<compile_context>
chip_gen: v7x
topology: tpu7x:2x2x1
jax: 0.10.0
libtpu: 0.0.40
codegen_flags: <defaults>
</compile_context>

<pallas_src>
import math

import jax
import jax.numpy as jnp
from jax.experimental import pallas as pl
from jax.experimental.pallas import tpu as pltpu

# small, TPU-friendly config (n_embd divisible by n_head, lane dim = 128)
N_EMBD = 128
N_HEAD = 4
HEAD_DIM = N_EMBD // N_HEAD
T_SEQ = 128
BATCH = 8
MLP_CHUNK = 128            # tile width over the 4C hidden dim
LN_EPS = 1e-5


def _layernorm(x, gamma, beta):
    # two-pass (centered) variance: robust when |mean| >> std
    mean = jnp.mean(x, axis=-1, keepdims=True)
    xc = x - mean
    var = jnp.mean(xc * xc, axis=-1, keepdims=True)
    inv = jax.lax.rsqrt(var + LN_EPS)
    return xc * inv * gamma + beta


def _gelu_tanh(x):
    c = math.sqrt(2.0 / math.pi)
    return 0.5 * x * (1.0 + jnp.tanh(c * (x + 0.044715 * x * x * x)))


def block_kernel(x_ref,
                 ln1_g_ref, ln1_b_ref,
                 w_attn_ref, b_attn_ref,
                 w_proj_ref, b_proj_ref,
                 ln2_g_ref, ln2_b_ref,
                 w_fc_ref, b_fc_ref,
                 w_proj2_ref, b_proj2_ref,
                 o_ref):
    S, T, C = x_ref.shape                    # (seqs_per_tile, T, n_embd)
    M = S * T
    D = C // N_HEAD
    bf16, f32 = jnp.bfloat16, jnp.float32

    x = x_ref[...].reshape(M, C)             # fold sequences into M (leading-dim merge, no relayout)

    # ---------------- x = x + attn(ln_1(x)) ----------------
    h = _layernorm(x, ln1_g_ref[...], ln1_b_ref[...]).astype(bf16)
    qkv = jnp.dot(h, w_attn_ref[...], preferred_element_type=f32)
    qkv = (qkv + b_attn_ref[...]).astype(bf16)          # (M, 3C) bf16; q columns pre-scaled by 1/sqrt(D)

    row = jax.lax.broadcasted_iota(jnp.int32, (T, T), 0)
    col = jax.lax.broadcasted_iota(jnp.int32, (T, T), 1)
    causal = row >= col

    head_outs = []
    for hd in range(N_HEAD):                 # static head loop; each iter is batched over sequences
        c0 = hd * D
        q = qkv[:, c0:c0 + D].reshape(S, T, D)
        k = qkv[:, C + c0:C + c0 + D].reshape(S, T, D)
        v = qkv[:, 2 * C + c0:2 * C + c0 + D].reshape(S, T, D)
        sc = jnp.einsum("sqd,skd->sqk", q, k, preferred_element_type=f32)   # (S, T, T)
        sc = jnp.where(causal, sc, -jnp.inf)
        m = jnp.max(sc, axis=-1, keepdims=True)
        p = jnp.exp(sc - m)
        p = p * pl.reciprocal(jnp.sum(p, axis=-1, keepdims=True), approx=True)
        o_h = jnp.einsum("sqk,skd->sqd", p.astype(bf16), v, preferred_element_type=f32)
        head_outs.append(o_h.astype(bf16))
    # merge heads once along lanes, then ONE full-K output projection matmul
    att = jnp.concatenate(head_outs, axis=-1).reshape(M, C)                 # (M, C) bf16
    y = jnp.dot(att, w_proj_ref[...], preferred_element_type=f32)           # (M, C) f32
    x1 = x + y + b_proj_ref[...]

    # ---------------- x = x + mlp(ln_2(x)) ----------------
    h2 = _layernorm(x1, ln2_g_ref[...], ln2_b_ref[...]).astype(bf16)
    hidden = w_fc_ref.shape[1]               # 4C
    mlp = None
    for c0 in range(0, hidden, MLP_CHUNK):   # tile the hidden dim: fc-chunk -> gelu -> proj2 partial
        f = jnp.dot(h2, w_fc_ref[:, c0:c0 + MLP_CHUNK], preferred_element_type=f32)
        f = _gelu_tanh(f + b_fc_ref[:, c0:c0 + MLP_CHUNK])
        part = jnp.dot(f.astype(bf16), w_proj2_ref[c0:c0 + MLP_CHUNK, :],
                       preferred_element_type=f32)
        mlp = part if mlp is None else mlp + part
    x2 = x1 + mlp + b_proj2_ref[...]

    o_ref[...] = x2.reshape(S, T, C).astype(o_ref.dtype)


PARAM_ORDER = ("ln1_g", "ln1_b", "w_attn", "b_attn", "w_proj", "b_proj",
               "ln2_g", "ln2_b", "w_fc", "b_fc", "w_proj2", "b_proj2")


def _replicated_spec(shape):
    nd = len(shape)
    # TODO(synk): pipeline_mode=pl.Buffered(1) for these constant weight blocks at real GPT-2 sizes.
    return pl.BlockSpec(shape, lambda i, nd=nd: (0,) * nd)


def _seqs_per_tile(batch, seq_len):
    """Per-generation grid sizing (review items): single-TC chips run one big step,
    multi-TC chips get >=2 parallel steps with ~256 rows each."""
    try:
        kind = jax.devices()[0].device_kind.lower()
    except Exception:
        kind = ""
    if ("v5" in kind) or ("v6" in kind):
        return batch                          # grid=(1,): the grid is a serial loop on 1 TC
    spt = max(1, 256 // seq_len)              # keep M ~ 256 rows to fill a 256-wide MXU
    while batch % spt:
        spt -= 1
    return spt


@jax.jit
def gpt2_block(x, params):
    B, T, C = x.shape
    spt = _seqs_per_tile(B, T)
    assert B % spt == 0

    # fold 1/sqrt(head_dim) into the q projection weights/bias (deletes the per-step q scaling)
    scale = 1.0 / math.sqrt(C // N_HEAD)
    w_attn = params["w_attn"]
    b_attn = params["b_attn"]
    w_attn = jnp.concatenate([w_attn[:, :C] * scale, w_attn[:, C:]], axis=1)
    b_attn = jnp.concatenate([b_attn[:, :C] * scale, b_attn[:, C:]], axis=1)
    p = dict(params)
    p["w_attn"], p["b_attn"] = w_attn, b_attn

    weights = [p[k] for k in PARAM_ORDER]
    in_specs = [pl.BlockSpec((spt, T, C), lambda i: (i, 0, 0))]
    in_specs += [_replicated_spec(w.shape) for w in weights]

    return pl.pallas_call(
        block_kernel,
        out_shape=jax.ShapeDtypeStruct((B, T, C), x.dtype),
        grid_spec=pltpu.PrefetchScalarGridSpec(
            num_scalar_prefetch=0,
            grid=(B // spt,),
            in_specs=in_specs,
            out_specs=pl.BlockSpec((spt, T, C), lambda i: (i, 0, 0)),
        ),
        compiler_params=pltpu.CompilerParams(
            dimension_semantics=("parallel",),          # shard row-tiles across TCs where available
            vmem_limit_bytes=32 * 1024 * 1024),
    )(x, *weights)


def init_params(key):
    ks = jax.random.split(key, 4)
    std = 0.02
    f32, bf16 = jnp.float32, jnp.bfloat16
    return {
        "ln1_g": jnp.ones((1, N_EMBD), f32),
        "ln1_b": jnp.zeros((1, N_EMBD), f32),
        # matmul weights stored in bf16 (MXU-native, half the HBM/VMEM bytes)
        "w_attn": (std * jax.random.normal(ks[0], (N_EMBD, 3 * N_EMBD))).astype(bf16),
        "b_attn": jnp.zeros((1, 3 * N_EMBD), f32),
        "w_proj": (std * jax.random.normal(ks[1], (N_EMBD, N_EMBD))).astype(bf16),
        "b_proj": jnp.zeros((1, N_EMBD), f32),
        "ln2_g": jnp.ones((1, N_EMBD), f32),
        "ln2_b": jnp.zeros((1, N_EMBD), f32),
        "w_fc": (std * jax.random.normal(ks[2], (N_EMBD, 4 * N_EMBD))).astype(bf16),
        "b_fc": jnp.zeros((1, 4 * N_EMBD), f32),
        "w_proj2": (std * jax.random.normal(ks[3], (4 * N_EMBD, N_EMBD))).astype(bf16),
        "b_proj2": jnp.zeros((1, N_EMBD), f32),
    }


def reference_block(x, p):
    # pure-JAX f32 reference using the same (bf16-rounded) weights, original scaling convention
    f32 = jnp.float32
    w_attn = p["w_attn"].astype(f32)
    w_proj = p["w_proj"].astype(f32)
    w_fc = p["w_fc"].astype(f32)
    w_proj2 = p["w_proj2"].astype(f32)

    def ln(z, g, b):
        mean = z.mean(-1, keepdims=True)
        var = ((z - mean) ** 2).mean(-1, keepdims=True)
        return (z - mean) / jnp.sqrt(var + LN_EPS) * g + b

    B, T, C = x.shape
    h = ln(x, p["ln1_g"][0], p["ln1_b"][0])
    qkv = h @ w_attn + p["b_attn"][0]
    q, k, v = jnp.split(qkv, 3, axis=-1)

    def heads(t):
        return t.reshape(B, T, N_HEAD, HEAD_DIM).transpose(0, 2, 1, 3)

    q, k, v = heads(q), heads(k), heads(v)
    s = jnp.einsum("bhqd,bhkd->bhqk", q, k) / math.sqrt(HEAD_DIM)
    mask = jnp.tril(jnp.ones((T, T), bool))
    s = jnp.where(mask, s, -jnp.inf)
    pa = jax.nn.softmax(s, axis=-1)
    y = jnp.einsum("bhqk,bhkd->bhqd", pa, v).transpose(0, 2, 1, 3).reshape(B, T, C)
    y = y @ w_proj + p["b_proj"][0]
    x = x + y

    h2 = ln(x, p["ln2_g"][0], p["ln2_b"][0])
    f = h2 @ w_fc + p["b_fc"][0]
    f = 0.5 * f * (1.0 + jnp.tanh(math.sqrt(2.0 / math.pi) * (f + 0.044715 * f ** 3)))
    f = f @ w_proj2 + p["b_proj2"][0]
    return x + f


if __name__ == "__main__":
    key = jax.random.PRNGKey(0)
    k_x, k_p = jax.random.split(key)
    x = jax.random.normal(k_x, (BATCH, T_SEQ, N_EMBD), dtype=jnp.float32)
    params = init_params(k_p)

    out = jax.block_until_ready(gpt2_block(x, params))

    ref = reference_block(x, params)
    max_err = float(jnp.max(jnp.abs(out - ref)))
    # bf16 matmul inputs/activations + approx reciprocal introduce a small, bounded error
    if not (max_err < 3e-2):
        raise AssertionError(f"mismatch vs reference, max abs err = {max_err}")

    print("KERNEL_OK")
</pallas_src>

<mosaic_0001>
module attributes {stable_mosaic.version = 11 : i64} {
  func.func @block_kernel(%arg0: i32, %arg1: memref<2x128x128xf32, #tpu.memory_space<vmem>>, %arg2: memref<1x128xf32, #tpu.memory_space<vmem>>, %arg3: memref<1x128xf32, #tpu.memory_space<vmem>>, %arg4: memref<128x384xbf16, #tpu.memory_space<vmem>>, %arg5: memref<1x384xf32, #tpu.memory_space<vmem>>, %arg6: memref<128x128xbf16, #tpu.memory_space<vmem>>, %arg7: memref<1x128xf32, #tpu.memory_space<vmem>>, %arg8: memref<1x128xf32, #tpu.memory_space<vmem>>, %arg9: memref<1x128xf32, #tpu.memory_space<vmem>>, %arg10: memref<128x512xbf16, #tpu.memory_space<vmem>>, %arg11: memref<1x512xf32, #tpu.memory_space<vmem>>, %arg12: memref<512x128xbf16, #tpu.memory_space<vmem>>, %arg13: memref<1x128xf32, #tpu.memory_space<vmem>>, %arg14: memref<2x128x128xf32, #tpu.memory_space<vmem>>) attributes {dimension_semantics = [#tpu.dimension_semantics<parallel>], iteration_bounds = array<i64: 4>, scalar_prefetch = 0 : i64, scratch_operands = 0 : i64, tpu.core_type = #tpu.core_type<tc>, window_params = [{transform_indices = @transform_0, window_bounds = array<i64: 2, 128, 128>}, {pipeline_mode = #tpu.pipeline_mode<synchronous>, transform_indices = @transform_1, window_bounds = array<i64: 1, 128>}, {pipeline_mode = #tpu.pipeline_mode<synchronous>, transform_indices = @transform_2, window_bounds = array<i64: 1, 128>}, {pipeline_mode = #tpu.pipeline_mode<synchronous>, transform_indices = @transform_3, window_bounds = array<i64: 128, 384>}, {pipeline_mode = #tpu.pipeline_mode<synchronous>, transform_indices = @transform_4, window_bounds = array<i64: 1, 384>}, {pipeline_mode = #tpu.pipeline_mode<synchronous>, transform_indices = @transform_5, window_bounds = array<i64: 128, 128>}, {pipeline_mode = #tpu.pipeline_mode<synchronous>, transform_indices = @transform_6, window_bounds = array<i64: 1, 128>}, {pipeline_mode = #tpu.pipeline_mode<synchronous>, transform_indices = @transform_7, window_bounds = array<i64: 1, 128>}, {pipeline_mode = #tpu.pipeline_mode<synchronous>, transform_indices = @transform_8, window_bounds = array<i64: 1, 128>}, {pipeline_mode = #tpu.pipeline_mode<synchronous>, transform_indices = @transform_9, window_bounds = array<i64: 128, 512>}, {pipeline_mode = #tpu.pipeline_mode<synchronous>, transform_indices = @transform_10, window_bounds = array<i64: 1, 512>}, {pipeline_mode = #tpu.pipeline_mode<synchronous>, transform_indices = @transform_11, window_bounds = array<i64: 512, 128>}, {pipeline_mode = #tpu.pipeline_mode<synchronous>, transform_indices = @transform_12, window_bounds = array<i64: 1, 128>}, {transform_indices = @transform_13, window_bounds = array<i64: 2, 128, 128>}]} {
    %c0 = arith.constant 0 : index
    %c0_0 = arith.constant 0 : index
    %c0_1 = arith.constant 0 : index
    %0 = vector.load %arg1[%c0, %c0_0, %c0_1] : memref<2x128x128xf32, #tpu.memory_space<vmem>>, vector<2x128x128xf32>
    %1 = vector.shape_cast %0 : vector<2x128x128xf32> to vector<256x128xf32>
    %c0_2 = arith.constant 0 : index
    %c0_3 = arith.constant 0 : index
    %2 = vector.load %arg2[%c0_2, %c0_3] : memref<1x128xf32, #tpu.memory_space<vmem>>, vector<1x128xf32>
    %c0_4 = arith.constant 0 : index
    %c0_5 = arith.constant 0 : index
    %3 = vector.load %arg3[%c0_4, %c0_5] : memref<1x128xf32, #tpu.memory_space<vmem>>, vector<1x128xf32>
    %cst = arith.constant dense<0.000000e+00> : vector<256xf32>
    %4 = vector.multi_reduction <add>, %1, %cst [1] : vector<256x128xf32> to vector<256xf32>
    %5 = vector.shape_cast %4 : vector<256xf32> to vector<256x1xf32>
    %cst_6 = arith.constant 1.280000e+02 : f32
    %6 = vector.broadcast %cst_6 : f32 to vector<256x1xf32>
    %7 = arith.divf %5, %6 : vector<256x1xf32>
    %8 = vector.broadcast %7 : vector<256x1xf32> to vector<256x128xf32>
    %9 = arith.subf %1, %8 : vector<256x128xf32>
    %10 = arith.mulf %9, %9 : vector<256x128xf32>
    %cst_7 = arith.constant dense<0.000000e+00> : vector<256xf32>
    %11 = vector.multi_reduction <add>, %10, %cst_7 [1] : vector<256x128xf32> to vector<256xf32>
    %12 = vector.shape_cast %11 : vector<256xf32> to vector<256x1xf32>
    %cst_8 = arith.constant 1.280000e+02 : f32
    %13 = vector.broadcast %cst_8 : f32 to vector<256x1xf32>
    %14 = arith.divf %12, %13 : vector<256x1xf32>
    %cst_9 = arith.constant 9.99999974E-6 : f32
    %15 = vector.broadcast %cst_9 : f32 to vector<256x1xf32>
    %16 = arith.addf %14, %15 : vector<256x1xf32>
    %17 = math.rsqrt %16 : vector<256x1xf32>
    %18 = vector.broadcast %17 : vector<256x1xf32> to vector<256x128xf32>
    %19 = arith.mulf %9, %18 : vector<256x128xf32>
    %20 = vector.broadcast %2 : vector<1x128xf32> to vector<256x128xf32>
    %21 = arith.mulf %19, %20 : vector<256x128xf32>
    %22 = vector.broadcast %3 : vector<1x128xf32> to vector<256x128xf32>
    %23 = arith.addf %21, %22 : vector<256x128xf32>
    %24 = arith.truncf %23 : vector<256x128xf32> to vector<256x128xbf16>
    %c0_10 = arith.constant 0 : index
    %c0_11 = arith.constant 0 : index
    %25 = vector.load %arg4[%c0_10, %c0_11] : memref<128x384xbf16, #tpu.memory_space<vmem>>, vector<128x384xbf16>
    %cst_12 = arith.constant dense<0.000000e+00> : vector<256x384xf32>
    %26 = tpu.matmul %24, %25, %cst_12 {dimension_numbers = #tpu.dot_dimension_numbers<[1], [0], [0], [1], [0, 0, 1, 1], [], []>} : vector<256x128xbf16>, vector<128x384xbf16>, vector<256x384xf32> -> vector<256x384xf32>
    %c0_13 = arith.constant 0 : index
    %c0_14 = arith.constant 0 : index
    %27 = vector.load %arg5[%c0_13, %c0_14] : memref<1x384xf32, #tpu.memory_space<vmem>>, vector<1x384xf32>
    %28 = vector.broadcast %27 : vector<1x384xf32> to vector<256x384xf32>
    %29 = arith.addf %26, %28 : vector<256x384xf32>
    %30 = arith.truncf %29 : vector<256x384xf32> to vector<256x384xbf16>
    %31 = tpu.iota {dimensions = array<i32: 0>} : vector<128x128xi32>
    %32 = tpu.iota {dimensions = array<i32: 1>} : vector<128x128xi32>
    %33 = arith.cmpi sge, %31, %32 : vector<128x128xi32>
    %34 = vector.extract_strided_slice %30 {offsets = [0, 0], sizes = [256, 32], strides = [1, 1]} : vector<256x384xbf16> to vector<256x32xbf16>
    %35 = vector.shape_cast %34 : vector<256x32xbf16> to vector<2x128x32xbf16>
    %36 = vector.extract_strided_slice %30 {offsets = [0, 128], sizes = [256, 32], strides = [1, 1]} : vector<256x384xbf16> to vector<256x32xbf16>
    %37 = vector.shape_cast %36 : vector<256x32xbf16> to vector<2x128x32xbf16>
    %38 = vector.extract_strided_slice %30 {offsets = [0, 256], sizes = [256, 32], strides = [1, 1]} : vector<256x384xbf16> to vector<256x32xbf16>
    %39 = vector.shape_cast %38 : vector<256x32xbf16> to vector<2x128x32xbf16>
    "tpu.trace_start"() <{level = 10 : i32, message = "sqd,skd->sqk"}> : () -> ()
    %cst_15 = arith.constant dense<0.000000e+00> : vector<2x128x128xf32>
    %40 = tpu.matmul %35, %37, %cst_15 {dimension_numbers = #tpu.dot_dimension_numbers<[2], [2], [1], [1], [0, 0, 0, 1, 1, 1], [0], [0]>} : vector<2x128x32xbf16>, vector<2x128x32xbf16>, vector<2x128x128xf32> -> vector<2x128x128xf32>
    %cst_16 = arith.constant 0xFF800000 : f32
    "tpu.trace_stop"() : () -> ()
    %41 = vector.shape_cast %33 : vector<128x128xi1> to vector<1x128x128xi1>
    %42 = vector.broadcast %41 : vector<1x128x128xi1> to vector<2x128x128xi1>
    %43 = vector.broadcast %cst_16 : f32 to vector<2x128x128xf32>
    %44 = arith.select %42, %40, %43 : vector<2x128x128xi1>, vector<2x128x128xf32>
    %cst_17 = arith.constant dense<0xFF800000> : vector<2x128xf32>
    %45 = vector.multi_reduction <maximumf>, %44, %cst_17 [2] : vector<2x128x128xf32> to vector<2x128xf32>
    %46 = vector.shape_cast %45 : vector<2x128xf32> to vector<2x128x1xf32>
    %47 = vector.broadcast %46 : vector<2x128x1xf32> to vector<2x128x128xf32>
    %48 = arith.subf %44, %47 : vector<2x128x128xf32>
    %49 = math.exp %48 : vector<2x128x128xf32>
    %cst_18 = arith.constant dense<0.000000e+00> : vector<2x128xf32>
    %50 = vector.multi_reduction <add>, %49, %cst_18 [2] : vector<2x128x128xf32> to vector<2x128xf32>
    %51 = vector.shape_cast %50 : vector<2x128xf32> to vector<2x128x1xf32>
    %52 = tpu.reciprocal %51 {approx = true} : vector<2x128x1xf32> -> vector<2x128x1xf32>
    %53 = vector.broadcast %52 : vector<2x128x1xf32> to vector<2x128x128xf32>
    %54 = arith.mulf %49, %53 : vector<2x128x128xf32>
    %55 = arith.truncf %54 : vector<2x128x128xf32> to vector<2x128x128xbf16>
    "tpu.trace_start"() <{level = 10 : i32, message = "sqk,skd->sqd"}> : () -> ()
    %cst_19 = arith.constant dense<0.000000e+00> : vector<2x128x32xf32>
    %56 = tpu.matmul %55, %39, %cst_19 {dimension_numbers = #tpu.dot_dimension_numbers<[2], [1], [1], [2], [0, 0, 0, 1, 1, 2], [0], [0]>} : vector<2x128x128xbf16>, vector<2x128x32xbf16>, vector<2x128x32xf32> -> vector<2x128x32xf32>
    "tpu.trace_stop"() : () -> ()
    %57 = arith.truncf %56 : vector<2x128x32xf32> to vector<2x128x32xbf16>
    %58 = vector.extract_strided_slice %30 {offsets = [0, 32], sizes = [256, 32], strides = [1, 1]} : vector<256x384xbf16> to vector<256x32xbf16>
    %59 = vector.shape_cast %58 : vector<256x32xbf16> to vector<2x128x32xbf16>
    %60 = vector.extract_strided_slice %30 {offsets = [0, 160], sizes = [256, 32], strides = [1, 1]} : vector<256x384xbf16> to vector<256x32xbf16>
    %61 = vector.shape_cast %60 : vector<256x32xbf16> to vector<2x128x32xbf16>
    %62 = vector.extract_strided_slice %30 {offsets = [0, 288], sizes = [256, 32], strides = [1, 1]} : vector<256x384xbf16> to vector<256x32xbf16>
    %63 = vector.shape_cast %62 : vector<256x32xbf16> to vector<2x128x32xbf16>
    "tpu.trace_start"() <{level = 10 : i32, message = "sqd,skd->sqk"}> : () -> ()
    %cst_20 = arith.constant dense<0.000000e+00> : vector<2x128x128xf32>
    %64 = tpu.matmul %59, %61, %cst_20 {dimension_numbers = #tpu.dot_dimension_numbers<[2], [2], [1], [1], [0, 0, 0, 1, 1, 1], [0], [0]>} : vector<2x128x32xbf16>, vector<2x128x32xbf16>, vector<2x128x128xf32> -> vector<2x128x128xf32>
    %cst_21 = arith.constant 0xFF800000 : f32
    "tpu.trace_stop"() : () -> ()
    %65 = vector.shape_cast %33 : vector<128x128xi1> to vector<1x128x128xi1>
    %66 = vector.broadcast %65 : vector<1x128x128xi1> to vector<2x128x128xi1>
    %67 = vector.broadcast %cst_21 : f32 to vector<2x128x128xf32>
    %68 = arith.select %66, %64, %67 : vector<2x128x128xi1>, vector<2x128x128xf32>
    %cst_22 = arith.constant dense<0xFF800000> : vector<2x128xf32>
    %69 = vector.multi_reduction <maximumf>, %68, %cst_22 [2] : vector<2x128x128xf32> to vector<2x128xf32>
    %70 = vector.shape_cast %69 : vector<2x128xf32> to vector<2x128x1xf32>
    %71 = vector.broadcast %70 : vector<2x128x1xf32> to vector<2x128x128xf32>
    %72 = arith.subf %68, %71 : vector<2x128x128xf32>
    %73 = math.exp %72 : vector<2x128x128xf32>
    %cst_23 = arith.constant dense<0.000000e+00> : vector<2x128xf32>
    %74 = vector.multi_reduction <add>, %73, %cst_23 [2] : vector<2x128x128xf32> to vector<2x128xf32>
    %75 = vector.shape_cast %74 : vector<2x128xf32> to vector<2x128x1xf32>
    %76 = tpu.reciprocal %75 {approx = true} : vector<2x128x1xf32> -> vector<2x128x1xf32>
    %77 = vector.broadcast %76 : vector<2x128x1xf32> to vector<2x128x128xf32>
    %78 = arith.mulf %73, %77 : vector<2x128x128xf32>
    %79 = arith.truncf %78 : vector<2x128x128xf32> to vector<2x128x128xbf16>
    "tpu.trace_start"() <{level = 10 : i32, message = "sqk,skd->sqd"}> : () -> ()
    %cst_24 = arith.constant dense<0.000000e+00> : vector<2x128x32xf32>
    %80 = tpu.matmul %79, %63, %cst_24 {dimension_numbers = #tpu.dot_dimension_numbers<[2], [1], [1], [2], [0, 0, 0, 1, 1, 2], [0], [0]>} : vector<2x128x128xbf16>, vector<2x128x32xbf16>, vector<2x128x32xf32> -> vector<2x128x32xf32>
    "tpu.trace_stop"() : () -> ()
    %81 = arith.truncf %80 : vector<2x128x32xf32> to vector<2x128x32xbf16>
    %82 = vector.extract_strided_slice %30 {offsets = [0, 64], sizes = [256, 32], strides = [1, 1]} : vector<256x384xbf16> to vector<256x32xbf16>
    %83 = vector.shape_cast %82 : vector<256x32xbf16> to vector<2x128x32xbf16>
    %84 = vector.extract_strided_slice %30 {offsets = [0, 192], sizes = [256, 32], strides = [1, 1]} : vector<256x384xbf16> to vector<256x32xbf16>
    %85 = vector.shape_cast %84 : vector<256x32xbf16> to vector<2x128x32xbf16>
    %86 = vector.extract_strided_slice %30 {offsets = [0, 320], sizes = [256, 32], strides = [1, 1]} : vector<256x384xbf16> to vector<256x32xbf16>
    %87 = vector.shape_cast %86 : vector<256x32xbf16> to vector<2x128x32xbf16>
    "tpu.trace_start"() <{level = 10 : i32, message = "sqd,skd->sqk"}> : () -> ()
    %cst_25 = arith.constant dense<0.000000e+00> : vector<2x128x128xf32>
    %88 = tpu.matmul %83, %85, %cst_25 {dimension_numbers = #tpu.dot_dimension_numbers<[2], [2], [1], [1], [0, 0, 0, 1, 1, 1], [0], [0]>} : vector<2x128x32xbf16>, vector<2x128x32xbf16>, vector<2x128x128xf32> -> vector<2x128x128xf32>
    %cst_26 = arith.constant 0xFF800000 : f32
    "tpu.trace_stop"() : () -> ()
    %89 = vector.shape_cast %33 : vector<128x128xi1> to vector<1x128x128xi1>
    %90 = vector.broadcast %89 : vector<1x128x128xi1> to vector<2x128x128xi1>
    %91 = vector.broadcast %cst_26 : f32 to vector<2x128x128xf32>
    %92 = arith.select %90, %88, %91 : vector<2x128x128xi1>, vector<2x128x128xf32>
    %cst_27 = arith.constant dense<0xFF800000> : vector<2x128xf32>
    %93 = vector.multi_reduction <maximumf>, %92, %cst_27 [2] : vector<2x128x128xf32> to vector<2x128xf32>
    %94 = vector.shape_cast %93 : vector<2x128xf32> to vector<2x128x1xf32>
    %95 = vector.broadcast %94 : vector<2x128x1xf32> to vector<2x128x128xf32>
    %96 = arith.subf %92, %95 : vector<2x128x128xf32>
    %97 = math.exp %96 : vector<2x128x128xf32>
    %cst_28 = arith.constant dense<0.000000e+00> : vector<2x128xf32>
    %98 = vector.multi_reduction <add>, %97, %cst_28 [2] : vector<2x128x128xf32> to vector<2x128xf32>
    %99 = vector.shape_cast %98 : vector<2x128xf32> to vector<2x128x1xf32>
    %100 = tpu.reciprocal %99 {approx = true} : vector<2x128x1xf32> -> vector<2x128x1xf32>
    %101 = vector.broadcast %100 : vector<2x128x1xf32> to vector<2x128x128xf32>
    %102 = arith.mulf %97, %101 : vector<2x128x128xf32>
    %103 = arith.truncf %102 : vector<2x128x128xf32> to vector<2x128x128xbf16>
    "tpu.trace_start"() <{level = 10 : i32, message = "sqk,skd->sqd"}> : () -> ()
    %cst_29 = arith.constant dense<0.000000e+00> : vector<2x128x32xf32>
    %104 = tpu.matmul %103, %87, %cst_29 {dimension_numbers = #tpu.dot_dimension_numbers<[2], [1], [1], [2], [0, 0, 0, 1, 1, 2], [0], [0]>} : vector<2x128x128xbf16>, vector<2x128x32xbf16>, vector<2x128x32xf32> -> vector<2x128x32xf32>
    "tpu.trace_stop"() : () -> ()
    %105 = arith.truncf %104 : vector<2x128x32xf32> to vector<2x128x32xbf16>
    %106 = vector.extract_strided_slice %30 {offsets = [0, 96], sizes = [256, 32], strides = [1, 1]} : vector<256x384xbf16> to vector<256x32xbf16>
    %107 = vector.shape_cast %106 : vector<256x32xbf16> to vector<2x128x32xbf16>
    %108 = vector.extract_strided_slice %30 {offsets = [0, 224], sizes = [256, 32], strides = [1, 1]} : vector<256x384xbf16> to vector<256x32xbf16>
    %109 = vector.shape_cast %108 : vector<256x32xbf16> to vector<2x128x32xbf16>
    %110 = vector.extract_strided_slice %30 {offsets = [0, 352], sizes = [256, 32], strides = [1, 1]} : vector<256x384xbf16> to vector<256x32xbf16>
    %111 = vector.shape_cast %110 : vector<256x32xbf16> to vector<2x128x32xbf16>
    "tpu.trace_start"() <{level = 10 : i32, message = "sqd,skd->sqk"}> : () -> ()
    %cst_30 = arith.constant dense<0.000000e+00> : vector<2x128x128xf32>
    %112 = tpu.matmul %107, %109, %cst_30 {dimension_numbers = #tpu.dot_dimension_numbers<[2], [2], [1], [1], [0, 0, 0, 1, 1, 1], [0], [0]>} : vector<2x128x32xbf16>, vector<2x128x32xbf16>, vector<2x128x128xf32> -> vector<2x128x128xf32>
    %cst_31 = arith.constant 0xFF800000 : f32
    "tpu.trace_stop"() : () -> ()
    %113 = vector.shape_cast %33 : vector<128x128xi1> to vector<1x128x128xi1>
    %114 = vector.broadcast %113 : vector<1x128x128xi1> to vector<2x128x128xi1>
    %115 = vector.broadcast %cst_31 : f32 to vector<2x128x128xf32>
    %116 = arith.select %114, %112, %115 : vector<2x128x128xi1>, vector<2x128x128xf32>
    %cst_32 = arith.constant dense<0xFF800000> : vector<2x128xf32>
    %117 = vector.multi_reduction <maximumf>, %116, %cst_32 [2] : vector<2x128x128xf32> to vector<2x128xf32>
    %118 = vector.shape_cast %117 : vector<2x128xf32> to vector<2x128x1xf32>
    %119 = vector.broadcast %118 : vector<2x128x1xf32> to vector<2x128x128xf32>
    %120 = arith.subf %116, %119 : vector<2x128x128xf32>
    %121 = math.exp %120 : vector<2x128x128xf32>
    %cst_33 = arith.constant dense<0.000000e+00> : vector<2x128xf32>
    %122 = vector.multi_reduction <add>, %121, %cst_33 [2] : vector<2x128x128xf32> to vector<2x128xf32>
    %123 = vector.shape_cast %122 : vector<2x128xf32> to vector<2x128x1xf32>
    %124 = tpu.reciprocal %123 {approx = true} : vector<2x128x1xf32> -> vector<2x128x1xf32>
    %125 = vector.broadcast %124 : vector<2x128x1xf32> to vector<2x128x128xf32>
    %126 = arith.mulf %121, %125 : vector<2x128x128xf32>
    %127 = arith.truncf %126 : vector<2x128x128xf32> to vector<2x128x128xbf16>
    "tpu.trace_start"() <{level = 10 : i32, message = "sqk,skd->sqd"}> : () -> ()
    %cst_34 = arith.constant dense<0.000000e+00> : vector<2x128x32xf32>
    %128 = tpu.matmul %127, %111, %cst_34 {dimension_numbers = #tpu.dot_dimension_numbers<[2], [1], [1], [2], [0, 0, 0, 1, 1, 2], [0], [0]>} : vector<2x128x128xbf16>, vector<2x128x32xbf16>, vector<2x128x32xf32> -> vector<2x128x32xf32>
    "tpu.trace_stop"() : () -> ()
    %129 = arith.truncf %128 : vector<2x128x32xf32> to vector<2x128x32xbf16>
    %130 = tpu.concatenate %57, %81, %105, %129 in 2 : vector<2x128x32xbf16>, vector<2x128x32xbf16>, vector<2x128x32xbf16>, vector<2x128x32xbf16> -> vector<2x128x128xbf16>
    %131 = vector.shape_cast %130 : vector<2x128x128xbf16> to vector<256x128xbf16>
    %c0_35 = arith.constant 0 : index
    %c0_36 = arith.constant 0 : index
    %132 = vector.load %arg6[%c0_35, %c0_36] : memref<128x128xbf16, #tpu.memory_space<vmem>>, vector<128x128xbf16>
    %cst_37 = arith.constant dense<0.000000e+00> : vector<256x128xf32>
    %133 = tpu.matmul %131, %132, %cst_37 {dimension_numbers = #tpu.dot_dimension_numbers<[1], [0], [0], [1], [0, 0, 1, 1], [], []>} : vector<256x128xbf16>, vector<128x128xbf16>, vector<256x128xf32> -> vector<256x128xf32>
    %134 = arith.addf %1, %133 : vector<256x128xf32>
    %c0_38 = arith.constant 0 : index
    %c0_39 = arith.constant 0 : index
    %135 = vector.load %arg7[%c0_38, %c0_39] : memref<1x128xf32, #tpu.memory_space<vmem>>, vector<1x128xf32>
    %136 = vector.broadcast %135 : vector<1x128xf32> to vector<256x128xf32>
    %137 = arith.addf %134, %136 : vector<256x128xf32>
    %c0_40 = arith.constant 0 : index
    %c0_41 = arith.constant 0 : index
    %138 = vector.load %arg8[%c0_40, %c0_41] : memref<1x128xf32, #tpu.memory_space<vmem>>, vector<1x128xf32>
    %c0_42 = arith.constant 0 : index
    %c0_43 = arith.constant 0 : index
    %139 = vector.load %arg9[%c0_42, %c0_43] : memref<1x128xf32, #tpu.memory_space<vmem>>, vector<1x128xf32>
    %cst_44 = arith.constant dense<0.000000e+00> : vector<256xf32>
    %140 = vector.multi_reduction <add>, %137, %cst_44 [1] : vector<256x128xf32> to vector<256xf32>
    %141 = vector.shape_cast %140 : vector<256xf32> to vector<256x1xf32>
    %cst_45 = arith.constant 1.280000e+02 : f32
    %142 = vector.broadcast %cst_45 : f32 to vector<256x1xf32>
    %143 = arith.divf %141, %142 : vector<256x1xf32>
    %144 = vector.broadcast %143 : vector<256x1xf32> to vector<256x128xf32>
    %145 = arith.subf %137, %144 : vector<256x128xf32>
    %146 = arith.mulf %145, %145 : vector<256x128xf32>
    %cst_46 = arith.constant dense<0.000000e+00> : vector<256xf32>
    %147 = vector.multi_reduction <add>, %146, %cst_46 [1] : vector<256x128xf32> to vector<256xf32>
    %148 = vector.shape_cast %147 : vector<256xf32> to vector<256x1xf32>
    %cst_47 = arith.constant 1.280000e+02 : f32
    %149 = vector.broadcast %cst_47 : f32 to vector<256x1xf32>
    %150 = arith.divf %148, %149 : vector<256x1xf32>
    %cst_48 = arith.constant 9.99999974E-6 : f32
    %151 = vector.broadcast %cst_48 : f32 to vector<256x1xf32>
    %152 = arith.addf %150, %151 : vector<256x1xf32>
    %153 = math.rsqrt %152 : vector<256x1xf32>
    %154 = vector.broadcast %153 : vector<256x1xf32> to vector<256x128xf32>
    %155 = arith.mulf %145, %154 : vector<256x128xf32>
    %156 = vector.broadcast %138 : vector<1x128xf32> to vector<256x128xf32>
    %157 = arith.mulf %155, %156 : vector<256x128xf32>
    %158 = vector.broadcast %139 : vector<1x128xf32> to vector<256x128xf32>
    %159 = arith.addf %157, %158 : vector<256x128xf32>
    %160 = arith.truncf %159 : vector<256x128xf32> to vector<256x128xbf16>
    %c0_49 = arith.constant 0 : index
    %c0_50 = arith.constant 0 : index
    %161 = vector.load %arg10[%c0_49, %c0_50] : memref<128x512xbf16, #tpu.memory_space<vmem>>, vector<128x128xbf16>
    %cst_51 = arith.constant dense<0.000000e+00> : vector<256x128xf32>
    %162 = tpu.matmul %160, %161, %cst_51 {dimension_numbers = #tpu.dot_dimension_numbers<[1], [0], [0], [1], [0, 0, 1, 1], [], []>} : vector<256x128xbf16>, vector<128x128xbf16>, vector<256x128xf32> -> vector<256x128xf32>
    %c0_52 = arith.constant 0 : index
    %c0_53 = arith.constant 0 : index
    %163 = vector.load %arg11[%c0_52, %c0_53] : memref<1x512xf32, #tpu.memory_space<vmem>>, vector<1x128xf32>
    %164 = vector.broadcast %163 : vector<1x128xf32> to vector<256x128xf32>
    %165 = arith.addf %162, %164 : vector<256x128xf32>
    %cst_54 = arith.constant 5.000000e-01 : f32
    %166 = vector.broadcast %cst_54 : f32 to vector<256x128xf32>
    %167 = arith.mulf %166, %165 : vector<256x128xf32>
    %cst_55 = arith.constant 4.471500e-02 : f32
    %168 = vector.broadcast %cst_55 : f32 to vector<256x128xf32>
    %169 = arith.mulf %168, %165 : vector<256x128xf32>
    %170 = arith.mulf %169, %165 : vector<256x128xf32>
    %171 = arith.mulf %170, %165 : vector<256x128xf32>
    %172 = arith.addf %165, %171 : vector<256x128xf32>
    %cst_56 = arith.constant 0.797884583 : f32
    %173 = vector.broadcast %cst_56 : f32 to vector<256x128xf32>
    %174 = arith.mulf %173, %172 : vector<256x128xf32>
    %175 = math.tanh %174 : vector<256x128xf32>
    %cst_57 = arith.constant 1.000000e+00 : f32
    %176 = vector.broadcast %cst_57 : f32 to vector<256x128xf32>
    %177 = arith.addf %176, %175 : vector<256x128xf32>
    %178 = arith.mulf %167, %177 : vector<256x128xf32>
    %179 = arith.truncf %178 : vector<256x128xf32> to vector<256x128xbf16>
    %c0_58 = arith.constant 0 : index
    %c0_59 = arith.constant 0 : index
    %180 = vector.load %arg12[%c0_58, %c0_59] : memref<512x128xbf16, #tpu.memory_space<vmem>>, vector<128x128xbf16>
    %cst_60 = arith.constant dense<0.000000e+00> : vector<256x128xf32>
    %181 = tpu.matmul %179, %180, %cst_60 {dimension_numbers = #tpu.dot_dimension_numbers<[1], [0], [0], [1], [0, 0, 1, 1], [], []>} : vector<256x128xbf16>, vector<128x128xbf16>, vector<256x128xf32> -> vector<256x128xf32>
    %c0_61 = arith.constant 0 : index
    %c128 = arith.constant 128 : index
    %182 = vector.load %arg10[%c0_61, %c128] : memref<128x512xbf16, #tpu.memory_space<vmem>>, vector<128x128xbf16>
    %cst_62 = arith.constant dense<0.000000e+00> : vector<256x128xf32>
    %183 = tpu.matmul %160, %182, %cst_62 {dimension_numbers = #tpu.dot_dimension_numbers<[1], [0], [0], [1], [0, 0, 1, 1], [], []>} : vector<256x128xbf16>, vector<128x128xbf16>, vector<256x128xf32> -> vector<256x128xf32>
    %c0_63 = arith.constant 0 : index
    %c128_64 = arith.constant 128 : index
    %184 = vector.load %arg11[%c0_63, %c128_64] : memref<1x512xf32, #tpu.memory_space<vmem>>, vector<1x128xf32>
    %185 = vector.broadcast %184 : vector<1x128xf32> to vector<256x128xf32>
    %186 = arith.addf %183, %185 : vector<256x128xf32>
    %cst_65 = arith.constant 5.000000e-01 : f32
    %187 = vector.broadcast %cst_65 : f32 to vector<256x128xf32>
    %188 = arith.mulf %187, %186 : vector<256x128xf32>
    %cst_66 = arith.constant 4.471500e-02 : f32
    %189 = vector.broadcast %cst_66 : f32 to vector<256x128xf32>
    %190 = arith.mulf %189, %186 : vector<256x128xf32>
    %191 = arith.mulf %190, %186 : vector<256x128xf32>
    %192 = arith.mulf %191, %186 : vector<256x128xf32>
    %193 = arith.addf %186, %192 : vector<256x128xf32>
    %cst_67 = arith.constant 0.797884583 : f32
    %194 = vector.broadcast %cst_67 : f32 to vector<256x128xf32>
    %195 = arith.mulf %194, %193 : vector<256x128xf32>
    %196 = math.tanh %195 : vector<256x128xf32>
    %cst_68 = arith.constant 1.000000e+00 : f32
    %197 = vector.broadcast %cst_68 : f32 to vector<256x128xf32>
    %198 = arith.addf %197, %196 : vector<256x128xf32>
    %199 = arith.mulf %188, %198 : vector<256x128xf32>
    %200 = arith.truncf %199 : vector<256x128xf32> to vector<256x128xbf16>
    %c128_69 = arith.constant 128 : index
    %c0_70 = arith.constant 0 : index
    %201 = vector.load %arg12[%c128_69, %c0_70] : memref<512x128xbf16, #tpu.memory_space<vmem>>, vector<128x128xbf16>
    %cst_71 = arith.constant dense<0.000000e+00> : vector<256x128xf32>
    %202 = tpu.matmul %200, %201, %cst_71 {dimension_numbers = #tpu.dot_dimension_numbers<[1], [0], [0], [1], [0, 0, 1, 1], [], []>} : vector<256x128xbf16>, vector<128x128xbf16>, vector<256x128xf32> -> vector<256x128xf32>
    %203 = arith.addf %181, %202 : vector<256x128xf32>
    %c0_72 = arith.constant 0 : index
    %c256 = arith.constant 256 : index
    %204 = vector.load %arg10[%c0_72, %c256] : memref<128x512xbf16, #tpu.memory_space<vmem>>, vector<128x128xbf16>
    %cst_73 = arith.constant dense<0.000000e+00> : vector<256x128xf32>
    %205 = tpu.matmul %160, %204, %cst_73 {dimension_numbers = #tpu.dot_dimension_numbers<[1], [0], [0], [1], [0, 0, 1, 1], [], []>} : vector<256x128xbf16>, vector<128x128xbf16>, vector<256x128xf32> -> vector<256x128xf32>
    %c0_74 = arith.constant 0 : index
    %c256_75 = arith.constant 256 : index
    %206 = vector.load %arg11[%c0_74, %c256_75] : memref<1x512xf32, #tpu.memory_space<vmem>>, vector<1x128xf32>
    %207 = vector.broadcast %206 : vector<1x128xf32> to vector<256x128xf32>
    %208 = arith.addf %205, %207 : vector<256x128xf32>
    %cst_76 = arith.constant 5.000000e-01 : f32
    %209 = vector.broadcast %cst_76 : f32 to vector<256x128xf32>
    %210 = arith.mulf %209, %208 : vector<256x128xf32>
    %cst_77 = arith.constant 4.471500e-02 : f32
    %211 = vector.broadcast %cst_77 : f32 to vector<256x128xf32>
    %212 = arith.mulf %211, %208 : vector<256x128xf32>
    %213 = arith.mulf %212, %208 : vector<256x128xf32>
    %214 = arith.mulf %213, %208 : vector<256x128xf32>
    %215 = arith.addf %208, %214 : vector<256x128xf32>
    %cst_78 = arith.constant 0.797884583 : f32
    %216 = vector.broadcast %cst_78 : f32 to vector<256x128xf32>
    %217 = arith.mulf %216, %215 : vector<256x128xf32>
    %218 = math.tanh %217 : vector<256x128xf32>
    %cst_79 = arith.constant 1.000000e+00 : f32
    %219 = vector.broadcast %cst_79 : f32 to vector<256x128xf32>
    %220 = arith.addf %219, %218 : vector<256x128xf32>
    %221 = arith.mulf %210, %220 : vector<256x128xf32>
    %222 = arith.truncf %221 : vector<256x128xf32> to vector<256x128xbf16>
    %c256_80 = arith.constant 256 : index
    %c0_81 = arith.constant 0 : index
    %223 = vector.load %arg12[%c256_80, %c0_81] : memref<512x128xbf16, #tpu.memory_space<vmem>>, vector<128x128xbf16>
    %cst_82 = arith.constant dense<0.000000e+00> : vector<256x128xf32>
    %224 = tpu.matmul %222, %223, %cst_82 {dimension_numbers = #tpu.dot_dimension_numbers<[1], [0], [0], [1], [0, 0, 1, 1], [], []>} : vector<256x128xbf16>, vector<128x128xbf16>, vector<256x128xf32> -> vector<256x128xf32>
    %225 = arith.addf %203, %224 : vector<256x128xf32>
    %c0_83 = arith.constant 0 : index
    %c384 = arith.constant 384 : index
    %226 = vector.load %arg10[%c0_83, %c384] : memref<128x512xbf16, #tpu.memory_space<vmem>>, vector<128x128xbf16>
    %cst_84 = arith.constant dense<0.000000e+00> : vector<256x128xf32>
    %227 = tpu.matmul %160, %226, %cst_84 {dimension_numbers = #tpu.dot_dimension_numbers<[1], [0], [0], [1], [0, 0, 1, 1], [], []>} : vector<256x128xbf16>, vector<128x128xbf16>, vector<256x128xf32> -> vector<256x128xf32>
    %c0_85 = arith.constant 0 : index
    %c384_86 = arith.constant 384 : index
    %228 = vector.load %arg11[%c0_85, %c384_86] : memref<1x512xf32, #tpu.memory_space<vmem>>, vector<1x128xf32>
    %229 = vector.broadcast %228 : vector<1x128xf32> to vector<256x128xf32>
    %230 = arith.addf %227, %229 : vector<256x128xf32>
    %cst_87 = arith.constant 5.000000e-01 : f32
    %231 = vector.broadcast %cst_87 : f32 to vector<256x128xf32>
    %232 = arith.mulf %231, %230 : vector<256x128xf32>
    %cst_88 = arith.constant 4.471500e-02 : f32
    %233 = vector.broadcast %cst_88 : f32 to vector<256x128xf32>
    %234 = arith.mulf %233, %230 : vector<256x128xf32>
    %235 = arith.mulf %234, %230 : vector<256x128xf32>
    %236 = arith.mulf %235, %230 : vector<256x128xf32>
    %237 = arith.addf %230, %236 : vector<256x128xf32>
    %cst_89 = arith.constant 0.797884583 : f32
    %238 = vector.broadcast %cst_89 : f32 to vector<256x128xf32>
    %239 = arith.mulf %238, %237 : vector<256x128xf32>
    %240 = math.tanh %239 : vector<256x128xf32>
    %cst_90 = arith.constant 1.000000e+00 : f32
    %241 = vector.broadcast %cst_90 : f32 to vector<256x128xf32>
    %242 = arith.addf %241, %240 : vector<256x128xf32>
    %243 = arith.mulf %232, %242 : vector<256x128xf32>
    %244 = arith.truncf %243 : vector<256x128xf32> to vector<256x128xbf16>
    %c384_91 = arith.constant 384 : index
    %c0_92 = arith.constant 0 : index
    %245 = vector.load %arg12[%c384_91, %c0_92] : memref<512x128xbf16, #tpu.memory_space<vmem>>, vector<128x128xbf16>
    %cst_93 = arith.constant dense<0.000000e+00> : vector<256x128xf32>
    %246 = tpu.matmul %244, %245, %cst_93 {dimension_numbers = #tpu.dot_dimension_numbers<[1], [0], [0], [1], [0, 0, 1, 1], [], []>} : vector<256x128xbf16>, vector<128x128xbf16>, vector<256x128xf32> -> vector<256x128xf32>
    %247 = arith.addf %225, %246 : vector<256x128xf32>
    %248 = arith.addf %137, %247 : vector<256x128xf32>
    %c0_94 = arith.constant 0 : index
    %c0_95 = arith.constant 0 : index
    %249 = vector.load %arg13[%c0_94, %c0_95] : memref<1x128xf32, #tpu.memory_space<vmem>>, vector<1x128xf32>
    %250 = vector.broadcast %249 : vector<1x128xf32> to vector<256x128xf32>
    %251 = arith.addf %248, %250 : vector<256x128xf32>
    %252 = vector.shape_cast %251 : vector<256x128xf32> to vector<2x128x128xf32>
    %c0_96 = arith.constant 0 : index
    %c0_97 = arith.constant 0 : index
    %c0_98 = arith.constant 0 : index
    %253 = vector.load %arg14[%c0_96, %c0_97, %c0_98] : memref<2x128x128xf32, #tpu.memory_space<vmem>>, vector<2x128x128xf32>
    tpu.vector_store %arg14[%c0_96, %c0_97, %c0_98], %252 {strides = array<i32>} : memref<2x128x128xf32, #tpu.memory_space<vmem>>, vector<2x128x128xf32>,
    return
  }
  func.func @transform_0(%arg0: i32) -> (i32, i32, i32) {
    %c0_i32 = arith.constant 0 : i32
    %c0_i32_0 = arith.constant 0 : i32
    %c0_i32_1 = arith.constant 0 : i32
    return %arg0, %c0_i32, %c0_i32_0 : i32, i32, i32
  }
  func.func @transform_1(%arg0: i32) -> (i32, i32) {
    %c0_i32 = arith.constant 0 : i32
    %c0_i32_0 = arith.constant 0 : i32
    %c0_i32_1 = arith.constant 0 : i32
    return %c0_i32, %c0_i32_0 : i32, i32
  }
  func.func @transform_2(%arg0: i32) -> (i32, i32) {
    %c0_i32 = arith.constant 0 : i32
    %c0_i32_0 = arith.constant 0 : i32
    %c0_i32_1 = arith.constant 0 : i32
    return %c0_i32, %c0_i32_0 : i32, i32
  }
  func.func @transform_3(%arg0: i32) -> (i32, i32) {
    %c0_i32 = arith.constant 0 : i32
    %c0_i32_0 = arith.constant 0 : i32
    %c0_i32_1 = arith.constant 0 : i32
    return %c0_i32, %c0_i32_0 : i32, i32
  }
  func.func @transform_4(%arg0: i32) -> (i32, i32) {
    %c0_i32 = arith.constant 0 : i32
    %c0_i32_0 = arith.constant 0 : i32
    %c0_i32_1 = arith.constant 0 : i32
    return %c0_i32, %c0_i32_0 : i32, i32
  }
  func.func @transform_5(%arg0: i32) -> (i32, i32) {
    %c0_i32 = arith.constant 0 : i32
    %c0_i32_0 = arith.constant 0 : i32
    %c0_i32_1 = arith.constant 0 : i32
    return %c0_i32, %c0_i32_0 : i32, i32
  }
  func.func @transform_6(%arg0: i32) -> (i32, i32) {
    %c0_i32 = arith.constant 0 : i32
    %c0_i32_0 = arith.constant 0 : i32
    %c0_i32_1 = arith.constant 0 : i32
    return %c0_i32, %c0_i32_0 : i32, i32
  }
  func.func @transform_7(%arg0: i32) -> (i32, i32) {
    %c0_i32 = arith.constant 0 : i32
    %c0_i32_0 = arith.constant 0 : i32
    %c0_i32_1 = arith.constant 0 : i32
    return %c0_i32, %c0_i32_0 : i32, i32
  }
  func.func @transform_8(%arg0: i32) -> (i32, i32) {
    %c0_i32 = arith.constant 0 : i32
    %c0_i32_0 = arith.constant 0 : i32
    %c0_i32_1 = arith.constant 0 : i32
    return %c0_i32, %c0_i32_0 : i32, i32
  }
  func.func @transform_9(%arg0: i32) -> (i32, i32) {
    %c0_i32 = arith.constant 0 : i32
    %c0_i32_0 = arith.constant 0 : i32
    %c0_i32_1 = arith.constant 0 : i32
    return %c0_i32, %c0_i32_0 : i32, i32
  }
  func.func @transform_10(%arg0: i32) -> (i32, i32) {
    %c0_i32 = arith.constant 0 : i32
    %c0_i32_0 = arith.constant 0 : i32
    %c0_i32_1 = arith.constant 0 : i32
    return %c0_i32, %c0_i32_0 : i32, i32
  }
  func.func @transform_11(%arg0: i32) -> (i32, i32) {
    %c0_i32 = arith.constant 0 : i32
    %c0_i32_0 = arith.constant 0 : i32
    %c0_i32_1 = arith.constant 0 : i32
    return %c0_i32, %c0_i32_0 : i32, i32
  }
  func.func @transform_12(%arg0: i32) -> (i32, i32) {
    %c0_i32 = arith.constant 0 : i32
    %c0_i32_0 = arith.constant 0 : i32
    %c0_i32_1 = arith.constant 0 : i32
    return %c0_i32, %c0_i32_0 : i32, i32
  }
  func.func @transform_13(%arg0: i32) -> (i32, i32, i32) {
    %c0_i32 = arith.constant 0 : i32
    %c0_i32_0 = arith.constant 0 : i32
    %c0_i32_1 = arith.constant 0 : i32
    return %arg0, %c0_i32, %c0_i32_0 : i32, i32, i32
  }
}

</mosaic_0001>

<llo_original>
// kernel: gpt2_block.1
$region0: #{gpt2_block.1}
  #allocation0 [shape = 'u32[]', space=smem, size = 0x4, offset = 0x4, fixed_abs, tag = 'smem constant byte address 0x4 - core index']
  #allocation1 [shape = 'u32[144,128]{1,0:T(1,128)}', space=vmem, size = 0x12000, scoped, tag = 'internal scratch']
  %s0 = inlined_call_operand.hbm [shape: f32[8,128,128], index: 0, kind: input, shape index: {}]
  %s1 = inlined_call_operand.vmem [shape: f32[1,128], index: 1, kind: input, shape index: {}]
  %s2 = inlined_call_operand.vmem [shape: f32[1,128], index: 2, kind: input, shape index: {}]
  %s3 = inlined_call_operand.vmem [shape: bf16[128,384], index: 3, kind: input, shape index: {}]
  %s4 = inlined_call_operand.vmem [shape: f32[1,384], index: 4, kind: input, shape index: {}]
  %s5 = inlined_call_operand.vmem [shape: bf16[128,128], index: 5, kind: input, shape index: {}]
  %s6 = inlined_call_operand.vmem [shape: f32[1,128], index: 6, kind: input, shape index: {}]
  %s7 = inlined_call_operand.vmem [shape: f32[1,128], index: 7, kind: input, shape index: {}]
  %s8 = inlined_call_operand.vmem [shape: f32[1,128], index: 8, kind: input, shape index: {}]
  %s9 = inlined_call_operand.vmem [shape: bf16[128,512], index: 9, kind: input, shape index: {}]
  %s10 = inlined_call_operand.vmem [shape: f32[1,512], index: 10, kind: input, shape index: {}]
  %s11 = inlined_call_operand.vmem [shape: bf16[512,128], index: 11, kind: input, shape index: {}]
  %s12 = inlined_call_operand.vmem [shape: f32[1,128], index: 12, kind: input, shape index: {}]
  %s13 = inlined_call_operand.hbm [shape: f32[8,128,128], index: 13, kind: output, shape index: {}]
  %s14 = sld [smem:[#allocation0]]
  $region89: #{gpt2_block.1} parent=0
    _
  %s16 = ssub.s32 1, %s14
  %s17 = scalar_select 0, %s16, %s14
  $region1: #{gpt2_block.1} parent=0
    #allocation2 [shape = 'u8[262144]{0}', space=vmem, size = 0x40000, scoped, tag = 'input window, operand 0']
    #allocation3 [shape = 's32[2]{0}', space=sflag, size = 0x8, scoped, tag = 'scoped memory for gpt2_block.1']
    #allocation4 [shape = 's32[2]{0}', space=sflag, size = 0x8, scoped, tag = 'scoped memory for gpt2_block.1']
    #allocation5 [shape = 'u8[262144]{0}', space=vmem, size = 0x40000, scoped, tag = 'output window, operand 0']
    %18 = vsyncpa [#allocation3], 0
    %s19 = scalar_lea.sflag [#allocation3], 1
    %20 = vsyncpa %s19, 0
    %21 = vsyncpa [#allocation4], 0
    %s22 = scalar_lea.sflag [#allocation4], 1
    %23 = vsyncpa %s22, 0
    loop: start=0, step=1, limit=6
    $region2: #{gpt2_block.1} parent=1 // loop_pre_header
      _
    $region3: #{gpt2_block.1} parent=1 // loop_header
      %s25 = sphi 0, %s29
      %p26 = scmp.ge.s32.totalorder %s25, 6
      %s35 = sphi 0, %s37
      %s38 = sphi 0, %s35
      %s39 = sphi 0, %s38
      %s55 = sphi 0, %s39
      %s59 = sphi 0, %s59
      %s61 = sphi 0, %s59
      %s62 = sphi 0, %s61
      %s76 = sphi 0, %s62
      %s80 = sphi 0, %s80
      %s82 = sphi 0, %s80
      %s83 = sphi 0, %s82
      %s97 = sphi 0, %s83
      %s101 = sphi 0, %s101
      %s103 = sphi 0, %s101
      %s104 = sphi 0, %s103
      %s118 = sphi 0, %s104
      %s122 = sphi 0, %s122
      %s124 = sphi 0, %s122
      %s125 = sphi 0, %s124
      %s139 = sphi 0, %s125
      %s143 = sphi 0, %s143
      %s145 = sphi 0, %s143
      %s146 = sphi 0, %s145
      %s160 = sphi 0, %s146
      %s164 = sphi 0, %s164
      %s166 = sphi 0, %s164
      %s167 = sphi 0, %s166
      %s181 = sphi 0, %s167
      %s185 = sphi 0, %s185
      %s187 = sphi 0, %s185
      %s188 = sphi 0, %s187
      %s202 = sphi 0, %s188
      %s206 = sphi 0, %s206
      %s208 = sphi 0, %s206
      %s209 = sphi 0, %s208
      %s223 = sphi 0, %s209
      %s227 = sphi 0, %s227
      %s229 = sphi 0, %s227
      %s230 = sphi 0, %s229
      %s244 = sphi 0, %s230
      %s248 = sphi 0, %s248
      %s250 = sphi 0, %s248
      %s251 = sphi 0, %s250
      %s265 = sphi 0, %s251
      %s269 = sphi 0, %s269
      %s271 = sphi 0, %s269
      %s272 = sphi 0, %s271
      %s286 = sphi 0, %s272
      %s290 = sphi 0, %s290
      %s292 = sphi 0, %s290
      %s293 = sphi 0, %s292
      %s307 = sphi 0, %s293
      %s313 = sphi 0, %s315
      %s316 = sphi 0, %s313
      %s317 = sphi 0, %s316
      %s333 = sphi 0, %s317
    $region4: #{gpt2_block.1} parent=1 // loop_header_branch
      %28 = sbr.rel (%p26) target = $region8
    $region5: #{gpt2_block.1} parent=1 // loop_body
      %s30 = ssub.s32 %s25, 1
      %s31 = ssub.s32 %s25, 2
      %s32 = sadd.s32 %s25, 1
      %s33 = ssub.s32 %s25, %s32
      %p34 = scmp.eq.s32.totalorder %s33, 0
      %s36 = sadd.s32 %s35, 1
      %s37 = scalar_select %p34, %s35, %s36
      %p40 = pneg %p34
      %p41 = scmp.eq.s32.totalorder %s25, 3
      %p42 = por %p40, %p41
      %p43 = scmp.ne.s32.totalorder %s35, %s38
      %p44 = scmp.eq.s32.totalorder %s25, 0
      %p45 = por %p43, %p44
      %p46 = scmp.ne.s32.totalorder %s35, %s38
      %p47 = scmp.eq.s32.totalorder %s30, 3
      %p48 = por %p46, %p47
      %p49 = scmp.ne.s32.totalorder %s38, %s39
      %p50 = scmp.eq.s32.totalorder %s30, 0
      %p51 = por %p49, %p50
      %p52 = scmp.ne.s32.totalorder %s38, %s39
      %p53 = scmp.eq.s32.totalorder %s31, 3
      %p54 = por %p52, %p53
      %p56 = scmp.ne.s32.totalorder %s39, %s55
      %p57 = scmp.eq.s32.totalorder %s31, 0
      %p58 = por %p56, %p57
      %s60 = sadd.s32 %s59, 1
      %p63 = scmp.eq.s32.totalorder %s25, 3
      %p64 = scmp.ne.s32.totalorder %s59, %s61
      %p65 = scmp.eq.s32.totalorder %s25, 0
      %p66 = por %p64, %p65
      %p67 = scmp.ne.s32.totalorder %s59, %s61
      %p68 = scmp.eq.s32.totalorder %s30, 3
      %p69 = por %p67, %p68
      %p70 = scmp.ne.s32.totalorder %s61, %s62
      %p71 = scmp.eq.s32.totalorder %s30, 0
      %p72 = por %p70, %p71
      %p73 = scmp.ne.s32.totalorder %s61, %s62
      %p74 = scmp.eq.s32.totalorder %s31, 3
      %p75 = por %p73, %p74
      %p77 = scmp.ne.s32.totalorder %s62, %s76
      %p78 = scmp.eq.s32.totalorder %s31, 0
      %p79 = por %p77, %p78
      %s81 = sadd.s32 %s80, 1
      %p84 = scmp.eq.s32.totalorder %s25, 3
      %p85 = scmp.ne.s32.totalorder %s80, %s82
      %p86 = scmp.eq.s32.totalorder %s25, 0
      %p87 = por %p85, %p86
      %p88 = scmp.ne.s32.totalorder %s80, %s82
      %p89 = scmp.eq.s32.totalorder %s30, 3
      %p90 = por %p88, %p89
      %p91 = scmp.ne.s32.totalorder %s82, %s83
      %p92 = scmp.eq.s32.totalorder %s30, 0
      %p93 = por %p91, %p92
      %p94 = scmp.ne.s32.totalorder %s82, %s83
      %p95 = scmp.eq.s32.totalorder %s31, 3
      %p96 = por %p94, %p95
      %p98 = scmp.ne.s32.totalorder %s83, %s97
      %p99 = scmp.eq.s32.totalorder %s31, 0
      %p100 = por %p98, %p99
      %s102 = sadd.s32 %s101, 1
      %p105 = scmp.eq.s32.totalorder %s25, 3
      %p106 = scmp.ne.s32.totalorder %s101, %s103
      %p107 = scmp.eq.s32.totalorder %s25, 0
      %p108 = por %p106, %p107
      %p109 = scmp.ne.s32.totalorder %s101, %s103
      %p110 = scmp.eq.s32.totalorder %s30, 3
      %p111 = por %p109, %p110
      %p112 = scmp.ne.s32.totalorder %s103, %s104
      %p113 = scmp.eq.s32.totalorder %s30, 0
      %p114 = por %p112, %p113
      %p115 = scmp.ne.s32.totalorder %s103, %s104
      %p116 = scmp.eq.s32.totalorder %s31, 3
      %p117 = por %p115, %p116
      %p119 = scmp.ne.s32.totalorder %s104, %s118
      %p120 = scmp.eq.s32.totalorder %s31, 0
      %p121 = por %p119, %p120
      %s123 = sadd.s32 %s122, 1
      %p126 = scmp.eq.s32.totalorder %s25, 3
      %p127 = scmp.ne.s32.totalorder %s122, %s124
      %p128 = scmp.eq.s32.totalorder %s25, 0
      %p129 = por %p127, %p128
      %p130 = scmp.ne.s32.totalorder %s122, %s124
      %p131 = scmp.eq.s32.totalorder %s30, 3
      %p132 = por %p130, %p131
      %p133 = scmp.ne.s32.totalorder %s124, %s125
      %p134 = scmp.eq.s32.totalorder %s30, 0
      %p135 = por %p133, %p134
      %p136 = scmp.ne.s32.totalorder %s124, %s125
      %p137 = scmp.eq.s32.totalorder %s31, 3
      %p138 = por %p136, %p137
      %p140 = scmp.ne.s32.totalorder %s125, %s139
      %p141 = scmp.eq.s32.totalorder %s31, 0
      %p142 = por %p140, %p141
      %s144 = sadd.s32 %s143, 1
      %p147 = scmp.eq.s32.totalorder %s25, 3
      %p148 = scmp.ne.s32.totalorder %s143, %s145
      %p149 = scmp.eq.s32.totalorder %s25, 0
      %p150 = por %p148, %p149
      %p151 = scmp.ne.s32.totalorder %s143, %s145
      %p152 = scmp.eq.s32.totalorder %s30, 3
      %p153 = por %p151, %p152
      %p154 = scmp.ne.s32.totalorder %s145, %s146
      %p155 = scmp.eq.s32.totalorder %s30, 0
      %p156 = por %p154, %p155
      %p157 = scmp.ne.s32.totalorder %s145, %s146
      %p158 = scmp.eq.s32.totalorder %s31, 3
      %p159 = por %p157, %p158
      %p161 = scmp.ne.s32.totalorder %s146, %s160
      %p162 = scmp.eq.s32.totalorder %s31, 0
      %p163 = por %p161, %p162
      %s165 = sadd.s32 %s164, 1
      %p168 = scmp.eq.s32.totalorder %s25, 3
      %p169 = scmp.ne.s32.totalorder %s164, %s166
      %p170 = scmp.eq.s32.totalorder %s25, 0
      %p171 = por %p169, %p170
      %p172 = scmp.ne.s32.totalorder %s164, %s166
      %p173 = scmp.eq.s32.totalorder %s30, 3
      %p174 = por %p172, %p173
      %p175 = scmp.ne.s32.totalorder %s166, %s167
      %p176 = scmp.eq.s32.totalorder %s30, 0
      %p177 = por %p175, %p176
      %p178 = scmp.ne.s32.totalorder %s166, %s167
      %p179 = scmp.eq.s32.totalorder %s31, 3
      %p180 = por %p178, %p179
      %p182 = scmp.ne.s32.totalorder %s167, %s181
      %p183 = scmp.eq.s32.totalorder %s31, 0
      %p184 = por %p182, %p183
      %s186 = sadd.s32 %s185, 1
      %p189 = scmp.eq.s32.totalorder %s25, 3
      %p190 = scmp.ne.s32.totalorder %s185, %s187
      %p191 = scmp.eq.s32.totalorder %s25, 0
      %p192 = por %p190, %p191
      %p193 = scmp.ne.s32.totalorder %s185, %s187
      %p194 = scmp.eq.s32.totalorder %s30, 3
      %p195 = por %p193, %p194
      %p196 = scmp.ne.s32.totalorder %s187, %s188
      %p197 = scmp.eq.s32.totalorder %s30, 0
      %p198 = por %p196, %p197
      %p199 = scmp.ne.s32.totalorder %s187, %s188
      %p200 = scmp.eq.s32.totalorder %s31, 3
      %p201 = por %p199, %p200
      %p203 = scmp.ne.s32.totalorder %s188, %s202
      %p204 = scmp.eq.s32.totalorder %s31, 0
      %p205 = por %p203, %p204
      %s207 = sadd.s32 %s206, 1
      %p210 = scmp.eq.s32.totalorder %s25, 3
      %p211 = scmp.ne.s32.totalorder %s206, %s208
      %p212 = scmp.eq.s32.totalorder %s25, 0
      %p213 = por %p211, %p212
      %p214 = scmp.ne.s32.totalorder %s206, %s208
      %p215 = scmp.eq.s32.totalorder %s30, 3
      %p216 = por %p214, %p215
      %p217 = scmp.ne.s32.totalorder %s208, %s209
      %p218 = scmp.eq.s32.totalorder %s30, 0
      %p219 = por %p217, %p218
      %p220 = scmp.ne.s32.totalorder %s208, %s209
      %p221 = scmp.eq.s32.totalorder %s31, 3
      %p222 = por %p220, %p221
      %p224 = scmp.ne.s32.totalorder %s209, %s223
      %p225 = scmp.eq.s32.totalorder %s31, 0
      %p226 = por %p224, %p225
      %s228 = sadd.s32 %s227, 1
      %p231 = scmp.eq.s32.totalorder %s25, 3
      %p232 = scmp.ne.s32.totalorder %s227, %s229
      %p233 = scmp.eq.s32.totalorder %s25, 0
      %p234 = por %p232, %p233
      %p235 = scmp.ne.s32.totalorder %s227, %s229
      %p236 = scmp.eq.s32.totalorder %s30, 3
      %p237 = por %p235, %p236
      %p238 = scmp.ne.s32.totalorder %s229, %s230
      %p239 = scmp.eq.s32.totalorder %s30, 0
      %p240 = por %p238, %p239
      %p241 = scmp.ne.s32.totalorder %s229, %s230
      %p242 = scmp.eq.s32.totalorder %s31, 3
      %p243 = por %p241, %p242
      %p245 = scmp.ne.s32.totalorder %s230, %s244
      %p246 = scmp.eq.s32.totalorder %s31, 0
      %p247 = por %p245, %p246
      %s249 = sadd.s32 %s248, 1
      %p252 = scmp.eq.s32.totalorder %s25, 3
      %p253 = scmp.ne.s32.totalorder %s248, %s250
      %p254 = scmp.eq.s32.totalorder %s25, 0
      %p255 = por %p253, %p254
      %p256 = scmp.ne.s32.totalorder %s248, %s250
      %p257 = scmp.eq.s32.totalorder %s30, 3
      %p258 = por %p256, %p257
      %p259 = scmp.ne.s32.totalorder %s250, %s251
      %p260 = scmp.eq.s32.totalorder %s30, 0
      %p261 = por %p259, %p260
      %p262 = scmp.ne.s32.totalorder %s250, %s251
      %p263 = scmp.eq.s32.totalorder %s31, 3
      %p264 = por %p262, %p263
      %p266 = scmp.ne.s32.totalorder %s251, %s265
      %p267 = scmp.eq.s32.totalorder %s31, 0
      %p268 = por %p266, %p267
      %s270 = sadd.s32 %s269, 1
      %p273 = scmp.eq.s32.totalorder %s25, 3
      %p274 = scmp.ne.s32.totalorder %s269, %s271
      %p275 = scmp.eq.s32.totalorder %s25, 0
      %p276 = por %p274, %p275
      %p277 = scmp.ne.s32.totalorder %s269, %s271
      %p278 = scmp.eq.s32.totalorder %s30, 3
      %p279 = por %p277, %p278
      %p280 = scmp.ne.s32.totalorder %s271, %s272
      %p281 = scmp.eq.s32.totalorder %s30, 0
      %p282 = por %p280, %p281
      %p283 = scmp.ne.s32.totalorder %s271, %s272
      %p284 = scmp.eq.s32.totalorder %s31, 3
      %p285 = por %p283, %p284
      %p287 = scmp.ne.s32.totalorder %s272, %s286
      %p288 = scmp.eq.s32.totalorder %s31, 0
      %p289 = por %p287, %p288
      %s291 = sadd.s32 %s290, 1
      %p294 = scmp.eq.s32.totalorder %s25, 3
      %p295 = scmp.ne.s32.totalorder %s290, %s292
      %p296 = scmp.eq.s32.totalorder %s25, 0
      %p297 = por %p295, %p296
      %p298 = scmp.ne.s32.totalorder %s290, %s292
      %p299 = scmp.eq.s32.totalorder %s30, 3
      %p300 = por %p298, %p299
      %p301 = scmp.ne.s32.totalorder %s292, %s293
      %p302 = scmp.eq.s32.totalorder %s30, 0
      %p303 = por %p301, %p302
      %p304 = scmp.ne.s32.totalorder %s292, %s293
      %p305 = scmp.eq.s32.totalorder %s31, 3
      %p306 = por %p304, %p305
      %p308 = scmp.ne.s32.totalorder %s293, %s307
      %p309 = scmp.eq.s32.totalorder %s31, 0
      %p310 = por %p308, %p309
      %s311 = ssub.s32 %s25, %s32
      %p312 = scmp.eq.s32.totalorder %s311, 0
      %s314 = sadd.s32 %s313, 1
      %s315 = scalar_select %p312, %s313, %s314
      %p318 = pneg %p312
      %p319 = scmp.eq.s32.totalorder %s25, 3
      %p320 = por %p318, %p319
      %p321 = scmp.ne.s32.totalorder %s313, %s316
      %p322 = scmp.eq.s32.totalorder %s25, 0
      %p323 = por %p321, %p322
      %p324 = scmp.ne.s32.totalorder %s313, %s316
      %p325 = scmp.eq.s32.totalorder %s30, 3
      %p326 = por %p324, %p325
      %p327 = scmp.ne.s32.totalorder %s316, %s317
      %p328 = scmp.eq.s32.totalorder %s30, 0
      %p329 = por %p327, %p328
      %p330 = scmp.ne.s32.totalorder %s316, %s317
      %p331 = scmp.eq.s32.totalorder %s31, 3
      %p332 = por %p330, %p331
      %p334 = scmp.ne.s32.totalorder %s317, %s333
      %p335 = scmp.eq.s32.totalorder %s31, 0
      %p336 = por %p334, %p335
      %p337 = scmp.le.s32.totalorder 1, %s25
      %p338 = scmp.lt.s32.totalorder %s25, 5
      %p339 = pnand %p337, %p338
      %p340 = pneg %p339
      // Predicated region
      $region9: #{gpt2_block.1} parent=5 // pred_check
        _
      $region10: #{gpt2_block.1} parent=5 // pred_check_branch
        %342 = sbr.rel (%p339) target = $region12
      $region11: #{gpt2_block.1} parent=5 // pred_region
        %s343 = ssub.s32 %s25, 1
        // Predicated region
        $region13: #{gpt2_block.1} parent=11 // pred_check
          %p344 = pneg %p72
        $region14: #{gpt2_block.1} parent=11 // pred_check_branch
          %346 = sbr.rel (%p344) target = $region16
        $region15: #{gpt2_block.1} parent=11 // pred_region
          _
        $region16: #{gpt2_block.1} parent=11 // pred_fallthru
          _
        // Predicated region
        $region17: #{gpt2_block.1} parent=11 // pred_check
          %p347 = pneg %p93
        $region18: #{gpt2_block.1} parent=11 // pred_check_branch
          %349 = sbr.rel (%p347) target = $region20
        $region19: #{gpt2_block.1} parent=11 // pred_region
          _
        $region20: #{gpt2_block.1} parent=11 // pred_fallthru
          _
        // Predicated region
        $region21: #{gpt2_block.1} parent=11 // pred_check
          %p350 = pneg %p114
        $region22: #{gpt2_block.1} parent=11 // pred_check_branch
          %352 = sbr.rel (%p350) target = $region24
        $region23: #{gpt2_block.1} parent=11 // pred_region
          _
        $region24: #{gpt2_block.1} parent=11 // pred_fallthru
          _
        // Predicated region
        $region25: #{gpt2_block.1} parent=11 // pred_check
          %p353 = pneg %p135
        $region26: #{gpt2_block.1} parent=11 // pred_check_branch
          %355 = sbr.rel (%p353) target = $region28
        $region27: #{gpt2_block.1} parent=11 // pred_region
          _
        $region28: #{gpt2_block.1} parent=11 // pred_fallthru
          _
        // Predicated region
        $region29: #{gpt2_block.1} parent=11 // pred_check
          %p356 = pneg %p156
        $region30: #{gpt2_block.1} parent=11 // pred_check_branch
          %358 = sbr.rel (%p356) target = $region32
        $region31: #{gpt2_block.1} parent=11 // pred_region
          _
        $region32: #{gpt2_block.1} parent=11 // pred_fallthru
          _
        // Predicated region
        $region33: #{gpt2_block.1} parent=11 // pred_check
          %p359 = pneg %p177
        $region34: #{gpt2_block.1} parent=11 // pred_check_branch
          %361 = sbr.rel (%p359) target = $region36
        $region35: #{gpt2_block.1} parent=11 // pred_region
          _
        $region36: #{gpt2_block.1} parent=11 // pred_fallthru
          _
        // Predicated region
        $region37: #{gpt2_block.1} parent=11 // pred_check
          %p362 = pneg %p198
        $region38: #{gpt2_block.1} parent=11 // pred_check_branch
          %364 = sbr.rel (%p362) target = $region40
        $region39: #{gpt2_block.1} parent=11 // pred_region
          _
        $region40: #{gpt2_block.1} parent=11 // pred_fallthru
          _
        // Predicated region
        $region41: #{gpt2_block.1} parent=11 // pred_check
          %p365 = pneg %p219
        $region42: #{gpt2_block.1} parent=11 // pred_check_branch
          %367 = sbr.rel (%p365) target = $region44
        $region43: #{gpt2_block.1} parent=11 // pred_region
          _
        $region44: #{gpt2_block.1} parent=11 // pred_fallthru
          _
        // Predicated region
        $region45: #{gpt2_block.1} parent=11 // pred_check
          %p368 = pneg %p240
        $region46: #{gpt2_block.1} parent=11 // pred_check_branch
          %370 = sbr.rel (%p368) target = $region48
        $region47: #{gpt2_block.1} parent=11 // pred_region
          _
        $region48: #{gpt2_block.1} parent=11 // pred_fallthru
          _
        // Predicated region
        $region49: #{gpt2_block.1} parent=11 // pred_check
          %p371 = pneg %p261
        $region50: #{gpt2_block.1} parent=11 // pred_check_branch
          %373 = sbr.rel (%p371) target = $region52
        $region51: #{gpt2_block.1} parent=11 // pred_region
          _
        $region52: #{gpt2_block.1} parent=11 // pred_fallthru
          _
        // Predicated region
        $region53: #{gpt2_block.1} parent=11 // pred_check
          %p374 = pneg %p282
        $region54: #{gpt2_block.1} parent=11 // pred_check_branch
          %376 = sbr.rel (%p374) target = $region56
        $region55: #{gpt2_block.1} parent=11 // pred_region
          _
        $region56: #{gpt2_block.1} parent=11 // pred_fallthru
          _
        // Predicated region
        $region57: #{gpt2_block.1} parent=11 // pred_check
          %p377 = pneg %p303
        $region58: #{gpt2_block.1} parent=11 // pred_check_branch
          %379 = sbr.rel (%p377) target = $region60
        $region59: #{gpt2_block.1} parent=11 // pred_region
          _
        $region60: #{gpt2_block.1} parent=11 // pred_fallthru
          _
      $region12: #{gpt2_block.1} parent=5 // pred_fallthru
        _
      %p380 = scmp.lt.s32.totalorder %s25, 4
      // Predicated region
      $region61: #{gpt2_block.1} parent=5 // pred_check
        %p381 = pneg %p380
      $region62: #{gpt2_block.1} parent=5 // pred_check_branch
        %383 = sbr.rel (%p381) target = $region64
      $region63: #{gpt2_block.1} parent=5 // pred_region
        // Predicated region
        $region65: #{gpt2_block.1} parent=63 // pred_check
          %p384 = pneg %p45
        $region66: #{gpt2_block.1} parent=63 // pred_check_branch
          %386 = sbr.rel (%p384) target = $region68
        $region67: #{gpt2_block.1} parent=63 // pred_region
          %s387 = sand.u32 %s35, 1
          %s388 = scalar_lea.sflag [#allocation3], %s387
          %s389 = sand.u32 %s35, 1
          %s390 = smul.addr %s389, 256
          %s391 = scalar_lea.vmem [#allocation2], %s390
          %s392 = smul.u32 2, %s25
          %s394 = ssub.s32 4096, 4096
          %395 = vsyncadd %s388, %s394
          %s396 = smul.addr %s392, 16
          %s397 = smul.addr %s396, 128
          %s398 = scalar_lea.hbm %s0, %s397
          %s399 = sshll.u32 %s391, 4
          %s400 = int_to_ptr.vmem [resolvable:$true] %s399
          %405 = dma.hbm_to_vmem [thread:$0]  %s398, 4096, %s400, %s388, 128, 128, 8
        $region68: #{gpt2_block.1} parent=63 // pred_fallthru
          _
      $region64: #{gpt2_block.1} parent=5 // pred_fallthru
        _
      %p406 = scmp.le.s32.totalorder 1, %s25
      %p407 = scmp.lt.s32.totalorder %s25, 5
      %p408 = pnand %p406, %p407
      %p409 = pneg %p408
      // Predicated region
      $region69: #{gpt2_block.1} parent=5 // pred_check
        _
      $region70: #{gpt2_block.1} parent=5 // pred_check_branch
        %411 = sbr.rel (%p408) target = $region72
      $region71: #{gpt2_block.1} parent=5 // pred_region
        %s412 = ssub.s32 %s25, 1
        %s413 = sand.u32 %s38, 1
        %s414 = scalar_lea.sflag [#allocation3], %s413
        %s415 = sand.u32 %s38, 1
        %s416 = smul.addr %s415, 256
        %s417 = scalar_lea.vmem [#allocation2], %s416
        // Predicated region
        $region73: #{gpt2_block.1} parent=71 // pred_check
          %p418 = pneg %p51
        $region74: #{gpt2_block.1} parent=71 // pred_check_branch
          %420 = sbr.rel (%p418) target = $region76
        $region75: #{gpt2_block.1} parent=71 // pred_region
          %421 = dma.done %s414, 4096
        $region76: #{gpt2_block.1} parent=71 // pred_fallthru
          _
        %s422 = sand.u32 %s38, 1
        %s423 = scalar_lea.sflag [#allocation3], %s422
        %s424 = sand.u32 %s38, 1
        %s425 = smul.addr %s424, 256
        %s426 = scalar_lea.vmem [#allocation2], %s425
        %p427 = pneg %p51
        %p428 = pneg %p48
        %p429 = pneg %p72
        %p430 = pneg %p69
        %p431 = pneg %p93
        %p432 = pneg %p90
        %p433 = pneg %p114
        %p434 = pneg %p111
        %p435 = pneg %p135
        %p436 = pneg %p132
        %p437 = pneg %p156
        %p438 = pneg %p153
        %p439 = pneg %p177
        %p440 = pneg %p174
        %p441 = pneg %p198
        %p442 = pneg %p195
        %p443 = pneg %p219
        %p444 = pneg %p216
        %p445 = pneg %p240
        %p446 = pneg %p237
        %p447 = pneg %p261
        %p448 = pneg %p258
        %p449 = pneg %p282
        %p450 = pneg %p279
        %p451 = pneg %p303
        %p452 = pneg %p300
        %p453 = pneg %p329
        %p454 = pneg %p326
        %s455 = sand.u32 %s316, 1
        %s456 = scalar_lea.sflag [#allocation4], %s455
        %s457 = sand.u32 %s316, 1
        %s458 = smul.addr %s457, 256
        %s459 = scalar_lea.vmem [#allocation5], %s458
        %s460 = smul.u32 2, %s30
        %s461 = smul.u32 2, %s30
        %v463 = vld [vmem:[%s417] sm:$0xff]
        %v464 = vld [vmem:[%s417 + $0x8] sm:$0xff]
        %v465 = vld [vmem:[%s417 + $0x10] sm:$0xff]
        %v466 = vld [vmem:[%s417 + $0x18] sm:$0xff]
        %v467 = vld [vmem:[%s417 + $0x20] sm:$0xff]
        %v468 = vld [vmem:[%s417 + $0x28] sm:$0xff]
        %v469 = vld [vmem:[%s417 + $0x30] sm:$0xff]
        %v470 = vld [vmem:[%s417 + $0x38] sm:$0xff]
        %v471 = vld [vmem:[%s417 + $0x40] sm:$0xff]
        %v472 = vld [vmem:[%s417 + $0x48] sm:$0xff]
        %v473 = vld [vmem:[%s417 + $0x50] sm:$0xff]
        %v474 = vld [vmem:[%s417 + $0x58] sm:$0xff]
        %v475 = vld [vmem:[%s417 + $0x60] sm:$0xff]
        %v476 = vld [vmem:[%s417 + $0x68] sm:$0xff]
        %v477 = vld [vmem:[%s417 + $0x70] sm:$0xff]
        %v478 = vld [vmem:[%s417 + $0x78] sm:$0xff]
        %v479 = vld [vmem:[%s417 + $0x80] sm:$0xff]
        %v480 = vld [vmem:[%s417 + $0x88] sm:$0xff]
        %v481 = vld [vmem:[%s417 + $0x90] sm:$0xff]
        %v482 = vld [vmem:[%s417 + $0x98] sm:$0xff]
        %v483 = vld [vmem:[%s417 + $0xa0] sm:$0xff]
        %v484 = vld [vmem:[%s417 + $0xa8] sm:$0xff]
        %v485 = vld [vmem:[%s417 + $0xb0] sm:$0xff]
        %v486 = vld [vmem:[%s417 + $0xb8] sm:$0xff]
        %v487 = vld [vmem:[%s417 + $0xc0] sm:$0xff]
        %v488 = vld [vmem:[%s417 + $0xc8] sm:$0xff]
        %v489 = vld [vmem:[%s417 + $0xd0] sm:$0xff]
        %v490 = vld [vmem:[%s417 + $0xd8] sm:$0xff]
        %v491 = vld [vmem:[%s417 + $0xe0] sm:$0xff]
        %v492 = vld [vmem:[%s417 + $0xe8] sm:$0xff]
        %v493 = vld [vmem:[%s417 + $0xf0] sm:$0xff]
        %v494 = vld [vmem:[%s417 + $0xf8] sm:$0xff]
        %v495 = vld [vmem:[%s1] sm:$0x1]
        %v496 = vld [vmem:[%s2] sm:$0x1]
        %497 = vadd.xlane.f32.xlu0 %v463
        %v498 = vpop.xlane.xlu0 %497
        %499 = vadd.xlane.f32.xlu0 %v464
        %v500 = vpop.xlane.xlu0 %499
        %501 = vadd.xlane.f32.xlu0 %v465
        %v502 = vpop.xlane.xlu0 %501
        %503 = vadd.xlane.f32.xlu0 %v466
        %v504 = vpop.xlane.xlu0 %503
        %505 = vadd.xlane.f32.xlu0 %v467
        %v506 = vpop.xlane.xlu0 %505
        %507 = vadd.xlane.f32.xlu0 %v468
        %v508 = vpop.xlane.xlu0 %507
        %509 = vadd.xlane.f32.xlu0 %v469
        %v510 = vpop.xlane.xlu0 %509
        %511 = vadd.xlane.f32.xlu0 %v470
        %v512 = vpop.xlane.xlu0 %511
        %513 = vadd.xlane.f32.xlu0 %v471
        %v514 = vpop.xlane.xlu0 %513
        %515 = vadd.xlane.f32.xlu0 %v472
        %v516 = vpop.xlane.xlu0 %515
        %517 = vadd.xlane.f32.xlu0 %v473
        %v518 = vpop.xlane.xlu0 %517
        %519 = vadd.xlane.f32.xlu0 %v474
        %v520 = vpop.xlane.xlu0 %519
        %521 = vadd.xlane.f32.xlu0 %v475
        %v522 = vpop.xlane.xlu0 %521
        %523 = vadd.xlane.f32.xlu0 %v476
        %v524 = vpop.xlane.xlu0 %523
        %525 = vadd.xlane.f32.xlu0 %v477
        %v526 = vpop.xlane.xlu0 %525
        %527 = vadd.xlane.f32.xlu0 %v478
        %v528 = vpop.xlane.xlu0 %527
        %529 = vadd.xlane.f32.xlu0 %v479
        %v530 = vpop.xlane.xlu0 %529
        %531 = vadd.xlane.f32.xlu0 %v480
        %v532 = vpop.xlane.xlu0 %531
        %533 = vadd.xlane.f32.xlu0 %v481
        %v534 = vpop.xlane.xlu0 %533
        %535 = vadd.xlane.f32.xlu0 %v482
        %v536 = vpop.xlane.xlu0 %535
        %537 = vadd.xlane.f32.xlu0 %v483
        %v538 = vpop.xlane.xlu0 %537
        %539 = vadd.xlane.f32.xlu0 %v484
        %v540 = vpop.xlane.xlu0 %539
        %541 = vadd.xlane.f32.xlu0 %v485
        %v542 = vpop.xlane.xlu0 %541
        %543 = vadd.xlane.f32.xlu0 %v486
        %v544 = vpop.xlane.xlu0 %543
        %545 = vadd.xlane.f32.xlu0 %v487
        %v546 = vpop.xlane.xlu0 %545
        %547 = vadd.xlane.f32.xlu0 %v488
        %v548 = vpop.xlane.xlu0 %547
        %549 = vadd.xlane.f32.xlu0 %v489
        %v550 = vpop.xlane.xlu0 %549
        %551 = vadd.xlane.f32.xlu0 %v490
        %v552 = vpop.xlane.xlu0 %551
        %553 = vadd.xlane.f32.xlu0 %v491
        %v554 = vpop.xlane.xlu0 %553
        %555 = vadd.xlane.f32.xlu0 %v492
        %v556 = vpop.xlane.xlu0 %555
        %557 = vadd.xlane.f32.xlu0 %v493
        %v558 = vpop.xlane.xlu0 %557
        %559 = vadd.xlane.f32.xlu0 %v494
        %v560 = vpop.xlane.xlu0 %559
        %v561 = vrcp.pop 128.0
        %v562 = vmul.f32 %v498, %v561
        %v563 = vmul.f32 %v500, %v561
        %v564 = vmul.f32 %v502, %v561
        %v565 = vmul.f32 %v504, %v561
        %v566 = vmul.f32 %v506, %v561
        %v567 = vmul.f32 %v508, %v561
        %v568 = vmul.f32 %v510, %v561
        %v569 = vmul.f32 %v512, %v561
        %v570 = vmul.f32 %v514, %v561
        %v571 = vmul.f32 %v516, %v561
        %v572 = vmul.f32 %v518, %v561
        %v573 = vmul.f32 %v520, %v561
        %v574 = vmul.f32 %v522, %v561
        %v575 = vmul.f32 %v524, %v561
        %v576 = vmul.f32 %v526, %v561
        %v577 = vmul.f32 %v528, %v561
        %v578 = vmul.f32 %v530, %v561
        %v579 = vmul.f32 %v532, %v561
        %v580 = vmul.f32 %v534, %v561
        %v581 = vmul.f32 %v536, %v561
        %v582 = vmul.f32 %v538, %v561
        %v583 = vmul.f32 %v540, %v561
        %v584 = vmul.f32 %v542, %v561
        %v585 = vmul.f32 %v544, %v561
        %v586 = vmul.f32 %v546, %v561
        %v587 = vmul.f32 %v548, %v561
        %v588 = vmul.f32 %v550, %v561
        %v589 = vmul.f32 %v552, %v561
        %v590 = vmul.f32 %v554, %v561
        %v591 = vmul.f32 %v556, %v561
        %v592 = vmul.f32 %v558, %v561
        %v593 = vmul.f32 %v560, %v561
        %v594 = vsub.f32 %v463, %v562
        %v595 = vsub.f32 %v464, %v563
        %v596 = vsub.f32 %v465, %v564
        %v597 = vsub.f32 %v466, %v565
        %v598 = vsub.f32 %v467, %v566
        %v599 = vsub.f32 %v468, %v567
        %v600 = vsub.f32 %v469, %v568
        %v601 = vsub.f32 %v470, %v569
        %v602 = vsub.f32 %v471, %v570
        %v603 = vsub.f32 %v472, %v571
        %v604 = vsub.f32 %v473, %v572
        %v605 = vsub.f32 %v474, %v573
        %v606 = vsub.f32 %v475, %v574
        %v607 = vsub.f32 %v476, %v575
        %v608 = vsub.f32 %v477, %v576
        %v609 = vsub.f32 %v478, %v577
        %v610 = vsub.f32 %v479, %v578
        %v611 = vsub.f32 %v480, %v579
        %v612 = vsub.f32 %v481, %v580
        %v613 = vsub.f32 %v482, %v581
        %v614 = vsub.f32 %v483, %v582
        %v615 = vsub.f32 %v484, %v583
        %v616 = vsub.f32 %v485, %v584
        %v617 = vsub.f32 %v486, %v585
        %v618 = vsub.f32 %v487, %v586
        %v619 = vsub.f32 %v488, %v587
        %v620 = vsub.f32 %v489, %v588
        %v621 = vsub.f32 %v490, %v589
        %v622 = vsub.f32 %v491, %v590
        %v623 = vsub.f32 %v492, %v591
        %v624 = vsub.f32 %v493, %v592
        %v625 = vsub.f32 %v494, %v593
        %v626 = vmul.f32 %v594, %v594
        %v627 = vmul.f32 %v595, %v595
        %v628 = vmul.f32 %v596, %v596
        %v629 = vmul.f32 %v597, %v597
        %v630 = vmul.f32 %v598, %v598
        %v631 = vmul.f32 %v599, %v599
        %v632 = vmul.f32 %v600, %v600
        %v633 = vmul.f32 %v601, %v601
        %v634 = vmul.f32 %v602, %v602
        %v635 = vmul.f32 %v603, %v603
        %v636 = vmul.f32 %v604, %v604
        %v637 = vmul.f32 %v605, %v605
        %v638 = vmul.f32 %v606, %v606
        %v639 = vmul.f32 %v607, %v607
        %v640 = vmul.f32 %v608, %v608
        %v641 = vmul.f32 %v609, %v609
        %v642 = vmul.f32 %v610, %v610
        %v643 = vmul.f32 %v611, %v611
        %v644 = vmul.f32 %v612, %v612
        %v645 = vmul.f32 %v613, %v613
        %v646 = vmul.f32 %v614, %v614
        %v647 = vmul.f32 %v615, %v615
        %v648 = vmul.f32 %v616, %v616
        %v649 = vmul.f32 %v617, %v617
        %v650 = vmul.f32 %v618, %v618
        %v651 = vmul.f32 %v619, %v619
        %v652 = vmul.f32 %v620, %v620
        %v653 = vmul.f32 %v621, %v621
        %v654 = vmul.f32 %v622, %v622
        %v655 = vmul.f32 %v623, %v623
        %v656 = vmul.f32 %v624, %v624
        %v657 = vmul.f32 %v625, %v625
        %658 = vadd.xlane.f32.xlu0 %v626
        %v659 = vpop.xlane.xlu0 %658
        %660 = vadd.xlane.f32.xlu0 %v627
        %v661 = vpop.xlane.xlu0 %660
        %662 = vadd.xlane.f32.xlu0 %v628
        %v663 = vpop.xlane.xlu0 %662
        %664 = vadd.xlane.f32.xlu0 %v629
        %v665 = vpop.xlane.xlu0 %664
        %666 = vadd.xlane.f32.xlu0 %v630
        %v667 = vpop.xlane.xlu0 %666
        %668 = vadd.xlane.f32.xlu0 %v631
        %v669 = vpop.xlane.xlu0 %668
        %670 = vadd.xlane.f32.xlu0 %v632
        %v671 = vpop.xlane.xlu0 %670
        %672 = vadd.xlane.f32.xlu0 %v633
        %v673 = vpop.xlane.xlu0 %672
        %674 = vadd.xlane.f32.xlu0 %v634
        %v675 = vpop.xlane.xlu0 %674
        %676 = vadd.xlane.f32.xlu0 %v635
        %v677 = vpop.xlane.xlu0 %676
        %678 = vadd.xlane.f32.xlu0 %v636
        %v679 = vpop.xlane.xlu0 %678
        %680 = vadd.xlane.f32.xlu0 %v637
        %v681 = vpop.xlane.xlu0 %680
        %682 = vadd.xlane.f32.xlu0 %v638
        %v683 = vpop.xlane.xlu0 %682
        %684 = vadd.xlane.f32.xlu0 %v639
        %v685 = vpop.xlane.xlu0 %684
        %686 = vadd.xlane.f32.xlu0 %v640
        %v687 = vpop.xlane.xlu0 %686
        %688 = vadd.xlane.f32.xlu0 %v641
        %v689 = vpop.xlane.xlu0 %688
        %690 = vadd.xlane.f32.xlu0 %v642
        %v691 = vpop.xlane.xlu0 %690
        %692 = vadd.xlane.f32.xlu0 %v643
        %v693 = vpop.xlane.xlu0 %692
        %694 = vadd.xlane.f32.xlu0 %v644
        %v695 = vpop.xlane.xlu0 %694
        %696 = vadd.xlane.f32.xlu0 %v645
        %v697 = vpop.xlane.xlu0 %696
        %698 = vadd.xlane.f32.xlu0 %v646
        %v699 = vpop.xlane.xlu0 %698
        %700 = vadd.xlane.f32.xlu0 %v647
        %v701 = vpop.xlane.xlu0 %700
        %702 = vadd.xlane.f32.xlu0 %v648
        %v703 = vpop.xlane.xlu0 %702
        %704 = vadd.xlane.f32.xlu0 %v649
        %v705 = vpop.xlane.xlu0 %704
        %706 = vadd.xlane.f32.xlu0 %v650
        %v707 = vpop.xlane.xlu0 %706
        %708 = vadd.xlane.f32.xlu0 %v651
        %v709 = vpop.xlane.xlu0 %708
        %710 = vadd.xlane.f32.xlu0 %v652
        %v711 = vpop.xlane.xlu0 %710
        %712 = vadd.xlane.f32.xlu0 %v653
        %v713 = vpop.xlane.xlu0 %712
        %714 = vadd.xlane.f32.xlu0 %v654
        %v715 = vpop.xlane.xlu0 %714
        %716 = vadd.xlane.f32.xlu0 %v655
        %v717 = vpop.xlane.xlu0 %716
        %718 = vadd.xlane.f32.xlu0 %v656
        %v719 = vpop.xlane.xlu0 %718
        %720 = vadd.xlane.f32.xlu0 %v657
        %v721 = vpop.xlane.xlu0 %720
        %v722 = vmul.f32 %v659, %v561
        %v723 = vmul.f32 %v661, %v561
        %v724 = vmul.f32 %v663, %v561
        %v725 = vmul.f32 %v665, %v561
        %v726 = vmul.f32 %v667, %v561
        %v727 = vmul.f32 %v669, %v561
        %v728 = vmul.f32 %v671, %v561
        %v729 = vmul.f32 %v673, %v561
        %v730 = vmul.f32 %v675, %v561
        %v731 = vmul.f32 %v677, %v561
        %v732 = vmul.f32 %v679, %v561
        %v733 = vmul.f32 %v681, %v561
        %v734 = vmul.f32 %v683, %v561
        %v735 = vmul.f32 %v685, %v561
        %v736 = vmul.f32 %v687, %v561
        %v737 = vmul.f32 %v689, %v561
        %v738 = vmul.f32 %v691, %v561
        %v739 = vmul.f32 %v693, %v561
        %v740 = vmul.f32 %v695, %v561
        %v741 = vmul.f32 %v697, %v561
        %v742 = vmul.f32 %v699, %v561
        %v743 = vmul.f32 %v701, %v561
        %v744 = vmul.f32 %v703, %v561
        %v745 = vmul.f32 %v705, %v561
        %v746 = vmul.f32 %v707, %v561
        %v747 = vmul.f32 %v709, %v561
        %v748 = vmul.f32 %v711, %v561
        %v749 = vmul.f32 %v713, %v561
        %v750 = vmul.f32 %v715, %v561
        %v751 = vmul.f32 %v717, %v561
        %v752 = vmul.f32 %v719, %v561
        %v753 = vmul.f32 %v721, %v561
        %v754 = vadd.f32 %v722, 1e-05
        %v755 = vadd.f32 %v723, 1e-05
        %v756 = vadd.f32 %v724, 1e-05
        %v757 = vadd.f32 %v725, 1e-05
        %v758 = vadd.f32 %v726, 1e-05
        %v759 = vadd.f32 %v727, 1e-05
        %v760 = vadd.f32 %v728, 1e-05
        %v761 = vadd.f32 %v729, 1e-05
        %v762 = vadd.f32 %v730, 1e-05
        %v763 = vadd.f32 %v731, 1e-05
        %v764 = vadd.f32 %v732, 1e-05
        %v765 = vadd.f32 %v733, 1e-05
        %v766 = vadd.f32 %v734, 1e-05
        %v767 = vadd.f32 %v735, 1e-05
        %v768 = vadd.f32 %v736, 1e-05
        %v769 = vadd.f32 %v737, 1e-05
        %v770 = vadd.f32 %v738, 1e-05
        %v771 = vadd.f32 %v739, 1e-05
        %v772 = vadd.f32 %v740, 1e-05
        %v773 = vadd.f32 %v741, 1e-05
        %v774 = vadd.f32 %v742, 1e-05
        %v775 = vadd.f32 %v743, 1e-05
        %v776 = vadd.f32 %v744, 1e-05
        %v777 = vadd.f32 %v745, 1e-05
        %v778 = vadd.f32 %v746, 1e-05
        %v779 = vadd.f32 %v747, 1e-05
        %v780 = vadd.f32 %v748, 1e-05
        %v781 = vadd.f32 %v749, 1e-05
        %v782 = vadd.f32 %v750, 1e-05
        %v783 = vadd.f32 %v751, 1e-05
        %v784 = vadd.f32 %v752, 1e-05
        %v785 = vadd.f32 %v753, 1e-05
        %v786 = vrsqrt.pop %v754
        %v787 = vrsqrt.pop %v755
        %v788 = vrsqrt.pop %v756
        %v789 = vrsqrt.pop %v757
        %v790 = vrsqrt.pop %v758
        %v791 = vrsqrt.pop %v759
        %v792 = vrsqrt.pop %v760
        %v793 = vrsqrt.pop %v761
        %v794 = vrsqrt.pop %v762
        %v795 = vrsqrt.pop %v763
        %v796 = vrsqrt.pop %v764
        %v797 = vrsqrt.pop %v765
        %v798 = vrsqrt.pop %v766
        %v799 = vrsqrt.pop %v767
        %v800 = vrsqrt.pop %v768
        %v801 = vrsqrt.pop %v769
        %v802 = vrsqrt.pop %v770
        %v803 = vrsqrt.pop %v771
        %v804 = vrsqrt.pop %v772
        %v805 = vrsqrt.pop %v773
        %v806 = vrsqrt.pop %v774
        %v807 = vrsqrt.pop %v775
        %v808 = vrsqrt.pop %v776
        %v809 = vrsqrt.pop %v777
        %v810 = vrsqrt.pop %v778
        %v811 = vrsqrt.pop %v779
        %v812 = vrsqrt.pop %v780
        %v813 = vrsqrt.pop %v781
        %v814 = vrsqrt.pop %v782
        %v815 = vrsqrt.pop %v783
        %v816 = vrsqrt.pop %v784
        %v817 = vrsqrt.pop %v785
        %v818 = vmul.f32 %v594, %v786
        %v819 = vmul.f32 %v595, %v787
        %v820 = vmul.f32 %v596, %v788
        %v821 = vmul.f32 %v597, %v789
        %v822 = vmul.f32 %v598, %v790
        %v823 = vmul.f32 %v599, %v791
        %v824 = vmul.f32 %v600, %v792
        %v825 = vmul.f32 %v601, %v793
        %v826 = vmul.f32 %v602, %v794
        %v827 = vmul.f32 %v603, %v795
        %v828 = vmul.f32 %v604, %v796
        %v829 = vmul.f32 %v605, %v797
        %v830 = vmul.f32 %v606, %v798
        %v831 = vmul.f32 %v607, %v799
        %v832 = vmul.f32 %v608, %v800
        %v833 = vmul.f32 %v609, %v801
        %v834 = vmul.f32 %v610, %v802
        %v835 = vmul.f32 %v611, %v803
        %v836 = vmul.f32 %v612, %v804
        %v837 = vmul.f32 %v613, %v805
        %v838 = vmul.f32 %v614, %v806
        %v839 = vmul.f32 %v615, %v807
        %v840 = vmul.f32 %v616, %v808
        %v841 = vmul.f32 %v617, %v809
        %v842 = vmul.f32 %v618, %v810
        %v843 = vmul.f32 %v619, %v811
        %v844 = vmul.f32 %v620, %v812
        %v845 = vmul.f32 %v621, %v813
        %v846 = vmul.f32 %v622, %v814
        %v847 = vmul.f32 %v623, %v815
        %v848 = vmul.f32 %v624, %v816
        %v849 = vmul.f32 %v625, %v817
        %v851 = vlaneseq
        %v852 = vshrl.u32 %v851, 7
        %v853 = vsub.s32 0, %v852
        %v854 = vrot.slane %v495, %v853
        %v856 = vmul.f32 %v818, %v854
        %v857 = vmul.f32 %v819, %v854
        %v858 = vmul.f32 %v820, %v854
        %v859 = vmul.f32 %v821, %v854
        %v860 = vmul.f32 %v822, %v854
        %v861 = vmul.f32 %v823, %v854
        %v862 = vmul.f32 %v824, %v854
        %v863 = vmul.f32 %v825, %v854
        %v864 = vmul.f32 %v826, %v854
        %v865 = vmul.f32 %v827, %v854
        %v866 = vmul.f32 %v828, %v854
        %v867 = vmul.f32 %v829, %v854
        %v868 = vmul.f32 %v830, %v854
        %v869 = vmul.f32 %v831, %v854
        %v870 = vmul.f32 %v832, %v854
        %v871 = vmul.f32 %v833, %v854
        %v872 = vmul.f32 %v834, %v854
        %v873 = vmul.f32 %v835, %v854
        %v874 = vmul.f32 %v836, %v854
        %v875 = vmul.f32 %v837, %v854
        %v876 = vmul.f32 %v838, %v854
        %v877 = vmul.f32 %v839, %v854
        %v878 = vmul.f32 %v840, %v854
        %v879 = vmul.f32 %v841, %v854
        %v880 = vmul.f32 %v842, %v854
        %v881 = vmul.f32 %v843, %v854
        %v882 = vmul.f32 %v844, %v854
        %v883 = vmul.f32 %v845, %v854
        %v884 = vmul.f32 %v846, %v854
        %v885 = vmul.f32 %v847, %v854
        %v886 = vmul.f32 %v848, %v854
        %v887 = vmul.f32 %v849, %v854
        %v889 = vlaneseq
        %v890 = vshrl.u32 %v889, 7
        %v891 = vsub.s32 0, %v890
        %v892 = vrot.slane %v496, %v891
        %v894 = vadd.f32 %v856, %v892
        %v895 = vadd.f32 %v857, %v892
        %v896 = vadd.f32 %v858, %v892
        %v897 = vadd.f32 %v859, %v892
        %v898 = vadd.f32 %v860, %v892
        %v899 = vadd.f32 %v861, %v892
        %v900 = vadd.f32 %v862, %v892
        %v901 = vadd.f32 %v863, %v892
        %v902 = vadd.f32 %v864, %v892
        %v903 = vadd.f32 %v865, %v892
        %v904 = vadd.f32 %v866, %v892
        %v905 = vadd.f32 %v867, %v892
        %v906 = vadd.f32 %v868, %v892
        %v907 = vadd.f32 %v869, %v892
        %v908 = vadd.f32 %v870, %v892
        %v909 = vadd.f32 %v871, %v892
        %v910 = vadd.f32 %v872, %v892
        %v911 = vadd.f32 %v873, %v892
        %v912 = vadd.f32 %v874, %v892
        %v913 = vadd.f32 %v875, %v892
        %v914 = vadd.f32 %v876, %v892
        %v915 = vadd.f32 %v877, %v892
        %v916 = vadd.f32 %v878, %v892
        %v917 = vadd.f32 %v879, %v892
        %v918 = vadd.f32 %v880, %v892
        %v919 = vadd.f32 %v881, %v892
        %v920 = vadd.f32 %v882, %v892
        %v921 = vadd.f32 %v883, %v892
        %v922 = vadd.f32 %v884, %v892
        %v923 = vadd.f32 %v885, %v892
        %v924 = vadd.f32 %v886, %v892
        %v925 = vadd.f32 %v887, %v892
        %v926 = vpack.c.bf16 %v895, %v894
        %v927 = vpack.c.bf16 %v897, %v896
        %v928 = vpack.c.bf16 %v899, %v898
        %v929 = vpack.c.bf16 %v901, %v900
        %v930 = vpack.c.bf16 %v903, %v902
        %v931 = vpack.c.bf16 %v905, %v904
        %v932 = vpack.c.bf16 %v907, %v906
        %v933 = vpack.c.bf16 %v909, %v908
        %v934 = vpack.c.bf16 %v911, %v910
        %v935 = vpack.c.bf16 %v913, %v912
        %v936 = vpack.c.bf16 %v915, %v914
        %v937 = vpack.c.bf16 %v917, %v916
        %v938 = vpack.c.bf16 %v919, %v918
        %v939 = vpack.c.bf16 %v921, %v920
        %v940 = vpack.c.bf16 %v923, %v922
        %v941 = vpack.c.bf16 %v925, %v924
        %v942 = vld [vmem:[%s3] sm:$0xff]
        %v943 = vld [vmem:[%s3 + $0x8] sm:$0xf]
        %v944 = vld [vmem:[%s3 + $0xc] sm:$0xff]
        %v945 = vld [vmem:[%s3 + $0x14] sm:$0xf]
        %v946 = vld [vmem:[%s3 + $0x18] sm:$0xff]
        %v947 = vld [vmem:[%s3 + $0x20] sm:$0xf]
        %v948 = vld [vmem:[%s3 + $0x24] sm:$0xff]
        %v949 = vld [vmem:[%s3 + $0x2c] sm:$0xf]
        %v950 = vld [vmem:[%s3 + $0x30] sm:$0xff]
        %v951 = vld [vmem:[%s3 + $0x38] sm:$0xf]
        %v952 = vld [vmem:[%s3 + $0x3c] sm:$0xff]
        %v953 = vld [vmem:[%s3 + $0x44] sm:$0xf]
        %v954 = vld [vmem:[%s3 + $0x48] sm:$0xff]
        %v955 = vld [vmem:[%s3 + $0x50] sm:$0xf]
        %v956 = vld [vmem:[%s3 + $0x54] sm:$0xff]
        %v957 = vld [vmem:[%s3 + $0x5c] sm:$0xf]
        %v958 = vld [vmem:[%s3 + $0x60] sm:$0xff]
        %v959 = vld [vmem:[%s3 + $0x68] sm:$0xf]
        %v960 = vld [vmem:[%s3 + $0x6c] sm:$0xff]
        %v961 = vld [vmem:[%s3 + $0x74] sm:$0xf]
        %v962 = vld [vmem:[%s3 + $0x78] sm:$0xff]
        %v963 = vld [vmem:[%s3 + $0x80] sm:$0xf]
        %v964 = vld [vmem:[%s3 + $0x84] sm:$0xff]
        %v965 = vld [vmem:[%s3 + $0x8c] sm:$0xf]
        %v966 = vld [vmem:[%s3 + $0x90] sm:$0xff]
        %v967 = vld [vmem:[%s3 + $0x98] sm:$0xf]
        %v968 = vld [vmem:[%s3 + $0x9c] sm:$0xff]
        %v969 = vld [vmem:[%s3 + $0xa4] sm:$0xf]
        %v970 = vld [vmem:[%s3 + $0xa8] sm:$0xff]
        %v971 = vld [vmem:[%s3 + $0xb0] sm:$0xf]
        %v972 = vld [vmem:[%s3 + $0xb4] sm:$0xff]
        %v973 = vld [vmem:[%s3 + $0xbc] sm:$0xf]
        %v974 = vld [vmem:[%s4] sm:$0x7]
        %v976 = vlaneseq
        %v977 = vshrl.u32 %v976, 7
        %v978 = vsub.s32 0, %v977
        %v979 = vrot.slane %v974, %v978
        %v980 = vlaneseq
        %v981 = vshrl.u32 %v980, 7
        %v982 = vsub.s32 1, %v981
        %v983 = vrot.slane %v974, %v982
        %v984 = vlaneseq
        %v985 = vshrl.u32 %v984, 7
        %v986 = vsub.s32 2, %v985
        %v987 = vrot.slane %v974, %v986
        %v1023 = vunpack.c.l.b16 %v942
        %v1024 = vunpack.c.h.b16 %v942
        %v1025 = vunpack.c.l.b16 %v943
        %v1026 = vunpack.c.l.b16 %v944
        %v1027 = vunpack.c.h.b16 %v944
        %v1028 = vunpack.c.l.b16 %v945
        %v1029 = vunpack.c.l.b16 %v946
        %v1030 = vunpack.c.h.b16 %v946
        %v1031 = vunpack.c.l.b16 %v947
        %v1032 = vunpack.c.l.b16 %v948
        %v1033 = vunpack.c.h.b16 %v948
        %v1034 = vunpack.c.l.b16 %v949
        %v1035 = vunpack.c.l.b16 %v950
        %v1036 = vunpack.c.h.b16 %v950
        %v1037 = vunpack.c.l.b16 %v951
        %v1038 = vunpack.c.l.b16 %v952
        %v1039 = vunpack.c.h.b16 %v952
        %v1040 = vunpack.c.l.b16 %v953
        %v1041 = vunpack.c.l.b16 %v954
        %v1042 = vunpack.c.h.b16 %v954
        %v1043 = vunpack.c.l.b16 %v955
        %v1044 = vunpack.c.l.b16 %v956
        %v1045 = vunpack.c.h.b16 %v956
        %v1046 = vunpack.c.l.b16 %v957
        %v1047 = vunpack.c.l.b16 %v958
        %v1048 = vunpack.c.h.b16 %v958
        %v1049 = vunpack.c.l.b16 %v959
        %v1050 = vunpack.c.l.b16 %v960
        %v1051 = vunpack.c.h.b16 %v960
        %v1052 = vunpack.c.l.b16 %v961
        %v1053 = vunpack.c.l.b16 %v962
        %v1054 = vunpack.c.h.b16 %v962
        %v1055 = vunpack.c.l.b16 %v963
        %v1056 = vunpack.c.l.b16 %v964
        %v1057 = vunpack.c.h.b16 %v964
        %v1058 = vunpack.c.l.b16 %v965
        %v1059 = vunpack.c.l.b16 %v966
        %v1060 = vunpack.c.h.b16 %v966
        %v1061 = vunpack.c.l.b16 %v967
        %v1062 = vunpack.c.l.b16 %v968
        %v1063 = vunpack.c.h.b16 %v968
        %v1064 = vunpack.c.l.b16 %v969
        %v1065 = vunpack.c.l.b16 %v970
        %v1066 = vunpack.c.h.b16 %v970
        %v1067 = vunpack.c.l.b16 %v971
        %v1068 = vunpack.c.l.b16 %v972
        %v1069 = vunpack.c.h.b16 %v972
        %v1070 = vunpack.c.l.b16 %v973
        %v1071 = vpack.c.b16 %v1026, %v1023
        %v1072 = vpack.c.b16 %v1027, %v1024
        %v1073 = vpack.c.b16 %v1028, %v1025
        %v1074 = vpack.c.b16 %v1032, %v1029
        %v1075 = vpack.c.b16 %v1033, %v1030
        %v1076 = vpack.c.b16 %v1034, %v1031
        %v1077 = vpack.c.b16 %v1038, %v1035
        %v1078 = vpack.c.b16 %v1039, %v1036
        %v1079 = vpack.c.b16 %v1040, %v1037
        %v1080 = vpack.c.b16 %v1044, %v1041
        %v1081 = vpack.c.b16 %v1045, %v1042
        %v1082 = vpack.c.b16 %v1046, %v1043
        %v1083 = vpack.c.b16 %v1050, %v1047
        %v1084 = vpack.c.b16 %v1051, %v1048
        %v1085 = vpack.c.b16 %v1052, %v1049
        %v1086 = vpack.c.b16 %v1056, %v1053
        %v1087 = vpack.c.b16 %v1057, %v1054
        %v1088 = vpack.c.b16 %v1058, %v1055
        %v1089 = vpack.c.b16 %v1062, %v1059
        %v1090 = vpack.c.b16 %v1063, %v1060
        %v1091 = vpack.c.b16 %v1064, %v1061
        %v1092 = vpack.c.b16 %v1068, %v1065
        %v1093 = vpack.c.b16 %v1069, %v1066
        %v1094 = vpack.c.b16 %v1070, %v1067
        %1119 = vmatprep.subr.bf16.mxu0 %v1072
        %1120 = vmatpush1.bf16.msra.mxu0 %v1071
        %1121 = vmatprep.subr.bf16.mxu0 %v1075
        %1122 = vmatpush1.bf16.msra.mxu0 %v1074
        %1123 = vmatprep.subr.bf16.mxu0 %v1078
        %1124 = vmatpush1.bf16.msra.mxu0 %v1077
        %1125 = vmatprep.subr.bf16.mxu0 %v1081
        %1126 = vmatpush1.bf16.msra.mxu0 %v1080
        %1127 = vmatprep.subr.bf16.mxu0 %v1084
        %1128 = vmatpush1.bf16.msra.mxu0 %v1083
        %1129 = vmatprep.subr.bf16.mxu0 %v1087
        %1130 = vmatpush1.bf16.msra.mxu0 %v1086
        %1131 = vmatprep.subr.bf16.mxu0 %v1090
        %1132 = vmatpush1.bf16.msra.mxu0 %v1089
        %1133 = vmatprep.subr.bf16.mxu0 %v1093
        %1134 = vmatpush1.bf16.msra.mxu0 %v1092
        %1135 = vmatprep.subr.bf16.mxu0 0
        %1136 = vmatpush1.bf16.msra.mxu0 0
        %1137 = vmatprep.subr.bf16.mxu0 0
        %1138 = vmatpush1.bf16.msra.mxu0 0
        %1139 = vmatprep.subr.bf16.mxu0 0
        %1140 = vmatpush1.bf16.msra.mxu0 0
        %1141 = vmatprep.subr.bf16.mxu0 0
        %1142 = vmatpush1.bf16.msra.mxu0 0
        %1143 = vmatprep.subr.bf16.mxu0 0
        %1144 = vmatpush1.bf16.msra.mxu0 0
        %1145 = vmatprep.subr.bf16.mxu0 0
        %1146 = vmatpush1.bf16.msra.mxu0 0
        %1147 = vmatprep.subr.bf16.mxu0 0
        %1148 = vmatpush1.bf16.msra.mxu0 0
        %1149 = vmatprep.subr.bf16.mxu0 0
        %1150 = vmatpush1.bf16.msra.mxu0 0
        %1151 = vmatprep.mubr.bf16.mxu0 0
        %1152 = vmatmul.mubr.bf16.gmra.mrb[0].mxu0 %v926
        %v1153 = vpop.f32.mrb[0].mxu0
        %v1154 = vadd.f32 %v979, %v1153
        %v1155 = vpop.f32.mrb[0].mxu0
        %v1156 = vadd.f32 %v983, %v1155
        %v1157 = vpop.f32.mrb[0].mxu0
        %v1158 = vadd.f32 %v979, %v1157
        %v1159 = vpop.f32.mrb[0].mxu0
        %v1160 = vadd.f32 %v983, %v1159
        %1161 = vmatprep.mubr.bf16.mxu0 0
        %1162 = vmatmul.mubr.bf16.gmra.mrb[0].mxu0 %v927
        %v1163 = vpop.f32.mrb[0].mxu0
        %v1164 = vadd.f32 %v979, %v1163
        %v1165 = vpop.f32.mrb[0].mxu0
        %v1166 = vadd.f32 %v983, %v1165
        %v1167 = vpop.f32.mrb[0].mxu0
        %v1168 = vadd.f32 %v979, %v1167
        %v1169 = vpop.f32.mrb[0].mxu0
        %v1170 = vadd.f32 %v983, %v1169
        %1171 = vmatprep.mubr.bf16.mxu0 0
        %1172 = vmatmul.mubr.bf16.gmra.mrb[0].mxu0 %v928
        %v1173 = vpop.f32.mrb[0].mxu0
        %v1174 = vadd.f32 %v979, %v1173
        %v1175 = vpop.f32.mrb[0].mxu0
        %v1176 = vadd.f32 %v983, %v1175
        %v1177 = vpop.f32.mrb[0].mxu0
        %v1178 = vadd.f32 %v979, %v1177
        %v1179 = vpop.f32.mrb[0].mxu0
        %v1180 = vadd.f32 %v983, %v1179
        %1181 = vmatprep.mubr.bf16.mxu0 0
        %1182 = vmatmul.mubr.bf16.gmra.mrb[0].mxu0 %v929
        %v1183 = vpop.f32.mrb[0].mxu0
        %v1184 = vadd.f32 %v979, %v1183
        %v1185 = vpop.f32.mrb[0].mxu0
        %v1186 = vadd.f32 %v983, %v1185
        %v1187 = vpop.f32.mrb[0].mxu0
        %v1188 = vadd.f32 %v979, %v1187
        %v1189 = vpop.f32.mrb[0].mxu0
        %v1190 = vadd.f32 %v983, %v1189
        %1191 = vmatprep.mubr.bf16.mxu0 0
        %1192 = vmatmul.mubr.bf16.gmra.mrb[0].mxu0 %v930
        %v1193 = vpop.f32.mrb[0].mxu0
        %v1194 = vadd.f32 %v979, %v1193
        %v1195 = vpop.f32.mrb[0].mxu0
        %v1196 = vadd.f32 %v983, %v1195
        %v1197 = vpop.f32.mrb[0].mxu0
        %v1198 = vadd.f32 %v979, %v1197
        %v1199 = vpop.f32.mrb[0].mxu0
        %v1200 = vadd.f32 %v983, %v1199
        %1201 = vmatprep.mubr.bf16.mxu0 0
        %1202 = vmatmul.mubr.bf16.gmra.mrb[0].mxu0 %v931
        %v1203 = vpop.f32.mrb[0].mxu0
        %v1204 = vadd.f32 %v979, %v1203
        %v1205 = vpop.f32.mrb[0].mxu0
        %v1206 = vadd.f32 %v983, %v1205
        %v1207 = vpop.f32.mrb[0].mxu0
        %v1208 = vadd.f32 %v979, %v1207
        %v1209 = vpop.f32.mrb[0].mxu0
        %v1210 = vadd.f32 %v983, %v1209
        %1211 = vmatprep.mubr.bf16.mxu0 0
        %1212 = vmatmul.mubr.bf16.gmra.mrb[0].mxu0 %v932
        %v1213 = vpop.f32.mrb[0].mxu0
        %v1214 = vadd.f32 %v979, %v1213
        %v1215 = vpop.f32.mrb[0].mxu0
        %v1216 = vadd.f32 %v983, %v1215
        %v1217 = vpop.f32.mrb[0].mxu0
        %v1218 = vadd.f32 %v979, %v1217
        %v1219 = vpop.f32.mrb[0].mxu0
        %v1220 = vadd.f32 %v983, %v1219
        %1221 = vmatprep.mubr.bf16.mxu0 0
        %1222 = vmatmul.mubr.bf16.gmra.mrb[0].mxu0 %v933
        %v1223 = vpop.f32.mrb[0].mxu0
        %v1224 = vadd.f32 %v979, %v1223
        %v1225 = vpop.f32.mrb[0].mxu0
        %v1226 = vadd.f32 %v983, %v1225
        %v1227 = vpop.f32.mrb[0].mxu0
        %v1228 = vadd.f32 %v979, %v1227
        %v1229 = vpop.f32.mrb[0].mxu0
        %v1230 = vadd.f32 %v983, %v1229
        %1231 = vmatprep.mubr.bf16.mxu0 0
        %1232 = vmatmul.mubr.bf16.gmra.mrb[0].mxu0 %v934
        %v1233 = vpop.f32.mrb[0].mxu0
        %v1234 = vadd.f32 %v979, %v1233
        %v1235 = vpop.f32.mrb[0].mxu0
        %v1236 = vadd.f32 %v983, %v1235
        %v1237 = vpop.f32.mrb[0].mxu0
        %v1238 = vadd.f32 %v979, %v1237
        %v1239 = vpop.f32.mrb[0].mxu0
        %v1240 = vadd.f32 %v983, %v1239
        %1241 = vmatprep.mubr.bf16.mxu0 0
        %1242 = vmatmul.mubr.bf16.gmra.mrb[0].mxu0 %v935
        %v1243 = vpop.f32.mrb[0].mxu0
        %v1244 = vadd.f32 %v979, %v1243
        %v1245 = vpop.f32.mrb[0].mxu0
        %v1246 = vadd.f32 %v983, %v1245
        %v1247 = vpop.f32.mrb[0].mxu0
        %v1248 = vadd.f32 %v979, %v1247
        %v1249 = vpop.f32.mrb[0].mxu0
        %v1250 = vadd.f32 %v983, %v1249
        %1251 = vmatprep.mubr.bf16.mxu0 0
        %1252 = vmatmul.mubr.bf16.gmra.mrb[0].mxu0 %v936
        %v1253 = vpop.f32.mrb[0].mxu0
        %v1254 = vadd.f32 %v979, %v1253
        %v1255 = vpop.f32.mrb[0].mxu0
        %v1256 = vadd.f32 %v983, %v1255
        %v1257 = vpop.f32.mrb[0].mxu0
        %v1258 = vadd.f32 %v979, %v1257
        %v1259 = vpop.f32.mrb[0].mxu0
        %v1260 = vadd.f32 %v983, %v1259
        %1261 = vmatprep.mubr.bf16.mxu0 0
        %1262 = vmatmul.mubr.bf16.gmra.mrb[0].mxu0 %v937
        %v1263 = vpop.f32.mrb[0].mxu0
        %v1264 = vadd.f32 %v979, %v1263
        %v1265 = vpop.f32.mrb[0].mxu0
        %v1266 = vadd.f32 %v983, %v1265
        %v1267 = vpop.f32.mrb[0].mxu0
        %v1268 = vadd.f32 %v979, %v1267
        %v1269 = vpop.f32.mrb[0].mxu0
        %v1270 = vadd.f32 %v983, %v1269
        %1271 = vmatprep.mubr.bf16.mxu0 0
        %1272 = vmatmul.mubr.bf16.gmra.mrb[0].mxu0 %v938
        %v1273 = vpop.f32.mrb[0].mxu0
        %v1274 = vadd.f32 %v979, %v1273
        %v1275 = vpop.f32.mrb[0].mxu0
        %v1276 = vadd.f32 %v983, %v1275
        %v1277 = vpop.f32.mrb[0].mxu0
        %v1278 = vadd.f32 %v979, %v1277
        %v1279 = vpop.f32.mrb[0].mxu0
        %v1280 = vadd.f32 %v983, %v1279
        %1281 = vmatprep.mubr.bf16.mxu0 0
        %1282 = vmatmul.mubr.bf16.gmra.mrb[0].mxu0 %v939
        %v1283 = vpop.f32.mrb[0].mxu0
        %v1284 = vadd.f32 %v979, %v1283
        %v1285 = vpop.f32.mrb[0].mxu0
        %v1286 = vadd.f32 %v983, %v1285
        %v1287 = vpop.f32.mrb[0].mxu0
        %v1288 = vadd.f32 %v979, %v1287
        %v1289 = vpop.f32.mrb[0].mxu0
        %v1290 = vadd.f32 %v983, %v1289
        %1291 = vmatprep.mubr.bf16.mxu0 0
        %1292 = vmatmul.mubr.bf16.gmra.mrb[0].mxu0 %v940
        %v1293 = vpop.f32.mrb[0].mxu0
        %v1294 = vadd.f32 %v979, %v1293
        %v1295 = vpop.f32.mrb[0].mxu0
        %v1296 = vadd.f32 %v983, %v1295
        %v1297 = vpop.f32.mrb[0].mxu0
        %v1298 = vadd.f32 %v979, %v1297
        %v1299 = vpop.f32.mrb[0].mxu0
        %v1300 = vadd.f32 %v983, %v1299
        %1301 = vmatprep.mubr.bf16.mxu0 0
        %1302 = vmatmul.mubr.bf16.gmra.mrb[0].mxu0 %v941
        %v1303 = vpop.f32.mrb[0].mxu0
        %v1304 = vadd.f32 %v979, %v1303
        %v1305 = vpop.f32.mrb[0].mxu0
        %v1306 = vadd.f32 %v983, %v1305
        %v1307 = vpop.f32.mrb[0].mxu0
        %v1308 = vadd.f32 %v979, %v1307
        %v1309 = vpop.f32.mrb[0].mxu0
        %v1310 = vadd.f32 %v983, %v1309
        %1311 = vdwg.mxu0
        %1312 = vmatprep.subr.bf16.mxu0 0
        %1313 = vmatpush1.bf16.msra.mxu0 %v1073
        %1314 = vmatprep.subr.bf16.mxu0 0
        %1315 = vmatpush1.bf16.msra.mxu0 %v1076
        %1316 = vmatprep.subr.bf16.mxu0 0
        %1317 = vmatpush1.bf16.msra.mxu0 %v1079
        %1318 = vmatprep.subr.bf16.mxu0 0
        %1319 = vmatpush1.bf16.msra.mxu0 %v1082
        %1320 = vmatprep.subr.bf16.mxu0 0
        %1321 = vmatpush1.bf16.msra.mxu0 %v1085
        %1322 = vmatprep.subr.bf16.mxu0 0
        %1323 = vmatpush1.bf16.msra.mxu0 %v1088
        %1324 = vmatprep.subr.bf16.mxu0 0
        %1325 = vmatpush1.bf16.msra.mxu0 %v1091
        %1326 = vmatprep.subr.bf16.mxu0 0
        %1327 = vmatpush1.bf16.msra.mxu0 %v1094
        %1328 = vmatprep.subr.bf16.mxu0 0
        %1329 = vmatpush1.bf16.msra.mxu0 0
        %1330 = vmatprep.subr.bf16.mxu0 0
        %1331 = vmatpush1.bf16.msra.mxu0 0
        %1332 = vmatprep.subr.bf16.mxu0 0
        %1333 = vmatpush1.bf16.msra.mxu0 0
        %1334 = vmatprep.subr.bf16.mxu0 0
        %1335 = vmatpush1.bf16.msra.mxu0 0
        %1336 = vmatprep.subr.bf16.mxu0 0
        %1337 = vmatpush1.bf16.msra.mxu0 0
        %1338 = vmatprep.subr.bf16.mxu0 0
        %1339 = vmatpush1.bf16.msra.mxu0 0
        %1340 = vmatprep.subr.bf16.mxu0 0
        %1341 = vmatpush1.bf16.msra.mxu0 0
        %1342 = vmatprep.subr.bf16.mxu0 0
        %1343 = vmatpush1.bf16.msra.mxu0 0
        %1344 = vmatprep.mubr.bf16.mxu0 0
        %1345 = vmatmul.mubr.bf16.gmra.mrb[0].mxu0 %v926
        %v1346 = vpop.f32.mrb[0].mxu0
        %v1347 = vadd.f32 %v987, %v1346
        %v1348 = vpop.f32.mrb[0].mxu0
        %v1349 = vpop.f32.mrb[0].mxu0
        %v1350 = vadd.f32 %v987, %v1349
        %v1351 = vpop.f32.mrb[0].mxu0
        %1352 = vmatprep.mubr.bf16.mxu0 0
        %1353 = vmatmul.mubr.bf16.gmra.mrb[0].mxu0 %v927
        %v1354 = vpop.f32.mrb[0].mxu0
        %v1355 = vadd.f32 %v987, %v1354
        %v1356 = vpop.f32.mrb[0].mxu0
        %v1357 = vpop.f32.mrb[0].mxu0
        %v1358 = vadd.f32 %v987, %v1357
        %v1359 = vpop.f32.mrb[0].mxu0
        %1360 = vmatprep.mubr.bf16.mxu0 0
        %1361 = vmatmul.mubr.bf16.gmra.mrb[0].mxu0 %v928
        %v1362 = vpop.f32.mrb[0].mxu0
        %v1363 = vadd.f32 %v987, %v1362
        %v1364 = vpop.f32.mrb[0].mxu0
        %v1365 = vpop.f32.mrb[0].mxu0
        %v1366 = vadd.f32 %v987, %v1365
        %v1367 = vpop.f32.mrb[0].mxu0
        %1368 = vmatprep.mubr.bf16.mxu0 0
        %1369 = vmatmul.mubr.bf16.gmra.mrb[0].mxu0 %v929
        %v1370 = vpop.f32.mrb[0].mxu0
        %v1371 = vadd.f32 %v987, %v1370
        %v1372 = vpop.f32.mrb[0].mxu0
        %v1373 = vpop.f32.mrb[0].mxu0
        %v1374 = vadd.f32 %v987, %v1373
        %v1375 = vpop.f32.mrb[0].mxu0
        %1376 = vmatprep.mubr.bf16.mxu0 0
        %1377 = vmatmul.mubr.bf16.gmra.mrb[0].mxu0 %v930
        %v1378 = vpop.f32.mrb[0].mxu0
        %v1379 = vadd.f32 %v987, %v1378
        %v1380 = vpop.f32.mrb[0].mxu0
        %v1381 = vpop.f32.mrb[0].mxu0
        %v1382 = vadd.f32 %v987, %v1381
        %v1383 = vpop.f32.mrb[0].mxu0
        %1384 = vmatprep.mubr.bf16.mxu0 0
        %1385 = vmatmul.mubr.bf16.gmra.mrb[0].mxu0 %v931
        %v1386 = vpop.f32.mrb[0].mxu0
        %v1387 = vadd.f32 %v987, %v1386
        %v1388 = vpop.f32.mrb[0].mxu0
        %v1389 = vpop.f32.mrb[0].mxu0
        %v1390 = vadd.f32 %v987, %v1389
        %v1391 = vpop.f32.mrb[0].mxu0
        %1392 = vmatprep.mubr.bf16.mxu0 0
        %1393 = vmatmul.mubr.bf16.gmra.mrb[0].mxu0 %v932
        %v1394 = vpop.f32.mrb[0].mxu0
        %v1395 = vadd.f32 %v987, %v1394
        %v1396 = vpop.f32.mrb[0].mxu0
        %v1397 = vpop.f32.mrb[0].mxu0
        %v1398 = vadd.f32 %v987, %v1397
        %v1399 = vpop.f32.mrb[0].mxu0
        %1400 = vmatprep.mubr.bf16.mxu0 0
        %1401 = vmatmul.mubr.bf16.gmra.mrb[0].mxu0 %v933
        %v1402 = vpop.f32.mrb[0].mxu0
        %v1403 = vadd.f32 %v987, %v1402
        %v1404 = vpop.f32.mrb[0].mxu0
        %v1405 = vpop.f32.mrb[0].mxu0
        %v1406 = vadd.f32 %v987, %v1405
        %v1407 = vpop.f32.mrb[0].mxu0
        %1408 = vmatprep.mubr.bf16.mxu0 0
        %1409 = vmatmul.mubr.bf16.gmra.mrb[0].mxu0 %v934
        %v1410 = vpop.f32.mrb[0].mxu0
        %v1411 = vadd.f32 %v987, %v1410
        %v1412 = vpop.f32.mrb[0].mxu0
        %v1413 = vpop.f32.mrb[0].mxu0
        %v1414 = vadd.f32 %v987, %v1413
        %v1415 = vpop.f32.mrb[0].mxu0
        %1416 = vmatprep.mubr.bf16.mxu0 0
        %1417 = vmatmul.mubr.bf16.gmra.mrb[0].mxu0 %v935
        %v1418 = vpop.f32.mrb[0].mxu0
        %v1419 = vadd.f32 %v987, %v1418
        %v1420 = vpop.f32.mrb[0].mxu0
        %v1421 = vpop.f32.mrb[0].mxu0
        %v1422 = vadd.f32 %v987, %v1421
        %v1423 = vpop.f32.mrb[0].mxu0
        %1424 = vmatprep.mubr.bf16.mxu0 0
        %1425 = vmatmul.mubr.bf16.gmra.mrb[0].mxu0 %v936
        %v1426 = vpop.f32.mrb[0].mxu0
        %v1427 = vadd.f32 %v987, %v1426
        %v1428 = vpop.f32.mrb[0].mxu0
        %v1429 = vpop.f32.mrb[0].mxu0
        %v1430 = vadd.f32 %v987, %v1429
        %v1431 = vpop.f32.mrb[0].mxu0
        %1432 = vmatprep.mubr.bf16.mxu0 0
        %1433 = vmatmul.mubr.bf16.gmra.mrb[0].mxu0 %v937
        %v1434 = vpop.f32.mrb[0].mxu0
        %v1435 = vadd.f32 %v987, %v1434
        %v1436 = vpop.f32.mrb[0].mxu0
        %v1437 = vpop.f32.mrb[0].mxu0
        %v1438 = vadd.f32 %v987, %v1437
        %v1439 = vpop.f32.mrb[0].mxu0
        %1440 = vmatprep.mubr.bf16.mxu0 0
        %1441 = vmatmul.mubr.bf16.gmra.mrb[0].mxu0 %v938
        %v1442 = vpop.f32.mrb[0].mxu0
        %v1443 = vadd.f32 %v987, %v1442
        %v1444 = vpop.f32.mrb[0].mxu0
        %v1445 = vpop.f32.mrb[0].mxu0
        %v1446 = vadd.f32 %v987, %v1445
        %v1447 = vpop.f32.mrb[0].mxu0
        %1448 = vmatprep.mubr.bf16.mxu0 0
        %1449 = vmatmul.mubr.bf16.gmra.mrb[0].mxu0 %v939
        %v1450 = vpop.f32.mrb[0].mxu0
        %v1451 = vadd.f32 %v987, %v1450
        %v1452 = vpop.f32.mrb[0].mxu0
        %v1453 = vpop.f32.mrb[0].mxu0
        %v1454 = vadd.f32 %v987, %v1453
        %v1455 = vpop.f32.mrb[0].mxu0
        %1456 = vmatprep.mubr.bf16.mxu0 0
        %1457 = vmatmul.mubr.bf16.gmra.mrb[0].mxu0 %v940
        %v1458 = vpop.f32.mrb[0].mxu0
        %v1459 = vadd.f32 %v987, %v1458
        %v1460 = vpop.f32.mrb[0].mxu0
        %v1461 = vpop.f32.mrb[0].mxu0
        %v1462 = vadd.f32 %v987, %v1461
        %v1463 = vpop.f32.mrb[0].mxu0
        %1464 = vmatprep.mubr.bf16.mxu0 0
        %1465 = vmatmul.mubr.bf16.gmra.mrb[0].mxu0 %v941
        %v1466 = vpop.f32.mrb[0].mxu0
        %v1467 = vadd.f32 %v987, %v1466
        %v1468 = vpop.f32.mrb[0].mxu0
        %v1469 = vpop.f32.mrb[0].mxu0
        %v1470 = vadd.f32 %v987, %v1469
        %v1471 = vpop.f32.mrb[0].mxu0
        %1472 = vdwg.mxu0
        %v1473 = vpack.c.bf16 %v1158, %v1154
        %v1474 = vpack.c.bf16 %v1160, %v1156
        %v1475 = vpack.c.bf16 %v1350, %v1347
        %v1476 = vpack.c.bf16 %v1168, %v1164
        %v1477 = vpack.c.bf16 %v1170, %v1166
        %v1478 = vpack.c.bf16 %v1358, %v1355
        %v1479 = vpack.c.bf16 %v1178, %v1174
        %v1480 = vpack.c.bf16 %v1180, %v1176
        %v1481 = vpack.c.bf16 %v1366, %v1363
        %v1482 = vpack.c.bf16 %v1188, %v1184
        %v1483 = vpack.c.bf16 %v1190, %v1186
        %v1484 = vpack.c.bf16 %v1374, %v1371
        %v1485 = vpack.c.bf16 %v1198, %v1194
        %v1486 = vpack.c.bf16 %v1200, %v1196
        %v1487 = vpack.c.bf16 %v1382, %v1379
        %v1488 = vpack.c.bf16 %v1208, %v1204
        %v1489 = vpack.c.bf16 %v1210, %v1206
        %v1490 = vpack.c.bf16 %v1390, %v1387
        %v1491 = vpack.c.bf16 %v1218, %v1214
        %v1492 = vpack.c.bf16 %v1220, %v1216
        %v1493 = vpack.c.bf16 %v1398, %v1395
        %v1494 = vpack.c.bf16 %v1228, %v1224
        %v1495 = vpack.c.bf16 %v1230, %v1226
        %v1496 = vpack.c.bf16 %v1406, %v1403
        %v1497 = vpack.c.bf16 %v1238, %v1234
        %v1498 = vpack.c.bf16 %v1240, %v1236
        %v1499 = vpack.c.bf16 %v1414, %v1411
        %v1500 = vpack.c.bf16 %v1248, %v1244
        %v1501 = vpack.c.bf16 %v1250, %v1246
        %v1502 = vpack.c.bf16 %v1422, %v1419
        %v1503 = vpack.c.bf16 %v1258, %v1254
        %v1504 = vpack.c.bf16 %v1260, %v1256
        %v1505 = vpack.c.bf16 %v1430, %v1427
        %v1506 = vpack.c.bf16 %v1268, %v1264
        %v1507 = vpack.c.bf16 %v1270, %v1266
        %v1508 = vpack.c.bf16 %v1438, %v1435
        %v1509 = vpack.c.bf16 %v1278, %v1274
        %v1510 = vpack.c.bf16 %v1280, %v1276
        %v1511 = vpack.c.bf16 %v1446, %v1443
        %v1512 = vpack.c.bf16 %v1288, %v1284
        %v1513 = vpack.c.bf16 %v1290, %v1286
        %v1514 = vpack.c.bf16 %v1454, %v1451
        %v1515 = vpack.c.bf16 %v1298, %v1294
        %v1516 = vpack.c.bf16 %v1300, %v1296
        %v1517 = vpack.c.bf16 %v1462, %v1459
        %v1518 = vpack.c.bf16 %v1308, %v1304
        %v1519 = vpack.c.bf16 %v1310, %v1306
        %v1520 = vpack.c.bf16 %v1470, %v1467
        %v1521 = vlaneseq
        %v1522 = vshrl.u32 %v1521, 7
        %v1523 = vadd.s32 %v1522, 8
        %v1524 = vadd.s32 %v1522, 16
        %v1525 = vadd.s32 %v1522, 24
        %v1526 = vadd.s32 %v1522, 32
        %v1527 = vadd.s32 %v1522, 40
        %v1528 = vadd.s32 %v1522, 48
        %v1529 = vadd.s32 %v1522, 56
        %v1530 = vadd.s32 %v1522, 64
        %v1531 = vadd.s32 %v1522, 72
        %v1532 = vadd.s32 %v1522, 80
        %v1533 = vadd.s32 %v1522, 88
        %v1534 = vadd.s32 %v1522, 96
        %v1535 = vadd.s32 %v1522, 104
        %v1536 = vadd.s32 %v1522, 112
        %v1537 = vadd.s32 %v1522, 120
        %v1538 = vlaneseq
        %v1539 = vand.u32 %v1538, 127
        %vm1540 = vcmp.ge.s32.totalorder %v1522, %v1539
        %vm1541 = vcmp.ge.s32.totalorder %v1523, %v1539
        %vm1542 = vcmp.ge.s32.totalorder %v1524, %v1539
        %vm1543 = vcmp.ge.s32.totalorder %v1525, %v1539
        %vm1544 = vcmp.ge.s32.totalorder %v1526, %v1539
        %vm1545 = vcmp.ge.s32.totalorder %v1527, %v1539
        %vm1546 = vcmp.ge.s32.totalorder %v1528, %v1539
        %vm1547 = vcmp.ge.s32.totalorder %v1529, %v1539
        %vm1548 = vcmp.ge.s32.totalorder %v1530, %v1539
        %vm1549 = vcmp.ge.s32.totalorder %v1531, %v1539
        %vm1550 = vcmp.ge.s32.totalorder %v1532, %v1539
        %vm1551 = vcmp.ge.s32.totalorder %v1533, %v1539
        %vm1552 = vcmp.ge.s32.totalorder %v1534, %v1539
        %vm1553 = vcmp.ge.s32.totalorder %v1535, %v1539
        %vm1554 = vcmp.ge.s32.totalorder %v1536, %v1539
        %vm1555 = vcmp.ge.s32.totalorder %v1537, %v1539
        %vm1556 = vcmask 261120
        %v1558 = vsel %vm1556, %v1473, 0
        %v1561 = vsel %vm1556, %v1476, 0
        %v1564 = vsel %vm1556, %v1479, 0
        %v1567 = vsel %vm1556, %v1482, 0
        %v1570 = vsel %vm1556, %v1485, 0
        %v1573 = vsel %vm1556, %v1488, 0
        %v1576 = vsel %vm1556, %v1491, 0
        %v1579 = vsel %vm1556, %v1494, 0
        %v1582 = vsel %vm1556, %v1474, 0
        %v1585 = vsel %vm1556, %v1477, 0
        %v1588 = vsel %vm1556, %v1480, 0
        %v1591 = vsel %vm1556, %v1483, 0
        %v1594 = vsel %vm1556, %v1486, 0
        %v1597 = vsel %vm1556, %v1489, 0
        %v1600 = vsel %vm1556, %v1492, 0
        %v1603 = vsel %vm1556, %v1495, 0
        %1605 = vmatprep.subr.bf16.mxu0 0
        %1606 = vmatpush1.bf16.xpose.msra.mxu0 %v1582
        %1607 = vmatprep.subr.bf16.mxu0 0
        %1608 = vmatpush1.bf16.xpose.msra.mxu0 %v1585
        %1609 = vmatprep.subr.bf16.mxu0 0
        %1610 = vmatpush1.bf16.xpose.msra.mxu0 %v1588
        %1611 = vmatprep.subr.bf16.mxu0 0
        %1612 = vmatpush1.bf16.xpose.msra.mxu0 %v1591
        %1613 = vmatprep.subr.bf16.mxu0 0
        %1614 = vmatpush1.bf16.xpose.msra.mxu0 %v1594
        %1615 = vmatprep.subr.bf16.mxu0 0
        %1616 = vmatpush1.bf16.xpose.msra.mxu0 %v1597
        %1617 = vmatprep.subr.bf16.mxu0 0
        %1618 = vmatpush1.bf16.xpose.msra.mxu0 %v1600
        %1619 = vmatprep.subr.bf16.mxu0 0
        %1620 = vmatpush1.bf16.xpose.msra.mxu0 %v1603
        %1621 = vmatprep.subr.bf16.mxu0 0
        %1622 = vmatpush1.bf16.xpose.msra.mxu0 0
        %1623 = vmatprep.subr.bf16.mxu0 0
        %1624 = vmatpush1.bf16.xpose.msra.mxu0 0
        %1625 = vmatprep.subr.bf16.mxu0 0
        %1626 = vmatpush1.bf16.xpose.msra.mxu0 0
        %1627 = vmatprep.subr.bf16.mxu0 0
        %1628 = vmatpush1.bf16.xpose.msra.mxu0 0
        %1629 = vmatprep.subr.bf16.mxu0 0
        %1630 = vmatpush1.bf16.xpose.msra.mxu0 0
        %1631 = vmatprep.subr.bf16.mxu0 0
        %1632 = vmatpush1.bf16.xpose.msra.mxu0 0
        %1633 = vmatprep.subr.bf16.mxu0 0
        %1634 = vmatpush1.bf16.xpose.msra.mxu0 0
        %1635 = vmatprep.subr.bf16.mxu0 0
        %1636 = vmatpush1.bf16.xpose.msra.mxu0 0
        %1637 = vmatprep.mubr.bf16.mxu0 0
        %1638 = vmatmul.mubr.bf16.gmra.mrb[0].mxu0 %v1558
        %v1639 = vpop.f32.mrb[0].mxu0
        %v1640 = vadd.f32 0.0, %v1639
        %v1641 = vpop.f32.mrb[0].mxu0
        %v1642 = vpop.f32.mrb[0].mxu0
        %v1643 = vadd.f32 0.0, %v1642
        %v1644 = vpop.f32.mrb[0].mxu0
        %1645 = vmatprep.mubr.bf16.mxu0 0
        %1646 = vmatmul.mubr.bf16.gmra.mrb[0].mxu0 %v1561
        %v1647 = vpop.f32.mrb[0].mxu0
        %v1648 = vadd.f32 0.0, %v1647
        %v1649 = vpop.f32.mrb[0].mxu0
        %v1650 = vpop.f32.mrb[0].mxu0
        %v1651 = vadd.f32 0.0, %v1650
        %v1652 = vpop.f32.mrb[0].mxu0
        %1653 = vmatprep.mubr.bf16.mxu0 0
        %1654 = vmatmul.mubr.bf16.gmra.mrb[0].mxu0 %v1564
        %v1655 = vpop.f32.mrb[0].mxu0
        %v1656 = vadd.f32 0.0, %v1655
        %v1657 = vpop.f32.mrb[0].mxu0
        %v1658 = vpop.f32.mrb[0].mxu0
        %v1659 = vadd.f32 0.0, %v1658
        %v1660 = vpop.f32.mrb[0].mxu0
        %1661 = vmatprep.mubr.bf16.mxu0 0
        %1662 = vmatmul.mubr.bf16.gmra.mrb[0].mxu0 %v1567
        %v1663 = vpop.f32.mrb[0].mxu0
        %v1664 = vadd.f32 0.0, %v1663
        %v1665 = vpop.f32.mrb[0].mxu0
        %v1666 = vpop.f32.mrb[0].mxu0
        %v1667 = vadd.f32 0.0, %v1666
        %v1668 = vpop.f32.mrb[0].mxu0
        %1669 = vmatprep.mubr.bf16.mxu0 0
        %1670 = vmatmul.mubr.bf16.gmra.mrb[0].mxu0 %v1570
        %v1671 = vpop.f32.mrb[0].mxu0
        %v1672 = vadd.f32 0.0, %v1671
        %v1673 = vpop.f32.mrb[0].mxu0
        %v1674 = vpop.f32.mrb[0].mxu0
        %v1675 = vadd.f32 0.0, %v1674
        %v1676 = vpop.f32.mrb[0].mxu0
        %1677 = vmatprep.mubr.bf16.mxu0 0
        %1678 = vmatmul.mubr.bf16.gmra.mrb[0].mxu0 %v1573
        %v1679 = vpop.f32.mrb[0].mxu0
        %v1680 = vadd.f32 0.0, %v1679
        %v1681 = vpop.f32.mrb[0].mxu0
        %v1682 = vpop.f32.mrb[0].mxu0
        %v1683 = vadd.f32 0.0, %v1682
        %v1684 = vpop.f32.mrb[0].mxu0
        %1685 = vmatprep.mubr.bf16.mxu0 0
        %1686 = vmatmul.mubr.bf16.gmra.mrb[0].mxu0 %v1576
        %v1687 = vpop.f32.mrb[0].mxu0
        %v1688 = vadd.f32 0.0, %v1687
        %v1689 = vpop.f32.mrb[0].mxu0
        %v1690 = vpop.f32.mrb[0].mxu0
        %v1691 = vadd.f32 0.0, %v1690
        %v1692 = vpop.f32.mrb[0].mxu0
        %1693 = vmatprep.mubr.bf16.mxu0 0
        %1694 = vmatmul.mubr.bf16.gmra.mrb[0].mxu0 %v1579
        %v1695 = vpop.f32.mrb[0].mxu0
        %v1696 = vadd.f32 0.0, %v1695
        %v1697 = vpop.f32.mrb[0].mxu0
        %v1698 = vpop.f32.mrb[0].mxu0
        %v1699 = vadd.f32 0.0, %v1698
        %v1700 = vpop.f32.mrb[0].mxu0
        %1701 = vdwg.mxu0
        %v1703 = vsel %vm1556, %v1497, 0
        %v1706 = vsel %vm1556, %v1500, 0
        %v1709 = vsel %vm1556, %v1503, 0
        %v1712 = vsel %vm1556, %v1506, 0
        %v1715 = vsel %vm1556, %v1509, 0
        %v1718 = vsel %vm1556, %v1512, 0
        %v1721 = vsel %vm1556, %v1515, 0
        %v1724 = vsel %vm1556, %v1518, 0
        %v1727 = vsel %vm1556, %v1498, 0
        %v1730 = vsel %vm1556, %v1501, 0
        %v1733 = vsel %vm1556, %v1504, 0
        %v1736 = vsel %vm1556, %v1507, 0
        %v1739 = vsel %vm1556, %v1510, 0
        %v1742 = vsel %vm1556, %v1513, 0
        %v1745 = vsel %vm1556, %v1516, 0
        %v1748 = vsel %vm1556, %v1519, 0
        %1750 = vmatprep.subr.bf16.mxu0 0
        %1751 = vmatpush1.bf16.xpose.msra.mxu0 %v1727
        %1752 = vmatprep.subr.bf16.mxu0 0
        %1753 = vmatpush1.bf16.xpose.msra.mxu0 %v1730
        %1754 = vmatprep.subr.bf16.mxu0 0
        %1755 = vmatpush1.bf16.xpose.msra.mxu0 %v1733
        %1756 = vmatprep.subr.bf16.mxu0 0
        %1757 = vmatpush1.bf16.xpose.msra.mxu0 %v1736
        %1758 = vmatprep.subr.bf16.mxu0 0
        %1759 = vmatpush1.bf16.xpose.msra.mxu0 %v1739
        %1760 = vmatprep.subr.bf16.mxu0 0
        %1761 = vmatpush1.bf16.xpose.msra.mxu0 %v1742
        %1762 = vmatprep.subr.bf16.mxu0 0
        %1763 = vmatpush1.bf16.xpose.msra.mxu0 %v1745
        %1764 = vmatprep.subr.bf16.mxu0 0
        %1765 = vmatpush1.bf16.xpose.msra.mxu0 %v1748
        %1766 = vmatprep.subr.bf16.mxu0 0
        %1767 = vmatpush1.bf16.xpose.msra.mxu0 0
        %1768 = vmatprep.subr.bf16.mxu0 0
        %1769 = vmatpush1.bf16.xpose.msra.mxu0 0
        %1770 = vmatprep.subr.bf16.mxu0 0
        %1771 = vmatpush1.bf16.xpose.msra.mxu0 0
        %1772 = vmatprep.subr.bf16.mxu0 0
        %1773 = vmatpush1.bf16.xpose.msra.mxu0 0
        %1774 = vmatprep.subr.bf16.mxu0 0
        %1775 = vmatpush1.bf16.xpose.msra.mxu0 0
        %1776 = vmatprep.subr.bf16.mxu0 0
        %1777 = vmatpush1.bf16.xpose.msra.mxu0 0
        %1778 = vmatprep.subr.bf16.mxu0 0
        %1779 = vmatpush1.bf16.xpose.msra.mxu0 0
        %1780 = vmatprep.subr.bf16.mxu0 0
        %1781 = vmatpush1.bf16.xpose.msra.mxu0 0
        %1782 = vmatprep.mubr.bf16.mxu0 0
        %1783 = vmatmul.mubr.bf16.gmra.mrb[0].mxu0 %v1703
        %v1784 = vpop.f32.mrb[0].mxu0
        %v1785 = vadd.f32 0.0, %v1784
        %v1786 = vpop.f32.mrb[0].mxu0
        %v1787 = vpop.f32.mrb[0].mxu0
        %v1788 = vadd.f32 0.0, %v1787
        %v1789 = vpop.f32.mrb[0].mxu0
        %1790 = vmatprep.mubr.bf16.mxu0 0
        %1791 = vmatmul.mubr.bf16.gmra.mrb[0].mxu0 %v1706
        %v1792 = vpop.f32.mrb[0].mxu0
        %v1793 = vadd.f32 0.0, %v1792
        %v1794 = vpop.f32.mrb[0].mxu0
        %v1795 = vpop.f32.mrb[0].mxu0
        %v1796 = vadd.f32 0.0, %v1795
        %v1797 = vpop.f32.mrb[0].mxu0
        %1798 = vmatprep.mubr.bf16.mxu0 0
        %1799 = vmatmul.mubr.bf16.gmra.mrb[0].mxu0 %v1709
        %v1800 = vpop.f32.mrb[0].mxu0
        %v1801 = vadd.f32 0.0, %v1800
        %v1802 = vpop.f32.mrb[0].mxu0
        %v1803 = vpop.f32.mrb[0].mxu0
        %v1804 = vadd.f32 0.0, %v1803
        %v1805 = vpop.f32.mrb[0].mxu0
        %1806 = vmatprep.mubr.bf16.mxu0 0
        %1807 = vmatmul.mubr.bf16.gmra.mrb[0].mxu0 %v1712
        %v1808 = vpop.f32.mrb[0].mxu0
        %v1809 = vadd.f32 0.0, %v1808
        %v1810 = vpop.f32.mrb[0].mxu0
        %v1811 = vpop.f32.mrb[0].mxu0
        %v1812 = vadd.f32 0.0, %v1811
        %v1813 = vpop.f32.mrb[0].mxu0
        %1814 = vmatprep.mubr.bf16.mxu0 0
        %1815 = vmatmul.mubr.bf16.gmra.mrb[0].mxu0 %v1715
        %v1816 = vpop.f32.mrb[0].mxu0
        %v1817 = vadd.f32 0.0, %v1816
        %v1818 = vpop.f32.mrb[0].mxu0
        %v1819 = vpop.f32.mrb[0].mxu0
        %v1820 = vadd.f32 0.0, %v1819
        %v1821 = vpop.f32.mrb[0].mxu0
        %1822 = vmatprep.mubr.bf16.mxu0 0
        %1823 = vmatmul.mubr.bf16.gmra.mrb[0].mxu0 %v1718
        %v1824 = vpop.f32.mrb[0].mxu0
        %v1825 = vadd.f32 0.0, %v1824
        %v1826 = vpop.f32.mrb[0].mxu0
        %v1827 = vpop.f32.mrb[0].mxu0
        %v1828 = vadd.f32 0.0, %v1827
        %v1829 = vpop.f32.mrb[0].mxu0
        %1830 = vmatprep.mubr.bf16.mxu0 0
        %1831 = vmatmul.mubr.bf16.gmra.mrb[0].mxu0 %v1721
        %v1832 = vpop.f32.mrb[0].mxu0
        %v1833 = vadd.f32 0.0, %v1832
        %v1834 = vpop.f32.mrb[0].mxu0
        %v1835 = vpop.f32.mrb[0].mxu0
        %v1836 = vadd.f32 0.0, %v1835
        %v1837 = vpop.f32.mrb[0].mxu0
        %1838 = vmatprep.mubr.bf16.mxu0 0
        %1839 = vmatmul.mubr.bf16.gmra.mrb[0].mxu0 %v1724
        %v1840 = vpop.f32.mrb[0].mxu0
        %v1841 = vadd.f32 0.0, %v1840
        %v1842 = vpop.f32.mrb[0].mxu0
        %v1843 = vpop.f32.mrb[0].mxu0
        %v1844 = vadd.f32 0.0, %v1843
        %v1845 = vpop.f32.mrb[0].mxu0
        %1846 = vdwg.mxu0
        %v1847 = vsel %vm1540, 1, 0
        %v1848 = vsel %vm1541, 1, 0
        %v1849 = vsel %vm1542, 1, 0
        %v1850 = vsel %vm1543, 1, 0
        %v1851 = vsel %vm1544, 1, 0
        %v1852 = vsel %vm1545, 1, 0
        %v1853 = vsel %vm1546, 1, 0
        %v1854 = vsel %vm1547, 1, 0
        %v1855 = vsel %vm1548, 1, 0
        %v1856 = vsel %vm1549, 1, 0
        %v1857 = vsel %vm1550, 1, 0
        %v1858 = vsel %vm1551, 1, 0
        %v1859 = vsel %vm1552, 1, 0
        %v1860 = vsel %vm1553, 1, 0
        %v1861 = vsel %vm1554, 1, 0
        %v1862 = vsel %vm1555, 1, 0
        %vm1863 = vcmp.eq.s32.totalorder %v1847, 1
        %vm1864 = vcmp.eq.s32.totalorder %v1848, 1
        %vm1865 = vcmp.eq.s32.totalorder %v1849, 1
        %vm1866 = vcmp.eq.s32.totalorder %v1850, 1
        %vm1867 = vcmp.eq.s32.totalorder %v1851, 1
        %vm1868 = vcmp.eq.s32.totalorder %v1852, 1
        %vm1869 = vcmp.eq.s32.totalorder %v1853, 1
        %vm1870 = vcmp.eq.s32.totalorder %v1854, 1
        %vm1871 = vcmp.eq.s32.totalorder %v1855, 1
        %vm1872 = vcmp.eq.s32.totalorder %v1856, 1
        %vm1873 = vcmp.eq.s32.totalorder %v1857, 1
        %vm1874 = vcmp.eq.s32.totalorder %v1858, 1
        %vm1875 = vcmp.eq.s32.totalorder %v1859, 1
        %vm1876 = vcmp.eq.s32.totalorder %v1860, 1
        %vm1877 = vcmp.eq.s32.totalorder %v1861, 1
        %vm1878 = vcmp.eq.s32.totalorder %v1862, 1
        %v1879 = vsel %vm1863, %v1640, -inf
        %v1880 = vsel %vm1864, %v1643, -inf
        %v1881 = vsel %vm1865, %v1648, -inf
        %v1882 = vsel %vm1866, %v1651, -inf
        %v1883 = vsel %vm1867, %v1656, -inf
        %v1884 = vsel %vm1868, %v1659, -inf
        %v1885 = vsel %vm1869, %v1664, -inf
        %v1886 = vsel %vm1870, %v1667, -inf
        %v1887 = vsel %vm1871, %v1672, -inf
        %v1888 = vsel %vm1872, %v1675, -inf
        %v1889 = vsel %vm1873, %v1680, -inf
        %v1890 = vsel %vm1874, %v1683, -inf
        %v1891 = vsel %vm1875, %v1688, -inf
        %v1892 = vsel %vm1876, %v1691, -inf
        %v1893 = vsel %vm1877, %v1696, -inf
        %v1894 = vsel %vm1878, %v1699, -inf
        %v1895 = vsel %vm1863, %v1785, -inf
        %v1896 = vsel %vm1864, %v1788, -inf
        %v1897 = vsel %vm1865, %v1793, -inf
        %v1898 = vsel %vm1866, %v1796, -inf
        %v1899 = vsel %vm1867, %v1801, -inf
        %v1900 = vsel %vm1868, %v1804, -inf
        %v1901 = vsel %vm1869, %v1809, -inf
        %v1902 = vsel %vm1870, %v1812, -inf
        %v1903 = vsel %vm1871, %v1817, -inf
        %v1904 = vsel %vm1872, %v1820, -inf
        %v1905 = vsel %vm1873, %v1825, -inf
        %v1906 = vsel %vm1874, %v1828, -inf
        %v1907 = vsel %vm1875, %v1833, -inf
        %v1908 = vsel %vm1876, %v1836, -inf
        %v1909 = vsel %vm1877, %v1841, -inf
        %v1910 = vsel %vm1878, %v1844, -inf
        %1911 = vmax.xlane.f32.xlu0 %v1879
        %v1912 = vpop.xlane.xlu0 %1911
        %1913 = vmax.xlane.f32.xlu0 %v1880
        %v1914 = vpop.xlane.xlu0 %1913
        %1915 = vmax.xlane.f32.xlu0 %v1881
        %v1916 = vpop.xlane.xlu0 %1915
        %1917 = vmax.xlane.f32.xlu0 %v1882
        %v1918 = vpop.xlane.xlu0 %1917
        %1919 = vmax.xlane.f32.xlu0 %v1883
        %v1920 = vpop.xlane.xlu0 %1919
        %1921 = vmax.xlane.f32.xlu0 %v1884
        %v1922 = vpop.xlane.xlu0 %1921
        %1923 = vmax.xlane.f32.xlu0 %v1885
        %v1924 = vpop.xlane.xlu0 %1923
        %1925 = vmax.xlane.f32.xlu0 %v1886
        %v1926 = vpop.xlane.xlu0 %1925
        %1927 = vmax.xlane.f32.xlu0 %v1887
        %v1928 = vpop.xlane.xlu0 %1927
        %1929 = vmax.xlane.f32.xlu0 %v1888
        %v1930 = vpop.xlane.xlu0 %1929
        %1931 = vmax.xlane.f32.xlu0 %v1889
        %v1932 = vpop.xlane.xlu0 %1931
        %1933 = vmax.xlane.f32.xlu0 %v1890
        %v1934 = vpop.xlane.xlu0 %1933
        %1935 = vmax.xlane.f32.xlu0 %v1891
        %v1936 = vpop.xlane.xlu0 %1935
        %1937 = vmax.xlane.f32.xlu0 %v1892
        %v1938 = vpop.xlane.xlu0 %1937
        %1939 = vmax.xlane.f32.xlu0 %v1893
        %v1940 = vpop.xlane.xlu0 %1939
        %1941 = vmax.xlane.f32.xlu0 %v1894
        %v1942 = vpop.xlane.xlu0 %1941
        %1943 = vmax.xlane.f32.xlu0 %v1895
        %v1944 = vpop.xlane.xlu0 %1943
        %1945 = vmax.xlane.f32.xlu0 %v1896
        %v1946 = vpop.xlane.xlu0 %1945
        %1947 = vmax.xlane.f32.xlu0 %v1897
        %v1948 = vpop.xlane.xlu0 %1947
        %1949 = vmax.xlane.f32.xlu0 %v1898
        %v1950 = vpop.xlane.xlu0 %1949
        %1951 = vmax.xlane.f32.xlu0 %v1899
        %v1952 = vpop.xlane.xlu0 %1951
        %1953 = vmax.xlane.f32.xlu0 %v1900
        %v1954 = vpop.xlane.xlu0 %1953
        %1955 = vmax.xlane.f32.xlu0 %v1901
        %v1956 = vpop.xlane.xlu0 %1955
        %1957 = vmax.xlane.f32.xlu0 %v1902
        %v1958 = vpop.xlane.xlu0 %1957
        %1959 = vmax.xlane.f32.xlu0 %v1903
        %v1960 = vpop.xlane.xlu0 %1959
        %1961 = vmax.xlane.f32.xlu0 %v1904
        %v1962 = vpop.xlane.xlu0 %1961
        %1963 = vmax.xlane.f32.xlu0 %v1905
        %v1964 = vpop.xlane.xlu0 %1963
        %1965 = vmax.xlane.f32.xlu0 %v1906
        %v1966 = vpop.xlane.xlu0 %1965
        %1967 = vmax.xlane.f32.xlu0 %v1907
        %v1968 = vpop.xlane.xlu0 %1967
        %1969 = vmax.xlane.f32.xlu0 %v1908
        %v1970 = vpop.xlane.xlu0 %1969
        %1971 = vmax.xlane.f32.xlu0 %v1909
        %v1972 = vpop.xlane.xlu0 %1971
        %1973 = vmax.xlane.f32.xlu0 %v1910
        %v1974 = vpop.xlane.xlu0 %1973
        %v1975 = vsub.f32 %v1879, %v1912
        %v1976 = vsub.f32 %v1880, %v1914
        %v1977 = vsub.f32 %v1881, %v1916
        %v1978 = vsub.f32 %v1882, %v1918
        %v1979 = vsub.f32 %v1883, %v1920
        %v1980 = vsub.f32 %v1884, %v1922
        %v1981 = vsub.f32 %v1885, %v1924
        %v1982 = vsub.f32 %v1886, %v1926
        %v1983 = vsub.f32 %v1887, %v1928
        %v1984 = vsub.f32 %v1888, %v1930
        %v1985 = vsub.f32 %v1889, %v1932
        %v1986 = vsub.f32 %v1890, %v1934
        %v1987 = vsub.f32 %v1891, %v1936
        %v1988 = vsub.f32 %v1892, %v1938
        %v1989 = vsub.f32 %v1893, %v1940
        %v1990 = vsub.f32 %v1894, %v1942
        %v1991 = vsub.f32 %v1895, %v1944
        %v1992 = vsub.f32 %v1896, %v1946
        %v1993 = vsub.f32 %v1897, %v1948
        %v1994 = vsub.f32 %v1898, %v1950
        %v1995 = vsub.f32 %v1899, %v1952
        %v1996 = vsub.f32 %v1900, %v1954
        %v1997 = vsub.f32 %v1901, %v1956
        %v1998 = vsub.f32 %v1902, %v1958
        %v1999 = vsub.f32 %v1903, %v1960
        %v2000 = vsub.f32 %v1904, %v1962
        %v2001 = vsub.f32 %v1905, %v1964
        %v2002 = vsub.f32 %v1906, %v1966
        %v2003 = vsub.f32 %v1907, %v1968
        %v2004 = vsub.f32 %v1908, %v1970
        %v2005 = vsub.f32 %v1909, %v1972
        %v2006 = vsub.f32 %v1910, %v1974
        %v2007 = vmul.f32 %v1975, 1.442695
        %v2008 = vpow.pop %v2007
        %v2009 = vmul.f32 %v1976, 1.442695
        %v2010 = vpow.pop %v2009
        %v2011 = vmul.f32 %v1977, 1.442695
        %v2012 = vpow.pop %v2011
        %v2013 = vmul.f32 %v1978, 1.442695
        %v2014 = vpow.pop %v2013
        %v2015 = vmul.f32 %v1979, 1.442695
        %v2016 = vpow.pop %v2015
        %v2017 = vmul.f32 %v1980, 1.442695
        %v2018 = vpow.pop %v2017
        %v2019 = vmul.f32 %v1981, 1.442695
        %v2020 = vpow.pop %v2019
        %v2021 = vmul.f32 %v1982, 1.442695
        %v2022 = vpow.pop %v2021
        %v2023 = vmul.f32 %v1983, 1.442695
        %v2024 = vpow.pop %v2023
        %v2025 = vmul.f32 %v1984, 1.442695
        %v2026 = vpow.pop %v2025
        %v2027 = vmul.f32 %v1985, 1.442695
        %v2028 = vpow.pop %v2027
        %v2029 = vmul.f32 %v1986, 1.442695
        %v2030 = vpow.pop %v2029
        %v2031 = vmul.f32 %v1987, 1.442695
        %v2032 = vpow.pop %v2031
        %v2033 = vmul.f32 %v1988, 1.442695
        %v2034 = vpow.pop %v2033
        %v2035 = vmul.f32 %v1989, 1.442695
        %v2036 = vpow.pop %v2035
        %v2037 = vmul.f32 %v1990, 1.442695
        %v2038 = vpow.pop %v2037
        %v2039 = vmul.f32 %v1991, 1.442695
        %v2040 = vpow.pop %v2039
        %v2041 = vmul.f32 %v1992, 1.442695
        %v2042 = vpow.pop %v2041
        %v2043 = vmul.f32 %v1993, 1.442695
        %v2044 = vpow.pop %v2043
        %v2045 = vmul.f32 %v1994, 1.442695
        %v2046 = vpow.pop %v2045
        %v2047 = vmul.f32 %v1995, 1.442695
        %v2048 = vpow.pop %v2047
        %v2049 = vmul.f32 %v1996, 1.442695
        %v2050 = vpow.pop %v2049
        %v2051 = vmul.f32 %v1997, 1.442695
        %v2052 = vpow.pop %v2051
        %v2053 = vmul.f32 %v1998, 1.442695
        %v2054 = vpow.pop %v2053
        %v2055 = vmul.f32 %v1999, 1.442695
        %v2056 = vpow.pop %v2055
        %v2057 = vmul.f32 %v2000, 1.442695
        %v2058 = vpow.pop %v2057
        %v2059 = vmul.f32 %v2001, 1.442695
        %v2060 = vpow.pop %v2059
        %v2061 = vmul.f32 %v2002, 1.442695
        %v2062 = vpow.pop %v2061
        %v2063 = vmul.f32 %v2003, 1.442695
        %v2064 = vpow.pop %v2063
        %v2065 = vmul.f32 %v2004, 1.442695
        %v2066 = vpow.pop %v2065
        %v2067 = vmul.f32 %v2005, 1.442695
        %v2068 = vpow.pop %v2067
        %v2069 = vmul.f32 %v2006, 1.442695
        %v2070 = vpow.pop %v2069
        %2071 = vadd.xlane.f32.xlu0 %v2008
        %v2072 = vpop.xlane.xlu0 %2071
        %2073 = vadd.xlane.f32.xlu0 %v2010
        %v2074 = vpop.xlane.xlu0 %2073
        %2075 = vadd.xlane.f32.xlu0 %v2012
        %v2076 = vpop.xlane.xlu0 %2075
        %2077 = vadd.xlane.f32.xlu0 %v2014
        %v2078 = vpop.xlane.xlu0 %2077
        %2079 = vadd.xlane.f32.xlu0 %v2016
        %v2080 = vpop.xlane.xlu0 %2079
        %2081 = vadd.xlane.f32.xlu0 %v2018
        %v2082 = vpop.xlane.xlu0 %2081
        %2083 = vadd.xlane.f32.xlu0 %v2020
        %v2084 = vpop.xlane.xlu0 %2083
        %2085 = vadd.xlane.f32.xlu0 %v2022
        %v2086 = vpop.xlane.xlu0 %2085
        %2087 = vadd.xlane.f32.xlu0 %v2024
        %v2088 = vpop.xlane.xlu0 %2087
        %2089 = vadd.xlane.f32.xlu0 %v2026
        %v2090 = vpop.xlane.xlu0 %2089
        %2091 = vadd.xlane.f32.xlu0 %v2028
        %v2092 = vpop.xlane.xlu0 %2091
        %2093 = vadd.xlane.f32.xlu0 %v2030
        %v2094 = vpop.xlane.xlu0 %2093
        %2095 = vadd.xlane.f32.xlu0 %v2032
        %v2096 = vpop.xlane.xlu0 %2095
        %2097 = vadd.xlane.f32.xlu0 %v2034
        %v2098 = vpop.xlane.xlu0 %2097
        %2099 = vadd.xlane.f32.xlu0 %v2036
        %v2100 = vpop.xlane.xlu0 %2099
        %2101 = vadd.xlane.f32.xlu0 %v2038
        %v2102 = vpop.xlane.xlu0 %2101
        %2103 = vadd.xlane.f32.xlu0 %v2040
        %v2104 = vpop.xlane.xlu0 %2103
        %2105 = vadd.xlane.f32.xlu0 %v2042
        %v2106 = vpop.xlane.xlu0 %2105
        %2107 = vadd.xlane.f32.xlu0 %v2044
        %v2108 = vpop.xlane.xlu0 %2107
        %2109 = vadd.xlane.f32.xlu0 %v2046
        %v2110 = vpop.xlane.xlu0 %2109
        %2111 = vadd.xlane.f32.xlu0 %v2048
        %v2112 = vpop.xlane.xlu0 %2111
        %2113 = vadd.xlane.f32.xlu0 %v2050
        %v2114 = vpop.xlane.xlu0 %2113
        %2115 = vadd.xlane.f32.xlu0 %v2052
        %v2116 = vpop.xlane.xlu0 %2115
        %2117 = vadd.xlane.f32.xlu0 %v2054
        %v2118 = vpop.xlane.xlu0 %2117
        %2119 = vadd.xlane.f32.xlu0 %v2056
        %v2120 = vpop.xlane.xlu0 %2119
        %2121 = vadd.xlane.f32.xlu0 %v2058
        %v2122 = vpop.xlane.xlu0 %2121
        %2123 = vadd.xlane.f32.xlu0 %v2060
        %v2124 = vpop.xlane.xlu0 %2123
        %2125 = vadd.xlane.f32.xlu0 %v2062
        %v2126 = vpop.xlane.xlu0 %2125
        %2127 = vadd.xlane.f32.xlu0 %v2064
        %v2128 = vpop.xlane.xlu0 %2127
        %2129 = vadd.xlane.f32.xlu0 %v2066
        %v2130 = vpop.xlane.xlu0 %2129
        %2131 = vadd.xlane.f32.xlu0 %v2068
        %v2132 = vpop.xlane.xlu0 %2131
        %2133 = vadd.xlane.f32.xlu0 %v2070
        %v2134 = vpop.xlane.xlu0 %2133
        %v2135 = vrcp.pop %v2072
        %v2136 = vrcp.pop %v2074
        %v2137 = vrcp.pop %v2076
        %v2138 = vrcp.pop %v2078
        %v2139 = vrcp.pop %v2080
        %v2140 = vrcp.pop %v2082
        %v2141 = vrcp.pop %v2084
        %v2142 = vrcp.pop %v2086
        %v2143 = vrcp.pop %v2088
        %v2144 = vrcp.pop %v2090
        %v2145 = vrcp.pop %v2092
        %v2146 = vrcp.pop %v2094
        %v2147 = vrcp.pop %v2096
        %v2148 = vrcp.pop %v2098
        %v2149 = vrcp.pop %v2100
        %v2150 = vrcp.pop %v2102
        %v2151 = vrcp.pop %v2104
        %v2152 = vrcp.pop %v2106
        %v2153 = vrcp.pop %v2108
        %v2154 = vrcp.pop %v2110
        %v2155 = vrcp.pop %v2112
        %v2156 = vrcp.pop %v2114
        %v2157 = vrcp.pop %v2116
        %v2158 = vrcp.pop %v2118
        %v2159 = vrcp.pop %v2120
        %v2160 = vrcp.pop %v2122
        %v2161 = vrcp.pop %v2124
        %v2162 = vrcp.pop %v2126
        %v2163 = vrcp.pop %v2128
        %v2164 = vrcp.pop %v2130
        %v2165 = vrcp.pop %v2132
        %v2166 = vrcp.pop %v2134
        %v2167 = vmul.f32 %v2008, %v2135
        %v2168 = vmul.f32 %v2010, %v2136
        %v2169 = vmul.f32 %v2012, %v2137
        %v2170 = vmul.f32 %v2014, %v2138
        %v2171 = vmul.f32 %v2016, %v2139
        %v2172 = vmul.f32 %v2018, %v2140
        %v2173 = vmul.f32 %v2020, %v2141
        %v2174 = vmul.f32 %v2022, %v2142
        %v2175 = vmul.f32 %v2024, %v2143
        %v2176 = vmul.f32 %v2026, %v2144
        %v2177 = vmul.f32 %v2028, %v2145
        %v2178 = vmul.f32 %v2030, %v2146
        %v2179 = vmul.f32 %v2032, %v2147
        %v2180 = vmul.f32 %v2034, %v2148
        %v2181 = vmul.f32 %v2036, %v2149
        %v2182 = vmul.f32 %v2038, %v2150
        %v2183 = vmul.f32 %v2040, %v2151
        %v2184 = vmul.f32 %v2042, %v2152
        %v2185 = vmul.f32 %v2044, %v2153
        %v2186 = vmul.f32 %v2046, %v2154
        %v2187 = vmul.f32 %v2048, %v2155
        %v2188 = vmul.f32 %v2050, %v2156
        %v2189 = vmul.f32 %v2052, %v2157
        %v2190 = vmul.f32 %v2054, %v2158
        %v2191 = vmul.f32 %v2056, %v2159
        %v2192 = vmul.f32 %v2058, %v2160
        %v2193 = vmul.f32 %v2060, %v2161
        %v2194 = vmul.f32 %v2062, %v2162
        %v2195 = vmul.f32 %v2064, %v2163
        %v2196 = vmul.f32 %v2066, %v2164
        %v2197 = vmul.f32 %v2068, %v2165
        %v2198 = vmul.f32 %v2070, %v2166
        %v2199 = vpack.c.bf16 %v2168, %v2167
        %v2200 = vpack.c.bf16 %v2170, %v2169
        %v2201 = vpack.c.bf16 %v2172, %v2171
        %v2202 = vpack.c.bf16 %v2174, %v2173
        %v2203 = vpack.c.bf16 %v2176, %v2175
        %v2204 = vpack.c.bf16 %v2178, %v2177
        %v2205 = vpack.c.bf16 %v2180, %v2179
        %v2206 = vpack.c.bf16 %v2182, %v2181
        %v2207 = vpack.c.bf16 %v2184, %v2183
        %v2208 = vpack.c.bf16 %v2186, %v2185
        %v2209 = vpack.c.bf16 %v2188, %v2187
        %v2210 = vpack.c.bf16 %v2190, %v2189
        %v2211 = vpack.c.bf16 %v2192, %v2191
        %v2212 = vpack.c.bf16 %v2194, %v2193
        %v2213 = vpack.c.bf16 %v2196, %v2195
        %v2214 = vpack.c.bf16 %v2198, %v2197
        %2215 = vmatprep.subr.bf16.mxu0 0
        %2216 = vmatpush1.bf16.msra.mxu0 %v1475
        %2217 = vmatprep.subr.bf16.mxu0 0
        %2218 = vmatpush1.bf16.msra.mxu0 %v1478
        %2219 = vmatprep.subr.bf16.mxu0 0
        %2220 = vmatpush1.bf16.msra.mxu0 %v1481
        %2221 = vmatprep.subr.bf16.mxu0 0
        %2222 = vmatpush1.bf16.msra.mxu0 %v1484
        %2223 = vmatprep.subr.bf16.mxu0 0
        %2224 = vmatpush1.bf16.msra.mxu0 %v1487
        %2225 = vmatprep.subr.bf16.mxu0 0
        %2226 = vmatpush1.bf16.msra.mxu0 %v1490
        %2227 = vmatprep.subr.bf16.mxu0 0
        %2228 = vmatpush1.bf16.msra.mxu0 %v1493
        %2229 = vmatprep.subr.bf16.mxu0 0
        %2230 = vmatpush1.bf16.msra.mxu0 %v1496
        %2231 = vmatprep.subr.bf16.mxu0 0
        %2232 = vmatpush1.bf16.msra.mxu0 0
        %2233 = vmatprep.subr.bf16.mxu0 0
        %2234 = vmatpush1.bf16.msra.mxu0 0
        %2235 = vmatprep.subr.bf16.mxu0 0
        %2236 = vmatpush1.bf16.msra.mxu0 0
        %2237 = vmatprep.subr.bf16.mxu0 0
        %2238 = vmatpush1.bf16.msra.mxu0 0
        %2239 = vmatprep.subr.bf16.mxu0 0
        %2240 = vmatpush1.bf16.msra.mxu0 0
        %2241 = vmatprep.subr.bf16.mxu0 0
        %2242 = vmatpush1.bf16.msra.mxu0 0
        %2243 = vmatprep.subr.bf16.mxu0 0
        %2244 = vmatpush1.bf16.msra.mxu0 0
        %2245 = vmatprep.subr.bf16.mxu0 0
        %2246 = vmatpush1.bf16.msra.mxu0 0
        %2247 = vmatprep.mubr.bf16.mxu0 0
        %2248 = vmatmul.mubr.bf16.gmra.mrb[0].mxu0 %v2199
        %v2249 = vpop.f32.mrb[0].mxu0
        %v2250 = vadd.f32 0.0, %v2249
        %v2251 = vpop.f32.mrb[0].mxu0
        %v2252 = vpop.f32.mrb[0].mxu0
        %v2253 = vadd.f32 0.0, %v2252
        %v2254 = vpop.f32.mrb[0].mxu0
        %2255 = vmatprep.mubr.bf16.mxu0 0
        %2256 = vmatmul.mubr.bf16.gmra.mrb[0].mxu0 %v2200
        %v2257 = vpop.f32.mrb[0].mxu0
        %v2258 = vadd.f32 0.0, %v2257
        %v2259 = vpop.f32.mrb[0].mxu0
        %v2260 = vpop.f32.mrb[0].mxu0
        %v2261 = vadd.f32 0.0, %v2260
        %v2262 = vpop.f32.mrb[0].mxu0
        %2263 = vmatprep.mubr.bf16.mxu0 0
        %2264 = vmatmul.mubr.bf16.gmra.mrb[0].mxu0 %v2201
        %v2265 = vpop.f32.mrb[0].mxu0
        %v2266 = vadd.f32 0.0, %v2265
        %v2267 = vpop.f32.mrb[0].mxu0
        %v2268 = vpop.f32.mrb[0].mxu0
        %v2269 = vadd.f32 0.0, %v2268
        %v2270 = vpop.f32.mrb[0].mxu0
        %2271 = vmatprep.mubr.bf16.mxu0 0
        %2272 = vmatmul.mubr.bf16.gmra.mrb[0].mxu0 %v2202
        %v2273 = vpop.f32.mrb[0].mxu0
        %v2274 = vadd.f32 0.0, %v2273
        %v2275 = vpop.f32.mrb[0].mxu0
        %v2276 = vpop.f32.mrb[0].mxu0
        %v2277 = vadd.f32 0.0, %v2276
        %v2278 = vpop.f32.mrb[0].mxu0
        %2279 = vmatprep.mubr.bf16.mxu0 0
        %2280 = vmatmul.mubr.bf16.gmra.mrb[0].mxu0 %v2203
        %v2281 = vpop.f32.mrb[0].mxu0
        %v2282 = vadd.f32 0.0, %v2281
        %v2283 = vpop.f32.mrb[0].mxu0
        %v2284 = vpop.f32.mrb[0].mxu0
        %v2285 = vadd.f32 0.0, %v2284
        %v2286 = vpop.f32.mrb[0].mxu0
        %2287 = vmatprep.mubr.bf16.mxu0 0
        %2288 = vmatmul.mubr.bf16.gmra.mrb[0].mxu0 %v2204
        %v2289 = vpop.f32.mrb[0].mxu0
        %v2290 = vadd.f32 0.0, %v2289
        %v2291 = vpop.f32.mrb[0].mxu0
        %v2292 = vpop.f32.mrb[0].mxu0
        %v2293 = vadd.f32 0.0, %v2292
        %v2294 = vpop.f32.mrb[0].mxu0
        %2295 = vmatprep.mubr.bf16.mxu0 0
        %2296 = vmatmul.mubr.bf16.gmra.mrb[0].mxu0 %v2205
        %v2297 = vpop.f32.mrb[0].mxu0
        %v2298 = vadd.f32 0.0, %v2297
        %v2299 = vpop.f32.mrb[0].mxu0
        %v2300 = vpop.f32.mrb[0].mxu0
        %v2301 = vadd.f32 0.0, %v2300
        %v2302 = vpop.f32.mrb[0].mxu0
        %2303 = vmatprep.mubr.bf16.mxu0 0
        %2304 = vmatmul.mubr.bf16.gmra.mrb[0].mxu0 %v2206
        %v2305 = vpop.f32.mrb[0].mxu0
        %v2306 = vadd.f32 0.0, %v2305
        %v2307 = vpop.f32.mrb[0].mxu0
        %v2308 = vpop.f32.mrb[0].mxu0
        %v2309 = vadd.f32 0.0, %v2308
        %v2310 = vpop.f32.mrb[0].mxu0
        %2311 = vdwg.mxu0
        %2312 = vmatprep.subr.bf16.mxu0 0
        %2313 = vmatpush1.bf16.msra.mxu0 %v1499
        %2314 = vmatprep.subr.bf16.mxu0 0
        %2315 = vmatpush1.bf16.msra.mxu0 %v1502
        %2316 = vmatprep.subr.bf16.mxu0 0
        %2317 = vmatpush1.bf16.msra.mxu0 %v1505
        %2318 = vmatprep.subr.bf16.mxu0 0
        %2319 = vmatpush1.bf16.msra.mxu0 %v1508
        %2320 = vmatprep.subr.bf16.mxu0 0
        %2321 = vmatpush1.bf16.msra.mxu0 %v1511
        %2322 = vmatprep.subr.bf16.mxu0 0
        %2323 = vmatpush1.bf16.msra.mxu0 %v1514
        %2324 = vmatprep.subr.bf16.mxu0 0
        %2325 = vmatpush1.bf16.msra.mxu0 %v1517
        %2326 = vmatprep.subr.bf16.mxu0 0
        %2327 = vmatpush1.bf16.msra.mxu0 %v1520
        %2328 = vmatprep.subr.bf16.mxu0 0
        %2329 = vmatpush1.bf16.msra.mxu0 0
        %2330 = vmatprep.subr.bf16.mxu0 0
        %2331 = vmatpush1.bf16.msra.mxu0 0
        %2332 = vmatprep.subr.bf16.mxu0 0
        %2333 = vmatpush1.bf16.msra.mxu0 0
        %2334 = vmatprep.subr.bf16.mxu0 0
        %2335 = vmatpush1.bf16.msra.mxu0 0
        %2336 = vmatprep.subr.bf16.mxu0 0
        %2337 = vmatpush1.bf16.msra.mxu0 0
        %2338 = vmatprep.subr.bf16.mxu0 0
        %2339 = vmatpush1.bf16.msra.mxu0 0
        %2340 = vmatprep.subr.bf16.mxu0 0
        %2341 = vmatpush1.bf16.msra.mxu0 0
        %2342 = vmatprep.subr.bf16.mxu0 0
        %2343 = vmatpush1.bf16.msra.mxu0 0
        %2344 = vmatprep.mubr.bf16.mxu0 0
        %2345 = vmatmul.mubr.bf16.gmra.mrb[0].mxu0 %v2207
        %v2346 = vpop.f32.mrb[0].mxu0
        %v2347 = vadd.f32 0.0, %v2346
        %v2348 = vpop.f32.mrb[0].mxu0
        %v2349 = vpop.f32.mrb[0].mxu0
        %v2350 = vadd.f32 0.0, %v2349
        %v2351 = vpop.f32.mrb[0].mxu0
        %2352 = vmatprep.mubr.bf16.mxu0 0
        %2353 = vmatmul.mubr.bf16.gmra.mrb[0].mxu0 %v2208
        %v2354 = vpop.f32.mrb[0].mxu0
        %v2355 = vadd.f32 0.0, %v2354
        %v2356 = vpop.f32.mrb[0].mxu0
        %v2357 = vpop.f32.mrb[0].mxu0
        %v2358 = vadd.f32 0.0, %v2357
        %v2359 = vpop.f32.mrb[0].mxu0
        %2360 = vmatprep.mubr.bf16.mxu0 0
        %2361 = vmatmul.mubr.bf16.gmra.mrb[0].mxu0 %v2209
        %v2362 = vpop.f32.mrb[0].mxu0
        %v2363 = vadd.f32 0.0, %v2362
        %v2364 = vpop.f32.mrb[0].mxu0
        %v2365 = vpop.f32.mrb[0].mxu0
        %v2366 = vadd.f32 0.0, %v2365
        %v2367 = vpop.f32.mrb[0].mxu0
        %2368 = vmatprep.mubr.bf16.mxu0 0
        %2369 = vmatmul.mubr.bf16.gmra.mrb[0].mxu0 %v2210
        %v2370 = vpop.f32.mrb[0].mxu0
        %v2371 = vadd.f32 0.0, %v2370
        %v2372 = vpop.f32.mrb[0].mxu0
        %v2373 = vpop.f32.mrb[0].mxu0
        %v2374 = vadd.f32 0.0, %v2373
        %v2375 = vpop.f32.mrb[0].mxu0
        %2376 = vmatprep.mubr.bf16.mxu0 0
        %2377 = vmatmul.mubr.bf16.gmra.mrb[0].mxu0 %v2211
        %v2378 = vpop.f32.mrb[0].mxu0
        %v2379 = vadd.f32 0.0, %v2378
        %v2380 = vpop.f32.mrb[0].mxu0
        %v2381 = vpop.f32.mrb[0].mxu0
        %v2382 = vadd.f32 0.0, %v2381
        %v2383 = vpop.f32.mrb[0].mxu0
        %2384 = vmatprep.mubr.bf16.mxu0 0
        %2385 = vmatmul.mubr.bf16.gmra.mrb[0].mxu0 %v2212
        %v2386 = vpop.f32.mrb[0].mxu0
        %v2387 = vadd.f32 0.0, %v2386
        %v2388 = vpop.f32.mrb[0].mxu0
        %v2389 = vpop.f32.mrb[0].mxu0
        %v2390 = vadd.f32 0.0, %v2389
        %v2391 = vpop.f32.mrb[0].mxu0
        %2392 = vmatprep.mubr.bf16.mxu0 0
        %2393 = vmatmul.mubr.bf16.gmra.mrb[0].mxu0 %v2213
        %v2394 = vpop.f32.mrb[0].mxu0
        %v2395 = vadd.f32 0.0, %v2394
        %v2396 = vpop.f32.mrb[0].mxu0
        %v2397 = vpop.f32.mrb[0].mxu0
        %v2398 = vadd.f32 0.0, %v2397
        %v2399 = vpop.f32.mrb[0].mxu0
        %2400 = vmatprep.mubr.bf16.mxu0 0
        %2401 = vmatmul.mubr.bf16.gmra.mrb[0].mxu0 %v2214
        %v2402 = vpop.f32.mrb[0].mxu0
        %v2403 = vadd.f32 0.0, %v2402
        %v2404 = vpop.f32.mrb[0].mxu0
        %v2405 = vpop.f32.mrb[0].mxu0
        %v2406 = vadd.f32 0.0, %v2405
        %v2407 = vpop.f32.mrb[0].mxu0
        %2408 = vdwg.mxu0
        %v2409 = vpack.c.bf16 %v2253, %v2250
        %v2410 = vpack.c.bf16 %v2261, %v2258
        %v2411 = vpack.c.bf16 %v2269, %v2266
        %v2412 = vpack.c.bf16 %v2277, %v2274
        %v2413 = vpack.c.bf16 %v2285, %v2282
        %v2414 = vpack.c.bf16 %v2293, %v2290
        %v2415 = vpack.c.bf16 %v2301, %v2298
        %v2416 = vpack.c.bf16 %v2309, %v2306
        %v2417 = vpack.c.bf16 %v2350, %v2347
        %v2418 = vpack.c.bf16 %v2358, %v2355
        %v2419 = vpack.c.bf16 %v2366, %v2363
        %v2420 = vpack.c.bf16 %v2374, %v2371
        %v2421 = vpack.c.bf16 %v2382, %v2379
        %v2422 = vpack.c.bf16 %v2390, %v2387
        %v2423 = vpack.c.bf16 %v2398, %v2395
        %v2424 = vpack.c.bf16 %v2406, %v2403
        %2433 = vrot.lane.b32.xlu0 %v1473, 96
        %v2434 = vpop.permute.xlu0 %2433
        %2435 = vrot.lane.b32.xlu0 %v1476, 96
        %v2436 = vpop.permute.xlu0 %2435
        %2437 = vrot.lane.b32.xlu0 %v1479, 96
        %v2438 = vpop.permute.xlu0 %2437
        %2439 = vrot.lane.b32.xlu0 %v1482, 96
        %v2440 = vpop.permute.xlu0 %2439
        %2441 = vrot.lane.b32.xlu0 %v1485, 96
        %v2442 = vpop.permute.xlu0 %2441
        %2443 = vrot.lane.b32.xlu0 %v1488, 96
        %v2444 = vpop.permute.xlu0 %2443
        %2445 = vrot.lane.b32.xlu0 %v1491, 96
        %v2446 = vpop.permute.xlu0 %2445
        %2447 = vrot.lane.b32.xlu0 %v1494, 96
        %v2448 = vpop.permute.xlu0 %2447
        %2457 = vrot.lane.b32.xlu0 %v1474, 96
        %v2458 = vpop.permute.xlu0 %2457
        %2459 = vrot.lane.b32.xlu0 %v1477, 96
        %v2460 = vpop.permute.xlu0 %2459
        %2461 = vrot.lane.b32.xlu0 %v1480, 96
        %v2462 = vpop.permute.xlu0 %2461
        %2463 = vrot.lane.b32.xlu0 %v1483, 96
        %v2464 = vpop.permute.xlu0 %2463
        %2465 = vrot.lane.b32.xlu0 %v1486, 96
        %v2466 = vpop.permute.xlu0 %2465
        %2467 = vrot.lane.b32.xlu0 %v1489, 96
        %v2468 = vpop.permute.xlu0 %2467
        %2469 = vrot.lane.b32.xlu0 %v1492, 96
        %v2470 = vpop.permute.xlu0 %2469
        %2471 = vrot.lane.b32.xlu0 %v1495, 96
        %v2472 = vpop.permute.xlu0 %2471
        %v2474 = vsel %vm1556, %v2434, 0
        %v2477 = vsel %vm1556, %v2436, 0
        %v2480 = vsel %vm1556, %v2438, 0
        %v2483 = vsel %vm1556, %v2440, 0
        %v2486 = vsel %vm1556, %v2442, 0
        %v2489 = vsel %vm1556, %v2444, 0
        %v2492 = vsel %vm1556, %v2446, 0
        %v2495 = vsel %vm1556, %v2448, 0
        %v2498 = vsel %vm1556, %v2458, 0
        %v2501 = vsel %vm1556, %v2460, 0
        %v2504 = vsel %vm1556, %v2462, 0
        %v2507 = vsel %vm1556, %v2464, 0
        %v2510 = vsel %vm1556, %v2466, 0
        %v2513 = vsel %vm1556, %v2468, 0
        %v2516 = vsel %vm1556, %v2470, 0
        %v2519 = vsel %vm1556, %v2472, 0
        %2521 = vmatprep.subr.bf16.mxu0 0
        %2522 = vmatpush1.bf16.xpose.msra.mxu0 %v2498
        %2523 = vmatprep.subr.bf16.mxu0 0
        %2524 = vmatpush1.bf16.xpose.msra.mxu0 %v2501
        %2525 = vmatprep.subr.bf16.mxu0 0
        %2526 = vmatpush1.bf16.xpose.msra.mxu0 %v2504
        %2527 = vmatprep.subr.bf16.mxu0 0
        %2528 = vmatpush1.bf16.xpose.msra.mxu0 %v2507
        %2529 = vmatprep.subr.bf16.mxu0 0
        %2530 = vmatpush1.bf16.xpose.msra.mxu0 %v2510
        %2531 = vmatprep.subr.bf16.mxu0 0
        %2532 = vmatpush1.bf16.xpose.msra.mxu0 %v2513
        %2533 = vmatprep.subr.bf16.mxu0 0
        %2534 = vmatpush1.bf16.xpose.msra.mxu0 %v2516
        %2535 = vmatprep.subr.bf16.mxu0 0
        %2536 = vmatpush1.bf16.xpose.msra.mxu0 %v2519
        %2537 = vmatprep.subr.bf16.mxu0 0
        %2538 = vmatpush1.bf16.xpose.msra.mxu0 0
        %2539 = vmatprep.subr.bf16.mxu0 0
        %2540 = vmatpush1.bf16.xpose.msra.mxu0 0
        %2541 = vmatprep.subr.bf16.mxu0 0
        %2542 = vmatpush1.bf16.xpose.msra.mxu0 0
        %2543 = vmatprep.subr.bf16.mxu0 0
        %2544 = vmatpush1.bf16.xpose.msra.mxu0 0
        %2545 = vmatprep.subr.bf16.mxu0 0
        %2546 = vmatpush1.bf16.xpose.msra.mxu0 0
        %2547 = vmatprep.subr.bf16.mxu0 0
        %2548 = vmatpush1.bf16.xpose.msra.mxu0 0
        %2549 = vmatprep.subr.bf16.mxu0 0
        %2550 = vmatpush1.bf16.xpose.msra.mxu0 0
        %2551 = vmatprep.subr.bf16.mxu0 0
        %2552 = vmatpush1.bf16.xpose.msra.mxu0 0
        %2553 = vmatprep.mubr.bf16.mxu0 0
        %2554 = vmatmul.mubr.bf16.gmra.mrb[0].mxu0 %v2474
        %v2555 = vpop.f32.mrb[0].mxu0
        %v2556 = vadd.f32 0.0, %v2555
        %v2557 = vpop.f32.mrb[0].mxu0
        %v2558 = vpop.f32.mrb[0].mxu0
        %v2559 = vadd.f32 0.0, %v2558
        %v2560 = vpop.f32.mrb[0].mxu0
        %2561 = vmatprep.mubr.bf16.mxu0 0
        %2562 = vmatmul.mubr.bf16.gmra.mrb[0].mxu0 %v2477
        %v2563 = vpop.f32.mrb[0].mxu0
        %v2564 = vadd.f32 0.0, %v2563
        %v2565 = vpop.f32.mrb[0].mxu0
        %v2566 = vpop.f32.mrb[0].mxu0
        %v2567 = vadd.f32 0.0, %v2566
        %v2568 = vpop.f32.mrb[0].mxu0
        %2569 = vmatprep.mubr.bf16.mxu0 0
        %2570 = vmatmul.mubr.bf16.gmra.mrb[0].mxu0 %v2480
        %v2571 = vpop.f32.mrb[0].mxu0
        %v2572 = vadd.f32 0.0, %v2571
        %v2573 = vpop.f32.mrb[0].mxu0
        %v2574 = vpop.f32.mrb[0].mxu0
        %v2575 = vadd.f32 0.0, %v2574
        %v2576 = vpop.f32.mrb[0].mxu0
        %2577 = vmatprep.mubr.bf16.mxu0 0
        %2578 = vmatmul.mubr.bf16.gmra.mrb[0].mxu0 %v2483
        %v2579 = vpop.f32.mrb[0].mxu0
        %v2580 = vadd.f32 0.0, %v2579
        %v2581 = vpop.f32.mrb[0].mxu0
        %v2582 = vpop.f32.mrb[0].mxu0
        %v2583 = vadd.f32 0.0, %v2582
        %v2584 = vpop.f32.mrb[0].mxu0
        %2585 = vmatprep.mubr.bf16.mxu0 0
        %2586 = vmatmul.mubr.bf16.gmra.mrb[0].mxu0 %v2486
        %v2587 = vpop.f32.mrb[0].mxu0
        %v2588 = vadd.f32 0.0, %v2587
        %v2589 = vpop.f32.mrb[0].mxu0
        %v2590 = vpop.f32.mrb[0].mxu0
        %v2591 = vadd.f32 0.0, %v2590
        %v2592 = vpop.f32.mrb[0].mxu0
        %2593 = vmatprep.mubr.bf16.mxu0 0
        %2594 = vmatmul.mubr.bf16.gmra.mrb[0].mxu0 %v2489
        %v2595 = vpop.f32.mrb[0].mxu0
        %v2596 = vadd.f32 0.0, %v2595
        %v2597 = vpop.f32.mrb[0].mxu0
        %v2598 = vpop.f32.mrb[0].mxu0
        %v2599 = vadd.f32 0.0, %v2598
        %v2600 = vpop.f32.mrb[0].mxu0
        %2601 = vmatprep.mubr.bf16.mxu0 0
        %2602 = vmatmul.mubr.bf16.gmra.mrb[0].mxu0 %v2492
        %v2603 = vpop.f32.mrb[0].mxu0
        %v2604 = vadd.f32 0.0, %v2603
        %v2605 = vpop.f32.mrb[0].mxu0
        %v2606 = vpop.f32.mrb[0].mxu0
        %v2607 = vadd.f32 0.0, %v2606
        %v2608 = vpop.f32.mrb[0].mxu0
        %2609 = vmatprep.mubr.bf16.mxu0 0
        %2610 = vmatmul.mubr.bf16.gmra.mrb[0].mxu0 %v2495
        %v2611 = vpop.f32.mrb[0].mxu0
        %v2612 = vadd.f32 0.0, %v2611
        %v2613 = vpop.f32.mrb[0].mxu0
        %v2614 = vpop.f32.mrb[0].mxu0
        %v2615 = vadd.f32 0.0, %v2614
        %v2616 = vpop.f32.mrb[0].mxu0
        %2617 = vdwg.mxu0
        %2626 = vrot.lane.b32.xlu0 %v1497, 96
        %v2627 = vpop.permute.xlu0 %2626
        %2628 = vrot.lane.b32.xlu0 %v1500, 96
        %v2629 = vpop.permute.xlu0 %2628
        %2630 = vrot.lane.b32.xlu0 %v1503, 96
        %v2631 = vpop.permute.xlu0 %2630
        %2632 = vrot.lane.b32.xlu0 %v1506, 96
        %v2633 = vpop.permute.xlu0 %2632
        %2634 = vrot.lane.b32.xlu0 %v1509, 96
        %v2635 = vpop.permute.xlu0 %2634
        %2636 = vrot.lane.b32.xlu0 %v1512, 96
        %v2637 = vpop.permute.xlu0 %2636
        %2638 = vrot.lane.b32.xlu0 %v1515, 96
        %v2639 = vpop.permute.xlu0 %2638
        %2640 = vrot.lane.b32.xlu0 %v1518, 96
        %v2641 = vpop.permute.xlu0 %2640
        %2650 = vrot.lane.b32.xlu0 %v1498, 96
        %v2651 = vpop.permute.xlu0 %2650
        %2652 = vrot.lane.b32.xlu0 %v1501, 96
        %v2653 = vpop.permute.xlu0 %2652
        %2654 = vrot.lane.b32.xlu0 %v1504, 96
        %v2655 = vpop.permute.xlu0 %2654
        %2656 = vrot.lane.b32.xlu0 %v1507, 96
        %v2657 = vpop.permute.xlu0 %2656
        %2658 = vrot.lane.b32.xlu0 %v1510, 96
        %v2659 = vpop.permute.xlu0 %2658
        %2660 = vrot.lane.b32.xlu0 %v1513, 96
        %v2661 = vpop.permute.xlu0 %2660
        %2662 = vrot.lane.b32.xlu0 %v1516, 96
        %v2663 = vpop.permute.xlu0 %2662
        %2664 = vrot.lane.b32.xlu0 %v1519, 96
        %v2665 = vpop.permute.xlu0 %2664
        %v2667 = vsel %vm1556, %v2627, 0
        %v2670 = vsel %vm1556, %v2629, 0
        %v2673 = vsel %vm1556, %v2631, 0
        %v2676 = vsel %vm1556, %v2633, 0
        %v2679 = vsel %vm1556, %v2635, 0
        %v2682 = vsel %vm1556, %v2637, 0
        %v2685 = vsel %vm1556, %v2639, 0
        %v2688 = vsel %vm1556, %v2641, 0
        %v2691 = vsel %vm1556, %v2651, 0
        %v2694 = vsel %vm1556, %v2653, 0
        %v2697 = vsel %vm1556, %v2655, 0
        %v2700 = vsel %vm1556, %v2657, 0
        %v2703 = vsel %vm1556, %v2659, 0
        %v2706 = vsel %vm1556, %v2661, 0
        %v2709 = vsel %vm1556, %v2663, 0
        %v2712 = vsel %vm1556, %v2665, 0
        %2714 = vmatprep.subr.bf16.mxu0 0
        %2715 = vmatpush1.bf16.xpose.msra.mxu0 %v2691
        %2716 = vmatprep.subr.bf16.mxu0 0
        %2717 = vmatpush1.bf16.xpose.msra.mxu0 %v2694
        %2718 = vmatprep.subr.bf16.mxu0 0
        %2719 = vmatpush1.bf16.xpose.msra.mxu0 %v2697
        %2720 = vmatprep.subr.bf16.mxu0 0
        %2721 = vmatpush1.bf16.xpose.msra.mxu0 %v2700
        %2722 = vmatprep.subr.bf16.mxu0 0
        %2723 = vmatpush1.bf16.xpose.msra.mxu0 %v2703
        %2724 = vmatprep.subr.bf16.mxu0 0
        %2725 = vmatpush1.bf16.xpose.msra.mxu0 %v2706
        %2726 = vmatprep.subr.bf16.mxu0 0
        %2727 = vmatpush1.bf16.xpose.msra.mxu0 %v2709
        %2728 = vmatprep.subr.bf16.mxu0 0
        %2729 = vmatpush1.bf16.xpose.msra.mxu0 %v2712
        %2730 = vmatprep.subr.bf16.mxu0 0
        %2731 = vmatpush1.bf16.xpose.msra.mxu0 0
        %2732 = vmatprep.subr.bf16.mxu0 0
        %2733 = vmatpush1.bf16.xpose.msra.mxu0 0
        %2734 = vmatprep.subr.bf16.mxu0 0
        %2735 = vmatpush1.bf16.xpose.msra.mxu0 0
        %2736 = vmatprep.subr.bf16.mxu0 0
        %2737 = vmatpush1.bf16.xpose.msra.mxu0 0
        %2738 = vmatprep.subr.bf16.mxu0 0
        %2739 = vmatpush1.bf16.xpose.msra.mxu0 0
        %2740 = vmatprep.subr.bf16.mxu0 0
        %2741 = vmatpush1.bf16.xpose.msra.mxu0 0
        %2742 = vmatprep.subr.bf16.mxu0 0
        %2743 = vmatpush1.bf16.xpose.msra.mxu0 0
        %2744 = vmatprep.subr.bf16.mxu0 0
        %2745 = vmatpush1.bf16.xpose.msra.mxu0 0
        %2746 = vmatprep.mubr.bf16.mxu0 0
        %2747 = vmatmul.mubr.bf16.gmra.mrb[0].mxu0 %v2667
        %v2748 = vpop.f32.mrb[0].mxu0
        %v2749 = vadd.f32 0.0, %v2748
        %v2750 = vpop.f32.mrb[0].mxu0
        %v2751 = vpop.f32.mrb[0].mxu0
        %v2752 = vadd.f32 0.0, %v2751
        %v2753 = vpop.f32.mrb[0].mxu0
        %2754 = vmatprep.mubr.bf16.mxu0 0
        %2755 = vmatmul.mubr.bf16.gmra.mrb[0].mxu0 %v2670
        %v2756 = vpop.f32.mrb[0].mxu0
        %v2757 = vadd.f32 0.0, %v2756
        %v2758 = vpop.f32.mrb[0].mxu0
        %v2759 = vpop.f32.mrb[0].mxu0
        %v2760 = vadd.f32 0.0, %v2759
        %v2761 = vpop.f32.mrb[0].mxu0
        %2762 = vmatprep.mubr.bf16.mxu0 0
        %2763 = vmatmul.mubr.bf16.gmra.mrb[0].mxu0 %v2673
        %v2764 = vpop.f32.mrb[0].mxu0
        %v2765 = vadd.f32 0.0, %v2764
        %v2766 = vpop.f32.mrb[0].mxu0
        %v2767 = vpop.f32.mrb[0].mxu0
        %v2768 = vadd.f32 0.0, %v2767
        %v2769 = vpop.f32.mrb[0].mxu0
        %2770 = vmatprep.mubr.bf16.mxu0 0
        %2771 = vmatmul.mubr.bf16.gmra.mrb[0].mxu0 %v2676
        %v2772 = vpop.f32.mrb[0].mxu0
        %v2773 = vadd.f32 0.0, %v2772
        %v2774 = vpop.f32.mrb[0].mxu0
        %v2775 = vpop.f32.mrb[0].mxu0
        %v2776 = vadd.f32 0.0, %v2775
        %v2777 = vpop.f32.mrb[0].mxu0
        %2778 = vmatprep.mubr.bf16.mxu0 0
        %2779 = vmatmul.mubr.bf16.gmra.mrb[0].mxu0 %v2679
        %v2780 = vpop.f32.mrb[0].mxu0
        %v2781 = vadd.f32 0.0, %v2780
        %v2782 = vpop.f32.mrb[0].mxu0
        %v2783 = vpop.f32.mrb[0].mxu0
        %v2784 = vadd.f32 0.0, %v2783
        %v2785 = vpop.f32.mrb[0].mxu0
        %2786 = vmatprep.mubr.bf16.mxu0 0
        %2787 = vmatmul.mubr.bf16.gmra.mrb[0].mxu0 %v2682
        %v2788 = vpop.f32.mrb[0].mxu0
        %v2789 = vadd.f32 0.0, %v2788
        %v2790 = vpop.f32.mrb[0].mxu0
        %v2791 = vpop.f32.mrb[0].mxu0
        %v2792 = vadd.f32 0.0, %v2791
        %v2793 = vpop.f32.mrb[0].mxu0
        %2794 = vmatprep.mubr.bf16.mxu0 0
        %2795 = vmatmul.mubr.bf16.gmra.mrb[0].mxu0 %v2685
        %v2796 = vpop.f32.mrb[0].mxu0
        %v2797 = vadd.f32 0.0, %v2796
        %v2798 = vpop.f32.mrb[0].mxu0
        %v2799 = vpop.f32.mrb[0].mxu0
        %v2800 = vadd.f32 0.0, %v2799
        %v2801 = vpop.f32.mrb[0].mxu0
        %2802 = vmatprep.mubr.bf16.mxu0 0
        %2803 = vmatmul.mubr.bf16.gmra.mrb[0].mxu0 %v2688
        %v2804 = vpop.f32.mrb[0].mxu0
        %v2805 = vadd.f32 0.0, %v2804
        %v2806 = vpop.f32.mrb[0].mxu0
        %v2807 = vpop.f32.mrb[0].mxu0
        %v2808 = vadd.f32 0.0, %v2807
        %v2809 = vpop.f32.mrb[0].mxu0
        %2810 = vdwg.mxu0
        %v2811 = vsel %vm1863, %v2556, -inf
        %v2812 = vsel %vm1864, %v2559, -inf
        %v2813 = vsel %vm1865, %v2564, -inf
        %v2814 = vsel %vm1866, %v2567, -inf
        %v2815 = vsel %vm1867, %v2572, -inf
        %v2816 = vsel %vm1868, %v2575, -inf
        %v2817 = vsel %vm1869, %v2580, -inf
        %v2818 = vsel %vm1870, %v2583, -inf
        %v2819 = vsel %vm1871, %v2588, -inf
        %v2820 = vsel %vm1872, %v2591, -inf
        %v2821 = vsel %vm1873, %v2596, -inf
        %v2822 = vsel %vm1874, %v2599, -inf
        %v2823 = vsel %vm1875, %v2604, -inf
        %v2824 = vsel %vm1876, %v2607, -inf
        %v2825 = vsel %vm1877, %v2612, -inf
        %v2826 = vsel %vm1878, %v2615, -inf
        %v2827 = vsel %vm1863, %v2749, -inf
        %v2828 = vsel %vm1864, %v2752, -inf
        %v2829 = vsel %vm1865, %v2757, -inf
        %v2830 = vsel %vm1866, %v2760, -inf
        %v2831 = vsel %vm1867, %v2765, -inf
        %v2832 = vsel %vm1868, %v2768, -inf
        %v2833 = vsel %vm1869, %v2773, -inf
        %v2834 = vsel %vm1870, %v2776, -inf
        %v2835 = vsel %vm1871, %v2781, -inf
        %v2836 = vsel %vm1872, %v2784, -inf
        %v2837 = vsel %vm1873, %v2789, -inf
        %v2838 = vsel %vm1874, %v2792, -inf
        %v2839 = vsel %vm1875, %v2797, -inf
        %v2840 = vsel %vm1876, %v2800, -inf
        %v2841 = vsel %vm1877, %v2805, -inf
        %v2842 = vsel %vm1878, %v2808, -inf
        %2843 = vmax.xlane.f32.xlu0 %v2811
        %v2844 = vpop.xlane.xlu0 %2843
        %2845 = vmax.xlane.f32.xlu0 %v2812
        %v2846 = vpop.xlane.xlu0 %2845
        %2847 = vmax.xlane.f32.xlu0 %v2813
        %v2848 = vpop.xlane.xlu0 %2847
        %2849 = vmax.xlane.f32.xlu0 %v2814
        %v2850 = vpop.xlane.xlu0 %2849
        %2851 = vmax.xlane.f32.xlu0 %v2815
        %v2852 = vpop.xlane.xlu0 %2851
        %2853 = vmax.xlane.f32.xlu0 %v2816
        %v2854 = vpop.xlane.xlu0 %2853
        %2855 = vmax.xlane.f32.xlu0 %v2817
        %v2856 = vpop.xlane.xlu0 %2855
        %2857 = vmax.xlane.f32.xlu0 %v2818
        %v2858 = vpop.xlane.xlu0 %2857
        %2859 = vmax.xlane.f32.xlu0 %v2819
        %v2860 = vpop.xlane.xlu0 %2859
        %2861 = vmax.xlane.f32.xlu0 %v2820
        %v2862 = vpop.xlane.xlu0 %2861
        %2863 = vmax.xlane.f32.xlu0 %v2821
        %v2864 = vpop.xlane.xlu0 %2863
        %2865 = vmax.xlane.f32.xlu0 %v2822
        %v2866 = vpop.xlane.xlu0 %2865
        %2867 = vmax.xlane.f32.xlu0 %v2823
        %v2868 = vpop.xlane.xlu0 %2867
        %2869 = vmax.xlane.f32.xlu0 %v2824
        %v2870 = vpop.xlane.xlu0 %2869
        %2871 = vmax.xlane.f32.xlu0 %v2825
        %v2872 = vpop.xlane.xlu0 %2871
        %2873 = vmax.xlane.f32.xlu0 %v2826
        %v2874 = vpop.xlane.xlu0 %2873
        %2875 = vmax.xlane.f32.xlu0 %v2827
        %v2876 = vpop.xlane.xlu0 %2875
        %2877 = vmax.xlane.f32.xlu0 %v2828
        %v2878 = vpop.xlane.xlu0 %2877
        %2879 = vmax.xlane.f32.xlu0 %v2829
        %v2880 = vpop.xlane.xlu0 %2879
        %2881 = vmax.xlane.f32.xlu0 %v2830
        %v2882 = vpop.xlane.xlu0 %2881
        %2883 = vmax.xlane.f32.xlu0 %v2831
        %v2884 = vpop.xlane.xlu0 %2883
        %2885 = vmax.xlane.f32.xlu0 %v2832
        %v2886 = vpop.xlane.xlu0 %2885
        %2887 = vmax.xlane.f32.xlu0 %v2833
        %v2888 = vpop.xlane.xlu0 %2887
        %2889 = vmax.xlane.f32.xlu0 %v2834
        %v2890 = vpop.xlane.xlu0 %2889
        %2891 = vmax.xlane.f32.xlu0 %v2835
        %v2892 = vpop.xlane.xlu0 %2891
        %2893 = vmax.xlane.f32.xlu0 %v2836
        %v2894 = vpop.xlane.xlu0 %2893
        %2895 = vmax.xlane.f32.xlu0 %v2837
        %v2896 = vpop.xlane.xlu0 %2895
        %2897 = vmax.xlane.f32.xlu0 %v2838
        %v2898 = vpop.xlane.xlu0 %2897
        %2899 = vmax.xlane.f32.xlu0 %v2839
        %v2900 = vpop.xlane.xlu0 %2899
        %2901 = vmax.xlane.f32.xlu0 %v2840
        %v2902 = vpop.xlane.xlu0 %2901
        %2903 = vmax.xlane.f32.xlu0 %v2841
        %v2904 = vpop.xlane.xlu0 %2903
        %2905 = vmax.xlane.f32.xlu0 %v2842
        %v2906 = vpop.xlane.xlu0 %2905
        %v2907 = vsub.f32 %v2811, %v2844
        %v2908 = vsub.f32 %v2812, %v2846
        %v2909 = vsub.f32 %v2813, %v2848
        %v2910 = vsub.f32 %v2814, %v2850
        %v2911 = vsub.f32 %v2815, %v2852
        %v2912 = vsub.f32 %v2816, %v2854
        %v2913 = vsub.f32 %v2817, %v2856
        %v2914 = vsub.f32 %v2818, %v2858
        %v2915 = vsub.f32 %v2819, %v2860
        %v2916 = vsub.f32 %v2820, %v2862
        %v2917 = vsub.f32 %v2821, %v2864
        %v2918 = vsub.f32 %v2822, %v2866
        %v2919 = vsub.f32 %v2823, %v2868
        %v2920 = vsub.f32 %v2824, %v2870
        %v2921 = vsub.f32 %v2825, %v2872
        %v2922 = vsub.f32 %v2826, %v2874
        %v2923 = vsub.f32 %v2827, %v2876
        %v2924 = vsub.f32 %v2828, %v2878
        %v2925 = vsub.f32 %v2829, %v2880
        %v2926 = vsub.f32 %v2830, %v2882
        %v2927 = vsub.f32 %v2831, %v2884
        %v2928 = vsub.f32 %v2832, %v2886
        %v2929 = vsub.f32 %v2833, %v2888
        %v2930 = vsub.f32 %v2834, %v2890
        %v2931 = vsub.f32 %v2835, %v2892
        %v2932 = vsub.f32 %v2836, %v2894
        %v2933 = vsub.f32 %v2837, %v2896
        %v2934 = vsub.f32 %v2838, %v2898
        %v2935 = vsub.f32 %v2839, %v2900
        %v2936 = vsub.f32 %v2840, %v2902
        %v2937 = vsub.f32 %v2841, %v2904
        %v2938 = vsub.f32 %v2842, %v2906
        %v2939 = vmul.f32 %v2907, 1.442695
        %v2940 = vpow.pop %v2939
        %v2941 = vmul.f32 %v2908, 1.442695
        %v2942 = vpow.pop %v2941
        %v2943 = vmul.f32 %v2909, 1.442695
        %v2944 = vpow.pop %v2943
        %v2945 = vmul.f32 %v2910, 1.442695
        %v2946 = vpow.pop %v2945
        %v2947 = vmul.f32 %v2911, 1.442695
        %v2948 = vpow.pop %v2947
        %v2949 = vmul.f32 %v2912, 1.442695
        %v2950 = vpow.pop %v2949
        %v2951 = vmul.f32 %v2913, 1.442695
        %v2952 = vpow.pop %v2951
        %v2953 = vmul.f32 %v2914, 1.442695
        %v2954 = vpow.pop %v2953
        %v2955 = vmul.f32 %v2915, 1.442695
        %v2956 = vpow.pop %v2955
        %v2957 = vmul.f32 %v2916, 1.442695
        %v2958 = vpow.pop %v2957
        %v2959 = vmul.f32 %v2917, 1.442695
        %v2960 = vpow.pop %v2959
        %v2961 = vmul.f32 %v2918, 1.442695
        %v2962 = vpow.pop %v2961
        %v2963 = vmul.f32 %v2919, 1.442695
        %v2964 = vpow.pop %v2963
        %v2965 = vmul.f32 %v2920, 1.442695
        %v2966 = vpow.pop %v2965
        %v2967 = vmul.f32 %v2921, 1.442695
        %v2968 = vpow.pop %v2967
        %v2969 = vmul.f32 %v2922, 1.442695
        %v2970 = vpow.pop %v2969
        %v2971 = vmul.f32 %v2923, 1.442695
        %v2972 = vpow.pop %v2971
        %v2973 = vmul.f32 %v2924, 1.442695
        %v2974 = vpow.pop %v2973
        %v2975 = vmul.f32 %v2925, 1.442695
        %v2976 = vpow.pop %v2975
        %v2977 = vmul.f32 %v2926, 1.442695
        %v2978 = vpow.pop %v2977
        %v2979 = vmul.f32 %v2927, 1.442695
        %v2980 = vpow.pop %v2979
        %v2981 = vmul.f32 %v2928, 1.442695
        %v2982 = vpow.pop %v2981
        %v2983 = vmul.f32 %v2929, 1.442695
        %v2984 = vpow.pop %v2983
        %v2985 = vmul.f32 %v2930, 1.442695
        %v2986 = vpow.pop %v2985
        %v2987 = vmul.f32 %v2931, 1.442695
        %v2988 = vpow.pop %v2987
        %v2989 = vmul.f32 %v2932, 1.442695
        %v2990 = vpow.pop %v2989
        %v2991 = vmul.f32 %v2933, 1.442695
        %v2992 = vpow.pop %v2991
        %v2993 = vmul.f32 %v2934, 1.442695
        %v2994 = vpow.pop %v2993
        %v2995 = vmul.f32 %v2935, 1.442695
        %v2996 = vpow.pop %v2995
        %v2997 = vmul.f32 %v2936, 1.442695
        %v2998 = vpow.pop %v2997
        %v2999 = vmul.f32 %v2937, 1.442695
        %v3000 = vpow.pop %v2999
        %v3001 = vmul.f32 %v2938, 1.442695
        %v3002 = vpow.pop %v3001
        %3003 = vadd.xlane.f32.xlu0 %v2940
        %v3004 = vpop.xlane.xlu0 %3003
        %3005 = vadd.xlane.f32.xlu0 %v2942
        %v3006 = vpop.xlane.xlu0 %3005
        %3007 = vadd.xlane.f32.xlu0 %v2944
        %v3008 = vpop.xlane.xlu0 %3007
        %3009 = vadd.xlane.f32.xlu0 %v2946
        %v3010 = vpop.xlane.xlu0 %3009
        %3011 = vadd.xlane.f32.xlu0 %v2948
        %v3012 = vpop.xlane.xlu0 %3011
        %3013 = vadd.xlane.f32.xlu0 %v2950
        %v3014 = vpop.xlane.xlu0 %3013
        %3015 = vadd.xlane.f32.xlu0 %v2952
        %v3016 = vpop.xlane.xlu0 %3015
        %3017 = vadd.xlane.f32.xlu0 %v2954
        %v3018 = vpop.xlane.xlu0 %3017
        %3019 = vadd.xlane.f32.xlu0 %v2956
        %v3020 = vpop.xlane.xlu0 %3019
        %3021 = vadd.xlane.f32.xlu0 %v2958
        %v3022 = vpop.xlane.xlu0 %3021
        %3023 = vadd.xlane.f32.xlu0 %v2960
        %v3024 = vpop.xlane.xlu0 %3023
        %3025 = vadd.xlane.f32.xlu0 %v2962
        %v3026 = vpop.xlane.xlu0 %3025
        %3027 = vadd.xlane.f32.xlu0 %v2964
        %v3028 = vpop.xlane.xlu0 %3027
        %3029 = vadd.xlane.f32.xlu0 %v2966
        %v3030 = vpop.xlane.xlu0 %3029
        %3031 = vadd.xlane.f32.xlu0 %v2968
        %v3032 = vpop.xlane.xlu0 %3031
        %3033 = vadd.xlane.f32.xlu0 %v2970
        %v3034 = vpop.xlane.xlu0 %3033
        %3035 = vadd.xlane.f32.xlu0 %v2972
        %v3036 = vpop.xlane.xlu0 %3035
        %3037 = vadd.xlane.f32.xlu0 %v2974
        %v3038 = vpop.xlane.xlu0 %3037
        %3039 = vadd.xlane.f32.xlu0 %v2976
        %v3040 = vpop.xlane.xlu0 %3039
        %3041 = vadd.xlane.f32.xlu0 %v2978
        %v3042 = vpop.xlane.xlu0 %3041
        %3043 = vadd.xlane.f32.xlu0 %v2980
        %v3044 = vpop.xlane.xlu0 %3043
        %3045 = vadd.xlane.f32.xlu0 %v2982
        %v3046 = vpop.xlane.xlu0 %3045
        %3047 = vadd.xlane.f32.xlu0 %v2984
        %v3048 = vpop.xlane.xlu0 %3047
        %3049 = vadd.xlane.f32.xlu0 %v2986
        %v3050 = vpop.xlane.xlu0 %3049
        %3051 = vadd.xlane.f32.xlu0 %v2988
        %v3052 = vpop.xlane.xlu0 %3051
        %3053 = vadd.xlane.f32.xlu0 %v2990
        %v3054 = vpop.xlane.xlu0 %3053
        %3055 = vadd.xlane.f32.xlu0 %v2992
        %v3056 = vpop.xlane.xlu0 %3055
        %3057 = vadd.xlane.f32.xlu0 %v2994
        %v3058 = vpop.xlane.xlu0 %3057
        %3059 = vadd.xlane.f32.xlu0 %v2996
        %v3060 = vpop.xlane.xlu0 %3059
        %3061 = vadd.xlane.f32.xlu0 %v2998
        %v3062 = vpop.xlane.xlu0 %3061
        %3063 = vadd.xlane.f32.xlu0 %v3000
        %v3064 = vpop.xlane.xlu0 %3063
        %3065 = vadd.xlane.f32.xlu0 %v3002
        %v3066 = vpop.xlane.xlu0 %3065
        %v3067 = vrcp.pop %v3004
        %v3068 = vrcp.pop %v3006
        %v3069 = vrcp.pop %v3008
        %v3070 = vrcp.pop %v3010
        %v3071 = vrcp.pop %v3012
        %v3072 = vrcp.pop %v3014
        %v3073 = vrcp.pop %v3016
        %v3074 = vrcp.pop %v3018
        %v3075 = vrcp.pop %v3020
        %v3076 = vrcp.pop %v3022
        %v3077 = vrcp.pop %v3024
        %v3078 = vrcp.pop %v3026
        %v3079 = vrcp.pop %v3028
        %v3080 = vrcp.pop %v3030
        %v3081 = vrcp.pop %v3032
        %v3082 = vrcp.pop %v3034
        %v3083 = vrcp.pop %v3036
        %v3084 = vrcp.pop %v3038
        %v3085 = vrcp.pop %v3040
        %v3086 = vrcp.pop %v3042
        %v3087 = vrcp.pop %v3044
        %v3088 = vrcp.pop %v3046
        %v3089 = vrcp.pop %v3048
        %v3090 = vrcp.pop %v3050
        %v3091 = vrcp.pop %v3052
        %v3092 = vrcp.pop %v3054
        %v3093 = vrcp.pop %v3056
        %v3094 = vrcp.pop %v3058
        %v3095 = vrcp.pop %v3060
        %v3096 = vrcp.pop %v3062
        %v3097 = vrcp.pop %v3064
        %v3098 = vrcp.pop %v3066
        %v3099 = vmul.f32 %v2940, %v3067
        %v3100 = vmul.f32 %v2942, %v3068
        %v3101 = vmul.f32 %v2944, %v3069
        %v3102 = vmul.f32 %v2946, %v3070
        %v3103 = vmul.f32 %v2948, %v3071
        %v3104 = vmul.f32 %v2950, %v3072
        %v3105 = vmul.f32 %v2952, %v3073
        %v3106 = vmul.f32 %v2954, %v3074
        %v3107 = vmul.f32 %v2956, %v3075
        %v3108 = vmul.f32 %v2958, %v3076
        %v3109 = vmul.f32 %v2960, %v3077
        %v3110 = vmul.f32 %v2962, %v3078
        %v3111 = vmul.f32 %v2964, %v3079
        %v3112 = vmul.f32 %v2966, %v3080
        %v3113 = vmul.f32 %v2968, %v3081
        %v3114 = vmul.f32 %v2970, %v3082
        %v3115 = vmul.f32 %v2972, %v3083
        %v3116 = vmul.f32 %v2974, %v3084
        %v3117 = vmul.f32 %v2976, %v3085
        %v3118 = vmul.f32 %v2978, %v3086
        %v3119 = vmul.f32 %v2980, %v3087
        %v3120 = vmul.f32 %v2982, %v3088
        %v3121 = vmul.f32 %v2984, %v3089
        %v3122 = vmul.f32 %v2986, %v3090
        %v3123 = vmul.f32 %v2988, %v3091
        %v3124 = vmul.f32 %v2990, %v3092
        %v3125 = vmul.f32 %v2992, %v3093
        %v3126 = vmul.f32 %v2994, %v3094
        %v3127 = vmul.f32 %v2996, %v3095
        %v3128 = vmul.f32 %v2998, %v3096
        %v3129 = vmul.f32 %v3000, %v3097
        %v3130 = vmul.f32 %v3002, %v3098
        %v3131 = vpack.c.bf16 %v3100, %v3099
        %v3132 = vpack.c.bf16 %v3102, %v3101
        %v3133 = vpack.c.bf16 %v3104, %v3103
        %v3134 = vpack.c.bf16 %v3106, %v3105
        %v3135 = vpack.c.bf16 %v3108, %v3107
        %v3136 = vpack.c.bf16 %v3110, %v3109
        %v3137 = vpack.c.bf16 %v3112, %v3111
        %v3138 = vpack.c.bf16 %v3114, %v3113
        %v3139 = vpack.c.bf16 %v3116, %v3115
        %v3140 = vpack.c.bf16 %v3118, %v3117
        %v3141 = vpack.c.bf16 %v3120, %v3119
        %v3142 = vpack.c.bf16 %v3122, %v3121
        %v3143 = vpack.c.bf16 %v3124, %v3123
        %v3144 = vpack.c.bf16 %v3126, %v3125
        %v3145 = vpack.c.bf16 %v3128, %v3127
        %v3146 = vpack.c.bf16 %v3130, %v3129
        %3155 = vrot.lane.b32.xlu0 %v1475, 96
        %v3156 = vpop.permute.xlu0 %3155
        %3157 = vrot.lane.b32.xlu0 %v1478, 96
        %v3158 = vpop.permute.xlu0 %3157
        %3159 = vrot.lane.b32.xlu0 %v1481, 96
        %v3160 = vpop.permute.xlu0 %3159
        %3161 = vrot.lane.b32.xlu0 %v1484, 96
        %v3162 = vpop.permute.xlu0 %3161
        %3163 = vrot.lane.b32.xlu0 %v1487, 96
        %v3164 = vpop.permute.xlu0 %3163
        %3165 = vrot.lane.b32.xlu0 %v1490, 96
        %v3166 = vpop.permute.xlu0 %3165
        %3167 = vrot.lane.b32.xlu0 %v1493, 96
        %v3168 = vpop.permute.xlu0 %3167
        %3169 = vrot.lane.b32.xlu0 %v1496, 96
        %v3170 = vpop.permute.xlu0 %3169
        %3179 = vmatprep.subr.bf16.mxu0 0
        %3180 = vmatpush1.bf16.msra.mxu0 %v3156
        %3181 = vmatprep.subr.bf16.mxu0 0
        %3182 = vmatpush1.bf16.msra.mxu0 %v3158
        %3183 = vmatprep.subr.bf16.mxu0 0
        %3184 = vmatpush1.bf16.msra.mxu0 %v3160
        %3185 = vmatprep.subr.bf16.mxu0 0
        %3186 = vmatpush1.bf16.msra.mxu0 %v3162
        %3187 = vmatprep.subr.bf16.mxu0 0
        %3188 = vmatpush1.bf16.msra.mxu0 %v3164
        %3189 = vmatprep.subr.bf16.mxu0 0
        %3190 = vmatpush1.bf16.msra.mxu0 %v3166
        %3191 = vmatprep.subr.bf16.mxu0 0
        %3192 = vmatpush1.bf16.msra.mxu0 %v3168
        %3193 = vmatprep.subr.bf16.mxu0 0
        %3194 = vmatpush1.bf16.msra.mxu0 %v3170
        %3195 = vmatprep.subr.bf16.mxu0 0
        %3196 = vmatpush1.bf16.msra.mxu0 0
        %3197 = vmatprep.subr.bf16.mxu0 0
        %3198 = vmatpush1.bf16.msra.mxu0 0
        %3199 = vmatprep.subr.bf16.mxu0 0
        %3200 = vmatpush1.bf16.msra.mxu0 0
        %3201 = vmatprep.subr.bf16.mxu0 0
        %3202 = vmatpush1.bf16.msra.mxu0 0
        %3203 = vmatprep.subr.bf16.mxu0 0
        %3204 = vmatpush1.bf16.msra.mxu0 0
        %3205 = vmatprep.subr.bf16.mxu0 0
        %3206 = vmatpush1.bf16.msra.mxu0 0
        %3207 = vmatprep.subr.bf16.mxu0 0
        %3208 = vmatpush1.bf16.msra.mxu0 0
        %3209 = vmatprep.subr.bf16.mxu0 0
        %3210 = vmatpush1.bf16.msra.mxu0 0
        %3211 = vmatprep.mubr.bf16.mxu0 0
        %3212 = vmatmul.mubr.bf16.gmra.mrb[0].mxu0 %v3131
        %v3213 = vpop.f32.mrb[0].mxu0
        %v3214 = vadd.f32 0.0, %v3213
        %v3215 = vpop.f32.mrb[0].mxu0
        %v3216 = vpop.f32.mrb[0].mxu0
        %v3217 = vadd.f32 0.0, %v3216
        %v3218 = vpop.f32.mrb[0].mxu0
        %3219 = vmatprep.mubr.bf16.mxu0 0
        %3220 = vmatmul.mubr.bf16.gmra.mrb[0].mxu0 %v3132
        %v3221 = vpop.f32.mrb[0].mxu0
        %v3222 = vadd.f32 0.0, %v3221
        %v3223 = vpop.f32.mrb[0].mxu0
        %v3224 = vpop.f32.mrb[0].mxu0
        %v3225 = vadd.f32 0.0, %v3224
        %v3226 = vpop.f32.mrb[0].mxu0
        %3227 = vmatprep.mubr.bf16.mxu0 0
        %3228 = vmatmul.mubr.bf16.gmra.mrb[0].mxu0 %v3133
        %v3229 = vpop.f32.mrb[0].mxu0
        %v3230 = vadd.f32 0.0, %v3229
        %v3231 = vpop.f32.mrb[0].mxu0
        %v3232 = vpop.f32.mrb[0].mxu0
        %v3233 = vadd.f32 0.0, %v3232
        %v3234 = vpop.f32.mrb[0].mxu0
        %3235 = vmatprep.mubr.bf16.mxu0 0
        %3236 = vmatmul.mubr.bf16.gmra.mrb[0].mxu0 %v3134
        %v3237 = vpop.f32.mrb[0].mxu0
        %v3238 = vadd.f32 0.0, %v3237
        %v3239 = vpop.f32.mrb[0].mxu0
        %v3240 = vpop.f32.mrb[0].mxu0
        %v3241 = vadd.f32 0.0, %v3240
        %v3242 = vpop.f32.mrb[0].mxu0
        %3243 = vmatprep.mubr.bf16.mxu0 0
        %3244 = vmatmul.mubr.bf16.gmra.mrb[0].mxu0 %v3135
        %v3245 = vpop.f32.mrb[0].mxu0
        %v3246 = vadd.f32 0.0, %v3245
        %v3247 = vpop.f32.mrb[0].mxu0
        %v3248 = vpop.f32.mrb[0].mxu0
        %v3249 = vadd.f32 0.0, %v3248
        %v3250 = vpop.f32.mrb[0].mxu0
        %3251 = vmatprep.mubr.bf16.mxu0 0
        %3252 = vmatmul.mubr.bf16.gmra.mrb[0].mxu0 %v3136
        %v3253 = vpop.f32.mrb[0].mxu0
        %v3254 = vadd.f32 0.0, %v3253
        %v3255 = vpop.f32.mrb[0].mxu0
        %v3256 = vpop.f32.mrb[0].mxu0
        %v3257 = vadd.f32 0.0, %v3256
        %v3258 = vpop.f32.mrb[0].mxu0
        %3259 = vmatprep.mubr.bf16.mxu0 0
        %3260 = vmatmul.mubr.bf16.gmra.mrb[0].mxu0 %v3137
        %v3261 = vpop.f32.mrb[0].mxu0
        %v3262 = vadd.f32 0.0, %v3261
        %v3263 = vpop.f32.mrb[0].mxu0
        %v3264 = vpop.f32.mrb[0].mxu0
        %v3265 = vadd.f32 0.0, %v3264
        %v3266 = vpop.f32.mrb[0].mxu0
        %3267 = vmatprep.mubr.bf16.mxu0 0
        %3268 = vmatmul.mubr.bf16.gmra.mrb[0].mxu0 %v3138
        %v3269 = vpop.f32.mrb[0].mxu0
        %v3270 = vadd.f32 0.0, %v3269
        %v3271 = vpop.f32.mrb[0].mxu0
        %v3272 = vpop.f32.mrb[0].mxu0
        %v3273 = vadd.f32 0.0, %v3272
        %v3274 = vpop.f32.mrb[0].mxu0
        %3275 = vdwg.mxu0
        %3284 = vrot.lane.b32.xlu0 %v1499, 96
        %v3285 = vpop.permute.xlu0 %3284
        %3286 = vrot.lane.b32.xlu0 %v1502, 96
        %v3287 = vpop.permute.xlu0 %3286
        %3288 = vrot.lane.b32.xlu0 %v1505, 96
        %v3289 = vpop.permute.xlu0 %3288
        %3290 = vrot.lane.b32.xlu0 %v1508, 96
        %v3291 = vpop.permute.xlu0 %3290
        %3292 = vrot.lane.b32.xlu0 %v1511, 96
        %v3293 = vpop.permute.xlu0 %3292
        %3294 = vrot.lane.b32.xlu0 %v1514, 96
        %v3295 = vpop.permute.xlu0 %3294
        %3296 = vrot.lane.b32.xlu0 %v1517, 96
        %v3297 = vpop.permute.xlu0 %3296
        %3298 = vrot.lane.b32.xlu0 %v1520, 96
        %v3299 = vpop.permute.xlu0 %3298
        %3308 = vmatprep.subr.bf16.mxu0 0
        %3309 = vmatpush1.bf16.msra.mxu0 %v3285
        %3310 = vmatprep.subr.bf16.mxu0 0
        %3311 = vmatpush1.bf16.msra.mxu0 %v3287
        %3312 = vmatprep.subr.bf16.mxu0 0
        %3313 = vmatpush1.bf16.msra.mxu0 %v3289
        %3314 = vmatprep.subr.bf16.mxu0 0
        %3315 = vmatpush1.bf16.msra.mxu0 %v3291
        %3316 = vmatprep.subr.bf16.mxu0 0
        %3317 = vmatpush1.bf16.msra.mxu0 %v3293
        %3318 = vmatprep.subr.bf16.mxu0 0
        %3319 = vmatpush1.bf16.msra.mxu0 %v3295
        %3320 = vmatprep.subr.bf16.mxu0 0
        %3321 = vmatpush1.bf16.msra.mxu0 %v3297
        %3322 = vmatprep.subr.bf16.mxu0 0
        %3323 = vmatpush1.bf16.msra.mxu0 %v3299
        %3324 = vmatprep.subr.bf16.mxu0 0
        %3325 = vmatpush1.bf16.msra.mxu0 0
        %3326 = vmatprep.subr.bf16.mxu0 0
        %3327 = vmatpush1.bf16.msra.mxu0 0
        %3328 = vmatprep.subr.bf16.mxu0 0
        %3329 = vmatpush1.bf16.msra.mxu0 0
        %3330 = vmatprep.subr.bf16.mxu0 0
        %3331 = vmatpush1.bf16.msra.mxu0 0
        %3332 = vmatprep.subr.bf16.mxu0 0
        %3333 = vmatpush1.bf16.msra.mxu0 0
        %3334 = vmatprep.subr.bf16.mxu0 0
        %3335 = vmatpush1.bf16.msra.mxu0 0
        %3336 = vmatprep.subr.bf16.mxu0 0
        %3337 = vmatpush1.bf16.msra.mxu0 0
        %3338 = vmatprep.subr.bf16.mxu0 0
        %3339 = vmatpush1.bf16.msra.mxu0 0
        %3340 = vmatprep.mubr.bf16.mxu0 0
        %3341 = vmatmul.mubr.bf16.gmra.mrb[0].mxu0 %v3139
        %v3342 = vpop.f32.mrb[0].mxu0
        %v3343 = vadd.f32 0.0, %v3342
        %v3344 = vpop.f32.mrb[0].mxu0
        %v3345 = vpop.f32.mrb[0].mxu0
        %v3346 = vadd.f32 0.0, %v3345
        %v3347 = vpop.f32.mrb[0].mxu0
        %3348 = vmatprep.mubr.bf16.mxu0 0
        %3349 = vmatmul.mubr.bf16.gmra.mrb[0].mxu0 %v3140
        %v3350 = vpop.f32.mrb[0].mxu0
        %v3351 = vadd.f32 0.0, %v3350
        %v3352 = vpop.f32.mrb[0].mxu0
        %v3353 = vpop.f32.mrb[0].mxu0
        %v3354 = vadd.f32 0.0, %v3353
        %v3355 = vpop.f32.mrb[0].mxu0
        %3356 = vmatprep.mubr.bf16.mxu0 0
        %3357 = vmatmul.mubr.bf16.gmra.mrb[0].mxu0 %v3141
        %v3358 = vpop.f32.mrb[0].mxu0
        %v3359 = vadd.f32 0.0, %v3358
        %v3360 = vpop.f32.mrb[0].mxu0
        %v3361 = vpop.f32.mrb[0].mxu0
        %v3362 = vadd.f32 0.0, %v3361
        %v3363 = vpop.f32.mrb[0].mxu0
        %3364 = vmatprep.mubr.bf16.mxu0 0
        %3365 = vmatmul.mubr.bf16.gmra.mrb[0].mxu0 %v3142
        %v3366 = vpop.f32.mrb[0].mxu0
        %v3367 = vadd.f32 0.0, %v3366
        %v3368 = vpop.f32.mrb[0].mxu0
        %v3369 = vpop.f32.mrb[0].mxu0
        %v3370 = vadd.f32 0.0, %v3369
        %v3371 = vpop.f32.mrb[0].mxu0
        %3372 = vmatprep.mubr.bf16.mxu0 0
        %3373 = vmatmul.mubr.bf16.gmra.mrb[0].mxu0 %v3143
        %v3374 = vpop.f32.mrb[0].mxu0
        %v3375 = vadd.f32 0.0, %v3374
        %v3376 = vpop.f32.mrb[0].mxu0
        %v3377 = vpop.f32.mrb[0].mxu0
        %v3378 = vadd.f32 0.0, %v3377
        %v3379 = vpop.f32.mrb[0].mxu0
        %3380 = vmatprep.mubr.bf16.mxu0 0
        %3381 = vmatmul.mubr.bf16.gmra.mrb[0].mxu0 %v3144
        %v3382 = vpop.f32.mrb[0].mxu0
        %v3383 = vadd.f32 0.0, %v3382
        %v3384 = vpop.f32.mrb[0].mxu0
        %v3385 = vpop.f32.mrb[0].mxu0
        %v3386 = vadd.f32 0.0, %v3385
        %v3387 = vpop.f32.mrb[0].mxu0
        %3388 = vmatprep.mubr.bf16.mxu0 0
        %3389 = vmatmul.mubr.bf16.gmra.mrb[0].mxu0 %v3145
        %v3390 = vpop.f32.mrb[0].mxu0
        %v3391 = vadd.f32 0.0, %v3390
        %v3392 = vpop.f32.mrb[0].mxu0
        %v3393 = vpop.f32.mrb[0].mxu0
        %v3394 = vadd.f32 0.0, %v3393
        %v3395 = vpop.f32.mrb[0].mxu0
        %3396 = vmatprep.mubr.bf16.mxu0 0
        %3397 = vmatmul.mubr.bf16.gmra.mrb[0].mxu0 %v3146
        %v3398 = vpop.f32.mrb[0].mxu0
        %v3399 = vadd.f32 0.0, %v3398
        %v3400 = vpop.f32.mrb[0].mxu0
        %v3401 = vpop.f32.mrb[0].mxu0
        %v3402 = vadd.f32 0.0, %v3401
        %v3403 = vpop.f32.mrb[0].mxu0
        %3404 = vdwg.mxu0
        %v3405 = vpack.c.bf16 %v3217, %v3214
        %v3406 = vpack.c.bf16 %v3225, %v3222
        %v3407 = vpack.c.bf16 %v3233, %v3230
        %v3408 = vpack.c.bf16 %v3241, %v3238
        %v3409 = vpack.c.bf16 %v3249, %v3246
        %v3410 = vpack.c.bf16 %v3257, %v3254
        %v3411 = vpack.c.bf16 %v3265, %v3262
        %v3412 = vpack.c.bf16 %v3273, %v3270
        %v3413 = vpack.c.bf16 %v3346, %v3343
        %v3414 = vpack.c.bf16 %v3354, %v3351
        %v3415 = vpack.c.bf16 %v3362, %v3359
        %v3416 = vpack.c.bf16 %v3370, %v3367
        %v3417 = vpack.c.bf16 %v3378, %v3375
        %v3418 = vpack.c.bf16 %v3386, %v3383
        %v3419 = vpack.c.bf16 %v3394, %v3391
        %v3420 = vpack.c.bf16 %v3402, %v3399
        %3421 = vrot.lane.b32.xlu0 %v1473, 64
        %v3422 = vpop.permute.xlu0 %3421
        %3423 = vrot.lane.b32.xlu0 %v1476, 64
        %v3424 = vpop.permute.xlu0 %3423
        %3425 = vrot.lane.b32.xlu0 %v1479, 64
        %v3426 = vpop.permute.xlu0 %3425
        %3427 = vrot.lane.b32.xlu0 %v1482, 64
        %v3428 = vpop.permute.xlu0 %3427
        %3429 = vrot.lane.b32.xlu0 %v1485, 64
        %v3430 = vpop.permute.xlu0 %3429
        %3431 = vrot.lane.b32.xlu0 %v1488, 64
        %v3432 = vpop.permute.xlu0 %3431
        %3433 = vrot.lane.b32.xlu0 %v1491, 64
        %v3434 = vpop.permute.xlu0 %3433
        %3435 = vrot.lane.b32.xlu0 %v1494, 64
        %v3436 = vpop.permute.xlu0 %3435
        %3437 = vrot.lane.b32.xlu0 %v1474, 64
        %v3438 = vpop.permute.xlu0 %3437
        %3439 = vrot.lane.b32.xlu0 %v1477, 64
        %v3440 = vpop.permute.xlu0 %3439
        %3441 = vrot.lane.b32.xlu0 %v1480, 64
        %v3442 = vpop.permute.xlu0 %3441
        %3443 = vrot.lane.b32.xlu0 %v1483, 64
        %v3444 = vpop.permute.xlu0 %3443
        %3445 = vrot.lane.b32.xlu0 %v1486, 64
        %v3446 = vpop.permute.xlu0 %3445
        %3447 = vrot.lane.b32.xlu0 %v1489, 64
        %v3448 = vpop.permute.xlu0 %3447
        %3449 = vrot.lane.b32.xlu0 %v1492, 64
        %v3450 = vpop.permute.xlu0 %3449
        %3451 = vrot.lane.b32.xlu0 %v1495, 64
        %v3452 = vpop.permute.xlu0 %3451
        %v3454 = vsel %vm1556, %v3422, 0
        %v3457 = vsel %vm1556, %v3424, 0
        %v3460 = vsel %vm1556, %v3426, 0
        %v3463 = vsel %vm1556, %v3428, 0
        %v3466 = vsel %vm1556, %v3430, 0
        %v3469 = vsel %vm1556, %v3432, 0
        %v3472 = vsel %vm1556, %v3434, 0
        %v3475 = vsel %vm1556, %v3436, 0
        %v3478 = vsel %vm1556, %v3438, 0
        %v3481 = vsel %vm1556, %v3440, 0
        %v3484 = vsel %vm1556, %v3442, 0
        %v3487 = vsel %vm1556, %v3444, 0
        %v3490 = vsel %vm1556, %v3446, 0
        %v3493 = vsel %vm1556, %v3448, 0
        %v3496 = vsel %vm1556, %v3450, 0
        %v3499 = vsel %vm1556, %v3452, 0
        %3501 = vmatprep.subr.bf16.mxu0 0
        %3502 = vmatpush1.bf16.xpose.msra.mxu0 %v3478
        %3503 = vmatprep.subr.bf16.mxu0 0
        %3504 = vmatpush1.bf16.xpose.msra.mxu0 %v3481
        %3505 = vmatprep.subr.bf16.mxu0 0
        %3506 = vmatpush1.bf16.xpose.msra.mxu0 %v3484
        %3507 = vmatprep.subr.bf16.mxu0 0
        %3508 = vmatpush1.bf16.xpose.msra.mxu0 %v3487
        %3509 = vmatprep.subr.bf16.mxu0 0
        %3510 = vmatpush1.bf16.xpose.msra.mxu0 %v3490
        %3511 = vmatprep.subr.bf16.mxu0 0
        %3512 = vmatpush1.bf16.xpose.msra.mxu0 %v3493
        %3513 = vmatprep.subr.bf16.mxu0 0
        %3514 = vmatpush1.bf16.xpose.msra.mxu0 %v3496
        %3515 = vmatprep.subr.bf16.mxu0 0
        %3516 = vmatpush1.bf16.xpose.msra.mxu0 %v3499
        %3517 = vmatprep.subr.bf16.mxu0 0
        %3518 = vmatpush1.bf16.xpose.msra.mxu0 0
        %3519 = vmatprep.subr.bf16.mxu0 0
        %3520 = vmatpush1.bf16.xpose.msra.mxu0 0
        %3521 = vmatprep.subr.bf16.mxu0 0
        %3522 = vmatpush1.bf16.xpose.msra.mxu0 0
        %3523 = vmatprep.subr.bf16.mxu0 0
        %3524 = vmatpush1.bf16.xpose.msra.mxu0 0
        %3525 = vmatprep.subr.bf16.mxu0 0
        %3526 = vmatpush1.bf16.xpose.msra.mxu0 0
        %3527 = vmatprep.subr.bf16.mxu0 0
        %3528 = vmatpush1.bf16.xpose.msra.mxu0 0
        %3529 = vmatprep.subr.bf16.mxu0 0
        %3530 = vmatpush1.bf16.xpose.msra.mxu0 0
        %3531 = vmatprep.subr.bf16.mxu0 0
        %3532 = vmatpush1.bf16.xpose.msra.mxu0 0
        %3533 = vmatprep.mubr.bf16.mxu0 0
        %3534 = vmatmul.mubr.bf16.gmra.mrb[0].mxu0 %v3454
        %v3535 = vpop.f32.mrb[0].mxu0
        %v3536 = vadd.f32 0.0, %v3535
        %v3537 = vpop.f32.mrb[0].mxu0
        %v3538 = vpop.f32.mrb[0].mxu0
        %v3539 = vadd.f32 0.0, %v3538
        %v3540 = vpop.f32.mrb[0].mxu0
        %3541 = vmatprep.mubr.bf16.mxu0 0
        %3542 = vmatmul.mubr.bf16.gmra.mrb[0].mxu0 %v3457
        %v3543 = vpop.f32.mrb[0].mxu0
        %v3544 = vadd.f32 0.0, %v3543
        %v3545 = vpop.f32.mrb[0].mxu0
        %v3546 = vpop.f32.mrb[0].mxu0
        %v3547 = vadd.f32 0.0, %v3546
        %v3548 = vpop.f32.mrb[0].mxu0
        %3549 = vmatprep.mubr.bf16.mxu0 0
        %3550 = vmatmul.mubr.bf16.gmra.mrb[0].mxu0 %v3460
        %v3551 = vpop.f32.mrb[0].mxu0
        %v3552 = vadd.f32 0.0, %v3551
        %v3553 = vpop.f32.mrb[0].mxu0
        %v3554 = vpop.f32.mrb[0].mxu0
        %v3555 = vadd.f32 0.0, %v3554
        %v3556 = vpop.f32.mrb[0].mxu0
        %3557 = vmatprep.mubr.bf16.mxu0 0
        %3558 = vmatmul.mubr.bf16.gmra.mrb[0].mxu0 %v3463
        %v3559 = vpop.f32.mrb[0].mxu0
        %v3560 = vadd.f32 0.0, %v3559
        %v3561 = vpop.f32.mrb[0].mxu0
        %v3562 = vpop.f32.mrb[0].mxu0
        %v3563 = vadd.f32 0.0, %v3562
        %v3564 = vpop.f32.mrb[0].mxu0
        %3565 = vmatprep.mubr.bf16.mxu0 0
        %3566 = vmatmul.mubr.bf16.gmra.mrb[0].mxu0 %v3466
        %v3567 = vpop.f32.mrb[0].mxu0
        %v3568 = vadd.f32 0.0, %v3567
        %v3569 = vpop.f32.mrb[0].mxu0
        %v3570 = vpop.f32.mrb[0].mxu0
        %v3571 = vadd.f32 0.0, %v3570
        %v3572 = vpop.f32.mrb[0].mxu0
        %3573 = vmatprep.mubr.bf16.mxu0 0
        %3574 = vmatmul.mubr.bf16.gmra.mrb[0].mxu0 %v3469
        %v3575 = vpop.f32.mrb[0].mxu0
        %v3576 = vadd.f32 0.0, %v3575
        %v3577 = vpop.f32.mrb[0].mxu0
        %v3578 = vpop.f32.mrb[0].mxu0
        %v3579 = vadd.f32 0.0, %v3578
        %v3580 = vpop.f32.mrb[0].mxu0
        %3581 = vmatprep.mubr.bf16.mxu0 0
        %3582 = vmatmul.mubr.bf16.gmra.mrb[0].mxu0 %v3472
        %v3583 = vpop.f32.mrb[0].mxu0
        %v3584 = vadd.f32 0.0, %v3583
        %v3585 = vpop.f32.mrb[0].mxu0
        %v3586 = vpop.f32.mrb[0].mxu0
        %v3587 = vadd.f32 0.0, %v3586
        %v3588 = vpop.f32.mrb[0].mxu0
        %3589 = vmatprep.mubr.bf16.mxu0 0
        %3590 = vmatmul.mubr.bf16.gmra.mrb[0].mxu0 %v3475
        %v3591 = vpop.f32.mrb[0].mxu0
        %v3592 = vadd.f32 0.0, %v3591
        %v3593 = vpop.f32.mrb[0].mxu0
        %v3594 = vpop.f32.mrb[0].mxu0
        %v3595 = vadd.f32 0.0, %v3594
        %v3596 = vpop.f32.mrb[0].mxu0
        %3597 = vdwg.mxu0
        %3598 = vrot.lane.b32.xlu0 %v1497, 64
        %v3599 = vpop.permute.xlu0 %3598
        %3600 = vrot.lane.b32.xlu0 %v1500, 64
        %v3601 = vpop.permute.xlu0 %3600
        %3602 = vrot.lane.b32.xlu0 %v1503, 64
        %v3603 = vpop.permute.xlu0 %3602
        %3604 = vrot.lane.b32.xlu0 %v1506, 64
        %v3605 = vpop.permute.xlu0 %3604
        %3606 = vrot.lane.b32.xlu0 %v1509, 64
        %v3607 = vpop.permute.xlu0 %3606
        %3608 = vrot.lane.b32.xlu0 %v1512, 64
        %v3609 = vpop.permute.xlu0 %3608
        %3610 = vrot.lane.b32.xlu0 %v1515, 64
        %v3611 = vpop.permute.xlu0 %3610
        %3612 = vrot.lane.b32.xlu0 %v1518, 64
        %v3613 = vpop.permute.xlu0 %3612
        %3614 = vrot.lane.b32.xlu0 %v1498, 64
        %v3615 = vpop.permute.xlu0 %3614
        %3616 = vrot.lane.b32.xlu0 %v1501, 64
        %v3617 = vpop.permute.xlu0 %3616
        %3618 = vrot.lane.b32.xlu0 %v1504, 64
        %v3619 = vpop.permute.xlu0 %3618
        %3620 = vrot.lane.b32.xlu0 %v1507, 64
        %v3621 = vpop.permute.xlu0 %3620
        %3622 = vrot.lane.b32.xlu0 %v1510, 64
        %v3623 = vpop.permute.xlu0 %3622
        %3624 = vrot.lane.b32.xlu0 %v1513, 64
        %v3625 = vpop.permute.xlu0 %3624
        %3626 = vrot.lane.b32.xlu0 %v1516, 64
        %v3627 = vpop.permute.xlu0 %3626
        %3628 = vrot.lane.b32.xlu0 %v1519, 64
        %v3629 = vpop.permute.xlu0 %3628
        %v3631 = vsel %vm1556, %v3599, 0
        %v3634 = vsel %vm1556, %v3601, 0
        %v3637 = vsel %vm1556, %v3603, 0
        %v3640 = vsel %vm1556, %v3605, 0
        %v3643 = vsel %vm1556, %v3607, 0
        %v3646 = vsel %vm1556, %v3609, 0
        %v3649 = vsel %vm1556, %v3611, 0
        %v3652 = vsel %vm1556, %v3613, 0
        %v3655 = vsel %vm1556, %v3615, 0
        %v3658 = vsel %vm1556, %v3617, 0
        %v3661 = vsel %vm1556, %v3619, 0
        %v3664 = vsel %vm1556, %v3621, 0
        %v3667 = vsel %vm1556, %v3623, 0
        %v3670 = vsel %vm1556, %v3625, 0
        %v3673 = vsel %vm1556, %v3627, 0
        %v3676 = vsel %vm1556, %v3629, 0
        %3678 = vmatprep.subr.bf16.mxu0 0
        %3679 = vmatpush1.bf16.xpose.msra.mxu0 %v3655
        %3680 = vmatprep.subr.bf16.mxu0 0
        %3681 = vmatpush1.bf16.xpose.msra.mxu0 %v3658
        %3682 = vmatprep.subr.bf16.mxu0 0
        %3683 = vmatpush1.bf16.xpose.msra.mxu0 %v3661
        %3684 = vmatprep.subr.bf16.mxu0 0
        %3685 = vmatpush1.bf16.xpose.msra.mxu0 %v3664
        %3686 = vmatprep.subr.bf16.mxu0 0
        %3687 = vmatpush1.bf16.xpose.msra.mxu0 %v3667
        %3688 = vmatprep.subr.bf16.mxu0 0
        %3689 = vmatpush1.bf16.xpose.msra.mxu0 %v3670
        %3690 = vmatprep.subr.bf16.mxu0 0
        %3691 = vmatpush1.bf16.xpose.msra.mxu0 %v3673
        %3692 = vmatprep.subr.bf16.mxu0 0
        %3693 = vmatpush1.bf16.xpose.msra.mxu0 %v3676
        %3694 = vmatprep.subr.bf16.mxu0 0
        %3695 = vmatpush1.bf16.xpose.msra.mxu0 0
        %3696 = vmatprep.subr.bf16.mxu0 0
        %3697 = vmatpush1.bf16.xpose.msra.mxu0 0
        %3698 = vmatprep.subr.bf16.mxu0 0
        %3699 = vmatpush1.bf16.xpose.msra.mxu0 0
        %3700 = vmatprep.subr.bf16.mxu0 0
        %3701 = vmatpush1.bf16.xpose.msra.mxu0 0
        %3702 = vmatprep.subr.bf16.mxu0 0
        %3703 = vmatpush1.bf16.xpose.msra.mxu0 0
        %3704 = vmatprep.subr.bf16.mxu0 0
        %3705 = vmatpush1.bf16.xpose.msra.mxu0 0
        %3706 = vmatprep.subr.bf16.mxu0 0
        %3707 = vmatpush1.bf16.xpose.msra.mxu0 0
        %3708 = vmatprep.subr.bf16.mxu0 0
        %3709 = vmatpush1.bf16.xpose.msra.mxu0 0
        %3710 = vmatprep.mubr.bf16.mxu0 0
        %3711 = vmatmul.mubr.bf16.gmra.mrb[0].mxu0 %v3631
        %v3712 = vpop.f32.mrb[0].mxu0
        %v3713 = vadd.f32 0.0, %v3712
        %v3714 = vpop.f32.mrb[0].mxu0
        %v3715 = vpop.f32.mrb[0].mxu0
        %v3716 = vadd.f32 0.0, %v3715
        %v3717 = vpop.f32.mrb[0].mxu0
        %3718 = vmatprep.mubr.bf16.mxu0 0
        %3719 = vmatmul.mubr.bf16.gmra.mrb[0].mxu0 %v3634
        %v3720 = vpop.f32.mrb[0].mxu0
        %v3721 = vadd.f32 0.0, %v3720
        %v3722 = vpop.f32.mrb[0].mxu0
        %v3723 = vpop.f32.mrb[0].mxu0
        %v3724 = vadd.f32 0.0, %v3723
        %v3725 = vpop.f32.mrb[0].mxu0
        %3726 = vmatprep.mubr.bf16.mxu0 0
        %3727 = vmatmul.mubr.bf16.gmra.mrb[0].mxu0 %v3637
        %v3728 = vpop.f32.mrb[0].mxu0
        %v3729 = vadd.f32 0.0, %v3728
        %v3730 = vpop.f32.mrb[0].mxu0
        %v3731 = vpop.f32.mrb[0].mxu0
        %v3732 = vadd.f32 0.0, %v3731
        %v3733 = vpop.f32.mrb[0].mxu0
        %3734 = vmatprep.mubr.bf16.mxu0 0
        %3735 = vmatmul.mubr.bf16.gmra.mrb[0].mxu0 %v3640
        %v3736 = vpop.f32.mrb[0].mxu0
        %v3737 = vadd.f32 0.0, %v3736
        %v3738 = vpop.f32.mrb[0].mxu0
        %v3739 = vpop.f32.mrb[0].mxu0
        %v3740 = vadd.f32 0.0, %v3739
        %v3741 = vpop.f32.mrb[0].mxu0
        %3742 = vmatprep.mubr.bf16.mxu0 0
        %3743 = vmatmul.mubr.bf16.gmra.mrb[0].mxu0 %v3643
        %v3744 = vpop.f32.mrb[0].mxu0
        %v3745 = vadd.f32 0.0, %v3744
        %v3746 = vpop.f32.mrb[0].mxu0
        %v3747 = vpop.f32.mrb[0].mxu0
        %v3748 = vadd.f32 0.0, %v3747
        %v3749 = vpop.f32.mrb[0].mxu0
        %3750 = vmatprep.mubr.bf16.mxu0 0
        %3751 = vmatmul.mubr.bf16.gmra.mrb[0].mxu0 %v3646
        %v3752 = vpop.f32.mrb[0].mxu0
        %v3753 = vadd.f32 0.0, %v3752
        %v3754 = vpop.f32.mrb[0].mxu0
        %v3755 = vpop.f32.mrb[0].mxu0
        %v3756 = vadd.f32 0.0, %v3755
        %v3757 = vpop.f32.mrb[0].mxu0
        %3758 = vmatprep.mubr.bf16.mxu0 0
        %3759 = vmatmul.mubr.bf16.gmra.mrb[0].mxu0 %v3649
        %v3760 = vpop.f32.mrb[0].mxu0
        %v3761 = vadd.f32 0.0, %v3760
        %v3762 = vpop.f32.mrb[0].mxu0
        %v3763 = vpop.f32.mrb[0].mxu0
        %v3764 = vadd.f32 0.0, %v3763
        %v3765 = vpop.f32.mrb[0].mxu0
        %3766 = vmatprep.mubr.bf16.mxu0 0
        %3767 = vmatmul.mubr.bf16.gmra.mrb[0].mxu0 %v3652
        %v3768 = vpop.f32.mrb[0].mxu0
        %v3769 = vadd.f32 0.0, %v3768
        %v3770 = vpop.f32.mrb[0].mxu0
        %v3771 = vpop.f32.mrb[0].mxu0
        %v3772 = vadd.f32 0.0, %v3771
        %v3773 = vpop.f32.mrb[0].mxu0
        %3774 = vdwg.mxu0
        %v3775 = vsel %vm1863, %v3536, -inf
        %v3776 = vsel %vm1864, %v3539, -inf
        %v3777 = vsel %vm1865, %v3544, -inf
        %v3778 = vsel %vm1866, %v3547, -inf
        %v3779 = vsel %vm1867, %v3552, -inf
        %v3780 = vsel %vm1868, %v3555, -inf
        %v3781 = vsel %vm1869, %v3560, -inf
        %v3782 = vsel %vm1870, %v3563, -inf
        %v3783 = vsel %vm1871, %v3568, -inf
        %v3784 = vsel %vm1872, %v3571, -inf
        %v3785 = vsel %vm1873, %v3576, -inf
        %v3786 = vsel %vm1874, %v3579, -inf
        %v3787 = vsel %vm1875, %v3584, -inf
        %v3788 = vsel %vm1876, %v3587, -inf
        %v3789 = vsel %vm1877, %v3592, -inf
        %v3790 = vsel %vm1878, %v3595, -inf
        %v3791 = vsel %vm1863, %v3713, -inf
        %v3792 = vsel %vm1864, %v3716, -inf
        %v3793 = vsel %vm1865, %v3721, -inf
        %v3794 = vsel %vm1866, %v3724, -inf
        %v3795 = vsel %vm1867, %v3729, -inf
        %v3796 = vsel %vm1868, %v3732, -inf
        %v3797 = vsel %vm1869, %v3737, -inf
        %v3798 = vsel %vm1870, %v3740, -inf
        %v3799 = vsel %vm1871, %v3745, -inf
        %v3800 = vsel %vm1872, %v3748, -inf
        %v3801 = vsel %vm1873, %v3753, -inf
        %v3802 = vsel %vm1874, %v3756, -inf
        %v3803 = vsel %vm1875, %v3761, -inf
        %v3804 = vsel %vm1876, %v3764, -inf
        %v3805 = vsel %vm1877, %v3769, -inf
        %v3806 = vsel %vm1878, %v3772, -inf
        %3807 = vmax.xlane.f32.xlu0 %v3775
        %v3808 = vpop.xlane.xlu0 %3807
        %3809 = vmax.xlane.f32.xlu0 %v3776
        %v3810 = vpop.xlane.xlu0 %3809
        %3811 = vmax.xlane.f32.xlu0 %v3777
        %v3812 = vpop.xlane.xlu0 %3811
        %3813 = vmax.xlane.f32.xlu0 %v3778
        %v3814 = vpop.xlane.xlu0 %3813
        %3815 = vmax.xlane.f32.xlu0 %v3779
        %v3816 = vpop.xlane.xlu0 %3815
        %3817 = vmax.xlane.f32.xlu0 %v3780
        %v3818 = vpop.xlane.xlu0 %3817
        %3819 = vmax.xlane.f32.xlu0 %v3781
        %v3820 = vpop.xlane.xlu0 %3819
        %3821 = vmax.xlane.f32.xlu0 %v3782
        %v3822 = vpop.xlane.xlu0 %3821
        %3823 = vmax.xlane.f32.xlu0 %v3783
        %v3824 = vpop.xlane.xlu0 %3823
        %3825 = vmax.xlane.f32.xlu0 %v3784
        %v3826 = vpop.xlane.xlu0 %3825
        %3827 = vmax.xlane.f32.xlu0 %v3785
        %v3828 = vpop.xlane.xlu0 %3827
        %3829 = vmax.xlane.f32.xlu0 %v3786
        %v3830 = vpop.xlane.xlu0 %3829
        %3831 = vmax.xlane.f32.xlu0 %v3787
        %v3832 = vpop.xlane.xlu0 %3831
        %3833 = vmax.xlane.f32.xlu0 %v3788
        %v3834 = vpop.xlane.xlu0 %3833
        %3835 = vmax.xlane.f32.xlu0 %v3789
        %v3836 = vpop.xlane.xlu0 %3835
        %3837 = vmax.xlane.f32.xlu0 %v3790
        %v3838 = vpop.xlane.xlu0 %3837
        %3839 = vmax.xlane.f32.xlu0 %v3791
        %v3840 = vpop.xlane.xlu0 %3839
        %3841 = vmax.xlane.f32.xlu0 %v3792
        %v3842 = vpop.xlane.xlu0 %3841
        %3843 = vmax.xlane.f32.xlu0 %v3793
        %v3844 = vpop.xlane.xlu0 %3843
        %3845 = vmax.xlane.f32.xlu0 %v3794
        %v3846 = vpop.xlane.xlu0 %3845
        %3847 = vmax.xlane.f32.xlu0 %v3795
        %v3848 = vpop.xlane.xlu0 %3847
        %3849 = vmax.xlane.f32.xlu0 %v3796
        %v3850 = vpop.xlane.xlu0 %3849
        %3851 = vmax.xlane.f32.xlu0 %v3797
        %v3852 = vpop.xlane.xlu0 %3851
        %3853 = vmax.xlane.f32.xlu0 %v3798
        %v3854 = vpop.xlane.xlu0 %3853
        %3855 = vmax.xlane.f32.xlu0 %v3799
        %v3856 = vpop.xlane.xlu0 %3855
        %3857 = vmax.xlane.f32.xlu0 %v3800
        %v3858 = vpop.xlane.xlu0 %3857
        %3859 = vmax.xlane.f32.xlu0 %v3801
        %v3860 = vpop.xlane.xlu0 %3859
        %3861 = vmax.xlane.f32.xlu0 %v3802
        %v3862 = vpop.xlane.xlu0 %3861
        %3863 = vmax.xlane.f32.xlu0 %v3803
        %v3864 = vpop.xlane.xlu0 %3863
        %3865 = vmax.xlane.f32.xlu0 %v3804
        %v3866 = vpop.xlane.xlu0 %3865
        %3867 = vmax.xlane.f32.xlu0 %v3805
        %v3868 = vpop.xlane.xlu0 %3867
        %3869 = vmax.xlane.f32.xlu0 %v3806
        %v3870 = vpop.xlane.xlu0 %3869
        %v3871 = vsub.f32 %v3775, %v3808
        %v3872 = vsub.f32 %v3776, %v3810
        %v3873 = vsub.f32 %v3777, %v3812
        %v3874 = vsub.f32 %v3778, %v3814
        %v3875 = vsub.f32 %v3779, %v3816
        %v3876 = vsub.f32 %v3780, %v3818
        %v3877 = vsub.f32 %v3781, %v3820
        %v3878 = vsub.f32 %v3782, %v3822
        %v3879 = vsub.f32 %v3783, %v3824
        %v3880 = vsub.f32 %v3784, %v3826
        %v3881 = vsub.f32 %v3785, %v3828
        %v3882 = vsub.f32 %v3786, %v3830
        %v3883 = vsub.f32 %v3787, %v3832
        %v3884 = vsub.f32 %v3788, %v3834
        %v3885 = vsub.f32 %v3789, %v3836
        %v3886 = vsub.f32 %v3790, %v3838
        %v3887 = vsub.f32 %v3791, %v3840
        %v3888 = vsub.f32 %v3792, %v3842
        %v3889 = vsub.f32 %v3793, %v3844
        %v3890 = vsub.f32 %v3794, %v3846
        %v3891 = vsub.f32 %v3795, %v3848
        %v3892 = vsub.f32 %v3796, %v3850
        %v3893 = vsub.f32 %v3797, %v3852
        %v3894 = vsub.f32 %v3798, %v3854
        %v3895 = vsub.f32 %v3799, %v3856
        %v3896 = vsub.f32 %v3800, %v3858
        %v3897 = vsub.f32 %v3801, %v3860
        %v3898 = vsub.f32 %v3802, %v3862
        %v3899 = vsub.f32 %v3803, %v3864
        %v3900 = vsub.f32 %v3804, %v3866
        %v3901 = vsub.f32 %v3805, %v3868
        %v3902 = vsub.f32 %v3806, %v3870
        %v3903 = vmul.f32 %v3871, 1.442695
        %v3904 = vpow.pop %v3903
        %v3905 = vmul.f32 %v3872, 1.442695
        %v3906 = vpow.pop %v3905
        %v3907 = vmul.f32 %v3873, 1.442695
        %v3908 = vpow.pop %v3907
        %v3909 = vmul.f32 %v3874, 1.442695
        %v3910 = vpow.pop %v3909
        %v3911 = vmul.f32 %v3875, 1.442695
        %v3912 = vpow.pop %v3911
        %v3913 = vmul.f32 %v3876, 1.442695
        %v3914 = vpow.pop %v3913
        %v3915 = vmul.f32 %v3877, 1.442695
        %v3916 = vpow.pop %v3915
        %v3917 = vmul.f32 %v3878, 1.442695
        %v3918 = vpow.pop %v3917
        %v3919 = vmul.f32 %v3879, 1.442695
        %v3920 = vpow.pop %v3919
        %v3921 = vmul.f32 %v3880, 1.442695
        %v3922 = vpow.pop %v3921
        %v3923 = vmul.f32 %v3881, 1.442695
        %v3924 = vpow.pop %v3923
        %v3925 = vmul.f32 %v3882, 1.442695
        %v3926 = vpow.pop %v3925
        %v3927 = vmul.f32 %v3883, 1.442695
        %v3928 = vpow.pop %v3927
        %v3929 = vmul.f32 %v3884, 1.442695
        %v3930 = vpow.pop %v3929
        %v3931 = vmul.f32 %v3885, 1.442695
        %v3932 = vpow.pop %v3931
        %v3933 = vmul.f32 %v3886, 1.442695
        %v3934 = vpow.pop %v3933
        %v3935 = vmul.f32 %v3887, 1.442695
        %v3936 = vpow.pop %v3935
        %v3937 = vmul.f32 %v3888, 1.442695
        %v3938 = vpow.pop %v3937
        %v3939 = vmul.f32 %v3889, 1.442695
        %v3940 = vpow.pop %v3939
        %v3941 = vmul.f32 %v3890, 1.442695
        %v3942 = vpow.pop %v3941
        %v3943 = vmul.f32 %v3891, 1.442695
        %v3944 = vpow.pop %v3943
        %v3945 = vmul.f32 %v3892, 1.442695
        %v3946 = vpow.pop %v3945
        %v3947 = vmul.f32 %v3893, 1.442695
        %v3948 = vpow.pop %v3947
        %v3949 = vmul.f32 %v3894, 1.442695
        %v3950 = vpow.pop %v3949
        %v3951 = vmul.f32 %v3895, 1.442695
        %v3952 = vpow.pop %v3951
        %v3953 = vmul.f32 %v3896, 1.442695
        %v3954 = vpow.pop %v3953
        %v3955 = vmul.f32 %v3897, 1.442695
        %v3956 = vpow.pop %v3955
        %v3957 = vmul.f32 %v3898, 1.442695
        %v3958 = vpow.pop %v3957
        %v3959 = vmul.f32 %v3899, 1.442695
        %v3960 = vpow.pop %v3959
        %v3961 = vmul.f32 %v3900, 1.442695
        %v3962 = vpow.pop %v3961
        %v3963 = vmul.f32 %v3901, 1.442695
        %v3964 = vpow.pop %v3963
        %v3965 = vmul.f32 %v3902, 1.442695
        %v3966 = vpow.pop %v3965
        %3967 = vadd.xlane.f32.xlu0 %v3904
        %v3968 = vpop.xlane.xlu0 %3967
        %3969 = vadd.xlane.f32.xlu0 %v3906
        %v3970 = vpop.xlane.xlu0 %3969
        %3971 = vadd.xlane.f32.xlu0 %v3908
        %v3972 = vpop.xlane.xlu0 %3971
        %3973 = vadd.xlane.f32.xlu0 %v3910
        %v3974 = vpop.xlane.xlu0 %3973
        %3975 = vadd.xlane.f32.xlu0 %v3912
        %v3976 = vpop.xlane.xlu0 %3975
        %3977 = vadd.xlane.f32.xlu0 %v3914
        %v3978 = vpop.xlane.xlu0 %3977
        %3979 = vadd.xlane.f32.xlu0 %v3916
        %v3980 = vpop.xlane.xlu0 %3979
        %3981 = vadd.xlane.f32.xlu0 %v3918
        %v3982 = vpop.xlane.xlu0 %3981
        %3983 = vadd.xlane.f32.xlu0 %v3920
        %v3984 = vpop.xlane.xlu0 %3983
        %3985 = vadd.xlane.f32.xlu0 %v3922
        %v3986 = vpop.xlane.xlu0 %3985
        %3987 = vadd.xlane.f32.xlu0 %v3924
        %v3988 = vpop.xlane.xlu0 %3987
        %3989 = vadd.xlane.f32.xlu0 %v3926
        %v3990 = vpop.xlane.xlu0 %3989
        %3991 = vadd.xlane.f32.xlu0 %v3928
        %v3992 = vpop.xlane.xlu0 %3991
        %3993 = vadd.xlane.f32.xlu0 %v3930
        %v3994 = vpop.xlane.xlu0 %3993
        %3995 = vadd.xlane.f32.xlu0 %v3932
        %v3996 = vpop.xlane.xlu0 %3995
        %3997 = vadd.xlane.f32.xlu0 %v3934
        %v3998 = vpop.xlane.xlu0 %3997
        %3999 = vadd.xlane.f32.xlu0 %v3936
        %v4000 = vpop.xlane.xlu0 %3999
        %4001 = vadd.xlane.f32.xlu0 %v3938
        %v4002 = vpop.xlane.xlu0 %4001
        %4003 = vadd.xlane.f32.xlu0 %v3940
        %v4004 = vpop.xlane.xlu0 %4003
        %4005 = vadd.xlane.f32.xlu0 %v3942
        %v4006 = vpop.xlane.xlu0 %4005
        %4007 = vadd.xlane.f32.xlu0 %v3944
        %v4008 = vpop.xlane.xlu0 %4007
        %4009 = vadd.xlane.f32.xlu0 %v3946
        %v4010 = vpop.xlane.xlu0 %4009
        %4011 = vadd.xlane.f32.xlu0 %v3948
        %v4012 = vpop.xlane.xlu0 %4011
        %4013 = vadd.xlane.f32.xlu0 %v3950
        %v4014 = vpop.xlane.xlu0 %4013
        %4015 = vadd.xlane.f32.xlu0 %v3952
        %v4016 = vpop.xlane.xlu0 %4015
        %4017 = vadd.xlane.f32.xlu0 %v3954
        %v4018 = vpop.xlane.xlu0 %4017
        %4019 = vadd.xlane.f32.xlu0 %v3956
        %v4020 = vpop.xlane.xlu0 %4019
        %4021 = vadd.xlane.f32.xlu0 %v3958
        %v4022 = vpop.xlane.xlu0 %4021
        %4023 = vadd.xlane.f32.xlu0 %v3960
        %v4024 = vpop.xlane.xlu0 %4023
        %4025 = vadd.xlane.f32.xlu0 %v3962
        %v4026 = vpop.xlane.xlu0 %4025
        %4027 = vadd.xlane.f32.xlu0 %v3964
        %v4028 = vpop.xlane.xlu0 %4027
        %4029 = vadd.xlane.f32.xlu0 %v3966
        %v4030 = vpop.xlane.xlu0 %4029
        %v4031 = vrcp.pop %v3968
        %v4032 = vrcp.pop %v3970
        %v4033 = vrcp.pop %v3972
        %v4034 = vrcp.pop %v3974
        %v4035 = vrcp.pop %v3976
        %v4036 = vrcp.pop %v3978
        %v4037 = vrcp.pop %v3980
        %v4038 = vrcp.pop %v3982
        %v4039 = vrcp.pop %v3984
        %v4040 = vrcp.pop %v3986
        %v4041 = vrcp.pop %v3988
        %v4042 = vrcp.pop %v3990
        %v4043 = vrcp.pop %v3992
        %v4044 = vrcp.pop %v3994
        %v4045 = vrcp.pop %v3996
        %v4046 = vrcp.pop %v3998
        %v4047 = vrcp.pop %v4000
        %v4048 = vrcp.pop %v4002
        %v4049 = vrcp.pop %v4004
        %v4050 = vrcp.pop %v4006
        %v4051 = vrcp.pop %v4008
        %v4052 = vrcp.pop %v4010
        %v4053 = vrcp.pop %v4012
        %v4054 = vrcp.pop %v4014
        %v4055 = vrcp.pop %v4016
        %v4056 = vrcp.pop %v4018
        %v4057 = vrcp.pop %v4020
        %v4058 = vrcp.pop %v4022
        %v4059 = vrcp.pop %v4024
        %v4060 = vrcp.pop %v4026
        %v4061 = vrcp.pop %v4028
        %v4062 = vrcp.pop %v4030
        %v4063 = vmul.f32 %v3904, %v4031
        %v4064 = vmul.f32 %v3906, %v4032
        %v4065 = vmul.f32 %v3908, %v4033
        %v4066 = vmul.f32 %v3910, %v4034
        %v4067 = vmul.f32 %v3912, %v4035
        %v4068 = vmul.f32 %v3914, %v4036
        %v4069 = vmul.f32 %v3916, %v4037
        %v4070 = vmul.f32 %v3918, %v4038
        %v4071 = vmul.f32 %v3920, %v4039
        %v4072 = vmul.f32 %v3922, %v4040
        %v4073 = vmul.f32 %v3924, %v4041
        %v4074 = vmul.f32 %v3926, %v4042
        %v4075 = vmul.f32 %v3928, %v4043
        %v4076 = vmul.f32 %v3930, %v4044
        %v4077 = vmul.f32 %v3932, %v4045
        %v4078 = vmul.f32 %v3934, %v4046
        %v4079 = vmul.f32 %v3936, %v4047
        %v4080 = vmul.f32 %v3938, %v4048
        %v4081 = vmul.f32 %v3940, %v4049
        %v4082 = vmul.f32 %v3942, %v4050
        %v4083 = vmul.f32 %v3944, %v4051
        %v4084 = vmul.f32 %v3946, %v4052
        %v4085 = vmul.f32 %v3948, %v4053
        %v4086 = vmul.f32 %v3950, %v4054
        %v4087 = vmul.f32 %v3952, %v4055
        %v4088 = vmul.f32 %v3954, %v4056
        %v4089 = vmul.f32 %v3956, %v4057
        %v4090 = vmul.f32 %v3958, %v4058
        %v4091 = vmul.f32 %v3960, %v4059
        %v4092 = vmul.f32 %v3962, %v4060
        %v4093 = vmul.f32 %v3964, %v4061
        %v4094 = vmul.f32 %v3966, %v4062
        %v4095 = vpack.c.bf16 %v4064, %v4063
        %v4096 = vpack.c.bf16 %v4066, %v4065
        %v4097 = vpack.c.bf16 %v4068, %v4067
        %v4098 = vpack.c.bf16 %v4070, %v4069
        %v4099 = vpack.c.bf16 %v4072, %v4071
        %v4100 = vpack.c.bf16 %v4074, %v4073
        %v4101 = vpack.c.bf16 %v4076, %v4075
        %v4102 = vpack.c.bf16 %v4078, %v4077
        %v4103 = vpack.c.bf16 %v4080, %v4079
        %v4104 = vpack.c.bf16 %v4082, %v4081
        %v4105 = vpack.c.bf16 %v4084, %v4083
        %v4106 = vpack.c.bf16 %v4086, %v4085
        %v4107 = vpack.c.bf16 %v4088, %v4087
        %v4108 = vpack.c.bf16 %v4090, %v4089
        %v4109 = vpack.c.bf16 %v4092, %v4091
        %v4110 = vpack.c.bf16 %v4094, %v4093
        %4111 = vrot.lane.b32.xlu0 %v1475, 64
        %v4112 = vpop.permute.xlu0 %4111
        %4113 = vrot.lane.b32.xlu0 %v1478, 64
        %v4114 = vpop.permute.xlu0 %4113
        %4115 = vrot.lane.b32.xlu0 %v1481, 64
        %v4116 = vpop.permute.xlu0 %4115
        %4117 = vrot.lane.b32.xlu0 %v1484, 64
        %v4118 = vpop.permute.xlu0 %4117
        %4119 = vrot.lane.b32.xlu0 %v1487, 64
        %v4120 = vpop.permute.xlu0 %4119
        %4121 = vrot.lane.b32.xlu0 %v1490, 64
        %v4122 = vpop.permute.xlu0 %4121
        %4123 = vrot.lane.b32.xlu0 %v1493, 64
        %v4124 = vpop.permute.xlu0 %4123
        %4125 = vrot.lane.b32.xlu0 %v1496, 64
        %v4126 = vpop.permute.xlu0 %4125
        %4135 = vmatprep.subr.bf16.mxu0 0
        %4136 = vmatpush1.bf16.msra.mxu0 %v4112
        %4137 = vmatprep.subr.bf16.mxu0 0
        %4138 = vmatpush1.bf16.msra.mxu0 %v4114
        %4139 = vmatprep.subr.bf16.mxu0 0
        %4140 = vmatpush1.bf16.msra.mxu0 %v4116
        %4141 = vmatprep.subr.bf16.mxu0 0
        %4142 = vmatpush1.bf16.msra.mxu0 %v4118
        %4143 = vmatprep.subr.bf16.mxu0 0
        %4144 = vmatpush1.bf16.msra.mxu0 %v4120
        %4145 = vmatprep.subr.bf16.mxu0 0
        %4146 = vmatpush1.bf16.msra.mxu0 %v4122
        %4147 = vmatprep.subr.bf16.mxu0 0
        %4148 = vmatpush1.bf16.msra.mxu0 %v4124
        %4149 = vmatprep.subr.bf16.mxu0 0
        %4150 = vmatpush1.bf16.msra.mxu0 %v4126
        %4151 = vmatprep.subr.bf16.mxu0 0
        %4152 = vmatpush1.bf16.msra.mxu0 0
        %4153 = vmatprep.subr.bf16.mxu0 0
        %4154 = vmatpush1.bf16.msra.mxu0 0
        %4155 = vmatprep.subr.bf16.mxu0 0
        %4156 = vmatpush1.bf16.msra.mxu0 0
        %4157 = vmatprep.subr.bf16.mxu0 0
        %4158 = vmatpush1.bf16.msra.mxu0 0
        %4159 = vmatprep.subr.bf16.mxu0 0
        %4160 = vmatpush1.bf16.msra.mxu0 0
        %4161 = vmatprep.subr.bf16.mxu0 0
        %4162 = vmatpush1.bf16.msra.mxu0 0
        %4163 = vmatprep.subr.bf16.mxu0 0
        %4164 = vmatpush1.bf16.msra.mxu0 0
        %4165 = vmatprep.subr.bf16.mxu0 0
        %4166 = vmatpush1.bf16.msra.mxu0 0
        %4167 = vmatprep.mubr.bf16.mxu0 0
        %4168 = vmatmul.mubr.bf16.gmra.mrb[0].mxu0 %v4095
        %v4169 = vpop.f32.mrb[0].mxu0
        %v4170 = vadd.f32 0.0, %v4169
        %v4171 = vpop.f32.mrb[0].mxu0
        %v4172 = vpop.f32.mrb[0].mxu0
        %v4173 = vadd.f32 0.0, %v4172
        %v4174 = vpop.f32.mrb[0].mxu0
        %4175 = vmatprep.mubr.bf16.mxu0 0
        %4176 = vmatmul.mubr.bf16.gmra.mrb[0].mxu0 %v4096
        %v4177 = vpop.f32.mrb[0].mxu0
        %v4178 = vadd.f32 0.0, %v4177
        %v4179 = vpop.f32.mrb[0].mxu0
        %v4180 = vpop.f32.mrb[0].mxu0
        %v4181 = vadd.f32 0.0, %v4180
        %v4182 = vpop.f32.mrb[0].mxu0
        %4183 = vmatprep.mubr.bf16.mxu0 0
        %4184 = vmatmul.mubr.bf16.gmra.mrb[0].mxu0 %v4097
        %v4185 = vpop.f32.mrb[0].mxu0
        %v4186 = vadd.f32 0.0, %v4185
        %v4187 = vpop.f32.mrb[0].mxu0
        %v4188 = vpop.f32.mrb[0].mxu0
        %v4189 = vadd.f32 0.0, %v4188
        %v4190 = vpop.f32.mrb[0].mxu0
        %4191 = vmatprep.mubr.bf16.mxu0 0
        %4192 = vmatmul.mubr.bf16.gmra.mrb[0].mxu0 %v4098
        %v4193 = vpop.f32.mrb[0].mxu0
        %v4194 = vadd.f32 0.0, %v4193
        %v4195 = vpop.f32.mrb[0].mxu0
        %v4196 = vpop.f32.mrb[0].mxu0
        %v4197 = vadd.f32 0.0, %v4196
        %v4198 = vpop.f32.mrb[0].mxu0
        %4199 = vmatprep.mubr.bf16.mxu0 0
        %4200 = vmatmul.mubr.bf16.gmra.mrb[0].mxu0 %v4099
        %v4201 = vpop.f32.mrb[0].mxu0
        %v4202 = vadd.f32 0.0, %v4201
        %v4203 = vpop.f32.mrb[0].mxu0
        %v4204 = vpop.f32.mrb[0].mxu0
        %v4205 = vadd.f32 0.0, %v4204
        %v4206 = vpop.f32.mrb[0].mxu0
        %4207 = vmatprep.mubr.bf16.mxu0 0
        %4208 = vmatmul.mubr.bf16.gmra.mrb[0].mxu0 %v4100
        %v4209 = vpop.f32.mrb[0].mxu0
        %v4210 = vadd.f32 0.0, %v4209
        %v4211 = vpop.f32.mrb[0].mxu0
        %v4212 = vpop.f32.mrb[0].mxu0
        %v4213 = vadd.f32 0.0, %v4212
        %v4214 = vpop.f32.mrb[0].mxu0
        %4215 = vmatprep.mubr.bf16.mxu0 0
        %4216 = vmatmul.mubr.bf16.gmra.mrb[0].mxu0 %v4101
        %v4217 = vpop.f32.mrb[0].mxu0
        %v4218 = vadd.f32 0.0, %v4217
        %v4219 = vpop.f32.mrb[0].mxu0
        %v4220 = vpop.f32.mrb[0].mxu0
        %v4221 = vadd.f32 0.0, %v4220
        %v4222 = vpop.f32.mrb[0].mxu0
        %4223 = vmatprep.mubr.bf16.mxu0 0
        %4224 = vmatmul.mubr.bf16.gmra.mrb[0].mxu0 %v4102
        %v4225 = vpop.f32.mrb[0].mxu0
        %v4226 = vadd.f32 0.0, %v4225
        %v4227 = vpop.f32.mrb[0].mxu0
        %v4228 = vpop.f32.mrb[0].mxu0
        %v4229 = vadd.f32 0.0, %v4228
        %v4230 = vpop.f32.mrb[0].mxu0
        %4231 = vdwg.mxu0
        %4232 = vrot.lane.b32.xlu0 %v1499, 64
        %v4233 = vpop.permute.xlu0 %4232
        %4234 = vrot.lane.b32.xlu0 %v1502, 64
        %v4235 = vpop.permute.xlu0 %4234
        %4236 = vrot.lane.b32.xlu0 %v1505, 64
        %v4237 = vpop.permute.xlu0 %4236
        %4238 = vrot.lane.b32.xlu0 %v1508, 64
        %v4239 = vpop.permute.xlu0 %4238
        %4240 = vrot.lane.b32.xlu0 %v1511, 64
        %v4241 = vpop.permute.xlu0 %4240
        %4242 = vrot.lane.b32.xlu0 %v1514, 64
        %v4243 = vpop.permute.xlu0 %4242
        %4244 = vrot.lane.b32.xlu0 %v1517, 64
        %v4245 = vpop.permute.xlu0 %4244
        %4246 = vrot.lane.b32.xlu0 %v1520, 64
        %v4247 = vpop.permute.xlu0 %4246
        %4256 = vmatprep.subr.bf16.mxu0 0
        %4257 = vmatpush1.bf16.msra.mxu0 %v4233
        %4258 = vmatprep.subr.bf16.mxu0 0
        %4259 = vmatpush1.bf16.msra.mxu0 %v4235
        %4260 = vmatprep.subr.bf16.mxu0 0
        %4261 = vmatpush1.bf16.msra.mxu0 %v4237
        %4262 = vmatprep.subr.bf16.mxu0 0
        %4263 = vmatpush1.bf16.msra.mxu0 %v4239
        %4264 = vmatprep.subr.bf16.mxu0 0
        %4265 = vmatpush1.bf16.msra.mxu0 %v4241
        %4266 = vmatprep.subr.bf16.mxu0 0
        %4267 = vmatpush1.bf16.msra.mxu0 %v4243
        %4268 = vmatprep.subr.bf16.mxu0 0
        %4269 = vmatpush1.bf16.msra.mxu0 %v4245
        %4270 = vmatprep.subr.bf16.mxu0 0
        %4271 = vmatpush1.bf16.msra.mxu0 %v4247
        %4272 = vmatprep.subr.bf16.mxu0 0
        %4273 = vmatpush1.bf16.msra.mxu0 0
        %4274 = vmatprep.subr.bf16.mxu0 0
        %4275 = vmatpush1.bf16.msra.mxu0 0
        %4276 = vmatprep.subr.bf16.mxu0 0
        %4277 = vmatpush1.bf16.msra.mxu0 0
        %4278 = vmatprep.subr.bf16.mxu0 0
        %4279 = vmatpush1.bf16.msra.mxu0 0
        %4280 = vmatprep.subr.bf16.mxu0 0
        %4281 = vmatpush1.bf16.msra.mxu0 0
        %4282 = vmatprep.subr.bf16.mxu0 0
        %4283 = vmatpush1.bf16.msra.mxu0 0
        %4284 = vmatprep.subr.bf16.mxu0 0
        %4285 = vmatpush1.bf16.msra.mxu0 0
        %4286 = vmatprep.subr.bf16.mxu0 0
        %4287 = vmatpush1.bf16.msra.mxu0 0
        %4288 = vmatprep.mubr.bf16.mxu0 0
        %4289 = vmatmul.mubr.bf16.gmra.mrb[0].mxu0 %v4103
        %v4290 = vpop.f32.mrb[0].mxu0
        %v4291 = vadd.f32 0.0, %v4290
        %v4292 = vpop.f32.mrb[0].mxu0
        %v4293 = vpop.f32.mrb[0].mxu0
        %v4294 = vadd.f32 0.0, %v4293
        %v4295 = vpop.f32.mrb[0].mxu0
        %4296 = vmatprep.mubr.bf16.mxu0 0
        %4297 = vmatmul.mubr.bf16.gmra.mrb[0].mxu0 %v4104
        %v4298 = vpop.f32.mrb[0].mxu0
        %v4299 = vadd.f32 0.0, %v4298
        %v4300 = vpop.f32.mrb[0].mxu0
        %v4301 = vpop.f32.mrb[0].mxu0
        %v4302 = vadd.f32 0.0, %v4301
        %v4303 = vpop.f32.mrb[0].mxu0
        %4304 = vmatprep.mubr.bf16.mxu0 0
        %4305 = vmatmul.mubr.bf16.gmra.mrb[0].mxu0 %v4105
        %v4306 = vpop.f32.mrb[0].mxu0
        %v4307 = vadd.f32 0.0, %v4306
        %v4308 = vpop.f32.mrb[0].mxu0
        %v4309 = vpop.f32.mrb[0].mxu0
        %v4310 = vadd.f32 0.0, %v4309
        %v4311 = vpop.f32.mrb[0].mxu0
        %4312 = vmatprep.mubr.bf16.mxu0 0
        %4313 = vmatmul.mubr.bf16.gmra.mrb[0].mxu0 %v4106
        %v4314 = vpop.f32.mrb[0].mxu0
        %v4315 = vadd.f32 0.0, %v4314
        %v4316 = vpop.f32.mrb[0].mxu0
        %v4317 = vpop.f32.mrb[0].mxu0
        %v4318 = vadd.f32 0.0, %v4317
        %v4319 = vpop.f32.mrb[0].mxu0
        %4320 = vmatprep.mubr.bf16.mxu0 0
        %4321 = vmatmul.mubr.bf16.gmra.mrb[0].mxu0 %v4107
        %v4322 = vpop.f32.mrb[0].mxu0
        %v4323 = vadd.f32 0.0, %v4322
        %v4324 = vpop.f32.mrb[0].mxu0
        %v4325 = vpop.f32.mrb[0].mxu0
        %v4326 = vadd.f32 0.0, %v4325
        %v4327 = vpop.f32.mrb[0].mxu0
        %4328 = vmatprep.mubr.bf16.mxu0 0
        %4329 = vmatmul.mubr.bf16.gmra.mrb[0].mxu0 %v4108
        %v4330 = vpop.f32.mrb[0].mxu0
        %v4331 = vadd.f32 0.0, %v4330
        %v4332 = vpop.f32.mrb[0].mxu0
        %v4333 = vpop.f32.mrb[0].mxu0
        %v4334 = vadd.f32 0.0, %v4333
        %v4335 = vpop.f32.mrb[0].mxu0
        %4336 = vmatprep.mubr.bf16.mxu0 0
        %4337 = vmatmul.mubr.bf16.gmra.mrb[0].mxu0 %v4109
        %v4338 = vpop.f32.mrb[0].mxu0
        %v4339 = vadd.f32 0.0, %v4338
        %v4340 = vpop.f32.mrb[0].mxu0
        %v4341 = vpop.f32.mrb[0].mxu0
        %v4342 = vadd.f32 0.0, %v4341
        %v4343 = vpop.f32.mrb[0].mxu0
        %4344 = vmatprep.mubr.bf16.mxu0 0
        %4345 = vmatmul.mubr.bf16.gmra.mrb[0].mxu0 %v4110
        %v4346 = vpop.f32.mrb[0].mxu0
        %v4347 = vadd.f32 0.0, %v4346
        %v4348 = vpop.f32.mrb[0].mxu0
        %v4349 = vpop.f32.mrb[0].mxu0
        %v4350 = vadd.f32 0.0, %v4349
        %v4351 = vpop.f32.mrb[0].mxu0
        %4352 = vdwg.mxu0
        %v4353 = vpack.c.bf16 %v4173, %v4170
        %v4354 = vpack.c.bf16 %v4181, %v4178
        %v4355 = vpack.c.bf16 %v4189, %v4186
        %v4356 = vpack.c.bf16 %v4197, %v4194
        %v4357 = vpack.c.bf16 %v4205, %v4202
        %v4358 = vpack.c.bf16 %v4213, %v4210
        %v4359 = vpack.c.bf16 %v4221, %v4218
        %v4360 = vpack.c.bf16 %v4229, %v4226
        %v4361 = vpack.c.bf16 %v4294, %v4291
        %v4362 = vpack.c.bf16 %v4302, %v4299
        %v4363 = vpack.c.bf16 %v4310, %v4307
        %v4364 = vpack.c.bf16 %v4318, %v4315
        %v4365 = vpack.c.bf16 %v4326, %v4323
        %v4366 = vpack.c.bf16 %v4334, %v4331
        %v4367 = vpack.c.bf16 %v4342, %v4339
        %v4368 = vpack.c.bf16 %v4350, %v4347
        %4369 = vrot.lane.b32.xlu0 %v1473, 32
        %v4370 = vpop.permute.xlu0 %4369
        %4371 = vrot.lane.b32.xlu0 %v1476, 32
        %v4372 = vpop.permute.xlu0 %4371
        %4373 = vrot.lane.b32.xlu0 %v1479, 32
        %v4374 = vpop.permute.xlu0 %4373
        %4375 = vrot.lane.b32.xlu0 %v1482, 32
        %v4376 = vpop.permute.xlu0 %4375
        %4377 = vrot.lane.b32.xlu0 %v1485, 32
        %v4378 = vpop.permute.xlu0 %4377
        %4379 = vrot.lane.b32.xlu0 %v1488, 32
        %v4380 = vpop.permute.xlu0 %4379
        %4381 = vrot.lane.b32.xlu0 %v1491, 32
        %v4382 = vpop.permute.xlu0 %4381
        %4383 = vrot.lane.b32.xlu0 %v1494, 32
        %v4384 = vpop.permute.xlu0 %4383
        %4385 = vrot.lane.b32.xlu0 %v1474, 32
        %v4386 = vpop.permute.xlu0 %4385
        %4387 = vrot.lane.b32.xlu0 %v1477, 32
        %v4388 = vpop.permute.xlu0 %4387
        %4389 = vrot.lane.b32.xlu0 %v1480, 32
        %v4390 = vpop.permute.xlu0 %4389
        %4391 = vrot.lane.b32.xlu0 %v1483, 32
        %v4392 = vpop.permute.xlu0 %4391
        %4393 = vrot.lane.b32.xlu0 %v1486, 32
        %v4394 = vpop.permute.xlu0 %4393
        %4395 = vrot.lane.b32.xlu0 %v1489, 32
        %v4396 = vpop.permute.xlu0 %4395
        %4397 = vrot.lane.b32.xlu0 %v1492, 32
        %v4398 = vpop.permute.xlu0 %4397
        %4399 = vrot.lane.b32.xlu0 %v1495, 32
        %v4400 = vpop.permute.xlu0 %4399
        %v4402 = vsel %vm1556, %v4370, 0
        %v4405 = vsel %vm1556, %v4372, 0
        %v4408 = vsel %vm1556, %v4374, 0
        %v4411 = vsel %vm1556, %v4376, 0
        %v4414 = vsel %vm1556, %v4378, 0
        %v4417 = vsel %vm1556, %v4380, 0
        %v4420 = vsel %vm1556, %v4382, 0
        %v4423 = vsel %vm1556, %v4384, 0
        %v4426 = vsel %vm1556, %v4386, 0
        %v4429 = vsel %vm1556, %v4388, 0
        %v4432 = vsel %vm1556, %v4390, 0
        %v4435 = vsel %vm1556, %v4392, 0
        %v4438 = vsel %vm1556, %v4394, 0
        %v4441 = vsel %vm1556, %v4396, 0
        %v4444 = vsel %vm1556, %v4398, 0
        %v4447 = vsel %vm1556, %v4400, 0
        %4449 = vmatprep.subr.bf16.mxu0 0
        %4450 = vmatpush1.bf16.xpose.msra.mxu0 %v4426
        %4451 = vmatprep.subr.bf16.mxu0 0
        %4452 = vmatpush1.bf16.xpose.msra.mxu0 %v4429
        %4453 = vmatprep.subr.bf16.mxu0 0
        %4454 = vmatpush1.bf16.xpose.msra.mxu0 %v4432
        %4455 = vmatprep.subr.bf16.mxu0 0
        %4456 = vmatpush1.bf16.xpose.msra.mxu0 %v4435
        %4457 = vmatprep.subr.bf16.mxu0 0
        %4458 = vmatpush1.bf16.xpose.msra.mxu0 %v4438
        %4459 = vmatprep.subr.bf16.mxu0 0
        %4460 = vmatpush1.bf16.xpose.msra.mxu0 %v4441
        %4461 = vmatprep.subr.bf16.mxu0 0
        %4462 = vmatpush1.bf16.xpose.msra.mxu0 %v4444
        %4463 = vmatprep.subr.bf16.mxu0 0
        %4464 = vmatpush1.bf16.xpose.msra.mxu0 %v4447
        %4465 = vmatprep.subr.bf16.mxu0 0
        %4466 = vmatpush1.bf16.xpose.msra.mxu0 0
        %4467 = vmatprep.subr.bf16.mxu0 0
        %4468 = vmatpush1.bf16.xpose.msra.mxu0 0
        %4469 = vmatprep.subr.bf16.mxu0 0
        %4470 = vmatpush1.bf16.xpose.msra.mxu0 0
        %4471 = vmatprep.subr.bf16.mxu0 0
        %4472 = vmatpush1.bf16.xpose.msra.mxu0 0
        %4473 = vmatprep.subr.bf16.mxu0 0
        %4474 = vmatpush1.bf16.xpose.msra.mxu0 0
        %4475 = vmatprep.subr.bf16.mxu0 0
        %4476 = vmatpush1.bf16.xpose.msra.mxu0 0
        %4477 = vmatprep.subr.bf16.mxu0 0
        %4478 = vmatpush1.bf16.xpose.msra.mxu0 0
        %4479 = vmatprep.subr.bf16.mxu0 0
        %4480 = vmatpush1.bf16.xpose.msra.mxu0 0
        %4481 = vmatprep.mubr.bf16.mxu0 0
        %4482 = vmatmul.mubr.bf16.gmra.mrb[0].mxu0 %v4402
        %v4483 = vpop.f32.mrb[0].mxu0
        %v4484 = vadd.f32 0.0, %v4483
        %v4485 = vpop.f32.mrb[0].mxu0
        %v4486 = vpop.f32.mrb[0].mxu0
        %v4487 = vadd.f32 0.0, %v4486
        %v4488 = vpop.f32.mrb[0].mxu0
        %4489 = vmatprep.mubr.bf16.mxu0 0
        %4490 = vmatmul.mubr.bf16.gmra.mrb[0].mxu0 %v4405
        %v4491 = vpop.f32.mrb[0].mxu0
        %v4492 = vadd.f32 0.0, %v4491
        %v4493 = vpop.f32.mrb[0].mxu0
        %v4494 = vpop.f32.mrb[0].mxu0
        %v4495 = vadd.f32 0.0, %v4494
        %v4496 = vpop.f32.mrb[0].mxu0
        %4497 = vmatprep.mubr.bf16.mxu0 0
        %4498 = vmatmul.mubr.bf16.gmra.mrb[0].mxu0 %v4408
        %v4499 = vpop.f32.mrb[0].mxu0
        %v4500 = vadd.f32 0.0, %v4499
        %v4501 = vpop.f32.mrb[0].mxu0
        %v4502 = vpop.f32.mrb[0].mxu0
        %v4503 = vadd.f32 0.0, %v4502
        %v4504 = vpop.f32.mrb[0].mxu0
        %4505 = vmatprep.mubr.bf16.mxu0 0
        %4506 = vmatmul.mubr.bf16.gmra.mrb[0].mxu0 %v4411
        %v4507 = vpop.f32.mrb[0].mxu0
        %v4508 = vadd.f32 0.0, %v4507
        %v4509 = vpop.f32.mrb[0].mxu0
        %v4510 = vpop.f32.mrb[0].mxu0
        %v4511 = vadd.f32 0.0, %v4510
        %v4512 = vpop.f32.mrb[0].mxu0
        %4513 = vmatprep.mubr.bf16.mxu0 0
        %4514 = vmatmul.mubr.bf16.gmra.mrb[0].mxu0 %v4414
        %v4515 = vpop.f32.mrb[0].mxu0
        %v4516 = vadd.f32 0.0, %v4515
        %v4517 = vpop.f32.mrb[0].mxu0
        %v4518 = vpop.f32.mrb[0].mxu0
        %v4519 = vadd.f32 0.0, %v4518
        %v4520 = vpop.f32.mrb[0].mxu0
        %4521 = vmatprep.mubr.bf16.mxu0 0
        %4522 = vmatmul.mubr.bf16.gmra.mrb[0].mxu0 %v4417
        %v4523 = vpop.f32.mrb[0].mxu0
        %v4524 = vadd.f32 0.0, %v4523
        %v4525 = vpop.f32.mrb[0].mxu0
        %v4526 = vpop.f32.mrb[0].mxu0
        %v4527 = vadd.f32 0.0, %v4526
        %v4528 = vpop.f32.mrb[0].mxu0
        %4529 = vmatprep.mubr.bf16.mxu0 0
        %4530 = vmatmul.mubr.bf16.gmra.mrb[0].mxu0 %v4420
        %v4531 = vpop.f32.mrb[0].mxu0
        %v4532 = vadd.f32 0.0, %v4531
        %v4533 = vpop.f32.mrb[0].mxu0
        %v4534 = vpop.f32.mrb[0].mxu0
        %v4535 = vadd.f32 0.0, %v4534
        %v4536 = vpop.f32.mrb[0].mxu0
        %4537 = vmatprep.mubr.bf16.mxu0 0
        %4538 = vmatmul.mubr.bf16.gmra.mrb[0].mxu0 %v4423
        %v4539 = vpop.f32.mrb[0].mxu0
        %v4540 = vadd.f32 0.0, %v4539
        %v4541 = vpop.f32.mrb[0].mxu0
        %v4542 = vpop.f32.mrb[0].mxu0
        %v4543 = vadd.f32 0.0, %v4542
        %v4544 = vpop.f32.mrb[0].mxu0
        %4545 = vdwg.mxu0
        %4546 = vrot.lane.b32.xlu0 %v1497, 32
        %v4547 = vpop.permute.xlu0 %4546
        %4548 = vrot.lane.b32.xlu0 %v1500, 32
        %v4549 = vpop.permute.xlu0 %4548
        %4550 = vrot.lane.b32.xlu0 %v1503, 32
        %v4551 = vpop.permute.xlu0 %4550
        %4552 = vrot.lane.b32.xlu0 %v1506, 32
        %v4553 = vpop.permute.xlu0 %4552
        %4554 = vrot.lane.b32.xlu0 %v1509, 32
        %v4555 = vpop.permute.xlu0 %4554
        %4556 = vrot.lane.b32.xlu0 %v1512, 32
        %v4557 = vpop.permute.xlu0 %4556
        %4558 = vrot.lane.b32.xlu0 %v1515, 32
        %v4559 = vpop.permute.xlu0 %4558
        %4560 = vrot.lane.b32.xlu0 %v1518, 32
        %v4561 = vpop.permute.xlu0 %4560
        %4562 = vrot.lane.b32.xlu0 %v1498, 32
        %v4563 = vpop.permute.xlu0 %4562
        %4564 = vrot.lane.b32.xlu0 %v1501, 32
        %v4565 = vpop.permute.xlu0 %4564
        %4566 = vrot.lane.b32.xlu0 %v1504, 32
        %v4567 = vpop.permute.xlu0 %4566
        %4568 = vrot.lane.b32.xlu0 %v1507, 32
        %v4569 = vpop.permute.xlu0 %4568
        %4570 = vrot.lane.b32.xlu0 %v1510, 32
        %v4571 = vpop.permute.xlu0 %4570
        %4572 = vrot.lane.b32.xlu0 %v1513, 32
        %v4573 = vpop.permute.xlu0 %4572
        %4574 = vrot.lane.b32.xlu0 %v1516, 32
        %v4575 = vpop.permute.xlu0 %4574
        %4576 = vrot.lane.b32.xlu0 %v1519, 32
        %v4577 = vpop.permute.xlu0 %4576
        %v4579 = vsel %vm1556, %v4547, 0
        %v4582 = vsel %vm1556, %v4549, 0
        %v4585 = vsel %vm1556, %v4551, 0
        %v4588 = vsel %vm1556, %v4553, 0
        %v4591 = vsel %vm1556, %v4555, 0
        %v4594 = vsel %vm1556, %v4557, 0
        %v4597 = vsel %vm1556, %v4559, 0
        %v4600 = vsel %vm1556, %v4561, 0
        %v4603 = vsel %vm1556, %v4563, 0
        %v4606 = vsel %vm1556, %v4565, 0
        %v4609 = vsel %vm1556, %v4567, 0
        %v4612 = vsel %vm1556, %v4569, 0
        %v4615 = vsel %vm1556, %v4571, 0
        %v4618 = vsel %vm1556, %v4573, 0
        %v4621 = vsel %vm1556, %v4575, 0
        %v4624 = vsel %vm1556, %v4577, 0
        %4626 = vmatprep.subr.bf16.mxu0 0
        %4627 = vmatpush1.bf16.xpose.msra.mxu0 %v4603
        %4628 = vmatprep.subr.bf16.mxu0 0
        %4629 = vmatpush1.bf16.xpose.msra.mxu0 %v4606
        %4630 = vmatprep.subr.bf16.mxu0 0
        %4631 = vmatpush1.bf16.xpose.msra.mxu0 %v4609
        %4632 = vmatprep.subr.bf16.mxu0 0
        %4633 = vmatpush1.bf16.xpose.msra.mxu0 %v4612
        %4634 = vmatprep.subr.bf16.mxu0 0
        %4635 = vmatpush1.bf16.xpose.msra.mxu0 %v4615
        %4636 = vmatprep.subr.bf16.mxu0 0
        %4637 = vmatpush1.bf16.xpose.msra.mxu0 %v4618
        %4638 = vmatprep.subr.bf16.mxu0 0
        %4639 = vmatpush1.bf16.xpose.msra.mxu0 %v4621
        %4640 = vmatprep.subr.bf16.mxu0 0
        %4641 = vmatpush1.bf16.xpose.msra.mxu0 %v4624
        %4642 = vmatprep.subr.bf16.mxu0 0
        %4643 = vmatpush1.bf16.xpose.msra.mxu0 0
        %4644 = vmatprep.subr.bf16.mxu0 0
        %4645 = vmatpush1.bf16.xpose.msra.mxu0 0
        %4646 = vmatprep.subr.bf16.mxu0 0
        %4647 = vmatpush1.bf16.xpose.msra.mxu0 0
        %4648 = vmatprep.subr.bf16.mxu0 0
        %4649 = vmatpush1.bf16.xpose.msra.mxu0 0
        %4650 = vmatprep.subr.bf16.mxu0 0
        %4651 = vmatpush1.bf16.xpose.msra.mxu0 0
        %4652 = vmatprep.subr.bf16.mxu0 0
        %4653 = vmatpush1.bf16.xpose.msra.mxu0 0
        %4654 = vmatprep.subr.bf16.mxu0 0
        %4655 = vmatpush1.bf16.xpose.msra.mxu0 0
        %4656 = vmatprep.subr.bf16.mxu0 0
        %4657 = vmatpush1.bf16.xpose.msra.mxu0 0
        %4658 = vmatprep.mubr.bf16.mxu0 0
        %4659 = vmatmul.mubr.bf16.gmra.mrb[0].mxu0 %v4579
        %v4660 = vpop.f32.mrb[0].mxu0
        %v4661 = vadd.f32 0.0, %v4660
        %v4662 = vpop.f32.mrb[0].mxu0
        %v4663 = vpop.f32.mrb[0].mxu0
        %v4664 = vadd.f32 0.0, %v4663
        %v4665 = vpop.f32.mrb[0].mxu0
        %4666 = vmatprep.mubr.bf16.mxu0 0
        %4667 = vmatmul.mubr.bf16.gmra.mrb[0].mxu0 %v4582
        %v4668 = vpop.f32.mrb[0].mxu0
        %v4669 = vadd.f32 0.0, %v4668
        %v4670 = vpop.f32.mrb[0].mxu0
        %v4671 = vpop.f32.mrb[0].mxu0
        %v4672 = vadd.f32 0.0, %v4671
        %v4673 = vpop.f32.mrb[0].mxu0
        %4674 = vmatprep.mubr.bf16.mxu0 0
        %4675 = vmatmul.mubr.bf16.gmra.mrb[0].mxu0 %v4585
        %v4676 = vpop.f32.mrb[0].mxu0
        %v4677 = vadd.f32 0.0, %v4676
        %v4678 = vpop.f32.mrb[0].mxu0
        %v4679 = vpop.f32.mrb[0].mxu0
        %v4680 = vadd.f32 0.0, %v4679
        %v4681 = vpop.f32.mrb[0].mxu0
        %4682 = vmatprep.mubr.bf16.mxu0 0
        %4683 = vmatmul.mubr.bf16.gmra.mrb[0].mxu0 %v4588
        %v4684 = vpop.f32.mrb[0].mxu0
        %v4685 = vadd.f32 0.0, %v4684
        %v4686 = vpop.f32.mrb[0].mxu0
        %v4687 = vpop.f32.mrb[0].mxu0
        %v4688 = vadd.f32 0.0, %v4687
        %v4689 = vpop.f32.mrb[0].mxu0
        %4690 = vmatprep.mubr.bf16.mxu0 0
        %4691 = vmatmul.mubr.bf16.gmra.mrb[0].mxu0 %v4591
        %v4692 = vpop.f32.mrb[0].mxu0
        %v4693 = vadd.f32 0.0, %v4692
        %v4694 = vpop.f32.mrb[0].mxu0
        %v4695 = vpop.f32.mrb[0].mxu0
        %v4696 = vadd.f32 0.0, %v4695
        %v4697 = vpop.f32.mrb[0].mxu0
        %4698 = vmatprep.mubr.bf16.mxu0 0
        %4699 = vmatmul.mubr.bf16.gmra.mrb[0].mxu0 %v4594
        %v4700 = vpop.f32.mrb[0].mxu0
        %v4701 = vadd.f32 0.0, %v4700
        %v4702 = vpop.f32.mrb[0].mxu0
        %v4703 = vpop.f32.mrb[0].mxu0
        %v4704 = vadd.f32 0.0, %v4703
        %v4705 = vpop.f32.mrb[0].mxu0
        %4706 = vmatprep.mubr.bf16.mxu0 0
        %4707 = vmatmul.mubr.bf16.gmra.mrb[0].mxu0 %v4597
        %v4708 = vpop.f32.mrb[0].mxu0
        %v4709 = vadd.f32 0.0, %v4708
        %v4710 = vpop.f32.mrb[0].mxu0
        %v4711 = vpop.f32.mrb[0].mxu0
        %v4712 = vadd.f32 0.0, %v4711
        %v4713 = vpop.f32.mrb[0].mxu0
        %4714 = vmatprep.mubr.bf16.mxu0 0
        %4715 = vmatmul.mubr.bf16.gmra.mrb[0].mxu0 %v4600
        %v4716 = vpop.f32.mrb[0].mxu0
        %v4717 = vadd.f32 0.0, %v4716
        %v4718 = vpop.f32.mrb[0].mxu0
        %v4719 = vpop.f32.mrb[0].mxu0
        %v4720 = vadd.f32 0.0, %v4719
        %v4721 = vpop.f32.mrb[0].mxu0
        %4722 = vdwg.mxu0
        %v4723 = vsel %vm1863, %v4484, -inf
        %v4724 = vsel %vm1864, %v4487, -inf
        %v4725 = vsel %vm1865, %v4492, -inf
        %v4726 = vsel %vm1866, %v4495, -inf
        %v4727 = vsel %vm1867, %v4500, -inf
        %v4728 = vsel %vm1868, %v4503, -inf
        %v4729 = vsel %vm1869, %v4508, -inf
        %v4730 = vsel %vm1870, %v4511, -inf
        %v4731 = vsel %vm1871, %v4516, -inf
        %v4732 = vsel %vm1872, %v4519, -inf
        %v4733 = vsel %vm1873, %v4524, -inf
        %v4734 = vsel %vm1874, %v4527, -inf
        %v4735 = vsel %vm1875, %v4532, -inf
        %v4736 = vsel %vm1876, %v4535, -inf
        %v4737 = vsel %vm1877, %v4540, -inf
        %v4738 = vsel %vm1878, %v4543, -inf
        %v4739 = vsel %vm1863, %v4661, -inf
        %v4740 = vsel %vm1864, %v4664, -inf
        %v4741 = vsel %vm1865, %v4669, -inf
        %v4742 = vsel %vm1866, %v4672, -inf
        %v4743 = vsel %vm1867, %v4677, -inf
        %v4744 = vsel %vm1868, %v4680, -inf
        %v4745 = vsel %vm1869, %v4685, -inf
        %v4746 = vsel %vm1870, %v4688, -inf
        %v4747 = vsel %vm1871, %v4693, -inf
        %v4748 = vsel %vm1872, %v4696, -inf
        %v4749 = vsel %vm1873, %v4701, -inf
        %v4750 = vsel %vm1874, %v4704, -inf
        %v4751 = vsel %vm1875, %v4709, -inf
        %v4752 = vsel %vm1876, %v4712, -inf
        %v4753 = vsel %vm1877, %v4717, -inf
        %v4754 = vsel %vm1878, %v4720, -inf
        %4755 = vmax.xlane.f32.xlu0 %v4723
        %v4756 = vpop.xlane.xlu0 %4755
        %4757 = vmax.xlane.f32.xlu0 %v4724
        %v4758 = vpop.xlane.xlu0 %4757
        %4759 = vmax.xlane.f32.xlu0 %v4725
        %v4760 = vpop.xlane.xlu0 %4759
        %4761 = vmax.xlane.f32.xlu0 %v4726
        %v4762 = vpop.xlane.xlu0 %4761
        %4763 = vmax.xlane.f32.xlu0 %v4727
        %v4764 = vpop.xlane.xlu0 %4763
        %4765 = vmax.xlane.f32.xlu0 %v4728
        %v4766 = vpop.xlane.xlu0 %4765
        %4767 = vmax.xlane.f32.xlu0 %v4729
        %v4768 = vpop.xlane.xlu0 %4767
        %4769 = vmax.xlane.f32.xlu0 %v4730
        %v4770 = vpop.xlane.xlu0 %4769
        %4771 = vmax.xlane.f32.xlu0 %v4731
        %v4772 = vpop.xlane.xlu0 %4771
        %4773 = vmax.xlane.f32.xlu0 %v4732
        %v4774 = vpop.xlane.xlu0 %4773
        %4775 = vmax.xlane.f32.xlu0 %v4733
        %v4776 = vpop.xlane.xlu0 %4775
        %4777 = vmax.xlane.f32.xlu0 %v4734
        %v4778 = vpop.xlane.xlu0 %4777
        %4779 = vmax.xlane.f32.xlu0 %v4735
        %v4780 = vpop.xlane.xlu0 %4779
        %4781 = vmax.xlane.f32.xlu0 %v4736
        %v4782 = vpop.xlane.xlu0 %4781
        %4783 = vmax.xlane.f32.xlu0 %v4737
        %v4784 = vpop.xlane.xlu0 %4783
        %4785 = vmax.xlane.f32.xlu0 %v4738
        %v4786 = vpop.xlane.xlu0 %4785
        %4787 = vmax.xlane.f32.xlu0 %v4739
        %v4788 = vpop.xlane.xlu0 %4787
        %4789 = vmax.xlane.f32.xlu0 %v4740
        %v4790 = vpop.xlane.xlu0 %4789
        %4791 = vmax.xlane.f32.xlu0 %v4741
        %v4792 = vpop.xlane.xlu0 %4791
        %4793 = vmax.xlane.f32.xlu0 %v4742
        %v4794 = vpop.xlane.xlu0 %4793
        %4795 = vmax.xlane.f32.xlu0 %v4743
        %v4796 = vpop.xlane.xlu0 %4795
        %4797 = vmax.xlane.f32.xlu0 %v4744
        %v4798 = vpop.xlane.xlu0 %4797
        %4799 = vmax.xlane.f32.xlu0 %v4745
        %v4800 = vpop.xlane.xlu0 %4799
        %4801 = vmax.xlane.f32.xlu0 %v4746
        %v4802 = vpop.xlane.xlu0 %4801
        %4803 = vmax.xlane.f32.xlu0 %v4747
        %v4804 = vpop.xlane.xlu0 %4803
        %4805 = vmax.xlane.f32.xlu0 %v4748
        %v4806 = vpop.xlane.xlu0 %4805
        %4807 = vmax.xlane.f32.xlu0 %v4749
        %v4808 = vpop.xlane.xlu0 %4807
        %4809 = vmax.xlane.f32.xlu0 %v4750
        %v4810 = vpop.xlane.xlu0 %4809
        %4811 = vmax.xlane.f32.xlu0 %v4751
        %v4812 = vpop.xlane.xlu0 %4811
        %4813 = vmax.xlane.f32.xlu0 %v4752
        %v4814 = vpop.xlane.xlu0 %4813
        %4815 = vmax.xlane.f32.xlu0 %v4753
        %v4816 = vpop.xlane.xlu0 %4815
        %4817 = vmax.xlane.f32.xlu0 %v4754
        %v4818 = vpop.xlane.xlu0 %4817
        %v4819 = vsub.f32 %v4723, %v4756
        %v4820 = vsub.f32 %v4724, %v4758
        %v4821 = vsub.f32 %v4725, %v4760
        %v4822 = vsub.f32 %v4726, %v4762
        %v4823 = vsub.f32 %v4727, %v4764
        %v4824 = vsub.f32 %v4728, %v4766
        %v4825 = vsub.f32 %v4729, %v4768
        %v4826 = vsub.f32 %v4730, %v4770
        %v4827 = vsub.f32 %v4731, %v4772
        %v4828 = vsub.f32 %v4732, %v4774
        %v4829 = vsub.f32 %v4733, %v4776
        %v4830 = vsub.f32 %v4734, %v4778
        %v4831 = vsub.f32 %v4735, %v4780
        %v4832 = vsub.f32 %v4736, %v4782
        %v4833 = vsub.f32 %v4737, %v4784
        %v4834 = vsub.f32 %v4738, %v4786
        %v4835 = vsub.f32 %v4739, %v4788
        %v4836 = vsub.f32 %v4740, %v4790
        %v4837 = vsub.f32 %v4741, %v4792
        %v4838 = vsub.f32 %v4742, %v4794
        %v4839 = vsub.f32 %v4743, %v4796
        %v4840 = vsub.f32 %v4744, %v4798
        %v4841 = vsub.f32 %v4745, %v4800
        %v4842 = vsub.f32 %v4746, %v4802
        %v4843 = vsub.f32 %v4747, %v4804
        %v4844 = vsub.f32 %v4748, %v4806
        %v4845 = vsub.f32 %v4749, %v4808
        %v4846 = vsub.f32 %v4750, %v4810
        %v4847 = vsub.f32 %v4751, %v4812
        %v4848 = vsub.f32 %v4752, %v4814
        %v4849 = vsub.f32 %v4753, %v4816
        %v4850 = vsub.f32 %v4754, %v4818
        %v4851 = vmul.f32 %v4819, 1.442695
        %v4852 = vpow.pop %v4851
        %v4853 = vmul.f32 %v4820, 1.442695
        %v4854 = vpow.pop %v4853
        %v4855 = vmul.f32 %v4821, 1.442695
        %v4856 = vpow.pop %v4855
        %v4857 = vmul.f32 %v4822, 1.442695
        %v4858 = vpow.pop %v4857
        %v4859 = vmul.f32 %v4823, 1.442695
        %v4860 = vpow.pop %v4859
        %v4861 = vmul.f32 %v4824, 1.442695
        %v4862 = vpow.pop %v4861
        %v4863 = vmul.f32 %v4825, 1.442695
        %v4864 = vpow.pop %v4863
        %v4865 = vmul.f32 %v4826, 1.442695
        %v4866 = vpow.pop %v4865
        %v4867 = vmul.f32 %v4827, 1.442695
        %v4868 = vpow.pop %v4867
        %v4869 = vmul.f32 %v4828, 1.442695
        %v4870 = vpow.pop %v4869
        %v4871 = vmul.f32 %v4829, 1.442695
        %v4872 = vpow.pop %v4871
        %v4873 = vmul.f32 %v4830, 1.442695
        %v4874 = vpow.pop %v4873
        %v4875 = vmul.f32 %v4831, 1.442695
        %v4876 = vpow.pop %v4875
        %v4877 = vmul.f32 %v4832, 1.442695
        %v4878 = vpow.pop %v4877
        %v4879 = vmul.f32 %v4833, 1.442695
        %v4880 = vpow.pop %v4879
        %v4881 = vmul.f32 %v4834, 1.442695
        %v4882 = vpow.pop %v4881
        %v4883 = vmul.f32 %v4835, 1.442695
        %v4884 = vpow.pop %v4883
        %v4885 = vmul.f32 %v4836, 1.442695
        %v4886 = vpow.pop %v4885
        %v4887 = vmul.f32 %v4837, 1.442695
        %v4888 = vpow.pop %v4887
        %v4889 = vmul.f32 %v4838, 1.442695
        %v4890 = vpow.pop %v4889
        %v4891 = vmul.f32 %v4839, 1.442695
        %v4892 = vpow.pop %v4891
        %v4893 = vmul.f32 %v4840, 1.442695
        %v4894 = vpow.pop %v4893
        %v4895 = vmul.f32 %v4841, 1.442695
        %v4896 = vpow.pop %v4895
        %v4897 = vmul.f32 %v4842, 1.442695
        %v4898 = vpow.pop %v4897
        %v4899 = vmul.f32 %v4843, 1.442695
        %v4900 = vpow.pop %v4899
        %v4901 = vmul.f32 %v4844, 1.442695
        %v4902 = vpow.pop %v4901
        %v4903 = vmul.f32 %v4845, 1.442695
        %v4904 = vpow.pop %v4903
        %v4905 = vmul.f32 %v4846, 1.442695
        %v4906 = vpow.pop %v4905
        %v4907 = vmul.f32 %v4847, 1.442695
        %v4908 = vpow.pop %v4907
        %v4909 = vmul.f32 %v4848, 1.442695
        %v4910 = vpow.pop %v4909
        %v4911 = vmul.f32 %v4849, 1.442695
        %v4912 = vpow.pop %v4911
        %v4913 = vmul.f32 %v4850, 1.442695
        %v4914 = vpow.pop %v4913
        %4915 = vadd.xlane.f32.xlu0 %v4852
        %v4916 = vpop.xlane.xlu0 %4915
        %4917 = vadd.xlane.f32.xlu0 %v4854
        %v4918 = vpop.xlane.xlu0 %4917
        %4919 = vadd.xlane.f32.xlu0 %v4856
        %v4920 = vpop.xlane.xlu0 %4919
        %4921 = vadd.xlane.f32.xlu0 %v4858
        %v4922 = vpop.xlane.xlu0 %4921
        %4923 = vadd.xlane.f32.xlu0 %v4860
        %v4924 = vpop.xlane.xlu0 %4923
        %4925 = vadd.xlane.f32.xlu0 %v4862
        %v4926 = vpop.xlane.xlu0 %4925
        %4927 = vadd.xlane.f32.xlu0 %v4864
        %v4928 = vpop.xlane.xlu0 %4927
        %4929 = vadd.xlane.f32.xlu0 %v4866
        %v4930 = vpop.xlane.xlu0 %4929
        %4931 = vadd.xlane.f32.xlu0 %v4868
        %v4932 = vpop.xlane.xlu0 %4931
        %4933 = vadd.xlane.f32.xlu0 %v4870
        %v4934 = vpop.xlane.xlu0 %4933
        %4935 = vadd.xlane.f32.xlu0 %v4872
        %v4936 = vpop.xlane.xlu0 %4935
        %4937 = vadd.xlane.f32.xlu0 %v4874
        %v4938 = vpop.xlane.xlu0 %4937
        %4939 = vadd.xlane.f32.xlu0 %v4876
        %v4940 = vpop.xlane.xlu0 %4939
        %4941 = vadd.xlane.f32.xlu0 %v4878
        %v4942 = vpop.xlane.xlu0 %4941
        %4943 = vadd.xlane.f32.xlu0 %v4880
        %v4944 = vpop.xlane.xlu0 %4943
        %4945 = vadd.xlane.f32.xlu0 %v4882
        %v4946 = vpop.xlane.xlu0 %4945
        %4947 = vadd.xlane.f32.xlu0 %v4884
        %v4948 = vpop.xlane.xlu0 %4947
        %4949 = vadd.xlane.f32.xlu0 %v4886
        %v4950 = vpop.xlane.xlu0 %4949
        %4951 = vadd.xlane.f32.xlu0 %v4888
        %v4952 = vpop.xlane.xlu0 %4951
        %4953 = vadd.xlane.f32.xlu0 %v4890
        %v4954 = vpop.xlane.xlu0 %4953
        %4955 = vadd.xlane.f32.xlu0 %v4892
        %v4956 = vpop.xlane.xlu0 %4955
        %4957 = vadd.xlane.f32.xlu0 %v4894
        %v4958 = vpop.xlane.xlu0 %4957
        %4959 = vadd.xlane.f32.xlu0 %v4896
        %v4960 = vpop.xlane.xlu0 %4959
        %4961 = vadd.xlane.f32.xlu0 %v4898
        %v4962 = vpop.xlane.xlu0 %4961
        %4963 = vadd.xlane.f32.xlu0 %v4900
        %v4964 = vpop.xlane.xlu0 %4963
        %4965 = vadd.xlane.f32.xlu0 %v4902
        %v4966 = vpop.xlane.xlu0 %4965
        %4967 = vadd.xlane.f32.xlu0 %v4904
        %v4968 = vpop.xlane.xlu0 %4967
        %4969 = vadd.xlane.f32.xlu0 %v4906
        %v4970 = vpop.xlane.xlu0 %4969
        %4971 = vadd.xlane.f32.xlu0 %v4908
        %v4972 = vpop.xlane.xlu0 %4971
        %4973 = vadd.xlane.f32.xlu0 %v4910
        %v4974 = vpop.xlane.xlu0 %4973
        %4975 = vadd.xlane.f32.xlu0 %v4912
        %v4976 = vpop.xlane.xlu0 %4975
        %4977 = vadd.xlane.f32.xlu0 %v4914
        %v4978 = vpop.xlane.xlu0 %4977
        %v4979 = vrcp.pop %v4916
        %v4980 = vrcp.pop %v4918
        %v4981 = vrcp.pop %v4920
        %v4982 = vrcp.pop %v4922
        %v4983 = vrcp.pop %v4924
        %v4984 = vrcp.pop %v4926
        %v4985 = vrcp.pop %v4928
        %v4986 = vrcp.pop %v4930
        %v4987 = vrcp.pop %v4932
        %v4988 = vrcp.pop %v4934
        %v4989 = vrcp.pop %v4936
        %v4990 = vrcp.pop %v4938
        %v4991 = vrcp.pop %v4940
        %v4992 = vrcp.pop %v4942
        %v4993 = vrcp.pop %v4944
        %v4994 = vrcp.pop %v4946
        %v4995 = vrcp.pop %v4948
        %v4996 = vrcp.pop %v4950
        %v4997 = vrcp.pop %v4952
        %v4998 = vrcp.pop %v4954
        %v4999 = vrcp.pop %v4956
        %v5000 = vrcp.pop %v4958
        %v5001 = vrcp.pop %v4960
        %v5002 = vrcp.pop %v4962
        %v5003 = vrcp.pop %v4964
        %v5004 = vrcp.pop %v4966
        %v5005 = vrcp.pop %v4968
        %v5006 = vrcp.pop %v4970
        %v5007 = vrcp.pop %v4972
        %v5008 = vrcp.pop %v4974
        %v5009 = vrcp.pop %v4976
        %v5010 = vrcp.pop %v4978
        %v5011 = vmul.f32 %v4852, %v4979
        %v5012 = vmul.f32 %v4854, %v4980
        %v5013 = vmul.f32 %v4856, %v4981
        %v5014 = vmul.f32 %v4858, %v4982
        %v5015 = vmul.f32 %v4860, %v4983
        %v5016 = vmul.f32 %v4862, %v4984
        %v5017 = vmul.f32 %v4864, %v4985
        %v5018 = vmul.f32 %v4866, %v4986
        %v5019 = vmul.f32 %v4868, %v4987
        %v5020 = vmul.f32 %v4870, %v4988
        %v5021 = vmul.f32 %v4872, %v4989
        %v5022 = vmul.f32 %v4874, %v4990
        %v5023 = vmul.f32 %v4876, %v4991
        %v5024 = vmul.f32 %v4878, %v4992
        %v5025 = vmul.f32 %v4880, %v4993
        %v5026 = vmul.f32 %v4882, %v4994
        %v5027 = vmul.f32 %v4884, %v4995
        %v5028 = vmul.f32 %v4886, %v4996
        %v5029 = vmul.f32 %v4888, %v4997
        %v5030 = vmul.f32 %v4890, %v4998
        %v5031 = vmul.f32 %v4892, %v4999
        %v5032 = vmul.f32 %v4894, %v5000
        %v5033 = vmul.f32 %v4896, %v5001
        %v5034 = vmul.f32 %v4898, %v5002
        %v5035 = vmul.f32 %v4900, %v5003
        %v5036 = vmul.f32 %v4902, %v5004
        %v5037 = vmul.f32 %v4904, %v5005
        %v5038 = vmul.f32 %v4906, %v5006
        %v5039 = vmul.f32 %v4908, %v5007
        %v5040 = vmul.f32 %v4910, %v5008
        %v5041 = vmul.f32 %v4912, %v5009
        %v5042 = vmul.f32 %v4914, %v5010
        %v5043 = vpack.c.bf16 %v5012, %v5011
        %v5044 = vpack.c.bf16 %v5014, %v5013
        %v5045 = vpack.c.bf16 %v5016, %v5015
        %v5046 = vpack.c.bf16 %v5018, %v5017
        %v5047 = vpack.c.bf16 %v5020, %v5019
        %v5048 = vpack.c.bf16 %v5022, %v5021
        %v5049 = vpack.c.bf16 %v5024, %v5023
        %v5050 = vpack.c.bf16 %v5026, %v5025
        %v5051 = vpack.c.bf16 %v5028, %v5027
        %v5052 = vpack.c.bf16 %v5030, %v5029
        %v5053 = vpack.c.bf16 %v5032, %v5031
        %v5054 = vpack.c.bf16 %v5034, %v5033
        %v5055 = vpack.c.bf16 %v5036, %v5035
        %v5056 = vpack.c.bf16 %v5038, %v5037
        %v5057 = vpack.c.bf16 %v5040, %v5039
        %v5058 = vpack.c.bf16 %v5042, %v5041
        %5059 = vrot.lane.b32.xlu0 %v1475, 32
        %v5060 = vpop.permute.xlu0 %5059
        %5061 = vrot.lane.b32.xlu0 %v1478, 32
        %v5062 = vpop.permute.xlu0 %5061
        %5063 = vrot.lane.b32.xlu0 %v1481, 32
        %v5064 = vpop.permute.xlu0 %5063
        %5065 = vrot.lane.b32.xlu0 %v1484, 32
        %v5066 = vpop.permute.xlu0 %5065
        %5067 = vrot.lane.b32.xlu0 %v1487, 32
        %v5068 = vpop.permute.xlu0 %5067
        %5069 = vrot.lane.b32.xlu0 %v1490, 32
        %v5070 = vpop.permute.xlu0 %5069
        %5071 = vrot.lane.b32.xlu0 %v1493, 32
        %v5072 = vpop.permute.xlu0 %5071
        %5073 = vrot.lane.b32.xlu0 %v1496, 32
        %v5074 = vpop.permute.xlu0 %5073
        %5083 = vmatprep.subr.bf16.mxu0 0
        %5084 = vmatpush1.bf16.msra.mxu0 %v5060
        %5085 = vmatprep.subr.bf16.mxu0 0
        %5086 = vmatpush1.bf16.msra.mxu0 %v5062
        %5087 = vmatprep.subr.bf16.mxu0 0
        %5088 = vmatpush1.bf16.msra.mxu0 %v5064
        %5089 = vmatprep.subr.bf16.mxu0 0
        %5090 = vmatpush1.bf16.msra.mxu0 %v5066
        %5091 = vmatprep.subr.bf16.mxu0 0
        %5092 = vmatpush1.bf16.msra.mxu0 %v5068
        %5093 = vmatprep.subr.bf16.mxu0 0
        %5094 = vmatpush1.bf16.msra.mxu0 %v5070
        %5095 = vmatprep.subr.bf16.mxu0 0
        %5096 = vmatpush1.bf16.msra.mxu0 %v5072
        %5097 = vmatprep.subr.bf16.mxu0 0
        %5098 = vmatpush1.bf16.msra.mxu0 %v5074
        %5099 = vmatprep.subr.bf16.mxu0 0
        %5100 = vmatpush1.bf16.msra.mxu0 0
        %5101 = vmatprep.subr.bf16.mxu0 0
        %5102 = vmatpush1.bf16.msra.mxu0 0
        %5103 = vmatprep.subr.bf16.mxu0 0
        %5104 = vmatpush1.bf16.msra.mxu0 0
        %5105 = vmatprep.subr.bf16.mxu0 0
        %5106 = vmatpush1.bf16.msra.mxu0 0
        %5107 = vmatprep.subr.bf16.mxu0 0
        %5108 = vmatpush1.bf16.msra.mxu0 0
        %5109 = vmatprep.subr.bf16.mxu0 0
        %5110 = vmatpush1.bf16.msra.mxu0 0
        %5111 = vmatprep.subr.bf16.mxu0 0
        %5112 = vmatpush1.bf16.msra.mxu0 0
        %5113 = vmatprep.subr.bf16.mxu0 0
        %5114 = vmatpush1.bf16.msra.mxu0 0
        %5115 = vmatprep.mubr.bf16.mxu0 0
        %5116 = vmatmul.mubr.bf16.gmra.mrb[0].mxu0 %v5043
        %v5117 = vpop.f32.mrb[0].mxu0
        %v5118 = vadd.f32 0.0, %v5117
        %v5119 = vpop.f32.mrb[0].mxu0
        %v5120 = vpop.f32.mrb[0].mxu0
        %v5121 = vadd.f32 0.0, %v5120
        %v5122 = vpop.f32.mrb[0].mxu0
        %5123 = vmatprep.mubr.bf16.mxu0 0
        %5124 = vmatmul.mubr.bf16.gmra.mrb[0].mxu0 %v5044
        %v5125 = vpop.f32.mrb[0].mxu0
        %v5126 = vadd.f32 0.0, %v5125
        %v5127 = vpop.f32.mrb[0].mxu0
        %v5128 = vpop.f32.mrb[0].mxu0
        %v5129 = vadd.f32 0.0, %v5128
        %v5130 = vpop.f32.mrb[0].mxu0
        %5131 = vmatprep.mubr.bf16.mxu0 0
        %5132 = vmatmul.mubr.bf16.gmra.mrb[0].mxu0 %v5045
        %v5133 = vpop.f32.mrb[0].mxu0
        %v5134 = vadd.f32 0.0, %v5133
        %v5135 = vpop.f32.mrb[0].mxu0
        %v5136 = vpop.f32.mrb[0].mxu0
        %v5137 = vadd.f32 0.0, %v5136
        %v5138 = vpop.f32.mrb[0].mxu0
        %5139 = vmatprep.mubr.bf16.mxu0 0
        %5140 = vmatmul.mubr.bf16.gmra.mrb[0].mxu0 %v5046
        %v5141 = vpop.f32.mrb[0].mxu0
        %v5142 = vadd.f32 0.0, %v5141
        %v5143 = vpop.f32.mrb[0].mxu0
        %v5144 = vpop.f32.mrb[0].mxu0
        %v5145 = vadd.f32 0.0, %v5144
        %v5146 = vpop.f32.mrb[0].mxu0
        %5147 = vmatprep.mubr.bf16.mxu0 0
        %5148 = vmatmul.mubr.bf16.gmra.mrb[0].mxu0 %v5047
        %v5149 = vpop.f32.mrb[0].mxu0
        %v5150 = vadd.f32 0.0, %v5149
        %v5151 = vpop.f32.mrb[0].mxu0
        %v5152 = vpop.f32.mrb[0].mxu0
        %v5153 = vadd.f32 0.0, %v5152
        %v5154 = vpop.f32.mrb[0].mxu0
        %5155 = vmatprep.mubr.bf16.mxu0 0
        %5156 = vmatmul.mubr.bf16.gmra.mrb[0].mxu0 %v5048
        %v5157 = vpop.f32.mrb[0].mxu0
        %v5158 = vadd.f32 0.0, %v5157
        %v5159 = vpop.f32.mrb[0].mxu0
        %v5160 = vpop.f32.mrb[0].mxu0
        %v5161 = vadd.f32 0.0, %v5160
        %v5162 = vpop.f32.mrb[0].mxu0
        %5163 = vmatprep.mubr.bf16.mxu0 0
        %5164 = vmatmul.mubr.bf16.gmra.mrb[0].mxu0 %v5049
        %v5165 = vpop.f32.mrb[0].mxu0
        %v5166 = vadd.f32 0.0, %v5165
        %v5167 = vpop.f32.mrb[0].mxu0
        %v5168 = vpop.f32.mrb[0].mxu0
        %v5169 = vadd.f32 0.0, %v5168
        %v5170 = vpop.f32.mrb[0].mxu0
        %5171 = vmatprep.mubr.bf16.mxu0 0
        %5172 = vmatmul.mubr.bf16.gmra.mrb[0].mxu0 %v5050
        %v5173 = vpop.f32.mrb[0].mxu0
        %v5174 = vadd.f32 0.0, %v5173
        %v5175 = vpop.f32.mrb[0].mxu0
        %v5176 = vpop.f32.mrb[0].mxu0
        %v5177 = vadd.f32 0.0, %v5176
        %v5178 = vpop.f32.mrb[0].mxu0
        %5179 = vdwg.mxu0
        %5180 = vrot.lane.b32.xlu0 %v1499, 32
        %v5181 = vpop.permute.xlu0 %5180
        %5182 = vrot.lane.b32.xlu0 %v1502, 32
        %v5183 = vpop.permute.xlu0 %5182
        %5184 = vrot.lane.b32.xlu0 %v1505, 32
        %v5185 = vpop.permute.xlu0 %5184
        %5186 = vrot.lane.b32.xlu0 %v1508, 32
        %v5187 = vpop.permute.xlu0 %5186
        %5188 = vrot.lane.b32.xlu0 %v1511, 32
        %v5189 = vpop.permute.xlu0 %5188
        %5190 = vrot.lane.b32.xlu0 %v1514, 32
        %v5191 = vpop.permute.xlu0 %5190
        %5192 = vrot.lane.b32.xlu0 %v1517, 32
        %v5193 = vpop.permute.xlu0 %5192
        %5194 = vrot.lane.b32.xlu0 %v1520, 32
        %v5195 = vpop.permute.xlu0 %5194
        %5204 = vmatprep.subr.bf16.mxu0 0
        %5205 = vmatpush1.bf16.msra.mxu0 %v5181
        %5206 = vmatprep.subr.bf16.mxu0 0
        %5207 = vmatpush1.bf16.msra.mxu0 %v5183
        %5208 = vmatprep.subr.bf16.mxu0 0
        %5209 = vmatpush1.bf16.msra.mxu0 %v5185
        %5210 = vmatprep.subr.bf16.mxu0 0
        %5211 = vmatpush1.bf16.msra.mxu0 %v5187
        %5212 = vmatprep.subr.bf16.mxu0 0
        %5213 = vmatpush1.bf16.msra.mxu0 %v5189
        %5214 = vmatprep.subr.bf16.mxu0 0
        %5215 = vmatpush1.bf16.msra.mxu0 %v5191
        %5216 = vmatprep.subr.bf16.mxu0 0
        %5217 = vmatpush1.bf16.msra.mxu0 %v5193
        %5218 = vmatprep.subr.bf16.mxu0 0
        %5219 = vmatpush1.bf16.msra.mxu0 %v5195
        %5220 = vmatprep.subr.bf16.mxu0 0
        %5221 = vmatpush1.bf16.msra.mxu0 0
        %5222 = vmatprep.subr.bf16.mxu0 0
        %5223 = vmatpush1.bf16.msra.mxu0 0
        %5224 = vmatprep.subr.bf16.mxu0 0
        %5225 = vmatpush1.bf16.msra.mxu0 0
        %5226 = vmatprep.subr.bf16.mxu0 0
        %5227 = vmatpush1.bf16.msra.mxu0 0
        %5228 = vmatprep.subr.bf16.mxu0 0
        %5229 = vmatpush1.bf16.msra.mxu0 0
        %5230 = vmatprep.subr.bf16.mxu0 0
        %5231 = vmatpush1.bf16.msra.mxu0 0
        %5232 = vmatprep.subr.bf16.mxu0 0
        %5233 = vmatpush1.bf16.msra.mxu0 0
        %5234 = vmatprep.subr.bf16.mxu0 0
        %5235 = vmatpush1.bf16.msra.mxu0 0
        %5236 = vmatprep.mubr.bf16.mxu0 0
        %5237 = vmatmul.mubr.bf16.gmra.mrb[0].mxu0 %v5051
        %v5238 = vpop.f32.mrb[0].mxu0
        %v5239 = vadd.f32 0.0, %v5238
        %v5240 = vpop.f32.mrb[0].mxu0
        %v5241 = vpop.f32.mrb[0].mxu0
        %v5242 = vadd.f32 0.0, %v5241
        %v5243 = vpop.f32.mrb[0].mxu0
        %5244 = vmatprep.mubr.bf16.mxu0 0
        %5245 = vmatmul.mubr.bf16.gmra.mrb[0].mxu0 %v5052
        %v5246 = vpop.f32.mrb[0].mxu0
        %v5247 = vadd.f32 0.0, %v5246
        %v5248 = vpop.f32.mrb[0].mxu0
        %v5249 = vpop.f32.mrb[0].mxu0
        %v5250 = vadd.f32 0.0, %v5249
        %v5251 = vpop.f32.mrb[0].mxu0
        %5252 = vmatprep.mubr.bf16.mxu0 0
        %5253 = vmatmul.mubr.bf16.gmra.mrb[0].mxu0 %v5053
        %v5254 = vpop.f32.mrb[0].mxu0
        %v5255 = vadd.f32 0.0, %v5254
        %v5256 = vpop.f32.mrb[0].mxu0
        %v5257 = vpop.f32.mrb[0].mxu0
        %v5258 = vadd.f32 0.0, %v5257
        %v5259 = vpop.f32.mrb[0].mxu0
        %5260 = vmatprep.mubr.bf16.mxu0 0
        %5261 = vmatmul.mubr.bf16.gmra.mrb[0].mxu0 %v5054
        %v5262 = vpop.f32.mrb[0].mxu0
        %v5263 = vadd.f32 0.0, %v5262
        %v5264 = vpop.f32.mrb[0].mxu0
        %v5265 = vpop.f32.mrb[0].mxu0
        %v5266 = vadd.f32 0.0, %v5265
        %v5267 = vpop.f32.mrb[0].mxu0
        %5268 = vmatprep.mubr.bf16.mxu0 0
        %5269 = vmatmul.mubr.bf16.gmra.mrb[0].mxu0 %v5055
        %v5270 = vpop.f32.mrb[0].mxu0
        %v5271 = vadd.f32 0.0, %v5270
        %v5272 = vpop.f32.mrb[0].mxu0
        %v5273 = vpop.f32.mrb[0].mxu0
        %v5274 = vadd.f32 0.0, %v5273
        %v5275 = vpop.f32.mrb[0].mxu0
        %5276 = vmatprep.mubr.bf16.mxu0 0
        %5277 = vmatmul.mubr.bf16.gmra.mrb[0].mxu0 %v5056
        %v5278 = vpop.f32.mrb[0].mxu0
        %v5279 = vadd.f32 0.0, %v5278
        %v5280 = vpop.f32.mrb[0].mxu0
        %v5281 = vpop.f32.mrb[0].mxu0
        %v5282 = vadd.f32 0.0, %v5281
        %v5283 = vpop.f32.mrb[0].mxu0
        %5284 = vmatprep.mubr.bf16.mxu0 0
        %5285 = vmatmul.mubr.bf16.gmra.mrb[0].mxu0 %v5057
        %v5286 = vpop.f32.mrb[0].mxu0
        %v5287 = vadd.f32 0.0, %v5286
        %v5288 = vpop.f32.mrb[0].mxu0
        %v5289 = vpop.f32.mrb[0].mxu0
        %v5290 = vadd.f32 0.0, %v5289
        %v5291 = vpop.f32.mrb[0].mxu0
        %5292 = vmatprep.mubr.bf16.mxu0 0
        %5293 = vmatmul.mubr.bf16.gmra.mrb[0].mxu0 %v5058
        %v5294 = vpop.f32.mrb[0].mxu0
        %v5295 = vadd.f32 0.0, %v5294
        %v5296 = vpop.f32.mrb[0].mxu0
        %v5297 = vpop.f32.mrb[0].mxu0
        %v5298 = vadd.f32 0.0, %v5297
        %v5299 = vpop.f32.mrb[0].mxu0
        %5300 = vdwg.mxu0
        %v5301 = vpack.c.bf16 %v5121, %v5118
        %v5302 = vpack.c.bf16 %v5129, %v5126
        %v5303 = vpack.c.bf16 %v5137, %v5134
        %v5304 = vpack.c.bf16 %v5145, %v5142
        %v5305 = vpack.c.bf16 %v5153, %v5150
        %v5306 = vpack.c.bf16 %v5161, %v5158
        %v5307 = vpack.c.bf16 %v5169, %v5166
        %v5308 = vpack.c.bf16 %v5177, %v5174
        %v5309 = vpack.c.bf16 %v5242, %v5239
        %v5310 = vpack.c.bf16 %v5250, %v5247
        %v5311 = vpack.c.bf16 %v5258, %v5255
        %v5312 = vpack.c.bf16 %v5266, %v5263
        %v5313 = vpack.c.bf16 %v5274, %v5271
        %v5314 = vpack.c.bf16 %v5282, %v5279
        %v5315 = vpack.c.bf16 %v5290, %v5287
        %v5316 = vpack.c.bf16 %v5298, %v5295
        %5333 = vrot.lane.b32.xlu0 %v3405, 32
        %v5334 = vpop.permute.xlu0 %5333
        %5335 = vrot.lane.b32.xlu0 %v3406, 32
        %v5336 = vpop.permute.xlu0 %5335
        %5337 = vrot.lane.b32.xlu0 %v3407, 32
        %v5338 = vpop.permute.xlu0 %5337
        %5339 = vrot.lane.b32.xlu0 %v3408, 32
        %v5340 = vpop.permute.xlu0 %5339
        %5341 = vrot.lane.b32.xlu0 %v3409, 32
        %v5342 = vpop.permute.xlu0 %5341
        %5343 = vrot.lane.b32.xlu0 %v3410, 32
        %v5344 = vpop.permute.xlu0 %5343
        %5345 = vrot.lane.b32.xlu0 %v3411, 32
        %v5346 = vpop.permute.xlu0 %5345
        %5347 = vrot.lane.b32.xlu0 %v3412, 32
        %v5348 = vpop.permute.xlu0 %5347
        %5349 = vrot.lane.b32.xlu0 %v3413, 32
        %v5350 = vpop.permute.xlu0 %5349
        %5351 = vrot.lane.b32.xlu0 %v3414, 32
        %v5352 = vpop.permute.xlu0 %5351
        %5353 = vrot.lane.b32.xlu0 %v3415, 32
        %v5354 = vpop.permute.xlu0 %5353
        %5355 = vrot.lane.b32.xlu0 %v3416, 32
        %v5356 = vpop.permute.xlu0 %5355
        %5357 = vrot.lane.b32.xlu0 %v3417, 32
        %v5358 = vpop.permute.xlu0 %5357
        %5359 = vrot.lane.b32.xlu0 %v3418, 32
        %v5360 = vpop.permute.xlu0 %5359
        %5361 = vrot.lane.b32.xlu0 %v3419, 32
        %v5362 = vpop.permute.xlu0 %5361
        %5363 = vrot.lane.b32.xlu0 %v3420, 32
        %v5364 = vpop.permute.xlu0 %5363
        %5381 = vrot.lane.b32.xlu0 %v4353, 64
        %v5382 = vpop.permute.xlu0 %5381
        %5383 = vrot.lane.b32.xlu0 %v4354, 64
        %v5384 = vpop.permute.xlu0 %5383
        %5385 = vrot.lane.b32.xlu0 %v4355, 64
        %v5386 = vpop.permute.xlu0 %5385
        %5387 = vrot.lane.b32.xlu0 %v4356, 64
        %v5388 = vpop.permute.xlu0 %5387
        %5389 = vrot.lane.b32.xlu0 %v4357, 64
        %v5390 = vpop.permute.xlu0 %5389
        %5391 = vrot.lane.b32.xlu0 %v4358, 64
        %v5392 = vpop.permute.xlu0 %5391
        %5393 = vrot.lane.b32.xlu0 %v4359, 64
        %v5394 = vpop.permute.xlu0 %5393
        %5395 = vrot.lane.b32.xlu0 %v4360, 64
        %v5396 = vpop.permute.xlu0 %5395
        %5397 = vrot.lane.b32.xlu0 %v4361, 64
        %v5398 = vpop.permute.xlu0 %5397
        %5399 = vrot.lane.b32.xlu0 %v4362, 64
        %v5400 = vpop.permute.xlu0 %5399
        %5401 = vrot.lane.b32.xlu0 %v4363, 64
        %v5402 = vpop.permute.xlu0 %5401
        %5403 = vrot.lane.b32.xlu0 %v4364, 64
        %v5404 = vpop.permute.xlu0 %5403
        %5405 = vrot.lane.b32.xlu0 %v4365, 64
        %v5406 = vpop.permute.xlu0 %5405
        %5407 = vrot.lane.b32.xlu0 %v4366, 64
        %v5408 = vpop.permute.xlu0 %5407
        %5409 = vrot.lane.b32.xlu0 %v4367, 64
        %v5410 = vpop.permute.xlu0 %5409
        %5411 = vrot.lane.b32.xlu0 %v4368, 64
        %v5412 = vpop.permute.xlu0 %5411
        %5429 = vrot.lane.b32.xlu0 %v5301, 96
        %v5430 = vpop.permute.xlu0 %5429
        %5431 = vrot.lane.b32.xlu0 %v5302, 96
        %v5432 = vpop.permute.xlu0 %5431
        %5433 = vrot.lane.b32.xlu0 %v5303, 96
        %v5434 = vpop.permute.xlu0 %5433
        %5435 = vrot.lane.b32.xlu0 %v5304, 96
        %v5436 = vpop.permute.xlu0 %5435
        %5437 = vrot.lane.b32.xlu0 %v5305, 96
        %v5438 = vpop.permute.xlu0 %5437
        %5439 = vrot.lane.b32.xlu0 %v5306, 96
        %v5440 = vpop.permute.xlu0 %5439
        %5441 = vrot.lane.b32.xlu0 %v5307, 96
        %v5442 = vpop.permute.xlu0 %5441
        %5443 = vrot.lane.b32.xlu0 %v5308, 96
        %v5444 = vpop.permute.xlu0 %5443
        %5445 = vrot.lane.b32.xlu0 %v5309, 96
        %v5446 = vpop.permute.xlu0 %5445
        %5447 = vrot.lane.b32.xlu0 %v5310, 96
        %v5448 = vpop.permute.xlu0 %5447
        %5449 = vrot.lane.b32.xlu0 %v5311, 96
        %v5450 = vpop.permute.xlu0 %5449
        %5451 = vrot.lane.b32.xlu0 %v5312, 96
        %v5452 = vpop.permute.xlu0 %5451
        %5453 = vrot.lane.b32.xlu0 %v5313, 96
        %v5454 = vpop.permute.xlu0 %5453
        %5455 = vrot.lane.b32.xlu0 %v5314, 96
        %v5456 = vpop.permute.xlu0 %5455
        %5457 = vrot.lane.b32.xlu0 %v5315, 96
        %v5458 = vpop.permute.xlu0 %5457
        %5459 = vrot.lane.b32.xlu0 %v5316, 96
        %v5460 = vpop.permute.xlu0 %5459
        %v5463 = vsel %vm1556, %v2409, %v5334
        %v5466 = vsel %vm1556, %v2410, %v5336
        %v5469 = vsel %vm1556, %v2411, %v5338
        %v5472 = vsel %vm1556, %v2412, %v5340
        %v5475 = vsel %vm1556, %v2413, %v5342
        %v5478 = vsel %vm1556, %v2414, %v5344
        %v5481 = vsel %vm1556, %v2415, %v5346
        %v5484 = vsel %vm1556, %v2416, %v5348
        %v5487 = vsel %vm1556, %v2417, %v5350
        %v5490 = vsel %vm1556, %v2418, %v5352
        %v5493 = vsel %vm1556, %v2419, %v5354
        %v5496 = vsel %vm1556, %v2420, %v5356
        %v5499 = vsel %vm1556, %v2421, %v5358
        %v5502 = vsel %vm1556, %v2422, %v5360
        %v5505 = vsel %vm1556, %v2423, %v5362
        %v5508 = vsel %vm1556, %v2424, %v5364
        %vm5509 = vcmask 523264
        %v5511 = vsel %vm5509, %v5463, %v5382
        %v5513 = vsel %vm5509, %v5466, %v5384
        %v5515 = vsel %vm5509, %v5469, %v5386
        %v5517 = vsel %vm5509, %v5472, %v5388
        %v5519 = vsel %vm5509, %v5475, %v5390
        %v5521 = vsel %vm5509, %v5478, %v5392
        %v5523 = vsel %vm5509, %v5481, %v5394
        %v5525 = vsel %vm5509, %v5484, %v5396
        %v5527 = vsel %vm5509, %v5487, %v5398
        %v5529 = vsel %vm5509, %v5490, %v5400
        %v5531 = vsel %vm5509, %v5493, %v5402
        %v5533 = vsel %vm5509, %v5496, %v5404
        %v5535 = vsel %vm5509, %v5499, %v5406
        %v5537 = vsel %vm5509, %v5502, %v5408
        %v5539 = vsel %vm5509, %v5505, %v5410
        %v5541 = vsel %vm5509, %v5508, %v5412
        %vm5542 = vcmask 785408
        %v5544 = vsel %vm5542, %v5511, %v5430
        %v5547 = vsel %vm5542, %v5513, %v5432
        %v5550 = vsel %vm5542, %v5515, %v5434
        %v5553 = vsel %vm5542, %v5517, %v5436
        %v5556 = vsel %vm5542, %v5519, %v5438
        %v5559 = vsel %vm5542, %v5521, %v5440
        %v5562 = vsel %vm5542, %v5523, %v5442
        %v5565 = vsel %vm5542, %v5525, %v5444
        %v5568 = vsel %vm5542, %v5527, %v5446
        %v5571 = vsel %vm5542, %v5529, %v5448
        %v5574 = vsel %vm5542, %v5531, %v5450
        %v5577 = vsel %vm5542, %v5533, %v5452
        %v5580 = vsel %vm5542, %v5535, %v5454
        %v5583 = vsel %vm5542, %v5537, %v5456
        %v5586 = vsel %vm5542, %v5539, %v5458
        %v5589 = vsel %vm5542, %v5541, %v5460
        %v5591 = vld [vmem:[%s5] sm:$0xf]
        %v5592 = vld [vmem:[%s5 + $0x4] sm:$0xf]
        %v5593 = vld [vmem:[%s5 + $0x8] sm:$0xf]
        %v5594 = vld [vmem:[%s5 + $0xc] sm:$0xf]
        %v5595 = vld [vmem:[%s5 + $0x10] sm:$0xf]
        %v5596 = vld [vmem:[%s5 + $0x14] sm:$0xf]
        %v5597 = vld [vmem:[%s5 + $0x18] sm:$0xf]
        %v5598 = vld [vmem:[%s5 + $0x1c] sm:$0xf]
        %v5599 = vld [vmem:[%s5 + $0x20] sm:$0xf]
        %v5600 = vld [vmem:[%s5 + $0x24] sm:$0xf]
        %v5601 = vld [vmem:[%s5 + $0x28] sm:$0xf]
        %v5602 = vld [vmem:[%s5 + $0x2c] sm:$0xf]
        %v5603 = vld [vmem:[%s5 + $0x30] sm:$0xf]
        %v5604 = vld [vmem:[%s5 + $0x34] sm:$0xf]
        %v5605 = vld [vmem:[%s5 + $0x38] sm:$0xf]
        %v5606 = vld [vmem:[%s5 + $0x3c] sm:$0xf]
        %v5623 = vunpack.c.l.b16 %v5591
        %v5624 = vunpack.c.l.b16 %v5592
        %v5625 = vunpack.c.l.b16 %v5593
        %v5626 = vunpack.c.l.b16 %v5594
        %v5627 = vunpack.c.l.b16 %v5595
        %v5628 = vunpack.c.l.b16 %v5596
        %v5629 = vunpack.c.l.b16 %v5597
        %v5630 = vunpack.c.l.b16 %v5598
        %v5631 = vunpack.c.l.b16 %v5599
        %v5632 = vunpack.c.l.b16 %v5600
        %v5633 = vunpack.c.l.b16 %v5601
        %v5634 = vunpack.c.l.b16 %v5602
        %v5635 = vunpack.c.l.b16 %v5603
        %v5636 = vunpack.c.l.b16 %v5604
        %v5637 = vunpack.c.l.b16 %v5605
        %v5638 = vunpack.c.l.b16 %v5606
        %v5639 = vpack.c.b16 %v5624, %v5623
        %v5640 = vpack.c.b16 %v5626, %v5625
        %v5641 = vpack.c.b16 %v5628, %v5627
        %v5642 = vpack.c.b16 %v5630, %v5629
        %v5643 = vpack.c.b16 %v5632, %v5631
        %v5644 = vpack.c.b16 %v5634, %v5633
        %v5645 = vpack.c.b16 %v5636, %v5635
        %v5646 = vpack.c.b16 %v5638, %v5637
        %5655 = vmatprep.subr.bf16.mxu0 0
        %5656 = vmatpush1.bf16.msra.mxu0 %v5639
        %5657 = vmatprep.subr.bf16.mxu0 0
        %5658 = vmatpush1.bf16.msra.mxu0 %v5640
        %5659 = vmatprep.subr.bf16.mxu0 0
        %5660 = vmatpush1.bf16.msra.mxu0 %v5641
        %5661 = vmatprep.subr.bf16.mxu0 0
        %5662 = vmatpush1.bf16.msra.mxu0 %v5642
        %5663 = vmatprep.subr.bf16.mxu0 0
        %5664 = vmatpush1.bf16.msra.mxu0 %v5643
        %5665 = vmatprep.subr.bf16.mxu0 0
        %5666 = vmatpush1.bf16.msra.mxu0 %v5644
        %5667 = vmatprep.subr.bf16.mxu0 0
        %5668 = vmatpush1.bf16.msra.mxu0 %v5645
        %5669 = vmatprep.subr.bf16.mxu0 0
        %5670 = vmatpush1.bf16.msra.mxu0 %v5646
        %5671 = vmatprep.subr.bf16.mxu0 0
        %5672 = vmatpush1.bf16.msra.mxu0 0
        %5673 = vmatprep.subr.bf16.mxu0 0
        %5674 = vmatpush1.bf16.msra.mxu0 0
        %5675 = vmatprep.subr.bf16.mxu0 0
        %5676 = vmatpush1.bf16.msra.mxu0 0
        %5677 = vmatprep.subr.bf16.mxu0 0
        %5678 = vmatpush1.bf16.msra.mxu0 0
        %5679 = vmatprep.subr.bf16.mxu0 0
        %5680 = vmatpush1.bf16.msra.mxu0 0
        %5681 = vmatprep.subr.bf16.mxu0 0
        %5682 = vmatpush1.bf16.msra.mxu0 0
        %5683 = vmatprep.subr.bf16.mxu0 0
        %5684 = vmatpush1.bf16.msra.mxu0 0
        %5685 = vmatprep.subr.bf16.mxu0 0
        %5686 = vmatpush1.bf16.msra.mxu0 0
        %5687 = vmatprep.mubr.bf16.mxu0 0
        %5688 = vmatmul.mubr.bf16.gmra.mrb[0].mxu0 %v5544
        %v5689 = vpop.f32.mrb[0].mxu0
        %v5690 = vadd.f32 0.0, %v5689
        %v5691 = vpop.f32.mrb[0].mxu0
        %v5692 = vpop.f32.mrb[0].mxu0
        %v5693 = vadd.f32 0.0, %v5692
        %v5694 = vpop.f32.mrb[0].mxu0
        %5695 = vmatprep.mubr.bf16.mxu0 0
        %5696 = vmatmul.mubr.bf16.gmra.mrb[0].mxu0 %v5547
        %v5697 = vpop.f32.mrb[0].mxu0
        %v5698 = vadd.f32 0.0, %v5697
        %v5699 = vpop.f32.mrb[0].mxu0
        %v5700 = vpop.f32.mrb[0].mxu0
        %v5701 = vadd.f32 0.0, %v5700
        %v5702 = vpop.f32.mrb[0].mxu0
        %5703 = vmatprep.mubr.bf16.mxu0 0
        %5704 = vmatmul.mubr.bf16.gmra.mrb[0].mxu0 %v5550
        %v5705 = vpop.f32.mrb[0].mxu0
        %v5706 = vadd.f32 0.0, %v5705
        %v5707 = vpop.f32.mrb[0].mxu0
        %v5708 = vpop.f32.mrb[0].mxu0
        %v5709 = vadd.f32 0.0, %v5708
        %v5710 = vpop.f32.mrb[0].mxu0
        %5711 = vmatprep.mubr.bf16.mxu0 0
        %5712 = vmatmul.mubr.bf16.gmra.mrb[0].mxu0 %v5553
        %v5713 = vpop.f32.mrb[0].mxu0
        %v5714 = vadd.f32 0.0, %v5713
        %v5715 = vpop.f32.mrb[0].mxu0
        %v5716 = vpop.f32.mrb[0].mxu0
        %v5717 = vadd.f32 0.0, %v5716
        %v5718 = vpop.f32.mrb[0].mxu0
        %5719 = vmatprep.mubr.bf16.mxu0 0
        %5720 = vmatmul.mubr.bf16.gmra.mrb[0].mxu0 %v5556
        %v5721 = vpop.f32.mrb[0].mxu0
        %v5722 = vadd.f32 0.0, %v5721
        %v5723 = vpop.f32.mrb[0].mxu0
        %v5724 = vpop.f32.mrb[0].mxu0
        %v5725 = vadd.f32 0.0, %v5724
        %v5726 = vpop.f32.mrb[0].mxu0
        %5727 = vmatprep.mubr.bf16.mxu0 0
        %5728 = vmatmul.mubr.bf16.gmra.mrb[0].mxu0 %v5559
        %v5729 = vpop.f32.mrb[0].mxu0
        %v5730 = vadd.f32 0.0, %v5729
        %v5731 = vpop.f32.mrb[0].mxu0
        %v5732 = vpop.f32.mrb[0].mxu0
        %v5733 = vadd.f32 0.0, %v5732
        %v5734 = vpop.f32.mrb[0].mxu0
        %5735 = vmatprep.mubr.bf16.mxu0 0
        %5736 = vmatmul.mubr.bf16.gmra.mrb[0].mxu0 %v5562
        %v5737 = vpop.f32.mrb[0].mxu0
        %v5738 = vadd.f32 0.0, %v5737
        %v5739 = vpop.f32.mrb[0].mxu0
        %v5740 = vpop.f32.mrb[0].mxu0
        %v5741 = vadd.f32 0.0, %v5740
        %v5742 = vpop.f32.mrb[0].mxu0
        %5743 = vmatprep.mubr.bf16.mxu0 0
        %5744 = vmatmul.mubr.bf16.gmra.mrb[0].mxu0 %v5565
        %v5745 = vpop.f32.mrb[0].mxu0
        %v5746 = vadd.f32 0.0, %v5745
        %v5747 = vpop.f32.mrb[0].mxu0
        %v5748 = vpop.f32.mrb[0].mxu0
        %v5749 = vadd.f32 0.0, %v5748
        %v5750 = vpop.f32.mrb[0].mxu0
        %5751 = vmatprep.mubr.bf16.mxu0 0
        %5752 = vmatmul.mubr.bf16.gmra.mrb[0].mxu0 %v5568
        %v5753 = vpop.f32.mrb[0].mxu0
        %v5754 = vadd.f32 0.0, %v5753
        %v5755 = vpop.f32.mrb[0].mxu0
        %v5756 = vpop.f32.mrb[0].mxu0
        %v5757 = vadd.f32 0.0, %v5756
        %v5758 = vpop.f32.mrb[0].mxu0
        %5759 = vmatprep.mubr.bf16.mxu0 0
        %5760 = vmatmul.mubr.bf16.gmra.mrb[0].mxu0 %v5571
        %v5761 = vpop.f32.mrb[0].mxu0
        %v5762 = vadd.f32 0.0, %v5761
        %v5763 = vpop.f32.mrb[0].mxu0
        %v5764 = vpop.f32.mrb[0].mxu0
        %v5765 = vadd.f32 0.0, %v5764
        %v5766 = vpop.f32.mrb[0].mxu0
        %5767 = vmatprep.mubr.bf16.mxu0 0
        %5768 = vmatmul.mubr.bf16.gmra.mrb[0].mxu0 %v5574
        %v5769 = vpop.f32.mrb[0].mxu0
        %v5770 = vadd.f32 0.0, %v5769
        %v5771 = vpop.f32.mrb[0].mxu0
        %v5772 = vpop.f32.mrb[0].mxu0
        %v5773 = vadd.f32 0.0, %v5772
        %v5774 = vpop.f32.mrb[0].mxu0
        %5775 = vmatprep.mubr.bf16.mxu0 0
        %5776 = vmatmul.mubr.bf16.gmra.mrb[0].mxu0 %v5577
        %v5777 = vpop.f32.mrb[0].mxu0
        %v5778 = vadd.f32 0.0, %v5777
        %v5779 = vpop.f32.mrb[0].mxu0
        %v5780 = vpop.f32.mrb[0].mxu0
        %v5781 = vadd.f32 0.0, %v5780
        %v5782 = vpop.f32.mrb[0].mxu0
        %5783 = vmatprep.mubr.bf16.mxu0 0
        %5784 = vmatmul.mubr.bf16.gmra.mrb[0].mxu0 %v5580
        %v5785 = vpop.f32.mrb[0].mxu0
        %v5786 = vadd.f32 0.0, %v5785
        %v5787 = vpop.f32.mrb[0].mxu0
        %v5788 = vpop.f32.mrb[0].mxu0
        %v5789 = vadd.f32 0.0, %v5788
        %v5790 = vpop.f32.mrb[0].mxu0
        %5791 = vmatprep.mubr.bf16.mxu0 0
        %5792 = vmatmul.mubr.bf16.gmra.mrb[0].mxu0 %v5583
        %v5793 = vpop.f32.mrb[0].mxu0
        %v5794 = vadd.f32 0.0, %v5793
        %v5795 = vpop.f32.mrb[0].mxu0
        %v5796 = vpop.f32.mrb[0].mxu0
        %v5797 = vadd.f32 0.0, %v5796
        %v5798 = vpop.f32.mrb[0].mxu0
        %5799 = vmatprep.mubr.bf16.mxu0 0
        %5800 = vmatmul.mubr.bf16.gmra.mrb[0].mxu0 %v5586
        %v5801 = vpop.f32.mrb[0].mxu0
        %v5802 = vadd.f32 0.0, %v5801
        %v5803 = vpop.f32.mrb[0].mxu0
        %v5804 = vpop.f32.mrb[0].mxu0
        %v5805 = vadd.f32 0.0, %v5804
        %v5806 = vpop.f32.mrb[0].mxu0
        %5807 = vmatprep.mubr.bf16.mxu0 0
        %5808 = vmatmul.mubr.bf16.gmra.mrb[0].mxu0 %v5589
        %v5809 = vpop.f32.mrb[0].mxu0
        %v5810 = vadd.f32 0.0, %v5809
        %v5811 = vpop.f32.mrb[0].mxu0
        %v5812 = vpop.f32.mrb[0].mxu0
        %v5813 = vadd.f32 0.0, %v5812
        %v5814 = vpop.f32.mrb[0].mxu0
        %5815 = vdwg.mxu0
        %v5816 = vadd.f32 %v463, %v5690
        %v5817 = vadd.f32 %v464, %v5693
        %v5818 = vadd.f32 %v465, %v5698
        %v5819 = vadd.f32 %v466, %v5701
        %v5820 = vadd.f32 %v467, %v5706
        %v5821 = vadd.f32 %v468, %v5709
        %v5822 = vadd.f32 %v469, %v5714
        %v5823 = vadd.f32 %v470, %v5717
        %v5824 = vadd.f32 %v471, %v5722
        %v5825 = vadd.f32 %v472, %v5725
        %v5826 = vadd.f32 %v473, %v5730
        %v5827 = vadd.f32 %v474, %v5733
        %v5828 = vadd.f32 %v475, %v5738
        %v5829 = vadd.f32 %v476, %v5741
        %v5830 = vadd.f32 %v477, %v5746
        %v5831 = vadd.f32 %v478, %v5749
        %v5832 = vadd.f32 %v479, %v5754
        %v5833 = vadd.f32 %v480, %v5757
        %v5834 = vadd.f32 %v481, %v5762
        %v5835 = vadd.f32 %v482, %v5765
        %v5836 = vadd.f32 %v483, %v5770
        %v5837 = vadd.f32 %v484, %v5773
        %v5838 = vadd.f32 %v485, %v5778
        %v5839 = vadd.f32 %v486, %v5781
        %v5840 = vadd.f32 %v487, %v5786
        %v5841 = vadd.f32 %v488, %v5789
        %v5842 = vadd.f32 %v489, %v5794
        %v5843 = vadd.f32 %v490, %v5797
        %v5844 = vadd.f32 %v491, %v5802
        %v5845 = vadd.f32 %v492, %v5805
        %v5846 = vadd.f32 %v493, %v5810
        %v5847 = vadd.f32 %v494, %v5813
        %v5848 = vld [vmem:[%s6] sm:$0x1]
        %v5850 = vlaneseq
        %v5851 = vshrl.u32 %v5850, 7
        %v5852 = vsub.s32 0, %v5851
        %v5853 = vrot.slane %v5848, %v5852
        %v5855 = vadd.f32 %v5816, %v5853
        %v5856 = vadd.f32 %v5817, %v5853
        %v5857 = vadd.f32 %v5818, %v5853
        %v5858 = vadd.f32 %v5819, %v5853
        %v5859 = vadd.f32 %v5820, %v5853
        %v5860 = vadd.f32 %v5821, %v5853
        %v5861 = vadd.f32 %v5822, %v5853
        %v5862 = vadd.f32 %v5823, %v5853
        %v5863 = vadd.f32 %v5824, %v5853
        %v5864 = vadd.f32 %v5825, %v5853
        %v5865 = vadd.f32 %v5826, %v5853
        %v5866 = vadd.f32 %v5827, %v5853
        %v5867 = vadd.f32 %v5828, %v5853
        %v5868 = vadd.f32 %v5829, %v5853
        %v5869 = vadd.f32 %v5830, %v5853
        %v5870 = vadd.f32 %v5831, %v5853
        %v5871 = vadd.f32 %v5832, %v5853
        %v5872 = vadd.f32 %v5833, %v5853
        %v5873 = vadd.f32 %v5834, %v5853
        %v5874 = vadd.f32 %v5835, %v5853
        %v5875 = vadd.f32 %v5836, %v5853
        %v5876 = vadd.f32 %v5837, %v5853
        %v5877 = vadd.f32 %v5838, %v5853
        %v5878 = vadd.f32 %v5839, %v5853
        %v5879 = vadd.f32 %v5840, %v5853
        %v5880 = vadd.f32 %v5841, %v5853
        %v5881 = vadd.f32 %v5842, %v5853
        %v5882 = vadd.f32 %v5843, %v5853
        %v5883 = vadd.f32 %v5844, %v5853
        %v5884 = vadd.f32 %v5845, %v5853
        %v5885 = vadd.f32 %v5846, %v5853
        %v5886 = vadd.f32 %v5847, %v5853
        %v5887 = vld [vmem:[%s7] sm:$0x1]
        %v5888 = vld [vmem:[%s8] sm:$0x1]
        %5889 = vadd.xlane.f32.xlu0 %v5855
        %v5890 = vpop.xlane.xlu0 %5889
        %5891 = vadd.xlane.f32.xlu0 %v5856
        %v5892 = vpop.xlane.xlu0 %5891
        %5893 = vadd.xlane.f32.xlu0 %v5857
        %v5894 = vpop.xlane.xlu0 %5893
        %5895 = vadd.xlane.f32.xlu0 %v5858
        %v5896 = vpop.xlane.xlu0 %5895
        %5897 = vadd.xlane.f32.xlu0 %v5859
        %v5898 = vpop.xlane.xlu0 %5897
        %5899 = vadd.xlane.f32.xlu0 %v5860
        %v5900 = vpop.xlane.xlu0 %5899
        %5901 = vadd.xlane.f32.xlu0 %v5861
        %v5902 = vpop.xlane.xlu0 %5901
        %5903 = vadd.xlane.f32.xlu0 %v5862
        %v5904 = vpop.xlane.xlu0 %5903
        %5905 = vadd.xlane.f32.xlu0 %v5863
        %v5906 = vpop.xlane.xlu0 %5905
        %5907 = vadd.xlane.f32.xlu0 %v5864
        %v5908 = vpop.xlane.xlu0 %5907
        %5909 = vadd.xlane.f32.xlu0 %v5865
        %v5910 = vpop.xlane.xlu0 %5909
        %5911 = vadd.xlane.f32.xlu0 %v5866
        %v5912 = vpop.xlane.xlu0 %5911
        %5913 = vadd.xlane.f32.xlu0 %v5867
        %v5914 = vpop.xlane.xlu0 %5913
        %5915 = vadd.xlane.f32.xlu0 %v5868
        %v5916 = vpop.xlane.xlu0 %5915
        %5917 = vadd.xlane.f32.xlu0 %v5869
        %v5918 = vpop.xlane.xlu0 %5917
        %5919 = vadd.xlane.f32.xlu0 %v5870
        %v5920 = vpop.xlane.xlu0 %5919
        %5921 = vadd.xlane.f32.xlu0 %v5871
        %v5922 = vpop.xlane.xlu0 %5921
        %5923 = vadd.xlane.f32.xlu0 %v5872
        %v5924 = vpop.xlane.xlu0 %5923
        %5925 = vadd.xlane.f32.xlu0 %v5873
        %v5926 = vpop.xlane.xlu0 %5925
        %5927 = vadd.xlane.f32.xlu0 %v5874
        %v5928 = vpop.xlane.xlu0 %5927
        %5929 = vadd.xlane.f32.xlu0 %v5875
        %v5930 = vpop.xlane.xlu0 %5929
        %5931 = vadd.xlane.f32.xlu0 %v5876
        %v5932 = vpop.xlane.xlu0 %5931
        %5933 = vadd.xlane.f32.xlu0 %v5877
        %v5934 = vpop.xlane.xlu0 %5933
        %5935 = vadd.xlane.f32.xlu0 %v5878
        %v5936 = vpop.xlane.xlu0 %5935
        %5937 = vadd.xlane.f32.xlu0 %v5879
        %v5938 = vpop.xlane.xlu0 %5937
        %5939 = vadd.xlane.f32.xlu0 %v5880
        %v5940 = vpop.xlane.xlu0 %5939
        %5941 = vadd.xlane.f32.xlu0 %v5881
        %v5942 = vpop.xlane.xlu0 %5941
        %5943 = vadd.xlane.f32.xlu0 %v5882
        %v5944 = vpop.xlane.xlu0 %5943
        %5945 = vadd.xlane.f32.xlu0 %v5883
        %v5946 = vpop.xlane.xlu0 %5945
        %5947 = vadd.xlane.f32.xlu0 %v5884
        %v5948 = vpop.xlane.xlu0 %5947
        %5949 = vadd.xlane.f32.xlu0 %v5885
        %v5950 = vpop.xlane.xlu0 %5949
        %5951 = vadd.xlane.f32.xlu0 %v5886
        %v5952 = vpop.xlane.xlu0 %5951
        %v5953 = vmul.f32 %v5890, %v561
        %v5954 = vmul.f32 %v5892, %v561
        %v5955 = vmul.f32 %v5894, %v561
        %v5956 = vmul.f32 %v5896, %v561
        %v5957 = vmul.f32 %v5898, %v561
        %v5958 = vmul.f32 %v5900, %v561
        %v5959 = vmul.f32 %v5902, %v561
        %v5960 = vmul.f32 %v5904, %v561
        %v5961 = vmul.f32 %v5906, %v561
        %v5962 = vmul.f32 %v5908, %v561
        %v5963 = vmul.f32 %v5910, %v561
        %v5964 = vmul.f32 %v5912, %v561
        %v5965 = vmul.f32 %v5914, %v561
        %v5966 = vmul.f32 %v5916, %v561
        %v5967 = vmul.f32 %v5918, %v561
        %v5968 = vmul.f32 %v5920, %v561
        %v5969 = vmul.f32 %v5922, %v561
        %v5970 = vmul.f32 %v5924, %v561
        %v5971 = vmul.f32 %v5926, %v561
        %v5972 = vmul.f32 %v5928, %v561
        %v5973 = vmul.f32 %v5930, %v561
        %v5974 = vmul.f32 %v5932, %v561
        %v5975 = vmul.f32 %v5934, %v561
        %v5976 = vmul.f32 %v5936, %v561
        %v5977 = vmul.f32 %v5938, %v561
        %v5978 = vmul.f32 %v5940, %v561
        %v5979 = vmul.f32 %v5942, %v561
        %v5980 = vmul.f32 %v5944, %v561
        %v5981 = vmul.f32 %v5946, %v561
        %v5982 = vmul.f32 %v5948, %v561
        %v5983 = vmul.f32 %v5950, %v561
        %v5984 = vmul.f32 %v5952, %v561
        %v5985 = vsub.f32 %v5855, %v5953
        %v5986 = vsub.f32 %v5856, %v5954
        %v5987 = vsub.f32 %v5857, %v5955
        %v5988 = vsub.f32 %v5858, %v5956
        %v5989 = vsub.f32 %v5859, %v5957
        %v5990 = vsub.f32 %v5860, %v5958
        %v5991 = vsub.f32 %v5861, %v5959
        %v5992 = vsub.f32 %v5862, %v5960
        %v5993 = vsub.f32 %v5863, %v5961
        %v5994 = vsub.f32 %v5864, %v5962
        %v5995 = vsub.f32 %v5865, %v5963
        %v5996 = vsub.f32 %v5866, %v5964
        %v5997 = vsub.f32 %v5867, %v5965
        %v5998 = vsub.f32 %v5868, %v5966
        %v5999 = vsub.f32 %v5869, %v5967
        %v6000 = vsub.f32 %v5870, %v5968
        %v6001 = vsub.f32 %v5871, %v5969
        %v6002 = vsub.f32 %v5872, %v5970
        %v6003 = vsub.f32 %v5873, %v5971
        %v6004 = vsub.f32 %v5874, %v5972
        %v6005 = vsub.f32 %v5875, %v5973
        %v6006 = vsub.f32 %v5876, %v5974
        %v6007 = vsub.f32 %v5877, %v5975
        %v6008 = vsub.f32 %v5878, %v5976
        %v6009 = vsub.f32 %v5879, %v5977
        %v6010 = vsub.f32 %v5880, %v5978
        %v6011 = vsub.f32 %v5881, %v5979
        %v6012 = vsub.f32 %v5882, %v5980
        %v6013 = vsub.f32 %v5883, %v5981
        %v6014 = vsub.f32 %v5884, %v5982
        %v6015 = vsub.f32 %v5885, %v5983
        %v6016 = vsub.f32 %v5886, %v5984
        %v6017 = vmul.f32 %v5985, %v5985
        %v6018 = vmul.f32 %v5986, %v5986
        %v6019 = vmul.f32 %v5987, %v5987
        %v6020 = vmul.f32 %v5988, %v5988
        %v6021 = vmul.f32 %v5989, %v5989
        %v6022 = vmul.f32 %v5990, %v5990
        %v6023 = vmul.f32 %v5991, %v5991
        %v6024 = vmul.f32 %v5992, %v5992
        %v6025 = vmul.f32 %v5993, %v5993
        %v6026 = vmul.f32 %v5994, %v5994
        %v6027 = vmul.f32 %v5995, %v5995
        %v6028 = vmul.f32 %v5996, %v5996
        %v6029 = vmul.f32 %v5997, %v5997
        %v6030 = vmul.f32 %v5998, %v5998
        %v6031 = vmul.f32 %v5999, %v5999
        %v6032 = vmul.f32 %v6000, %v6000
        %v6033 = vmul.f32 %v6001, %v6001
        %v6034 = vmul.f32 %v6002, %v6002
        %v6035 = vmul.f32 %v6003, %v6003
        %v6036 = vmul.f32 %v6004, %v6004
        %v6037 = vmul.f32 %v6005, %v6005
        %v6038 = vmul.f32 %v6006, %v6006
        %v6039 = vmul.f32 %v6007, %v6007
        %v6040 = vmul.f32 %v6008, %v6008
        %v6041 = vmul.f32 %v6009, %v6009
        %v6042 = vmul.f32 %v6010, %v6010
        %v6043 = vmul.f32 %v6011, %v6011
        %v6044 = vmul.f32 %v6012, %v6012
        %v6045 = vmul.f32 %v6013, %v6013
        %v6046 = vmul.f32 %v6014, %v6014
        %v6047 = vmul.f32 %v6015, %v6015
        %v6048 = vmul.f32 %v6016, %v6016
        %6049 = vadd.xlane.f32.xlu0 %v6017
        %v6050 = vpop.xlane.xlu0 %6049
        %6051 = vadd.xlane.f32.xlu0 %v6018
        %v6052 = vpop.xlane.xlu0 %6051
        %6053 = vadd.xlane.f32.xlu0 %v6019
        %v6054 = vpop.xlane.xlu0 %6053
        %6055 = vadd.xlane.f32.xlu0 %v6020
        %v6056 = vpop.xlane.xlu0 %6055
        %6057 = vadd.xlane.f32.xlu0 %v6021
        %v6058 = vpop.xlane.xlu0 %6057
        %6059 = vadd.xlane.f32.xlu0 %v6022
        %v6060 = vpop.xlane.xlu0 %6059
        %6061 = vadd.xlane.f32.xlu0 %v6023
        %v6062 = vpop.xlane.xlu0 %6061
        %6063 = vadd.xlane.f32.xlu0 %v6024
        %v6064 = vpop.xlane.xlu0 %6063
        %6065 = vadd.xlane.f32.xlu0 %v6025
        %v6066 = vpop.xlane.xlu0 %6065
        %6067 = vadd.xlane.f32.xlu0 %v6026
        %v6068 = vpop.xlane.xlu0 %6067
        %6069 = vadd.xlane.f32.xlu0 %v6027
        %v6070 = vpop.xlane.xlu0 %6069
        %6071 = vadd.xlane.f32.xlu0 %v6028
        %v6072 = vpop.xlane.xlu0 %6071
        %6073 = vadd.xlane.f32.xlu0 %v6029
        %v6074 = vpop.xlane.xlu0 %6073
        %6075 = vadd.xlane.f32.xlu0 %v6030
        %v6076 = vpop.xlane.xlu0 %6075
        %6077 = vadd.xlane.f32.xlu0 %v6031
        %v6078 = vpop.xlane.xlu0 %6077
        %6079 = vadd.xlane.f32.xlu0 %v6032
        %v6080 = vpop.xlane.xlu0 %6079
        %6081 = vadd.xlane.f32.xlu0 %v6033
        %v6082 = vpop.xlane.xlu0 %6081
        %6083 = vadd.xlane.f32.xlu0 %v6034
        %v6084 = vpop.xlane.xlu0 %6083
        %6085 = vadd.xlane.f32.xlu0 %v6035
        %v6086 = vpop.xlane.xlu0 %6085
        %6087 = vadd.xlane.f32.xlu0 %v6036
        %v6088 = vpop.xlane.xlu0 %6087
        %6089 = vadd.xlane.f32.xlu0 %v6037
        %v6090 = vpop.xlane.xlu0 %6089
        %6091 = vadd.xlane.f32.xlu0 %v6038
        %v6092 = vpop.xlane.xlu0 %6091
        %6093 = vadd.xlane.f32.xlu0 %v6039
        %v6094 = vpop.xlane.xlu0 %6093
        %6095 = vadd.xlane.f32.xlu0 %v6040
        %v6096 = vpop.xlane.xlu0 %6095
        %6097 = vadd.xlane.f32.xlu0 %v6041
        %v6098 = vpop.xlane.xlu0 %6097
        %6099 = vadd.xlane.f32.xlu0 %v6042
        %v6100 = vpop.xlane.xlu0 %6099
        %6101 = vadd.xlane.f32.xlu0 %v6043
        %v6102 = vpop.xlane.xlu0 %6101
        %6103 = vadd.xlane.f32.xlu0 %v6044
        %v6104 = vpop.xlane.xlu0 %6103
        %6105 = vadd.xlane.f32.xlu0 %v6045
        %v6106 = vpop.xlane.xlu0 %6105
        %6107 = vadd.xlane.f32.xlu0 %v6046
        %v6108 = vpop.xlane.xlu0 %6107
        %6109 = vadd.xlane.f32.xlu0 %v6047
        %v6110 = vpop.xlane.xlu0 %6109
        %6111 = vadd.xlane.f32.xlu0 %v6048
        %v6112 = vpop.xlane.xlu0 %6111
        %v6113 = vmul.f32 %v6050, %v561
        %v6114 = vmul.f32 %v6052, %v561
        %v6115 = vmul.f32 %v6054, %v561
        %v6116 = vmul.f32 %v6056, %v561
        %v6117 = vmul.f32 %v6058, %v561
        %v6118 = vmul.f32 %v6060, %v561
        %v6119 = vmul.f32 %v6062, %v561
        %v6120 = vmul.f32 %v6064, %v561
        %v6121 = vmul.f32 %v6066, %v561
        %v6122 = vmul.f32 %v6068, %v561
        %v6123 = vmul.f32 %v6070, %v561
        %v6124 = vmul.f32 %v6072, %v561
        %v6125 = vmul.f32 %v6074, %v561
        %v6126 = vmul.f32 %v6076, %v561
        %v6127 = vmul.f32 %v6078, %v561
        %v6128 = vmul.f32 %v6080, %v561
        %v6129 = vmul.f32 %v6082, %v561
        %v6130 = vmul.f32 %v6084, %v561
        %v6131 = vmul.f32 %v6086, %v561
        %v6132 = vmul.f32 %v6088, %v561
        %v6133 = vmul.f32 %v6090, %v561
        %v6134 = vmul.f32 %v6092, %v561
        %v6135 = vmul.f32 %v6094, %v561
        %v6136 = vmul.f32 %v6096, %v561
        %v6137 = vmul.f32 %v6098, %v561
        %v6138 = vmul.f32 %v6100, %v561
        %v6139 = vmul.f32 %v6102, %v561
        %v6140 = vmul.f32 %v6104, %v561
        %v6141 = vmul.f32 %v6106, %v561
        %v6142 = vmul.f32 %v6108, %v561
        %v6143 = vmul.f32 %v6110, %v561
        %v6144 = vmul.f32 %v6112, %v561
        %v6145 = vadd.f32 %v6113, 1e-05
        %v6146 = vadd.f32 %v6114, 1e-05
        %v6147 = vadd.f32 %v6115, 1e-05
        %v6148 = vadd.f32 %v6116, 1e-05
        %v6149 = vadd.f32 %v6117, 1e-05
        %v6150 = vadd.f32 %v6118, 1e-05
        %v6151 = vadd.f32 %v6119, 1e-05
        %v6152 = vadd.f32 %v6120, 1e-05
        %v6153 = vadd.f32 %v6121, 1e-05
        %v6154 = vadd.f32 %v6122, 1e-05
        %v6155 = vadd.f32 %v6123, 1e-05
        %v6156 = vadd.f32 %v6124, 1e-05
        %v6157 = vadd.f32 %v6125, 1e-05
        %v6158 = vadd.f32 %v6126, 1e-05
        %v6159 = vadd.f32 %v6127, 1e-05
        %v6160 = vadd.f32 %v6128, 1e-05
        %v6161 = vadd.f32 %v6129, 1e-05
        %v6162 = vadd.f32 %v6130, 1e-05
        %v6163 = vadd.f32 %v6131, 1e-05
        %v6164 = vadd.f32 %v6132, 1e-05
        %v6165 = vadd.f32 %v6133, 1e-05
        %v6166 = vadd.f32 %v6134, 1e-05
        %v6167 = vadd.f32 %v6135, 1e-05
        %v6168 = vadd.f32 %v6136, 1e-05
        %v6169 = vadd.f32 %v6137, 1e-05
        %v6170 = vadd.f32 %v6138, 1e-05
        %v6171 = vadd.f32 %v6139, 1e-05
        %v6172 = vadd.f32 %v6140, 1e-05
        %v6173 = vadd.f32 %v6141, 1e-05
        %v6174 = vadd.f32 %v6142, 1e-05
        %v6175 = vadd.f32 %v6143, 1e-05
        %v6176 = vadd.f32 %v6144, 1e-05
        %v6177 = vrsqrt.pop %v6145
        %v6178 = vrsqrt.pop %v6146
        %v6179 = vrsqrt.pop %v6147
        %v6180 = vrsqrt.pop %v6148
        %v6181 = vrsqrt.pop %v6149
        %v6182 = vrsqrt.pop %v6150
        %v6183 = vrsqrt.pop %v6151
        %v6184 = vrsqrt.pop %v6152
        %v6185 = vrsqrt.pop %v6153
        %v6186 = vrsqrt.pop %v6154
        %v6187 = vrsqrt.pop %v6155
        %v6188 = vrsqrt.pop %v6156
        %v6189 = vrsqrt.pop %v6157
        %v6190 = vrsqrt.pop %v6158
        %v6191 = vrsqrt.pop %v6159
        %v6192 = vrsqrt.pop %v6160
        %v6193 = vrsqrt.pop %v6161
        %v6194 = vrsqrt.pop %v6162
        %v6195 = vrsqrt.pop %v6163
        %v6196 = vrsqrt.pop %v6164
        %v6197 = vrsqrt.pop %v6165
        %v6198 = vrsqrt.pop %v6166
        %v6199 = vrsqrt.pop %v6167
        %v6200 = vrsqrt.pop %v6168
        %v6201 = vrsqrt.pop %v6169
        %v6202 = vrsqrt.pop %v6170
        %v6203 = vrsqrt.pop %v6171
        %v6204 = vrsqrt.pop %v6172
        %v6205 = vrsqrt.pop %v6173
        %v6206 = vrsqrt.pop %v6174
        %v6207 = vrsqrt.pop %v6175
        %v6208 = vrsqrt.pop %v6176
        %v6209 = vmul.f32 %v5985, %v6177
        %v6210 = vmul.f32 %v5986, %v6178
        %v6211 = vmul.f32 %v5987, %v6179
        %v6212 = vmul.f32 %v5988, %v6180
        %v6213 = vmul.f32 %v5989, %v6181
        %v6214 = vmul.f32 %v5990, %v6182
        %v6215 = vmul.f32 %v5991, %v6183
        %v6216 = vmul.f32 %v5992, %v6184
        %v6217 = vmul.f32 %v5993, %v6185
        %v6218 = vmul.f32 %v5994, %v6186
        %v6219 = vmul.f32 %v5995, %v6187
        %v6220 = vmul.f32 %v5996, %v6188
        %v6221 = vmul.f32 %v5997, %v6189
        %v6222 = vmul.f32 %v5998, %v6190
        %v6223 = vmul.f32 %v5999, %v6191
        %v6224 = vmul.f32 %v6000, %v6192
        %v6225 = vmul.f32 %v6001, %v6193
        %v6226 = vmul.f32 %v6002, %v6194
        %v6227 = vmul.f32 %v6003, %v6195
        %v6228 = vmul.f32 %v6004, %v6196
        %v6229 = vmul.f32 %v6005, %v6197
        %v6230 = vmul.f32 %v6006, %v6198
        %v6231 = vmul.f32 %v6007, %v6199
        %v6232 = vmul.f32 %v6008, %v6200
        %v6233 = vmul.f32 %v6009, %v6201
        %v6234 = vmul.f32 %v6010, %v6202
        %v6235 = vmul.f32 %v6011, %v6203
        %v6236 = vmul.f32 %v6012, %v6204
        %v6237 = vmul.f32 %v6013, %v6205
        %v6238 = vmul.f32 %v6014, %v6206
        %v6239 = vmul.f32 %v6015, %v6207
        %v6240 = vmul.f32 %v6016, %v6208
        %v6242 = vlaneseq
        %v6243 = vshrl.u32 %v6242, 7
        %v6244 = vsub.s32 0, %v6243
        %v6245 = vrot.slane %v5887, %v6244
        %v6247 = vmul.f32 %v6209, %v6245
        %v6248 = vmul.f32 %v6210, %v6245
        %v6249 = vmul.f32 %v6211, %v6245
        %v6250 = vmul.f32 %v6212, %v6245
        %v6251 = vmul.f32 %v6213, %v6245
        %v6252 = vmul.f32 %v6214, %v6245
        %v6253 = vmul.f32 %v6215, %v6245
        %v6254 = vmul.f32 %v6216, %v6245
        %v6255 = vmul.f32 %v6217, %v6245
        %v6256 = vmul.f32 %v6218, %v6245
        %v6257 = vmul.f32 %v6219, %v6245
        %v6258 = vmul.f32 %v6220, %v6245
        %v6259 = vmul.f32 %v6221, %v6245
        %v6260 = vmul.f32 %v6222, %v6245
        %v6261 = vmul.f32 %v6223, %v6245
        %v6262 = vmul.f32 %v6224, %v6245
        %v6263 = vmul.f32 %v6225, %v6245
        %v6264 = vmul.f32 %v6226, %v6245
        %v6265 = vmul.f32 %v6227, %v6245
        %v6266 = vmul.f32 %v6228, %v6245
        %v6267 = vmul.f32 %v6229, %v6245
        %v6268 = vmul.f32 %v6230, %v6245
        %v6269 = vmul.f32 %v6231, %v6245
        %v6270 = vmul.f32 %v6232, %v6245
        %v6271 = vmul.f32 %v6233, %v6245
        %v6272 = vmul.f32 %v6234, %v6245
        %v6273 = vmul.f32 %v6235, %v6245
        %v6274 = vmul.f32 %v6236, %v6245
        %v6275 = vmul.f32 %v6237, %v6245
        %v6276 = vmul.f32 %v6238, %v6245
        %v6277 = vmul.f32 %v6239, %v6245
        %v6278 = vmul.f32 %v6240, %v6245
        %v6280 = vlaneseq
        %v6281 = vshrl.u32 %v6280, 7
        %v6282 = vsub.s32 0, %v6281
        %v6283 = vrot.slane %v5888, %v6282
        %v6285 = vadd.f32 %v6247, %v6283
        %v6286 = vadd.f32 %v6248, %v6283
        %v6287 = vadd.f32 %v6249, %v6283
        %v6288 = vadd.f32 %v6250, %v6283
        %v6289 = vadd.f32 %v6251, %v6283
        %v6290 = vadd.f32 %v6252, %v6283
        %v6291 = vadd.f32 %v6253, %v6283
        %v6292 = vadd.f32 %v6254, %v6283
        %v6293 = vadd.f32 %v6255, %v6283
        %v6294 = vadd.f32 %v6256, %v6283
        %v6295 = vadd.f32 %v6257, %v6283
        %v6296 = vadd.f32 %v6258, %v6283
        %v6297 = vadd.f32 %v6259, %v6283
        %v6298 = vadd.f32 %v6260, %v6283
        %v6299 = vadd.f32 %v6261, %v6283
        %v6300 = vadd.f32 %v6262, %v6283
        %v6301 = vadd.f32 %v6263, %v6283
        %v6302 = vadd.f32 %v6264, %v6283
        %v6303 = vadd.f32 %v6265, %v6283
        %v6304 = vadd.f32 %v6266, %v6283
        %v6305 = vadd.f32 %v6267, %v6283
        %v6306 = vadd.f32 %v6268, %v6283
        %v6307 = vadd.f32 %v6269, %v6283
        %v6308 = vadd.f32 %v6270, %v6283
        %v6309 = vadd.f32 %v6271, %v6283
        %v6310 = vadd.f32 %v6272, %v6283
        %v6311 = vadd.f32 %v6273, %v6283
        %v6312 = vadd.f32 %v6274, %v6283
        %v6313 = vadd.f32 %v6275, %v6283
        %v6314 = vadd.f32 %v6276, %v6283
        %v6315 = vadd.f32 %v6277, %v6283
        %v6316 = vadd.f32 %v6278, %v6283
        %v6317 = vpack.c.bf16 %v6286, %v6285
        %v6318 = vpack.c.bf16 %v6288, %v6287
        %v6319 = vpack.c.bf16 %v6290, %v6289
        %v6320 = vpack.c.bf16 %v6292, %v6291
        %v6321 = vpack.c.bf16 %v6294, %v6293
        %v6322 = vpack.c.bf16 %v6296, %v6295
        %v6323 = vpack.c.bf16 %v6298, %v6297
        %v6324 = vpack.c.bf16 %v6300, %v6299
        %v6325 = vpack.c.bf16 %v6302, %v6301
        %v6326 = vpack.c.bf16 %v6304, %v6303
        %v6327 = vpack.c.bf16 %v6306, %v6305
        %v6328 = vpack.c.bf16 %v6308, %v6307
        %v6329 = vpack.c.bf16 %v6310, %v6309
        %v6330 = vpack.c.bf16 %v6312, %v6311
        %v6331 = vpack.c.bf16 %v6314, %v6313
        %v6332 = vpack.c.bf16 %v6316, %v6315
        %v6333 = vld [vmem:[%s9] sm:$0xf]
        %v6334 = vld [vmem:[%s9 + $0x10] sm:$0xf]
        %v6335 = vld [vmem:[%s9 + $0x20] sm:$0xf]
        %v6336 = vld [vmem:[%s9 + $0x30] sm:$0xf]
        %v6337 = vld [vmem:[%s9 + $0x40] sm:$0xf]
        %v6338 = vld [vmem:[%s9 + $0x50] sm:$0xf]
        %v6339 = vld [vmem:[%s9 + $0x60] sm:$0xf]
        %v6340 = vld [vmem:[%s9 + $0x70] sm:$0xf]
        %v6341 = vld [vmem:[%s9 + $0x80] sm:$0xf]
        %v6342 = vld [vmem:[%s9 + $0x90] sm:$0xf]
        %v6343 = vld [vmem:[%s9 + $0xa0] sm:$0xf]
        %v6344 = vld [vmem:[%s9 + $0xb0] sm:$0xf]
        %v6345 = vld [vmem:[%s9 + $0xc0] sm:$0xf]
        %v6346 = vld [vmem:[%s9 + $0xd0] sm:$0xf]
        %v6347 = vld [vmem:[%s9 + $0xe0] sm:$0xf]
        %v6348 = vld [vmem:[%s9 + $0xf0] sm:$0xf]
        %v6349 = vld [vmem:[%s10] sm:$0x1]
        %v6351 = vlaneseq
        %v6352 = vshrl.u32 %v6351, 7
        %v6353 = vsub.s32 0, %v6352
        %v6354 = vrot.slane %v6349, %v6353
        %v6372 = vunpack.c.l.b16 %v6333
        %v6373 = vunpack.c.l.b16 %v6334
        %v6374 = vunpack.c.l.b16 %v6335
        %v6375 = vunpack.c.l.b16 %v6336
        %v6376 = vunpack.c.l.b16 %v6337
        %v6377 = vunpack.c.l.b16 %v6338
        %v6378 = vunpack.c.l.b16 %v6339
        %v6379 = vunpack.c.l.b16 %v6340
        %v6380 = vunpack.c.l.b16 %v6341
        %v6381 = vunpack.c.l.b16 %v6342
        %v6382 = vunpack.c.l.b16 %v6343
        %v6383 = vunpack.c.l.b16 %v6344
        %v6384 = vunpack.c.l.b16 %v6345
        %v6385 = vunpack.c.l.b16 %v6346
        %v6386 = vunpack.c.l.b16 %v6347
        %v6387 = vunpack.c.l.b16 %v6348
        %v6388 = vpack.c.b16 %v6373, %v6372
        %v6389 = vpack.c.b16 %v6375, %v6374
        %v6390 = vpack.c.b16 %v6377, %v6376
        %v6391 = vpack.c.b16 %v6379, %v6378
        %v6392 = vpack.c.b16 %v6381, %v6380
        %v6393 = vpack.c.b16 %v6383, %v6382
        %v6394 = vpack.c.b16 %v6385, %v6384
        %v6395 = vpack.c.b16 %v6387, %v6386
        %6404 = vmatprep.subr.bf16.mxu0 0
        %6405 = vmatpush1.bf16.msra.mxu0 %v6388
        %6406 = vmatprep.subr.bf16.mxu0 0
        %6407 = vmatpush1.bf16.msra.mxu0 %v6389
        %6408 = vmatprep.subr.bf16.mxu0 0
        %6409 = vmatpush1.bf16.msra.mxu0 %v6390
        %6410 = vmatprep.subr.bf16.mxu0 0
        %6411 = vmatpush1.bf16.msra.mxu0 %v6391
        %6412 = vmatprep.subr.bf16.mxu0 0
        %6413 = vmatpush1.bf16.msra.mxu0 %v6392
        %6414 = vmatprep.subr.bf16.mxu0 0
        %6415 = vmatpush1.bf16.msra.mxu0 %v6393
        %6416 = vmatprep.subr.bf16.mxu0 0
        %6417 = vmatpush1.bf16.msra.mxu0 %v6394
        %6418 = vmatprep.subr.bf16.mxu0 0
        %6419 = vmatpush1.bf16.msra.mxu0 %v6395
        %6420 = vmatprep.subr.bf16.mxu0 0
        %6421 = vmatpush1.bf16.msra.mxu0 0
        %6422 = vmatprep.subr.bf16.mxu0 0
        %6423 = vmatpush1.bf16.msra.mxu0 0
        %6424 = vmatprep.subr.bf16.mxu0 0
        %6425 = vmatpush1.bf16.msra.mxu0 0
        %6426 = vmatprep.subr.bf16.mxu0 0
        %6427 = vmatpush1.bf16.msra.mxu0 0
        %6428 = vmatprep.subr.bf16.mxu0 0
        %6429 = vmatpush1.bf16.msra.mxu0 0
        %6430 = vmatprep.subr.bf16.mxu0 0
        %6431 = vmatpush1.bf16.msra.mxu0 0
        %6432 = vmatprep.subr.bf16.mxu0 0
        %6433 = vmatpush1.bf16.msra.mxu0 0
        %6434 = vmatprep.subr.bf16.mxu0 0
        %6435 = vmatpush1.bf16.msra.mxu0 0
        %6436 = vmatprep.mubr.bf16.mxu0 0
        %6437 = vmatmul.mubr.bf16.gmra.mrb[0].mxu0 %v6317
        %v6438 = vpop.f32.mrb[0].mxu0
        %v6439 = vadd.f32 %v6354, %v6438
        %v6440 = vpop.f32.mrb[0].mxu0
        %v6441 = vpop.f32.mrb[0].mxu0
        %v6442 = vadd.f32 %v6354, %v6441
        %v6443 = vpop.f32.mrb[0].mxu0
        %6444 = vmatprep.mubr.bf16.mxu0 0
        %6445 = vmatmul.mubr.bf16.gmra.mrb[0].mxu0 %v6318
        %v6446 = vpop.f32.mrb[0].mxu0
        %v6447 = vadd.f32 %v6354, %v6446
        %v6448 = vpop.f32.mrb[0].mxu0
        %v6449 = vpop.f32.mrb[0].mxu0
        %v6450 = vadd.f32 %v6354, %v6449
        %v6451 = vpop.f32.mrb[0].mxu0
        %6452 = vmatprep.mubr.bf16.mxu0 0
        %6453 = vmatmul.mubr.bf16.gmra.mrb[0].mxu0 %v6319
        %v6454 = vpop.f32.mrb[0].mxu0
        %v6455 = vadd.f32 %v6354, %v6454
        %v6456 = vpop.f32.mrb[0].mxu0
        %v6457 = vpop.f32.mrb[0].mxu0
        %v6458 = vadd.f32 %v6354, %v6457
        %v6459 = vpop.f32.mrb[0].mxu0
        %6460 = vmatprep.mubr.bf16.mxu0 0
        %6461 = vmatmul.mubr.bf16.gmra.mrb[0].mxu0 %v6320
        %v6462 = vpop.f32.mrb[0].mxu0
        %v6463 = vadd.f32 %v6354, %v6462
        %v6464 = vpop.f32.mrb[0].mxu0
        %v6465 = vpop.f32.mrb[0].mxu0
        %v6466 = vadd.f32 %v6354, %v6465
        %v6467 = vpop.f32.mrb[0].mxu0
        %6468 = vmatprep.mubr.bf16.mxu0 0
        %6469 = vmatmul.mubr.bf16.gmra.mrb[0].mxu0 %v6321
        %v6470 = vpop.f32.mrb[0].mxu0
        %v6471 = vadd.f32 %v6354, %v6470
        %v6472 = vpop.f32.mrb[0].mxu0
        %v6473 = vpop.f32.mrb[0].mxu0
        %v6474 = vadd.f32 %v6354, %v6473
        %v6475 = vpop.f32.mrb[0].mxu0
        %6476 = vmatprep.mubr.bf16.mxu0 0
        %6477 = vmatmul.mubr.bf16.gmra.mrb[0].mxu0 %v6322
        %v6478 = vpop.f32.mrb[0].mxu0
        %v6479 = vadd.f32 %v6354, %v6478
        %v6480 = vpop.f32.mrb[0].mxu0
        %v6481 = vpop.f32.mrb[0].mxu0
        %v6482 = vadd.f32 %v6354, %v6481
        %v6483 = vpop.f32.mrb[0].mxu0
        %6484 = vmatprep.mubr.bf16.mxu0 0
        %6485 = vmatmul.mubr.bf16.gmra.mrb[0].mxu0 %v6323
        %v6486 = vpop.f32.mrb[0].mxu0
        %v6487 = vadd.f32 %v6354, %v6486
        %v6488 = vpop.f32.mrb[0].mxu0
        %v6489 = vpop.f32.mrb[0].mxu0
        %v6490 = vadd.f32 %v6354, %v6489
        %v6491 = vpop.f32.mrb[0].mxu0
        %6492 = vmatprep.mubr.bf16.mxu0 0
        %6493 = vmatmul.mubr.bf16.gmra.mrb[0].mxu0 %v6324
        %v6494 = vpop.f32.mrb[0].mxu0
        %v6495 = vadd.f32 %v6354, %v6494
        %v6496 = vpop.f32.mrb[0].mxu0
        %v6497 = vpop.f32.mrb[0].mxu0
        %v6498 = vadd.f32 %v6354, %v6497
        %v6499 = vpop.f32.mrb[0].mxu0
        %6500 = vmatprep.mubr.bf16.mxu0 0
        %6501 = vmatmul.mubr.bf16.gmra.mrb[0].mxu0 %v6325
        %v6502 = vpop.f32.mrb[0].mxu0
        %v6503 = vadd.f32 %v6354, %v6502
        %v6504 = vpop.f32.mrb[0].mxu0
        %v6505 = vpop.f32.mrb[0].mxu0
        %v6506 = vadd.f32 %v6354, %v6505
        %v6507 = vpop.f32.mrb[0].mxu0
        %6508 = vmatprep.mubr.bf16.mxu0 0
        %6509 = vmatmul.mubr.bf16.gmra.mrb[0].mxu0 %v6326
        %v6510 = vpop.f32.mrb[0].mxu0
        %v6511 = vadd.f32 %v6354, %v6510
        %v6512 = vpop.f32.mrb[0].mxu0
        %v6513 = vpop.f32.mrb[0].mxu0
        %v6514 = vadd.f32 %v6354, %v6513
        %v6515 = vpop.f32.mrb[0].mxu0
        %6516 = vmatprep.mubr.bf16.mxu0 0
        %6517 = vmatmul.mubr.bf16.gmra.mrb[0].mxu0 %v6327
        %v6518 = vpop.f32.mrb[0].mxu0
        %v6519 = vadd.f32 %v6354, %v6518
        %v6520 = vpop.f32.mrb[0].mxu0
        %v6521 = vpop.f32.mrb[0].mxu0
        %v6522 = vadd.f32 %v6354, %v6521
        %v6523 = vpop.f32.mrb[0].mxu0
        %6524 = vmatprep.mubr.bf16.mxu0 0
        %6525 = vmatmul.mubr.bf16.gmra.mrb[0].mxu0 %v6328
        %v6526 = vpop.f32.mrb[0].mxu0
        %v6527 = vadd.f32 %v6354, %v6526
        %v6528 = vpop.f32.mrb[0].mxu0
        %v6529 = vpop.f32.mrb[0].mxu0
        %v6530 = vadd.f32 %v6354, %v6529
        %v6531 = vpop.f32.mrb[0].mxu0
        %6532 = vmatprep.mubr.bf16.mxu0 0
        %6533 = vmatmul.mubr.bf16.gmra.mrb[0].mxu0 %v6329
        %v6534 = vpop.f32.mrb[0].mxu0
        %v6535 = vadd.f32 %v6354, %v6534
        %v6536 = vpop.f32.mrb[0].mxu0
        %v6537 = vpop.f32.mrb[0].mxu0
        %v6538 = vadd.f32 %v6354, %v6537
        %v6539 = vpop.f32.mrb[0].mxu0
        %6540 = vmatprep.mubr.bf16.mxu0 0
        %6541 = vmatmul.mubr.bf16.gmra.mrb[0].mxu0 %v6330
        %v6542 = vpop.f32.mrb[0].mxu0
        %v6543 = vadd.f32 %v6354, %v6542
        %v6544 = vpop.f32.mrb[0].mxu0
        %v6545 = vpop.f32.mrb[0].mxu0
        %v6546 = vadd.f32 %v6354, %v6545
        %v6547 = vpop.f32.mrb[0].mxu0
        %6548 = vmatprep.mubr.bf16.mxu0 0
        %6549 = vmatmul.mubr.bf16.gmra.mrb[0].mxu0 %v6331
        %v6550 = vpop.f32.mrb[0].mxu0
        %v6551 = vadd.f32 %v6354, %v6550
        %v6552 = vpop.f32.mrb[0].mxu0
        %v6553 = vpop.f32.mrb[0].mxu0
        %v6554 = vadd.f32 %v6354, %v6553
        %v6555 = vpop.f32.mrb[0].mxu0
        %6556 = vmatprep.mubr.bf16.mxu0 0
        %6557 = vmatmul.mubr.bf16.gmra.mrb[0].mxu0 %v6332
        %v6558 = vpop.f32.mrb[0].mxu0
        %v6559 = vadd.f32 %v6354, %v6558
        %v6560 = vpop.f32.mrb[0].mxu0
        %v6561 = vpop.f32.mrb[0].mxu0
        %v6562 = vadd.f32 %v6354, %v6561
        %v6563 = vpop.f32.mrb[0].mxu0
        %6564 = vdwg.mxu0
        %v6565 = vmul.f32 %v6439, 0.5
        %v6566 = vmul.f32 %v6442, 0.5
        %v6567 = vmul.f32 %v6447, 0.5
        %v6568 = vmul.f32 %v6450, 0.5
        %v6569 = vmul.f32 %v6455, 0.5
        %v6570 = vmul.f32 %v6458, 0.5
        %v6571 = vmul.f32 %v6463, 0.5
        %v6572 = vmul.f32 %v6466, 0.5
        %v6573 = vmul.f32 %v6471, 0.5
        %v6574 = vmul.f32 %v6474, 0.5
        %v6575 = vmul.f32 %v6479, 0.5
        %v6576 = vmul.f32 %v6482, 0.5
        %v6577 = vmul.f32 %v6487, 0.5
        %v6578 = vmul.f32 %v6490, 0.5
        %v6579 = vmul.f32 %v6495, 0.5
        %v6580 = vmul.f32 %v6498, 0.5
        %v6581 = vmul.f32 %v6503, 0.5
        %v6582 = vmul.f32 %v6506, 0.5
        %v6583 = vmul.f32 %v6511, 0.5
        %v6584 = vmul.f32 %v6514, 0.5
        %v6585 = vmul.f32 %v6519, 0.5
        %v6586 = vmul.f32 %v6522, 0.5
        %v6587 = vmul.f32 %v6527, 0.5
        %v6588 = vmul.f32 %v6530, 0.5
        %v6589 = vmul.f32 %v6535, 0.5
        %v6590 = vmul.f32 %v6538, 0.5
        %v6591 = vmul.f32 %v6543, 0.5
        %v6592 = vmul.f32 %v6546, 0.5
        %v6593 = vmul.f32 %v6551, 0.5
        %v6594 = vmul.f32 %v6554, 0.5
        %v6595 = vmul.f32 %v6559, 0.5
        %v6596 = vmul.f32 %v6562, 0.5
        %v6597 = vmul.f32 %v6439, 0.044715
        %v6598 = vmul.f32 %v6442, 0.044715
        %v6599 = vmul.f32 %v6447, 0.044715
        %v6600 = vmul.f32 %v6450, 0.044715
        %v6601 = vmul.f32 %v6455, 0.044715
        %v6602 = vmul.f32 %v6458, 0.044715
        %v6603 = vmul.f32 %v6463, 0.044715
        %v6604 = vmul.f32 %v6466, 0.044715
        %v6605 = vmul.f32 %v6471, 0.044715
        %v6606 = vmul.f32 %v6474, 0.044715
        %v6607 = vmul.f32 %v6479, 0.044715
        %v6608 = vmul.f32 %v6482, 0.044715
        %v6609 = vmul.f32 %v6487, 0.044715
        %v6610 = vmul.f32 %v6490, 0.044715
        %v6611 = vmul.f32 %v6495, 0.044715
        %v6612 = vmul.f32 %v6498, 0.044715
        %v6613 = vmul.f32 %v6503, 0.044715
        %v6614 = vmul.f32 %v6506, 0.044715
        %v6615 = vmul.f32 %v6511, 0.044715
        %v6616 = vmul.f32 %v6514, 0.044715
        %v6617 = vmul.f32 %v6519, 0.044715
        %v6618 = vmul.f32 %v6522, 0.044715
        %v6619 = vmul.f32 %v6527, 0.044715
        %v6620 = vmul.f32 %v6530, 0.044715
        %v6621 = vmul.f32 %v6535, 0.044715
        %v6622 = vmul.f32 %v6538, 0.044715
        %v6623 = vmul.f32 %v6543, 0.044715
        %v6624 = vmul.f32 %v6546, 0.044715
        %v6625 = vmul.f32 %v6551, 0.044715
        %v6626 = vmul.f32 %v6554, 0.044715
        %v6627 = vmul.f32 %v6559, 0.044715
        %v6628 = vmul.f32 %v6562, 0.044715
        %v6629 = vmul.f32 %v6597, %v6439
        %v6630 = vmul.f32 %v6598, %v6442
        %v6631 = vmul.f32 %v6599, %v6447
        %v6632 = vmul.f32 %v6600, %v6450
        %v6633 = vmul.f32 %v6601, %v6455
        %v6634 = vmul.f32 %v6602, %v6458
        %v6635 = vmul.f32 %v6603, %v6463
        %v6636 = vmul.f32 %v6604, %v6466
        %v6637 = vmul.f32 %v6605, %v6471
        %v6638 = vmul.f32 %v6606, %v6474
        %v6639 = vmul.f32 %v6607, %v6479
        %v6640 = vmul.f32 %v6608, %v6482
        %v6641 = vmul.f32 %v6609, %v6487
        %v6642 = vmul.f32 %v6610, %v6490
        %v6643 = vmul.f32 %v6611, %v6495
        %v6644 = vmul.f32 %v6612, %v6498
        %v6645 = vmul.f32 %v6613, %v6503
        %v6646 = vmul.f32 %v6614, %v6506
        %v6647 = vmul.f32 %v6615, %v6511
        %v6648 = vmul.f32 %v6616, %v6514
        %v6649 = vmul.f32 %v6617, %v6519
        %v6650 = vmul.f32 %v6618, %v6522
        %v6651 = vmul.f32 %v6619, %v6527
        %v6652 = vmul.f32 %v6620, %v6530
        %v6653 = vmul.f32 %v6621, %v6535
        %v6654 = vmul.f32 %v6622, %v6538
        %v6655 = vmul.f32 %v6623, %v6543
        %v6656 = vmul.f32 %v6624, %v6546
        %v6657 = vmul.f32 %v6625, %v6551
        %v6658 = vmul.f32 %v6626, %v6554
        %v6659 = vmul.f32 %v6627, %v6559
        %v6660 = vmul.f32 %v6628, %v6562
        %v6661 = vmul.f32 %v6629, %v6439
        %v6662 = vmul.f32 %v6630, %v6442
        %v6663 = vmul.f32 %v6631, %v6447
        %v6664 = vmul.f32 %v6632, %v6450
        %v6665 = vmul.f32 %v6633, %v6455
        %v6666 = vmul.f32 %v6634, %v6458
        %v6667 = vmul.f32 %v6635, %v6463
        %v6668 = vmul.f32 %v6636, %v6466
        %v6669 = vmul.f32 %v6637, %v6471
        %v6670 = vmul.f32 %v6638, %v6474
        %v6671 = vmul.f32 %v6639, %v6479
        %v6672 = vmul.f32 %v6640, %v6482
        %v6673 = vmul.f32 %v6641, %v6487
        %v6674 = vmul.f32 %v6642, %v6490
        %v6675 = vmul.f32 %v6643, %v6495
        %v6676 = vmul.f32 %v6644, %v6498
        %v6677 = vmul.f32 %v6645, %v6503
        %v6678 = vmul.f32 %v6646, %v6506
        %v6679 = vmul.f32 %v6647, %v6511
        %v6680 = vmul.f32 %v6648, %v6514
        %v6681 = vmul.f32 %v6649, %v6519
        %v6682 = vmul.f32 %v6650, %v6522
        %v6683 = vmul.f32 %v6651, %v6527
        %v6684 = vmul.f32 %v6652, %v6530
        %v6685 = vmul.f32 %v6653, %v6535
        %v6686 = vmul.f32 %v6654, %v6538
        %v6687 = vmul.f32 %v6655, %v6543
        %v6688 = vmul.f32 %v6656, %v6546
        %v6689 = vmul.f32 %v6657, %v6551
        %v6690 = vmul.f32 %v6658, %v6554
        %v6691 = vmul.f32 %v6659, %v6559
        %v6692 = vmul.f32 %v6660, %v6562
        %v6693 = vadd.f32 %v6439, %v6661
        %v6694 = vadd.f32 %v6442, %v6662
        %v6695 = vadd.f32 %v6447, %v6663
        %v6696 = vadd.f32 %v6450, %v6664
        %v6697 = vadd.f32 %v6455, %v6665
        %v6698 = vadd.f32 %v6458, %v6666
        %v6699 = vadd.f32 %v6463, %v6667
        %v6700 = vadd.f32 %v6466, %v6668
        %v6701 = vadd.f32 %v6471, %v6669
        %v6702 = vadd.f32 %v6474, %v6670
        %v6703 = vadd.f32 %v6479, %v6671
        %v6704 = vadd.f32 %v6482, %v6672
        %v6705 = vadd.f32 %v6487, %v6673
        %v6706 = vadd.f32 %v6490, %v6674
        %v6707 = vadd.f32 %v6495, %v6675
        %v6708 = vadd.f32 %v6498, %v6676
        %v6709 = vadd.f32 %v6503, %v6677
        %v6710 = vadd.f32 %v6506, %v6678
        %v6711 = vadd.f32 %v6511, %v6679
        %v6712 = vadd.f32 %v6514, %v6680
        %v6713 = vadd.f32 %v6519, %v6681
        %v6714 = vadd.f32 %v6522, %v6682
        %v6715 = vadd.f32 %v6527, %v6683
        %v6716 = vadd.f32 %v6530, %v6684
        %v6717 = vadd.f32 %v6535, %v6685
        %v6718 = vadd.f32 %v6538, %v6686
        %v6719 = vadd.f32 %v6543, %v6687
        %v6720 = vadd.f32 %v6546, %v6688
        %v6721 = vadd.f32 %v6551, %v6689
        %v6722 = vadd.f32 %v6554, %v6690
        %v6723 = vadd.f32 %v6559, %v6691
        %v6724 = vadd.f32 %v6562, %v6692
        %v6725 = vmul.f32 %v6693, 0.7978846
        %v6726 = vmul.f32 %v6694, 0.7978846
        %v6727 = vmul.f32 %v6695, 0.7978846
        %v6728 = vmul.f32 %v6696, 0.7978846
        %v6729 = vmul.f32 %v6697, 0.7978846
        %v6730 = vmul.f32 %v6698, 0.7978846
        %v6731 = vmul.f32 %v6699, 0.7978846
        %v6732 = vmul.f32 %v6700, 0.7978846
        %v6733 = vmul.f32 %v6701, 0.7978846
        %v6734 = vmul.f32 %v6702, 0.7978846
        %v6735 = vmul.f32 %v6703, 0.7978846
        %v6736 = vmul.f32 %v6704, 0.7978846
        %v6737 = vmul.f32 %v6705, 0.7978846
        %v6738 = vmul.f32 %v6706, 0.7978846
        %v6739 = vmul.f32 %v6707, 0.7978846
        %v6740 = vmul.f32 %v6708, 0.7978846
        %v6741 = vmul.f32 %v6709, 0.7978846
        %v6742 = vmul.f32 %v6710, 0.7978846
        %v6743 = vmul.f32 %v6711, 0.7978846
        %v6744 = vmul.f32 %v6712, 0.7978846
        %v6745 = vmul.f32 %v6713, 0.7978846
        %v6746 = vmul.f32 %v6714, 0.7978846
        %v6747 = vmul.f32 %v6715, 0.7978846
        %v6748 = vmul.f32 %v6716, 0.7978846
        %v6749 = vmul.f32 %v6717, 0.7978846
        %v6750 = vmul.f32 %v6718, 0.7978846
        %v6751 = vmul.f32 %v6719, 0.7978846
        %v6752 = vmul.f32 %v6720, 0.7978846
        %v6753 = vmul.f32 %v6721, 0.7978846
        %v6754 = vmul.f32 %v6722, 0.7978846
        %v6755 = vmul.f32 %v6723, 0.7978846
        %v6756 = vmul.f32 %v6724, 0.7978846
        %v6757 = vtanh.pop %v6725
        %v6758 = vtanh.pop %v6726
        %v6759 = vtanh.pop %v6727
        %v6760 = vtanh.pop %v6728
        %v6761 = vtanh.pop %v6729
        %v6762 = vtanh.pop %v6730
        %v6763 = vtanh.pop %v6731
        %v6764 = vtanh.pop %v6732
        %v6765 = vtanh.pop %v6733
        %v6766 = vtanh.pop %v6734
        %v6767 = vtanh.pop %v6735
        %v6768 = vtanh.pop %v6736
        %v6769 = vtanh.pop %v6737
        %v6770 = vtanh.pop %v6738
        %v6771 = vtanh.pop %v6739
        %v6772 = vtanh.pop %v6740
        %v6773 = vtanh.pop %v6741
        %v6774 = vtanh.pop %v6742
        %v6775 = vtanh.pop %v6743
        %v6776 = vtanh.pop %v6744
        %v6777 = vtanh.pop %v6745
        %v6778 = vtanh.pop %v6746
        %v6779 = vtanh.pop %v6747
        %v6780 = vtanh.pop %v6748
        %v6781 = vtanh.pop %v6749
        %v6782 = vtanh.pop %v6750
        %v6783 = vtanh.pop %v6751
        %v6784 = vtanh.pop %v6752
        %v6785 = vtanh.pop %v6753
        %v6786 = vtanh.pop %v6754
        %v6787 = vtanh.pop %v6755
        %v6788 = vtanh.pop %v6756
        %v6789 = vadd.f32 %v6757, 1.0
        %v6790 = vadd.f32 %v6758, 1.0
        %v6791 = vadd.f32 %v6759, 1.0
        %v6792 = vadd.f32 %v6760, 1.0
        %v6793 = vadd.f32 %v6761, 1.0
        %v6794 = vadd.f32 %v6762, 1.0
        %v6795 = vadd.f32 %v6763, 1.0
        %v6796 = vadd.f32 %v6764, 1.0
        %v6797 = vadd.f32 %v6765, 1.0
        %v6798 = vadd.f32 %v6766, 1.0
        %v6799 = vadd.f32 %v6767, 1.0
        %v6800 = vadd.f32 %v6768, 1.0
        %v6801 = vadd.f32 %v6769, 1.0
        %v6802 = vadd.f32 %v6770, 1.0
        %v6803 = vadd.f32 %v6771, 1.0
        %v6804 = vadd.f32 %v6772, 1.0
        %v6805 = vadd.f32 %v6773, 1.0
        %v6806 = vadd.f32 %v6774, 1.0
        %v6807 = vadd.f32 %v6775, 1.0
        %v6808 = vadd.f32 %v6776, 1.0
        %v6809 = vadd.f32 %v6777, 1.0
        %v6810 = vadd.f32 %v6778, 1.0
        %v6811 = vadd.f32 %v6779, 1.0
        %v6812 = vadd.f32 %v6780, 1.0
        %v6813 = vadd.f32 %v6781, 1.0
        %v6814 = vadd.f32 %v6782, 1.0
        %v6815 = vadd.f32 %v6783, 1.0
        %v6816 = vadd.f32 %v6784, 1.0
        %v6817 = vadd.f32 %v6785, 1.0
        %v6818 = vadd.f32 %v6786, 1.0
        %v6819 = vadd.f32 %v6787, 1.0
        %v6820 = vadd.f32 %v6788, 1.0
        %v6821 = vmul.f32 %v6565, %v6789
        %v6822 = vmul.f32 %v6566, %v6790
        %v6823 = vmul.f32 %v6567, %v6791
        %v6824 = vmul.f32 %v6568, %v6792
        %v6825 = vmul.f32 %v6569, %v6793
        %v6826 = vmul.f32 %v6570, %v6794
        %v6827 = vmul.f32 %v6571, %v6795
        %v6828 = vmul.f32 %v6572, %v6796
        %v6829 = vmul.f32 %v6573, %v6797
        %v6830 = vmul.f32 %v6574, %v6798
        %v6831 = vmul.f32 %v6575, %v6799
        %v6832 = vmul.f32 %v6576, %v6800
        %v6833 = vmul.f32 %v6577, %v6801
        %v6834 = vmul.f32 %v6578, %v6802
        %v6835 = vmul.f32 %v6579, %v6803
        %v6836 = vmul.f32 %v6580, %v6804
        %v6837 = vmul.f32 %v6581, %v6805
        %v6838 = vmul.f32 %v6582, %v6806
        %v6839 = vmul.f32 %v6583, %v6807
        %v6840 = vmul.f32 %v6584, %v6808
        %v6841 = vmul.f32 %v6585, %v6809
        %v6842 = vmul.f32 %v6586, %v6810
        %v6843 = vmul.f32 %v6587, %v6811
        %v6844 = vmul.f32 %v6588, %v6812
        %v6845 = vmul.f32 %v6589, %v6813
        %v6846 = vmul.f32 %v6590, %v6814
        %v6847 = vmul.f32 %v6591, %v6815
        %v6848 = vmul.f32 %v6592, %v6816
        %v6849 = vmul.f32 %v6593, %v6817
        %v6850 = vmul.f32 %v6594, %v6818
        %v6851 = vmul.f32 %v6595, %v6819
        %v6852 = vmul.f32 %v6596, %v6820
        %v6853 = vpack.c.bf16 %v6822, %v6821
        %v6854 = vpack.c.bf16 %v6824, %v6823
        %v6855 = vpack.c.bf16 %v6826, %v6825
        %v6856 = vpack.c.bf16 %v6828, %v6827
        %v6857 = vpack.c.bf16 %v6830, %v6829
        %v6858 = vpack.c.bf16 %v6832, %v6831
        %v6859 = vpack.c.bf16 %v6834, %v6833
        %v6860 = vpack.c.bf16 %v6836, %v6835
        %v6861 = vpack.c.bf16 %v6838, %v6837
        %v6862 = vpack.c.bf16 %v6840, %v6839
        %v6863 = vpack.c.bf16 %v6842, %v6841
        %v6864 = vpack.c.bf16 %v6844, %v6843
        %v6865 = vpack.c.bf16 %v6846, %v6845
        %v6866 = vpack.c.bf16 %v6848, %v6847
        %v6867 = vpack.c.bf16 %v6850, %v6849
        %v6868 = vpack.c.bf16 %v6852, %v6851
        %v6869 = vld [vmem:[%s11] sm:$0xf]
        %v6870 = vld [vmem:[%s11 + $0x4] sm:$0xf]
        %v6871 = vld [vmem:[%s11 + $0x8] sm:$0xf]
        %v6872 = vld [vmem:[%s11 + $0xc] sm:$0xf]
        %v6873 = vld [vmem:[%s11 + $0x10] sm:$0xf]
        %v6874 = vld [vmem:[%s11 + $0x14] sm:$0xf]
        %v6875 = vld [vmem:[%s11 + $0x18] sm:$0xf]
        %v6876 = vld [vmem:[%s11 + $0x1c] sm:$0xf]
        %v6877 = vld [vmem:[%s11 + $0x20] sm:$0xf]
        %v6878 = vld [vmem:[%s11 + $0x24] sm:$0xf]
        %v6879 = vld [vmem:[%s11 + $0x28] sm:$0xf]
        %v6880 = vld [vmem:[%s11 + $0x2c] sm:$0xf]
        %v6881 = vld [vmem:[%s11 + $0x30] sm:$0xf]
        %v6882 = vld [vmem:[%s11 + $0x34] sm:$0xf]
        %v6883 = vld [vmem:[%s11 + $0x38] sm:$0xf]
        %v6884 = vld [vmem:[%s11 + $0x3c] sm:$0xf]
        %v6885 = vld [vmem:[%s9 + $0x4] sm:$0xf]
        %v6886 = vld [vmem:[%s9 + $0x14] sm:$0xf]
        %v6887 = vld [vmem:[%s9 + $0x24] sm:$0xf]
        %v6888 = vld [vmem:[%s9 + $0x34] sm:$0xf]
        %v6889 = vld [vmem:[%s9 + $0x44] sm:$0xf]
        %v6890 = vld [vmem:[%s9 + $0x54] sm:$0xf]
        %v6891 = vld [vmem:[%s9 + $0x64] sm:$0xf]
        %v6892 = vld [vmem:[%s9 + $0x74] sm:$0xf]
        %v6893 = vld [vmem:[%s9 + $0x84] sm:$0xf]
        %v6894 = vld [vmem:[%s9 + $0x94] sm:$0xf]
        %v6895 = vld [vmem:[%s9 + $0xa4] sm:$0xf]
        %v6896 = vld [vmem:[%s9 + $0xb4] sm:$0xf]
        %v6897 = vld [vmem:[%s9 + $0xc4] sm:$0xf]
        %v6898 = vld [vmem:[%s9 + $0xd4] sm:$0xf]
        %v6899 = vld [vmem:[%s9 + $0xe4] sm:$0xf]
        %v6900 = vld [vmem:[%s9 + $0xf4] sm:$0xf]
        %v6901 = vld [vmem:[%s10 + $0x1] sm:$0x1]
        %v6903 = vlaneseq
        %v6904 = vshrl.u32 %v6903, 7
        %v6905 = vsub.s32 0, %v6904
        %v6906 = vrot.slane %v6901, %v6905
        %v6924 = vunpack.c.l.b16 %v6885
        %v6925 = vunpack.c.l.b16 %v6886
        %v6926 = vunpack.c.l.b16 %v6887
        %v6927 = vunpack.c.l.b16 %v6888
        %v6928 = vunpack.c.l.b16 %v6889
        %v6929 = vunpack.c.l.b16 %v6890
        %v6930 = vunpack.c.l.b16 %v6891
        %v6931 = vunpack.c.l.b16 %v6892
        %v6932 = vunpack.c.l.b16 %v6893
        %v6933 = vunpack.c.l.b16 %v6894
        %v6934 = vunpack.c.l.b16 %v6895
        %v6935 = vunpack.c.l.b16 %v6896
        %v6936 = vunpack.c.l.b16 %v6897
        %v6937 = vunpack.c.l.b16 %v6898
        %v6938 = vunpack.c.l.b16 %v6899
        %v6939 = vunpack.c.l.b16 %v6900
        %v6940 = vpack.c.b16 %v6925, %v6924
        %v6941 = vpack.c.b16 %v6927, %v6926
        %v6942 = vpack.c.b16 %v6929, %v6928
        %v6943 = vpack.c.b16 %v6931, %v6930
        %v6944 = vpack.c.b16 %v6933, %v6932
        %v6945 = vpack.c.b16 %v6935, %v6934
        %v6946 = vpack.c.b16 %v6937, %v6936
        %v6947 = vpack.c.b16 %v6939, %v6938
        %6956 = vmatprep.subr.bf16.mxu0 0
        %6957 = vmatpush1.bf16.msra.mxu0 %v6940
        %6958 = vmatprep.subr.bf16.mxu0 0
        %6959 = vmatpush1.bf16.msra.mxu0 %v6941
        %6960 = vmatprep.subr.bf16.mxu0 0
        %6961 = vmatpush1.bf16.msra.mxu0 %v6942
        %6962 = vmatprep.subr.bf16.mxu0 0
        %6963 = vmatpush1.bf16.msra.mxu0 %v6943
        %6964 = vmatprep.subr.bf16.mxu0 0
        %6965 = vmatpush1.bf16.msra.mxu0 %v6944
        %6966 = vmatprep.subr.bf16.mxu0 0
        %6967 = vmatpush1.bf16.msra.mxu0 %v6945
        %6968 = vmatprep.subr.bf16.mxu0 0
        %6969 = vmatpush1.bf16.msra.mxu0 %v6946
        %6970 = vmatprep.subr.bf16.mxu0 0
        %6971 = vmatpush1.bf16.msra.mxu0 %v6947
        %6972 = vmatprep.subr.bf16.mxu0 0
        %6973 = vmatpush1.bf16.msra.mxu0 0
        %6974 = vmatprep.subr.bf16.mxu0 0
        %6975 = vmatpush1.bf16.msra.mxu0 0
        %6976 = vmatprep.subr.bf16.mxu0 0
        %6977 = vmatpush1.bf16.msra.mxu0 0
        %6978 = vmatprep.subr.bf16.mxu0 0
        %6979 = vmatpush1.bf16.msra.mxu0 0
        %6980 = vmatprep.subr.bf16.mxu0 0
        %6981 = vmatpush1.bf16.msra.mxu0 0
        %6982 = vmatprep.subr.bf16.mxu0 0
        %6983 = vmatpush1.bf16.msra.mxu0 0
        %6984 = vmatprep.subr.bf16.mxu0 0
        %6985 = vmatpush1.bf16.msra.mxu0 0
        %6986 = vmatprep.subr.bf16.mxu0 0
        %6987 = vmatpush1.bf16.msra.mxu0 0
        %6988 = vmatprep.mubr.bf16.mxu0 0
        %6989 = vmatmul.mubr.bf16.gmra.mrb[0].mxu0 %v6317
        %v6990 = vpop.f32.mrb[0].mxu0
        %v6991 = vadd.f32 %v6906, %v6990
        %v6992 = vpop.f32.mrb[0].mxu0
        %v6993 = vpop.f32.mrb[0].mxu0
        %v6994 = vadd.f32 %v6906, %v6993
        %v6995 = vpop.f32.mrb[0].mxu0
        %6996 = vmatprep.mubr.bf16.mxu0 0
        %6997 = vmatmul.mubr.bf16.gmra.mrb[0].mxu0 %v6318
        %v6998 = vpop.f32.mrb[0].mxu0
        %v6999 = vadd.f32 %v6906, %v6998
        %v7000 = vpop.f32.mrb[0].mxu0
        %v7001 = vpop.f32.mrb[0].mxu0
        %v7002 = vadd.f32 %v6906, %v7001
        %v7003 = vpop.f32.mrb[0].mxu0
        %7004 = vmatprep.mubr.bf16.mxu0 0
        %7005 = vmatmul.mubr.bf16.gmra.mrb[0].mxu0 %v6319
        %v7006 = vpop.f32.mrb[0].mxu0
        %v7007 = vadd.f32 %v6906, %v7006
        %v7008 = vpop.f32.mrb[0].mxu0
        %v7009 = vpop.f32.mrb[0].mxu0
        %v7010 = vadd.f32 %v6906, %v7009
        %v7011 = vpop.f32.mrb[0].mxu0
        %7012 = vmatprep.mubr.bf16.mxu0 0
        %7013 = vmatmul.mubr.bf16.gmra.mrb[0].mxu0 %v6320
        %v7014 = vpop.f32.mrb[0].mxu0
        %v7015 = vadd.f32 %v6906, %v7014
        %v7016 = vpop.f32.mrb[0].mxu0
        %v7017 = vpop.f32.mrb[0].mxu0
        %v7018 = vadd.f32 %v6906, %v7017
        %v7019 = vpop.f32.mrb[0].mxu0
        %7020 = vmatprep.mubr.bf16.mxu0 0
        %7021 = vmatmul.mubr.bf16.gmra.mrb[0].mxu0 %v6321
        %v7022 = vpop.f32.mrb[0].mxu0
        %v7023 = vadd.f32 %v6906, %v7022
        %v7024 = vpop.f32.mrb[0].mxu0
        %v7025 = vpop.f32.mrb[0].mxu0
        %v7026 = vadd.f32 %v6906, %v7025
        %v7027 = vpop.f32.mrb[0].mxu0
        %7028 = vmatprep.mubr.bf16.mxu0 0
        %7029 = vmatmul.mubr.bf16.gmra.mrb[0].mxu0 %v6322
        %v7030 = vpop.f32.mrb[0].mxu0
        %v7031 = vadd.f32 %v6906, %v7030
        %v7032 = vpop.f32.mrb[0].mxu0
        %v7033 = vpop.f32.mrb[0].mxu0
        %v7034 = vadd.f32 %v6906, %v7033
        %v7035 = vpop.f32.mrb[0].mxu0
        %7036 = vmatprep.mubr.bf16.mxu0 0
        %7037 = vmatmul.mubr.bf16.gmra.mrb[0].mxu0 %v6323
        %v7038 = vpop.f32.mrb[0].mxu0
        %v7039 = vadd.f32 %v6906, %v7038
        %v7040 = vpop.f32.mrb[0].mxu0
        %v7041 = vpop.f32.mrb[0].mxu0
        %v7042 = vadd.f32 %v6906, %v7041
        %v7043 = vpop.f32.mrb[0].mxu0
        %7044 = vmatprep.mubr.bf16.mxu0 0
        %7045 = vmatmul.mubr.bf16.gmra.mrb[0].mxu0 %v6324
        %v7046 = vpop.f32.mrb[0].mxu0
        %v7047 = vadd.f32 %v6906, %v7046
        %v7048 = vpop.f32.mrb[0].mxu0
        %v7049 = vpop.f32.mrb[0].mxu0
        %v7050 = vadd.f32 %v6906, %v7049
        %v7051 = vpop.f32.mrb[0].mxu0
        %7052 = vmatprep.mubr.bf16.mxu0 0
        %7053 = vmatmul.mubr.bf16.gmra.mrb[0].mxu0 %v6325
        %v7054 = vpop.f32.mrb[0].mxu0
        %v7055 = vadd.f32 %v6906, %v7054
        %v7056 = vpop.f32.mrb[0].mxu0
        %v7057 = vpop.f32.mrb[0].mxu0
        %v7058 = vadd.f32 %v6906, %v7057
        %v7059 = vpop.f32.mrb[0].mxu0
        %7060 = vmatprep.mubr.bf16.mxu0 0
        %7061 = vmatmul.mubr.bf16.gmra.mrb[0].mxu0 %v6326
        %v7062 = vpop.f32.mrb[0].mxu0
        %v7063 = vadd.f32 %v6906, %v7062
        %v7064 = vpop.f32.mrb[0].mxu0
        %v7065 = vpop.f32.mrb[0].mxu0
        %v7066 = vadd.f32 %v6906, %v7065
        %v7067 = vpop.f32.mrb[0].mxu0
        %7068 = vmatprep.mubr.bf16.mxu0 0
        %7069 = vmatmul.mubr.bf16.gmra.mrb[0].mxu0 %v6327
        %v7070 = vpop.f32.mrb[0].mxu0
        %v7071 = vadd.f32 %v6906, %v7070
        %v7072 = vpop.f32.mrb[0].mxu0
        %v7073 = vpop.f32.mrb[0].mxu0
        %v7074 = vadd.f32 %v6906, %v7073
        %v7075 = vpop.f32.mrb[0].mxu0
        %7076 = vmatprep.mubr.bf16.mxu0 0
        %7077 = vmatmul.mubr.bf16.gmra.mrb[0].mxu0 %v6328
        %v7078 = vpop.f32.mrb[0].mxu0
        %v7079 = vadd.f32 %v6906, %v7078
        %v7080 = vpop.f32.mrb[0].mxu0
        %v7081 = vpop.f32.mrb[0].mxu0
        %v7082 = vadd.f32 %v6906, %v7081
        %v7083 = vpop.f32.mrb[0].mxu0
        %7084 = vmatprep.mubr.bf16.mxu0 0
        %7085 = vmatmul.mubr.bf16.gmra.mrb[0].mxu0 %v6329
        %v7086 = vpop.f32.mrb[0].mxu0
        %v7087 = vadd.f32 %v6906, %v7086
        %v7088 = vpop.f32.mrb[0].mxu0
        %v7089 = vpop.f32.mrb[0].mxu0
        %v7090 = vadd.f32 %v6906, %v7089
        %v7091 = vpop.f32.mrb[0].mxu0
        %7092 = vmatprep.mubr.bf16.mxu0 0
        %7093 = vmatmul.mubr.bf16.gmra.mrb[0].mxu0 %v6330
        %v7094 = vpop.f32.mrb[0].mxu0
        %v7095 = vadd.f32 %v6906, %v7094
        %v7096 = vpop.f32.mrb[0].mxu0
        %v7097 = vpop.f32.mrb[0].mxu0
        %v7098 = vadd.f32 %v6906, %v7097
        %v7099 = vpop.f32.mrb[0].mxu0
        %7100 = vmatprep.mubr.bf16.mxu0 0
        %7101 = vmatmul.mubr.bf16.gmra.mrb[0].mxu0 %v6331
        %v7102 = vpop.f32.mrb[0].mxu0
        %v7103 = vadd.f32 %v6906, %v7102
        %v7104 = vpop.f32.mrb[0].mxu0
        %v7105 = vpop.f32.mrb[0].mxu0
        %v7106 = vadd.f32 %v6906, %v7105
        %v7107 = vpop.f32.mrb[0].mxu0
        %7108 = vmatprep.mubr.bf16.mxu0 0
        %7109 = vmatmul.mubr.bf16.gmra.mrb[0].mxu0 %v6332
        %v7110 = vpop.f32.mrb[0].mxu0
        %v7111 = vadd.f32 %v6906, %v7110
        %v7112 = vpop.f32.mrb[0].mxu0
        %v7113 = vpop.f32.mrb[0].mxu0
        %v7114 = vadd.f32 %v6906, %v7113
        %v7115 = vpop.f32.mrb[0].mxu0
        %7116 = vdwg.mxu0
        %v7117 = vmul.f32 %v6991, 0.5
        %v7118 = vmul.f32 %v6994, 0.5
        %v7119 = vmul.f32 %v6999, 0.5
        %v7120 = vmul.f32 %v7002, 0.5
        %v7121 = vmul.f32 %v7007, 0.5
        %v7122 = vmul.f32 %v7010, 0.5
        %v7123 = vmul.f32 %v7015, 0.5
        %v7124 = vmul.f32 %v7018, 0.5
        %v7125 = vmul.f32 %v7023, 0.5
        %v7126 = vmul.f32 %v7026, 0.5
        %v7127 = vmul.f32 %v7031, 0.5
        %v7128 = vmul.f32 %v7034, 0.5
        %v7129 = vmul.f32 %v7039, 0.5
        %v7130 = vmul.f32 %v7042, 0.5
        %v7131 = vmul.f32 %v7047, 0.5
        %v7132 = vmul.f32 %v7050, 0.5
        %v7133 = vmul.f32 %v7055, 0.5
        %v7134 = vmul.f32 %v7058, 0.5
        %v7135 = vmul.f32 %v7063, 0.5
        %v7136 = vmul.f32 %v7066, 0.5
        %v7137 = vmul.f32 %v7071, 0.5
        %v7138 = vmul.f32 %v7074, 0.5
        %v7139 = vmul.f32 %v7079, 0.5
        %v7140 = vmul.f32 %v7082, 0.5
        %v7141 = vmul.f32 %v7087, 0.5
        %v7142 = vmul.f32 %v7090, 0.5
        %v7143 = vmul.f32 %v7095, 0.5
        %v7144 = vmul.f32 %v7098, 0.5
        %v7145 = vmul.f32 %v7103, 0.5
        %v7146 = vmul.f32 %v7106, 0.5
        %v7147 = vmul.f32 %v7111, 0.5
        %v7148 = vmul.f32 %v7114, 0.5
        %v7149 = vmul.f32 %v6991, 0.044715
        %v7150 = vmul.f32 %v6994, 0.044715
        %v7151 = vmul.f32 %v6999, 0.044715
        %v7152 = vmul.f32 %v7002, 0.044715
        %v7153 = vmul.f32 %v7007, 0.044715
        %v7154 = vmul.f32 %v7010, 0.044715
        %v7155 = vmul.f32 %v7015, 0.044715
        %v7156 = vmul.f32 %v7018, 0.044715
        %v7157 = vmul.f32 %v7023, 0.044715
        %v7158 = vmul.f32 %v7026, 0.044715
        %v7159 = vmul.f32 %v7031, 0.044715
        %v7160 = vmul.f32 %v7034, 0.044715
        %v7161 = vmul.f32 %v7039, 0.044715
        %v7162 = vmul.f32 %v7042, 0.044715
        %v7163 = vmul.f32 %v7047, 0.044715
        %v7164 = vmul.f32 %v7050, 0.044715
        %v7165 = vmul.f32 %v7055, 0.044715
        %v7166 = vmul.f32 %v7058, 0.044715
        %v7167 = vmul.f32 %v7063, 0.044715
        %v7168 = vmul.f32 %v7066, 0.044715
        %v7169 = vmul.f32 %v7071, 0.044715
        %v7170 = vmul.f32 %v7074, 0.044715
        %v7171 = vmul.f32 %v7079, 0.044715
        %v7172 = vmul.f32 %v7082, 0.044715
        %v7173 = vmul.f32 %v7087, 0.044715
        %v7174 = vmul.f32 %v7090, 0.044715
        %v7175 = vmul.f32 %v7095, 0.044715
        %v7176 = vmul.f32 %v7098, 0.044715
        %v7177 = vmul.f32 %v7103, 0.044715
        %v7178 = vmul.f32 %v7106, 0.044715
        %v7179 = vmul.f32 %v7111, 0.044715
        %v7180 = vmul.f32 %v7114, 0.044715
        %v7181 = vmul.f32 %v7149, %v6991
        %v7182 = vmul.f32 %v7150, %v6994
        %v7183 = vmul.f32 %v7151, %v6999
        %v7184 = vmul.f32 %v7152, %v7002
        %v7185 = vmul.f32 %v7153, %v7007
        %v7186 = vmul.f32 %v7154, %v7010
        %v7187 = vmul.f32 %v7155, %v7015
        %v7188 = vmul.f32 %v7156, %v7018
        %v7189 = vmul.f32 %v7157, %v7023
        %v7190 = vmul.f32 %v7158, %v7026
        %v7191 = vmul.f32 %v7159, %v7031
        %v7192 = vmul.f32 %v7160, %v7034
        %v7193 = vmul.f32 %v7161, %v7039
        %v7194 = vmul.f32 %v7162, %v7042
        %v7195 = vmul.f32 %v7163, %v7047
        %v7196 = vmul.f32 %v7164, %v7050
        %v7197 = vmul.f32 %v7165, %v7055
        %v7198 = vmul.f32 %v7166, %v7058
        %v7199 = vmul.f32 %v7167, %v7063
        %v7200 = vmul.f32 %v7168, %v7066
        %v7201 = vmul.f32 %v7169, %v7071
        %v7202 = vmul.f32 %v7170, %v7074
        %v7203 = vmul.f32 %v7171, %v7079
        %v7204 = vmul.f32 %v7172, %v7082
        %v7205 = vmul.f32 %v7173, %v7087
        %v7206 = vmul.f32 %v7174, %v7090
        %v7207 = vmul.f32 %v7175, %v7095
        %v7208 = vmul.f32 %v7176, %v7098
        %v7209 = vmul.f32 %v7177, %v7103
        %v7210 = vmul.f32 %v7178, %v7106
        %v7211 = vmul.f32 %v7179, %v7111
        %v7212 = vmul.f32 %v7180, %v7114
        %v7213 = vmul.f32 %v7181, %v6991
        %v7214 = vmul.f32 %v7182, %v6994
        %v7215 = vmul.f32 %v7183, %v6999
        %v7216 = vmul.f32 %v7184, %v7002
        %v7217 = vmul.f32 %v7185, %v7007
        %v7218 = vmul.f32 %v7186, %v7010
        %v7219 = vmul.f32 %v7187, %v7015
        %v7220 = vmul.f32 %v7188, %v7018
        %v7221 = vmul.f32 %v7189, %v7023
        %v7222 = vmul.f32 %v7190, %v7026
        %v7223 = vmul.f32 %v7191, %v7031
        %v7224 = vmul.f32 %v7192, %v7034
        %v7225 = vmul.f32 %v7193, %v7039
        %v7226 = vmul.f32 %v7194, %v7042
        %v7227 = vmul.f32 %v7195, %v7047
        %v7228 = vmul.f32 %v7196, %v7050
        %v7229 = vmul.f32 %v7197, %v7055
        %v7230 = vmul.f32 %v7198, %v7058
        %v7231 = vmul.f32 %v7199, %v7063
        %v7232 = vmul.f32 %v7200, %v7066
        %v7233 = vmul.f32 %v7201, %v7071
        %v7234 = vmul.f32 %v7202, %v7074
        %v7235 = vmul.f32 %v7203, %v7079
        %v7236 = vmul.f32 %v7204, %v7082
        %v7237 = vmul.f32 %v7205, %v7087
        %v7238 = vmul.f32 %v7206, %v7090
        %v7239 = vmul.f32 %v7207, %v7095
        %v7240 = vmul.f32 %v7208, %v7098
        %v7241 = vmul.f32 %v7209, %v7103
        %v7242 = vmul.f32 %v7210, %v7106
        %v7243 = vmul.f32 %v7211, %v7111
        %v7244 = vmul.f32 %v7212, %v7114
        %v7245 = vadd.f32 %v6991, %v7213
        %v7246 = vadd.f32 %v6994, %v7214
        %v7247 = vadd.f32 %v6999, %v7215
        %v7248 = vadd.f32 %v7002, %v7216
        %v7249 = vadd.f32 %v7007, %v7217
        %v7250 = vadd.f32 %v7010, %v7218
        %v7251 = vadd.f32 %v7015, %v7219
        %v7252 = vadd.f32 %v7018, %v7220
        %v7253 = vadd.f32 %v7023, %v7221
        %v7254 = vadd.f32 %v7026, %v7222
        %v7255 = vadd.f32 %v7031, %v7223
        %v7256 = vadd.f32 %v7034, %v7224
        %v7257 = vadd.f32 %v7039, %v7225
        %v7258 = vadd.f32 %v7042, %v7226
        %v7259 = vadd.f32 %v7047, %v7227
        %v7260 = vadd.f32 %v7050, %v7228
        %v7261 = vadd.f32 %v7055, %v7229
        %v7262 = vadd.f32 %v7058, %v7230
        %v7263 = vadd.f32 %v7063, %v7231
        %v7264 = vadd.f32 %v7066, %v7232
        %v7265 = vadd.f32 %v7071, %v7233
        %v7266 = vadd.f32 %v7074, %v7234
        %v7267 = vadd.f32 %v7079, %v7235
        %v7268 = vadd.f32 %v7082, %v7236
        %v7269 = vadd.f32 %v7087, %v7237
        %v7270 = vadd.f32 %v7090, %v7238
        %v7271 = vadd.f32 %v7095, %v7239
        %v7272 = vadd.f32 %v7098, %v7240
        %v7273 = vadd.f32 %v7103, %v7241
        %v7274 = vadd.f32 %v7106, %v7242
        %v7275 = vadd.f32 %v7111, %v7243
        %v7276 = vadd.f32 %v7114, %v7244
        %v7277 = vmul.f32 %v7245, 0.7978846
        %v7278 = vmul.f32 %v7246, 0.7978846
        %v7279 = vmul.f32 %v7247, 0.7978846
        %v7280 = vmul.f32 %v7248, 0.7978846
        %v7281 = vmul.f32 %v7249, 0.7978846
        %v7282 = vmul.f32 %v7250, 0.7978846
        %v7283 = vmul.f32 %v7251, 0.7978846
        %v7284 = vmul.f32 %v7252, 0.7978846
        %v7285 = vmul.f32 %v7253, 0.7978846
        %v7286 = vmul.f32 %v7254, 0.7978846
        %v7287 = vmul.f32 %v7255, 0.7978846
        %v7288 = vmul.f32 %v7256, 0.7978846
        %v7289 = vmul.f32 %v7257, 0.7978846
        %v7290 = vmul.f32 %v7258, 0.7978846
        %v7291 = vmul.f32 %v7259, 0.7978846
        %v7292 = vmul.f32 %v7260, 0.7978846
        %v7293 = vmul.f32 %v7261, 0.7978846
        %v7294 = vmul.f32 %v7262, 0.7978846
        %v7295 = vmul.f32 %v7263, 0.7978846
        %v7296 = vmul.f32 %v7264, 0.7978846
        %v7297 = vmul.f32 %v7265, 0.7978846
        %v7298 = vmul.f32 %v7266, 0.7978846
        %v7299 = vmul.f32 %v7267, 0.7978846
        %v7300 = vmul.f32 %v7268, 0.7978846
        %v7301 = vmul.f32 %v7269, 0.7978846
        %v7302 = vmul.f32 %v7270, 0.7978846
        %v7303 = vmul.f32 %v7271, 0.7978846
        %v7304 = vmul.f32 %v7272, 0.7978846
        %v7305 = vmul.f32 %v7273, 0.7978846
        %v7306 = vmul.f32 %v7274, 0.7978846
        %v7307 = vmul.f32 %v7275, 0.7978846
        %v7308 = vmul.f32 %v7276, 0.7978846
        %v7309 = vtanh.pop %v7277
        %v7310 = vtanh.pop %v7278
        %v7311 = vtanh.pop %v7279
        %v7312 = vtanh.pop %v7280
        %v7313 = vtanh.pop %v7281
        %v7314 = vtanh.pop %v7282
        %v7315 = vtanh.pop %v7283
        %v7316 = vtanh.pop %v7284
        %v7317 = vtanh.pop %v7285
        %v7318 = vtanh.pop %v7286
        %v7319 = vtanh.pop %v7287
        %v7320 = vtanh.pop %v7288
        %v7321 = vtanh.pop %v7289
        %v7322 = vtanh.pop %v7290
        %v7323 = vtanh.pop %v7291
        %v7324 = vtanh.pop %v7292
        %v7325 = vtanh.pop %v7293
        %v7326 = vtanh.pop %v7294
        %v7327 = vtanh.pop %v7295
        %v7328 = vtanh.pop %v7296
        %v7329 = vtanh.pop %v7297
        %v7330 = vtanh.pop %v7298
        %v7331 = vtanh.pop %v7299
        %v7332 = vtanh.pop %v7300
        %v7333 = vtanh.pop %v7301
        %v7334 = vtanh.pop %v7302
        %v7335 = vtanh.pop %v7303
        %v7336 = vtanh.pop %v7304
        %v7337 = vtanh.pop %v7305
        %v7338 = vtanh.pop %v7306
        %v7339 = vtanh.pop %v7307
        %v7340 = vtanh.pop %v7308
        %v7341 = vadd.f32 %v7309, 1.0
        %v7342 = vadd.f32 %v7310, 1.0
        %v7343 = vadd.f32 %v7311, 1.0
        %v7344 = vadd.f32 %v7312, 1.0
        %v7345 = vadd.f32 %v7313, 1.0
        %v7346 = vadd.f32 %v7314, 1.0
        %v7347 = vadd.f32 %v7315, 1.0
        %v7348 = vadd.f32 %v7316, 1.0
        %v7349 = vadd.f32 %v7317, 1.0
        %v7350 = vadd.f32 %v7318, 1.0
        %v7351 = vadd.f32 %v7319, 1.0
        %v7352 = vadd.f32 %v7320, 1.0
        %v7353 = vadd.f32 %v7321, 1.0
        %v7354 = vadd.f32 %v7322, 1.0
        %v7355 = vadd.f32 %v7323, 1.0
        %v7356 = vadd.f32 %v7324, 1.0
        %v7357 = vadd.f32 %v7325, 1.0
        %v7358 = vadd.f32 %v7326, 1.0
        %v7359 = vadd.f32 %v7327, 1.0
        %v7360 = vadd.f32 %v7328, 1.0
        %v7361 = vadd.f32 %v7329, 1.0
        %v7362 = vadd.f32 %v7330, 1.0
        %v7363 = vadd.f32 %v7331, 1.0
        %v7364 = vadd.f32 %v7332, 1.0
        %v7365 = vadd.f32 %v7333, 1.0
        %v7366 = vadd.f32 %v7334, 1.0
        %v7367 = vadd.f32 %v7335, 1.0
        %v7368 = vadd.f32 %v7336, 1.0
        %v7369 = vadd.f32 %v7337, 1.0
        %v7370 = vadd.f32 %v7338, 1.0
        %v7371 = vadd.f32 %v7339, 1.0
        %v7372 = vadd.f32 %v7340, 1.0
        %v7373 = vmul.f32 %v7117, %v7341
        %v7374 = vmul.f32 %v7118, %v7342
        %v7375 = vmul.f32 %v7119, %v7343
        %v7376 = vmul.f32 %v7120, %v7344
        %v7377 = vmul.f32 %v7121, %v7345
        %v7378 = vmul.f32 %v7122, %v7346
        %v7379 = vmul.f32 %v7123, %v7347
        %v7380 = vmul.f32 %v7124, %v7348
        %v7381 = vmul.f32 %v7125, %v7349
        %v7382 = vmul.f32 %v7126, %v7350
        %v7383 = vmul.f32 %v7127, %v7351
        %v7384 = vmul.f32 %v7128, %v7352
        %v7385 = vmul.f32 %v7129, %v7353
        %v7386 = vmul.f32 %v7130, %v7354
        %v7387 = vmul.f32 %v7131, %v7355
        %v7388 = vmul.f32 %v7132, %v7356
        %v7389 = vmul.f32 %v7133, %v7357
        %v7390 = vmul.f32 %v7134, %v7358
        %v7391 = vmul.f32 %v7135, %v7359
        %v7392 = vmul.f32 %v7136, %v7360
        %v7393 = vmul.f32 %v7137, %v7361
        %v7394 = vmul.f32 %v7138, %v7362
        %v7395 = vmul.f32 %v7139, %v7363
        %v7396 = vmul.f32 %v7140, %v7364
        %v7397 = vmul.f32 %v7141, %v7365
        %v7398 = vmul.f32 %v7142, %v7366
        %v7399 = vmul.f32 %v7143, %v7367
        %v7400 = vmul.f32 %v7144, %v7368
        %v7401 = vmul.f32 %v7145, %v7369
        %v7402 = vmul.f32 %v7146, %v7370
        %v7403 = vmul.f32 %v7147, %v7371
        %v7404 = vmul.f32 %v7148, %v7372
        %v7405 = vpack.c.bf16 %v7374, %v7373
        %v7406 = vpack.c.bf16 %v7376, %v7375
        %v7407 = vpack.c.bf16 %v7378, %v7377
        %v7408 = vpack.c.bf16 %v7380, %v7379
        %v7409 = vpack.c.bf16 %v7382, %v7381
        %v7410 = vpack.c.bf16 %v7384, %v7383
        %v7411 = vpack.c.bf16 %v7386, %v7385
        %v7412 = vpack.c.bf16 %v7388, %v7387
        %v7413 = vpack.c.bf16 %v7390, %v7389
        %v7414 = vpack.c.bf16 %v7392, %v7391
        %v7415 = vpack.c.bf16 %v7394, %v7393
        %v7416 = vpack.c.bf16 %v7396, %v7395
        %v7417 = vpack.c.bf16 %v7398, %v7397
        %v7418 = vpack.c.bf16 %v7400, %v7399
        %v7419 = vpack.c.bf16 %v7402, %v7401
        %v7420 = vpack.c.bf16 %v7404, %v7403
        %v7421 = vld [vmem:[%s11 + $0x40] sm:$0xf]
        %v7422 = vld [vmem:[%s11 + $0x44] sm:$0xf]
        %v7423 = vld [vmem:[%s11 + $0x48] sm:$0xf]
        %v7424 = vld [vmem:[%s11 + $0x4c] sm:$0xf]
        %v7425 = vld [vmem:[%s11 + $0x50] sm:$0xf]
        %v7426 = vld [vmem:[%s11 + $0x54] sm:$0xf]
        %v7427 = vld [vmem:[%s11 + $0x58] sm:$0xf]
        %v7428 = vld [vmem:[%s11 + $0x5c] sm:$0xf]
        %v7429 = vld [vmem:[%s11 + $0x60] sm:$0xf]
        %v7430 = vld [vmem:[%s11 + $0x64] sm:$0xf]
        %v7431 = vld [vmem:[%s11 + $0x68] sm:$0xf]
        %v7432 = vld [vmem:[%s11 + $0x6c] sm:$0xf]
        %v7433 = vld [vmem:[%s11 + $0x70] sm:$0xf]
        %v7434 = vld [vmem:[%s11 + $0x74] sm:$0xf]
        %v7435 = vld [vmem:[%s11 + $0x78] sm:$0xf]
        %v7436 = vld [vmem:[%s11 + $0x7c] sm:$0xf]
        %v7453 = vunpack.c.l.b16 %v7421
        %v7454 = vunpack.c.l.b16 %v7422
        %v7455 = vunpack.c.l.b16 %v7423
        %v7456 = vunpack.c.l.b16 %v7424
        %v7457 = vunpack.c.l.b16 %v7425
        %v7458 = vunpack.c.l.b16 %v7426
        %v7459 = vunpack.c.l.b16 %v7427
        %v7460 = vunpack.c.l.b16 %v7428
        %v7461 = vunpack.c.l.b16 %v7429
        %v7462 = vunpack.c.l.b16 %v7430
        %v7463 = vunpack.c.l.b16 %v7431
        %v7464 = vunpack.c.l.b16 %v7432
        %v7465 = vunpack.c.l.b16 %v7433
        %v7466 = vunpack.c.l.b16 %v7434
        %v7467 = vunpack.c.l.b16 %v7435
        %v7468 = vunpack.c.l.b16 %v7436
        %v7469 = vpack.c.b16 %v7454, %v7453
        %v7470 = vpack.c.b16 %v7456, %v7455
        %v7471 = vpack.c.b16 %v7458, %v7457
        %v7472 = vpack.c.b16 %v7460, %v7459
        %v7473 = vpack.c.b16 %v7462, %v7461
        %v7474 = vpack.c.b16 %v7464, %v7463
        %v7475 = vpack.c.b16 %v7466, %v7465
        %v7476 = vpack.c.b16 %v7468, %v7467
        %7485 = vmatprep.subr.bf16.mxu0 0
        %7486 = vmatpush1.bf16.msra.mxu0 %v7469
        %7487 = vmatprep.subr.bf16.mxu0 0
        %7488 = vmatpush1.bf16.msra.mxu0 %v7470
        %7489 = vmatprep.subr.bf16.mxu0 0
        %7490 = vmatpush1.bf16.msra.mxu0 %v7471
        %7491 = vmatprep.subr.bf16.mxu0 0
        %7492 = vmatpush1.bf16.msra.mxu0 %v7472
        %7493 = vmatprep.subr.bf16.mxu0 0
        %7494 = vmatpush1.bf16.msra.mxu0 %v7473
        %7495 = vmatprep.subr.bf16.mxu0 0
        %7496 = vmatpush1.bf16.msra.mxu0 %v7474
        %7497 = vmatprep.subr.bf16.mxu0 0
        %7498 = vmatpush1.bf16.msra.mxu0 %v7475
        %7499 = vmatprep.subr.bf16.mxu0 0
        %7500 = vmatpush1.bf16.msra.mxu0 %v7476
        %7501 = vmatprep.subr.bf16.mxu0 0
        %7502 = vmatpush1.bf16.msra.mxu0 0
        %7503 = vmatprep.subr.bf16.mxu0 0
        %7504 = vmatpush1.bf16.msra.mxu0 0
        %7505 = vmatprep.subr.bf16.mxu0 0
        %7506 = vmatpush1.bf16.msra.mxu0 0
        %7507 = vmatprep.subr.bf16.mxu0 0
        %7508 = vmatpush1.bf16.msra.mxu0 0
        %7509 = vmatprep.subr.bf16.mxu0 0
        %7510 = vmatpush1.bf16.msra.mxu0 0
        %7511 = vmatprep.subr.bf16.mxu0 0
        %7512 = vmatpush1.bf16.msra.mxu0 0
        %7513 = vmatprep.subr.bf16.mxu0 0
        %7514 = vmatpush1.bf16.msra.mxu0 0
        %7515 = vmatprep.subr.bf16.mxu0 0
        %7516 = vmatpush1.bf16.msra.mxu0 0
        %7517 = vmatprep.mubr.bf16.mxu0 0
        %7518 = vmatmul.mubr.bf16.gmra.mrb[0].mxu0 %v7405
        %v7519 = vpop.f32.mrb[0].mxu0
        %v7520 = vadd.f32 0.0, %v7519
        %v7521 = vpop.f32.mrb[0].mxu0
        %v7522 = vpop.f32.mrb[0].mxu0
        %v7523 = vadd.f32 0.0, %v7522
        %v7524 = vpop.f32.mrb[0].mxu0
        %7525 = vmatprep.mubr.bf16.mxu0 0
        %7526 = vmatmul.mubr.bf16.gmra.mrb[0].mxu0 %v7406
        %v7527 = vpop.f32.mrb[0].mxu0
        %v7528 = vadd.f32 0.0, %v7527
        %v7529 = vpop.f32.mrb[0].mxu0
        %v7530 = vpop.f32.mrb[0].mxu0
        %v7531 = vadd.f32 0.0, %v7530
        %v7532 = vpop.f32.mrb[0].mxu0
        %7533 = vmatprep.mubr.bf16.mxu0 0
        %7534 = vmatmul.mubr.bf16.gmra.mrb[0].mxu0 %v7407
        %v7535 = vpop.f32.mrb[0].mxu0
        %v7536 = vadd.f32 0.0, %v7535
        %v7537 = vpop.f32.mrb[0].mxu0
        %v7538 = vpop.f32.mrb[0].mxu0
        %v7539 = vadd.f32 0.0, %v7538
        %v7540 = vpop.f32.mrb[0].mxu0
        %7541 = vmatprep.mubr.bf16.mxu0 0
        %7542 = vmatmul.mubr.bf16.gmra.mrb[0].mxu0 %v7408
        %v7543 = vpop.f32.mrb[0].mxu0
        %v7544 = vadd.f32 0.0, %v7543
        %v7545 = vpop.f32.mrb[0].mxu0
        %v7546 = vpop.f32.mrb[0].mxu0
        %v7547 = vadd.f32 0.0, %v7546
        %v7548 = vpop.f32.mrb[0].mxu0
        %7549 = vmatprep.mubr.bf16.mxu0 0
        %7550 = vmatmul.mubr.bf16.gmra.mrb[0].mxu0 %v7409
        %v7551 = vpop.f32.mrb[0].mxu0
        %v7552 = vadd.f32 0.0, %v7551
        %v7553 = vpop.f32.mrb[0].mxu0
        %v7554 = vpop.f32.mrb[0].mxu0
        %v7555 = vadd.f32 0.0, %v7554
        %v7556 = vpop.f32.mrb[0].mxu0
        %7557 = vmatprep.mubr.bf16.mxu0 0
        %7558 = vmatmul.mubr.bf16.gmra.mrb[0].mxu0 %v7410
        %v7559 = vpop.f32.mrb[0].mxu0
        %v7560 = vadd.f32 0.0, %v7559
        %v7561 = vpop.f32.mrb[0].mxu0
        %v7562 = vpop.f32.mrb[0].mxu0
        %v7563 = vadd.f32 0.0, %v7562
        %v7564 = vpop.f32.mrb[0].mxu0
        %7565 = vmatprep.mubr.bf16.mxu0 0
        %7566 = vmatmul.mubr.bf16.gmra.mrb[0].mxu0 %v7411
        %v7567 = vpop.f32.mrb[0].mxu0
        %v7568 = vadd.f32 0.0, %v7567
        %v7569 = vpop.f32.mrb[0].mxu0
        %v7570 = vpop.f32.mrb[0].mxu0
        %v7571 = vadd.f32 0.0, %v7570
        %v7572 = vpop.f32.mrb[0].mxu0
        %7573 = vmatprep.mubr.bf16.mxu0 0
        %7574 = vmatmul.mubr.bf16.gmra.mrb[0].mxu0 %v7412
        %v7575 = vpop.f32.mrb[0].mxu0
        %v7576 = vadd.f32 0.0, %v7575
        %v7577 = vpop.f32.mrb[0].mxu0
        %v7578 = vpop.f32.mrb[0].mxu0
        %v7579 = vadd.f32 0.0, %v7578
        %v7580 = vpop.f32.mrb[0].mxu0
        %7581 = vmatprep.mubr.bf16.mxu0 0
        %7582 = vmatmul.mubr.bf16.gmra.mrb[0].mxu0 %v7413
        %v7583 = vpop.f32.mrb[0].mxu0
        %v7584 = vadd.f32 0.0, %v7583
        %v7585 = vpop.f32.mrb[0].mxu0
        %v7586 = vpop.f32.mrb[0].mxu0
        %v7587 = vadd.f32 0.0, %v7586
        %v7588 = vpop.f32.mrb[0].mxu0
        %7589 = vmatprep.mubr.bf16.mxu0 0
        %7590 = vmatmul.mubr.bf16.gmra.mrb[0].mxu0 %v7414
        %v7591 = vpop.f32.mrb[0].mxu0
        %v7592 = vadd.f32 0.0, %v7591
        %v7593 = vpop.f32.mrb[0].mxu0
        %v7594 = vpop.f32.mrb[0].mxu0
        %v7595 = vadd.f32 0.0, %v7594
        %v7596 = vpop.f32.mrb[0].mxu0
        %7597 = vmatprep.mubr.bf16.mxu0 0
        %7598 = vmatmul.mubr.bf16.gmra.mrb[0].mxu0 %v7415
        %v7599 = vpop.f32.mrb[0].mxu0
        %v7600 = vadd.f32 0.0, %v7599
        %v7601 = vpop.f32.mrb[0].mxu0
        %v7602 = vpop.f32.mrb[0].mxu0
        %v7603 = vadd.f32 0.0, %v7602
        %v7604 = vpop.f32.mrb[0].mxu0
        %7605 = vmatprep.mubr.bf16.mxu0 0
        %7606 = vmatmul.mubr.bf16.gmra.mrb[0].mxu0 %v7416
        %v7607 = vpop.f32.mrb[0].mxu0
        %v7608 = vadd.f32 0.0, %v7607
        %v7609 = vpop.f32.mrb[0].mxu0
        %v7610 = vpop.f32.mrb[0].mxu0
        %v7611 = vadd.f32 0.0, %v7610
        %v7612 = vpop.f32.mrb[0].mxu0
        %7613 = vmatprep.mubr.bf16.mxu0 0
        %7614 = vmatmul.mubr.bf16.gmra.mrb[0].mxu0 %v7417
        %v7615 = vpop.f32.mrb[0].mxu0
        %v7616 = vadd.f32 0.0, %v7615
        %v7617 = vpop.f32.mrb[0].mxu0
        %v7618 = vpop.f32.mrb[0].mxu0
        %v7619 = vadd.f32 0.0, %v7618
        %v7620 = vpop.f32.mrb[0].mxu0
        %7621 = vmatprep.mubr.bf16.mxu0 0
        %7622 = vmatmul.mubr.bf16.gmra.mrb[0].mxu0 %v7418
        %v7623 = vpop.f32.mrb[0].mxu0
        %v7624 = vadd.f32 0.0, %v7623
        %v7625 = vpop.f32.mrb[0].mxu0
        %v7626 = vpop.f32.mrb[0].mxu0
        %v7627 = vadd.f32 0.0, %v7626
        %v7628 = vpop.f32.mrb[0].mxu0
        %7629 = vmatprep.mubr.bf16.mxu0 0
        %7630 = vmatmul.mubr.bf16.gmra.mrb[0].mxu0 %v7419
        %v7631 = vpop.f32.mrb[0].mxu0
        %v7632 = vadd.f32 0.0, %v7631
        %v7633 = vpop.f32.mrb[0].mxu0
        %v7634 = vpop.f32.mrb[0].mxu0
        %v7635 = vadd.f32 0.0, %v7634
        %v7636 = vpop.f32.mrb[0].mxu0
        %7637 = vmatprep.mubr.bf16.mxu0 0
        %7638 = vmatmul.mubr.bf16.gmra.mrb[0].mxu0 %v7420
        %v7639 = vpop.f32.mrb[0].mxu0
        %v7640 = vadd.f32 0.0, %v7639
        %v7641 = vpop.f32.mrb[0].mxu0
        %v7642 = vpop.f32.mrb[0].mxu0
        %v7643 = vadd.f32 0.0, %v7642
        %v7644 = vpop.f32.mrb[0].mxu0
        %7645 = vdwg.mxu0
        %v7662 = vunpack.c.l.b16 %v6869
        %v7663 = vunpack.c.l.b16 %v6870
        %v7664 = vunpack.c.l.b16 %v6871
        %v7665 = vunpack.c.l.b16 %v6872
        %v7666 = vunpack.c.l.b16 %v6873
        %v7667 = vunpack.c.l.b16 %v6874
        %v7668 = vunpack.c.l.b16 %v6875
        %v7669 = vunpack.c.l.b16 %v6876
        %v7670 = vunpack.c.l.b16 %v6877
        %v7671 = vunpack.c.l.b16 %v6878
        %v7672 = vunpack.c.l.b16 %v6879
        %v7673 = vunpack.c.l.b16 %v6880
        %v7674 = vunpack.c.l.b16 %v6881
        %v7675 = vunpack.c.l.b16 %v6882
        %v7676 = vunpack.c.l.b16 %v6883
        %v7677 = vunpack.c.l.b16 %v6884
        %v7678 = vpack.c.b16 %v7663, %v7662
        %v7679 = vpack.c.b16 %v7665, %v7664
        %v7680 = vpack.c.b16 %v7667, %v7666
        %v7681 = vpack.c.b16 %v7669, %v7668
        %v7682 = vpack.c.b16 %v7671, %v7670
        %v7683 = vpack.c.b16 %v7673, %v7672
        %v7684 = vpack.c.b16 %v7675, %v7674
        %v7685 = vpack.c.b16 %v7677, %v7676
        %7694 = vmatprep.subr.bf16.mxu0 0
        %7695 = vmatpush1.bf16.msra.mxu0 %v7678
        %7696 = vmatprep.subr.bf16.mxu0 0
        %7697 = vmatpush1.bf16.msra.mxu0 %v7679
        %7698 = vmatprep.subr.bf16.mxu0 0
        %7699 = vmatpush1.bf16.msra.mxu0 %v7680
        %7700 = vmatprep.subr.bf16.mxu0 0
        %7701 = vmatpush1.bf16.msra.mxu0 %v7681
        %7702 = vmatprep.subr.bf16.mxu0 0
        %7703 = vmatpush1.bf16.msra.mxu0 %v7682
        %7704 = vmatprep.subr.bf16.mxu0 0
        %7705 = vmatpush1.bf16.msra.mxu0 %v7683
        %7706 = vmatprep.subr.bf16.mxu0 0
        %7707 = vmatpush1.bf16.msra.mxu0 %v7684
        %7708 = vmatprep.subr.bf16.mxu0 0
        %7709 = vmatpush1.bf16.msra.mxu0 %v7685
        %7710 = vmatprep.subr.bf16.mxu0 0
        %7711 = vmatpush1.bf16.msra.mxu0 0
        %7712 = vmatprep.subr.bf16.mxu0 0
        %7713 = vmatpush1.bf16.msra.mxu0 0
        %7714 = vmatprep.subr.bf16.mxu0 0
        %7715 = vmatpush1.bf16.msra.mxu0 0
        %7716 = vmatprep.subr.bf16.mxu0 0
        %7717 = vmatpush1.bf16.msra.mxu0 0
        %7718 = vmatprep.subr.bf16.mxu0 0
        %7719 = vmatpush1.bf16.msra.mxu0 0
        %7720 = vmatprep.subr.bf16.mxu0 0
        %7721 = vmatpush1.bf16.msra.mxu0 0
        %7722 = vmatprep.subr.bf16.mxu0 0
        %7723 = vmatpush1.bf16.msra.mxu0 0
        %7724 = vmatprep.subr.bf16.mxu0 0
        %7725 = vmatpush1.bf16.msra.mxu0 0
        %7726 = vmatprep.mubr.bf16.mxu0 0
        %7727 = vmatmul.mubr.bf16.gmra.mrb[0].mxu0 %v6853
        %v7728 = vpop.f32.mrb[0].mxu0
        %v7729 = vadd.f32 %v7520, %v7728
        %v7730 = vpop.f32.mrb[0].mxu0
        %v7731 = vpop.f32.mrb[0].mxu0
        %v7732 = vadd.f32 %v7523, %v7731
        %v7733 = vpop.f32.mrb[0].mxu0
        %7734 = vmatprep.mubr.bf16.mxu0 0
        %7735 = vmatmul.mubr.bf16.gmra.mrb[0].mxu0 %v6854
        %v7736 = vpop.f32.mrb[0].mxu0
        %v7737 = vadd.f32 %v7528, %v7736
        %v7738 = vpop.f32.mrb[0].mxu0
        %v7739 = vpop.f32.mrb[0].mxu0
        %v7740 = vadd.f32 %v7531, %v7739
        %v7741 = vpop.f32.mrb[0].mxu0
        %7742 = vmatprep.mubr.bf16.mxu0 0
        %7743 = vmatmul.mubr.bf16.gmra.mrb[0].mxu0 %v6855
        %v7744 = vpop.f32.mrb[0].mxu0
        %v7745 = vadd.f32 %v7536, %v7744
        %v7746 = vpop.f32.mrb[0].mxu0
        %v7747 = vpop.f32.mrb[0].mxu0
        %v7748 = vadd.f32 %v7539, %v7747
        %v7749 = vpop.f32.mrb[0].mxu0
        %7750 = vmatprep.mubr.bf16.mxu0 0
        %7751 = vmatmul.mubr.bf16.gmra.mrb[0].mxu0 %v6856
        %v7752 = vpop.f32.mrb[0].mxu0
        %v7753 = vadd.f32 %v7544, %v7752
        %v7754 = vpop.f32.mrb[0].mxu0
        %v7755 = vpop.f32.mrb[0].mxu0
        %v7756 = vadd.f32 %v7547, %v7755
        %v7757 = vpop.f32.mrb[0].mxu0
        %7758 = vmatprep.mubr.bf16.mxu0 0
        %7759 = vmatmul.mubr.bf16.gmra.mrb[0].mxu0 %v6857
        %v7760 = vpop.f32.mrb[0].mxu0
        %v7761 = vadd.f32 %v7552, %v7760
        %v7762 = vpop.f32.mrb[0].mxu0
        %v7763 = vpop.f32.mrb[0].mxu0
        %v7764 = vadd.f32 %v7555, %v7763
        %v7765 = vpop.f32.mrb[0].mxu0
        %7766 = vmatprep.mubr.bf16.mxu0 0
        %7767 = vmatmul.mubr.bf16.gmra.mrb[0].mxu0 %v6858
        %v7768 = vpop.f32.mrb[0].mxu0
        %v7769 = vadd.f32 %v7560, %v7768
        %v7770 = vpop.f32.mrb[0].mxu0
        %v7771 = vpop.f32.mrb[0].mxu0
        %v7772 = vadd.f32 %v7563, %v7771
        %v7773 = vpop.f32.mrb[0].mxu0
        %7774 = vmatprep.mubr.bf16.mxu0 0
        %7775 = vmatmul.mubr.bf16.gmra.mrb[0].mxu0 %v6859
        %v7776 = vpop.f32.mrb[0].mxu0
        %v7777 = vadd.f32 %v7568, %v7776
        %v7778 = vpop.f32.mrb[0].mxu0
        %v7779 = vpop.f32.mrb[0].mxu0
        %v7780 = vadd.f32 %v7571, %v7779
        %v7781 = vpop.f32.mrb[0].mxu0
        %7782 = vmatprep.mubr.bf16.mxu0 0
        %7783 = vmatmul.mubr.bf16.gmra.mrb[0].mxu0 %v6860
        %v7784 = vpop.f32.mrb[0].mxu0
        %v7785 = vadd.f32 %v7576, %v7784
        %v7786 = vpop.f32.mrb[0].mxu0
        %v7787 = vpop.f32.mrb[0].mxu0
        %v7788 = vadd.f32 %v7579, %v7787
        %v7789 = vpop.f32.mrb[0].mxu0
        %7790 = vmatprep.mubr.bf16.mxu0 0
        %7791 = vmatmul.mubr.bf16.gmra.mrb[0].mxu0 %v6861
        %v7792 = vpop.f32.mrb[0].mxu0
        %v7793 = vadd.f32 %v7584, %v7792
        %v7794 = vpop.f32.mrb[0].mxu0
        %v7795 = vpop.f32.mrb[0].mxu0
        %v7796 = vadd.f32 %v7587, %v7795
        %v7797 = vpop.f32.mrb[0].mxu0
        %7798 = vmatprep.mubr.bf16.mxu0 0
        %7799 = vmatmul.mubr.bf16.gmra.mrb[0].mxu0 %v6862
        %v7800 = vpop.f32.mrb[0].mxu0
        %v7801 = vadd.f32 %v7592, %v7800
        %v7802 = vpop.f32.mrb[0].mxu0
        %v7803 = vpop.f32.mrb[0].mxu0
        %v7804 = vadd.f32 %v7595, %v7803
        %v7805 = vpop.f32.mrb[0].mxu0
        %7806 = vmatprep.mubr.bf16.mxu0 0
        %7807 = vmatmul.mubr.bf16.gmra.mrb[0].mxu0 %v6863
        %v7808 = vpop.f32.mrb[0].mxu0
        %v7809 = vadd.f32 %v7600, %v7808
        %v7810 = vpop.f32.mrb[0].mxu0
        %v7811 = vpop.f32.mrb[0].mxu0
        %v7812 = vadd.f32 %v7603, %v7811
        %v7813 = vpop.f32.mrb[0].mxu0
        %7814 = vmatprep.mubr.bf16.mxu0 0
        %7815 = vmatmul.mubr.bf16.gmra.mrb[0].mxu0 %v6864
        %v7816 = vpop.f32.mrb[0].mxu0
        %v7817 = vadd.f32 %v7608, %v7816
        %v7818 = vpop.f32.mrb[0].mxu0
        %v7819 = vpop.f32.mrb[0].mxu0
        %v7820 = vadd.f32 %v7611, %v7819
        %v7821 = vpop.f32.mrb[0].mxu0
        %7822 = vmatprep.mubr.bf16.mxu0 0
        %7823 = vmatmul.mubr.bf16.gmra.mrb[0].mxu0 %v6865
        %v7824 = vpop.f32.mrb[0].mxu0
        %v7825 = vadd.f32 %v7616, %v7824
        %v7826 = vpop.f32.mrb[0].mxu0
        %v7827 = vpop.f32.mrb[0].mxu0
        %v7828 = vadd.f32 %v7619, %v7827
        %v7829 = vpop.f32.mrb[0].mxu0
        %7830 = vmatprep.mubr.bf16.mxu0 0
        %7831 = vmatmul.mubr.bf16.gmra.mrb[0].mxu0 %v6866
        %v7832 = vpop.f32.mrb[0].mxu0
        %v7833 = vadd.f32 %v7624, %v7832
        %v7834 = vpop.f32.mrb[0].mxu0
        %v7835 = vpop.f32.mrb[0].mxu0
        %v7836 = vadd.f32 %v7627, %v7835
        %v7837 = vpop.f32.mrb[0].mxu0
        %7838 = vmatprep.mubr.bf16.mxu0 0
        %7839 = vmatmul.mubr.bf16.gmra.mrb[0].mxu0 %v6867
        %v7840 = vpop.f32.mrb[0].mxu0
        %v7841 = vadd.f32 %v7632, %v7840
        %v7842 = vpop.f32.mrb[0].mxu0
        %v7843 = vpop.f32.mrb[0].mxu0
        %v7844 = vadd.f32 %v7635, %v7843
        %v7845 = vpop.f32.mrb[0].mxu0
        %7846 = vmatprep.mubr.bf16.mxu0 0
        %7847 = vmatmul.mubr.bf16.gmra.mrb[0].mxu0 %v6868
        %v7848 = vpop.f32.mrb[0].mxu0
        %v7849 = vadd.f32 %v7640, %v7848
        %v7850 = vpop.f32.mrb[0].mxu0
        %v7851 = vpop.f32.mrb[0].mxu0
        %v7852 = vadd.f32 %v7643, %v7851
        %v7853 = vpop.f32.mrb[0].mxu0
        %7854 = vdwg.mxu0
        %v7855 = vld [vmem:[%s9 + $0x8] sm:$0xf]
        %v7856 = vld [vmem:[%s9 + $0x18] sm:$0xf]
        %v7857 = vld [vmem:[%s9 + $0x28] sm:$0xf]
        %v7858 = vld [vmem:[%s9 + $0x38] sm:$0xf]
        %v7859 = vld [vmem:[%s9 + $0x48] sm:$0xf]
        %v7860 = vld [vmem:[%s9 + $0x58] sm:$0xf]
        %v7861 = vld [vmem:[%s9 + $0x68] sm:$0xf]
        %v7862 = vld [vmem:[%s9 + $0x78] sm:$0xf]
        %v7863 = vld [vmem:[%s9 + $0x88] sm:$0xf]
        %v7864 = vld [vmem:[%s9 + $0x98] sm:$0xf]
        %v7865 = vld [vmem:[%s9 + $0xa8] sm:$0xf]
        %v7866 = vld [vmem:[%s9 + $0xb8] sm:$0xf]
        %v7867 = vld [vmem:[%s9 + $0xc8] sm:$0xf]
        %v7868 = vld [vmem:[%s9 + $0xd8] sm:$0xf]
        %v7869 = vld [vmem:[%s9 + $0xe8] sm:$0xf]
        %v7870 = vld [vmem:[%s9 + $0xf8] sm:$0xf]
        %v7871 = vld [vmem:[%s10 + $0x2] sm:$0x1]
        %v7873 = vlaneseq
        %v7874 = vshrl.u32 %v7873, 7
        %v7875 = vsub.s32 0, %v7874
        %v7876 = vrot.slane %v7871, %v7875
        %v7894 = vunpack.c.l.b16 %v7855
        %v7895 = vunpack.c.l.b16 %v7856
        %v7896 = vunpack.c.l.b16 %v7857
        %v7897 = vunpack.c.l.b16 %v7858
        %v7898 = vunpack.c.l.b16 %v7859
        %v7899 = vunpack.c.l.b16 %v7860
        %v7900 = vunpack.c.l.b16 %v7861
        %v7901 = vunpack.c.l.b16 %v7862
        %v7902 = vunpack.c.l.b16 %v7863
        %v7903 = vunpack.c.l.b16 %v7864
        %v7904 = vunpack.c.l.b16 %v7865
        %v7905 = vunpack.c.l.b16 %v7866
        %v7906 = vunpack.c.l.b16 %v7867
        %v7907 = vunpack.c.l.b16 %v7868
        %v7908 = vunpack.c.l.b16 %v7869
        %v7909 = vunpack.c.l.b16 %v7870
        %v7910 = vpack.c.b16 %v7895, %v7894
        %v7911 = vpack.c.b16 %v7897, %v7896
        %v7912 = vpack.c.b16 %v7899, %v7898
        %v7913 = vpack.c.b16 %v7901, %v7900
        %v7914 = vpack.c.b16 %v7903, %v7902
        %v7915 = vpack.c.b16 %v7905, %v7904
        %v7916 = vpack.c.b16 %v7907, %v7906
        %v7917 = vpack.c.b16 %v7909, %v7908
        %7926 = vmatprep.subr.bf16.mxu0 0
        %7927 = vmatpush1.bf16.msra.mxu0 %v7910
        %7928 = vmatprep.subr.bf16.mxu0 0
        %7929 = vmatpush1.bf16.msra.mxu0 %v7911
        %7930 = vmatprep.subr.bf16.mxu0 0
        %7931 = vmatpush1.bf16.msra.mxu0 %v7912
        %7932 = vmatprep.subr.bf16.mxu0 0
        %7933 = vmatpush1.bf16.msra.mxu0 %v7913
        %7934 = vmatprep.subr.bf16.mxu0 0
        %7935 = vmatpush1.bf16.msra.mxu0 %v7914
        %7936 = vmatprep.subr.bf16.mxu0 0
        %7937 = vmatpush1.bf16.msra.mxu0 %v7915
        %7938 = vmatprep.subr.bf16.mxu0 0
        %7939 = vmatpush1.bf16.msra.mxu0 %v7916
        %7940 = vmatprep.subr.bf16.mxu0 0
        %7941 = vmatpush1.bf16.msra.mxu0 %v7917
        %7942 = vmatprep.subr.bf16.mxu0 0
        %7943 = vmatpush1.bf16.msra.mxu0 0
        %7944 = vmatprep.subr.bf16.mxu0 0
        %7945 = vmatpush1.bf16.msra.mxu0 0
        %7946 = vmatprep.subr.bf16.mxu0 0
        %7947 = vmatpush1.bf16.msra.mxu0 0
        %7948 = vmatprep.subr.bf16.mxu0 0
        %7949 = vmatpush1.bf16.msra.mxu0 0
        %7950 = vmatprep.subr.bf16.mxu0 0
        %7951 = vmatpush1.bf16.msra.mxu0 0
        %7952 = vmatprep.subr.bf16.mxu0 0
        %7953 = vmatpush1.bf16.msra.mxu0 0
        %7954 = vmatprep.subr.bf16.mxu0 0
        %7955 = vmatpush1.bf16.msra.mxu0 0
        %7956 = vmatprep.subr.bf16.mxu0 0
        %7957 = vmatpush1.bf16.msra.mxu0 0
        %7958 = vmatprep.mubr.bf16.mxu0 0
        %7959 = vmatmul.mubr.bf16.gmra.mrb[0].mxu0 %v6317
        %v7960 = vpop.f32.mrb[0].mxu0
        %v7961 = vadd.f32 %v7876, %v7960
        %v7962 = vpop.f32.mrb[0].mxu0
        %v7963 = vpop.f32.mrb[0].mxu0
        %v7964 = vadd.f32 %v7876, %v7963
        %v7965 = vpop.f32.mrb[0].mxu0
        %7966 = vmatprep.mubr.bf16.mxu0 0
        %7967 = vmatmul.mubr.bf16.gmra.mrb[0].mxu0 %v6318
        %v7968 = vpop.f32.mrb[0].mxu0
        %v7969 = vadd.f32 %v7876, %v7968
        %v7970 = vpop.f32.mrb[0].mxu0
        %v7971 = vpop.f32.mrb[0].mxu0
        %v7972 = vadd.f32 %v7876, %v7971
        %v7973 = vpop.f32.mrb[0].mxu0
        %7974 = vmatprep.mubr.bf16.mxu0 0
        %7975 = vmatmul.mubr.bf16.gmra.mrb[0].mxu0 %v6319
        %v7976 = vpop.f32.mrb[0].mxu0
        %v7977 = vadd.f32 %v7876, %v7976
        %v7978 = vpop.f32.mrb[0].mxu0
        %v7979 = vpop.f32.mrb[0].mxu0
        %v7980 = vadd.f32 %v7876, %v7979
        %v7981 = vpop.f32.mrb[0].mxu0
        %7982 = vmatprep.mubr.bf16.mxu0 0
        %7983 = vmatmul.mubr.bf16.gmra.mrb[0].mxu0 %v6320
        %v7984 = vpop.f32.mrb[0].mxu0
        %v7985 = vadd.f32 %v7876, %v7984
        %v7986 = vpop.f32.mrb[0].mxu0
        %v7987 = vpop.f32.mrb[0].mxu0
        %v7988 = vadd.f32 %v7876, %v7987
        %v7989 = vpop.f32.mrb[0].mxu0
        %7990 = vmatprep.mubr.bf16.mxu0 0
        %7991 = vmatmul.mubr.bf16.gmra.mrb[0].mxu0 %v6321
        %v7992 = vpop.f32.mrb[0].mxu0
        %v7993 = vadd.f32 %v7876, %v7992
        %v7994 = vpop.f32.mrb[0].mxu0
        %v7995 = vpop.f32.mrb[0].mxu0
        %v7996 = vadd.f32 %v7876, %v7995
        %v7997 = vpop.f32.mrb[0].mxu0
        %7998 = vmatprep.mubr.bf16.mxu0 0
        %7999 = vmatmul.mubr.bf16.gmra.mrb[0].mxu0 %v6322
        %v8000 = vpop.f32.mrb[0].mxu0
        %v8001 = vadd.f32 %v7876, %v8000
        %v8002 = vpop.f32.mrb[0].mxu0
        %v8003 = vpop.f32.mrb[0].mxu0
        %v8004 = vadd.f32 %v7876, %v8003
        %v8005 = vpop.f32.mrb[0].mxu0
        %8006 = vmatprep.mubr.bf16.mxu0 0
        %8007 = vmatmul.mubr.bf16.gmra.mrb[0].mxu0 %v6323
        %v8008 = vpop.f32.mrb[0].mxu0
        %v8009 = vadd.f32 %v7876, %v8008
        %v8010 = vpop.f32.mrb[0].mxu0
        %v8011 = vpop.f32.mrb[0].mxu0
        %v8012 = vadd.f32 %v7876, %v8011
        %v8013 = vpop.f32.mrb[0].mxu0
        %8014 = vmatprep.mubr.bf16.mxu0 0
        %8015 = vmatmul.mubr.bf16.gmra.mrb[0].mxu0 %v6324
        %v8016 = vpop.f32.mrb[0].mxu0
        %v8017 = vadd.f32 %v7876, %v8016
        %v8018 = vpop.f32.mrb[0].mxu0
        %v8019 = vpop.f32.mrb[0].mxu0
        %v8020 = vadd.f32 %v7876, %v8019
        %v8021 = vpop.f32.mrb[0].mxu0
        %8022 = vmatprep.mubr.bf16.mxu0 0
        %8023 = vmatmul.mubr.bf16.gmra.mrb[0].mxu0 %v6325
        %v8024 = vpop.f32.mrb[0].mxu0
        %v8025 = vadd.f32 %v7876, %v8024
        %v8026 = vpop.f32.mrb[0].mxu0
        %v8027 = vpop.f32.mrb[0].mxu0
        %v8028 = vadd.f32 %v7876, %v8027
        %v8029 = vpop.f32.mrb[0].mxu0
        %8030 = vmatprep.mubr.bf16.mxu0 0
        %8031 = vmatmul.mubr.bf16.gmra.mrb[0].mxu0 %v6326
        %v8032 = vpop.f32.mrb[0].mxu0
        %v8033 = vadd.f32 %v7876, %v8032
        %v8034 = vpop.f32.mrb[0].mxu0
        %v8035 = vpop.f32.mrb[0].mxu0
        %v8036 = vadd.f32 %v7876, %v8035
        %v8037 = vpop.f32.mrb[0].mxu0
        %8038 = vmatprep.mubr.bf16.mxu0 0
        %8039 = vmatmul.mubr.bf16.gmra.mrb[0].mxu0 %v6327
        %v8040 = vpop.f32.mrb[0].mxu0
        %v8041 = vadd.f32 %v7876, %v8040
        %v8042 = vpop.f32.mrb[0].mxu0
        %v8043 = vpop.f32.mrb[0].mxu0
        %v8044 = vadd.f32 %v7876, %v8043
        %v8045 = vpop.f32.mrb[0].mxu0
        %8046 = vmatprep.mubr.bf16.mxu0 0
        %8047 = vmatmul.mubr.bf16.gmra.mrb[0].mxu0 %v6328
        %v8048 = vpop.f32.mrb[0].mxu0
        %v8049 = vadd.f32 %v7876, %v8048
        %v8050 = vpop.f32.mrb[0].mxu0
        %v8051 = vpop.f32.mrb[0].mxu0
        %v8052 = vadd.f32 %v7876, %v8051
        %v8053 = vpop.f32.mrb[0].mxu0
        %8054 = vmatprep.mubr.bf16.mxu0 0
        %8055 = vmatmul.mubr.bf16.gmra.mrb[0].mxu0 %v6329
        %v8056 = vpop.f32.mrb[0].mxu0
        %v8057 = vadd.f32 %v7876, %v8056
        %v8058 = vpop.f32.mrb[0].mxu0
        %v8059 = vpop.f32.mrb[0].mxu0
        %v8060 = vadd.f32 %v7876, %v8059
        %v8061 = vpop.f32.mrb[0].mxu0
        %8062 = vmatprep.mubr.bf16.mxu0 0
        %8063 = vmatmul.mubr.bf16.gmra.mrb[0].mxu0 %v6330
        %v8064 = vpop.f32.mrb[0].mxu0
        %v8065 = vadd.f32 %v7876, %v8064
        %v8066 = vpop.f32.mrb[0].mxu0
        %v8067 = vpop.f32.mrb[0].mxu0
        %v8068 = vadd.f32 %v7876, %v8067
        %v8069 = vpop.f32.mrb[0].mxu0
        %8070 = vmatprep.mubr.bf16.mxu0 0
        %8071 = vmatmul.mubr.bf16.gmra.mrb[0].mxu0 %v6331
        %v8072 = vpop.f32.mrb[0].mxu0
        %v8073 = vadd.f32 %v7876, %v8072
        %v8074 = vpop.f32.mrb[0].mxu0
        %v8075 = vpop.f32.mrb[0].mxu0
        %v8076 = vadd.f32 %v7876, %v8075
        %v8077 = vpop.f32.mrb[0].mxu0
        %8078 = vmatprep.mubr.bf16.mxu0 0
        %8079 = vmatmul.mubr.bf16.gmra.mrb[0].mxu0 %v6332
        %v8080 = vpop.f32.mrb[0].mxu0
        %v8081 = vadd.f32 %v7876, %v8080
        %v8082 = vpop.f32.mrb[0].mxu0
        %v8083 = vpop.f32.mrb[0].mxu0
        %v8084 = vadd.f32 %v7876, %v8083
        %v8085 = vpop.f32.mrb[0].mxu0
        %8086 = vdwg.mxu0
        %v8087 = vmul.f32 %v7961, 0.5
        %v8088 = vmul.f32 %v7964, 0.5
        %v8089 = vmul.f32 %v7969, 0.5
        %v8090 = vmul.f32 %v7972, 0.5
        %v8091 = vmul.f32 %v7977, 0.5
        %v8092 = vmul.f32 %v7980, 0.5
        %v8093 = vmul.f32 %v7985, 0.5
        %v8094 = vmul.f32 %v7988, 0.5
        %v8095 = vmul.f32 %v7993, 0.5
        %v8096 = vmul.f32 %v7996, 0.5
        %v8097 = vmul.f32 %v8001, 0.5
        %v8098 = vmul.f32 %v8004, 0.5
        %v8099 = vmul.f32 %v8009, 0.5
        %v8100 = vmul.f32 %v8012, 0.5
        %v8101 = vmul.f32 %v8017, 0.5
        %v8102 = vmul.f32 %v8020, 0.5
        %v8103 = vmul.f32 %v8025, 0.5
        %v8104 = vmul.f32 %v8028, 0.5
        %v8105 = vmul.f32 %v8033, 0.5
        %v8106 = vmul.f32 %v8036, 0.5
        %v8107 = vmul.f32 %v8041, 0.5
        %v8108 = vmul.f32 %v8044, 0.5
        %v8109 = vmul.f32 %v8049, 0.5
        %v8110 = vmul.f32 %v8052, 0.5
        %v8111 = vmul.f32 %v8057, 0.5
        %v8112 = vmul.f32 %v8060, 0.5
        %v8113 = vmul.f32 %v8065, 0.5
        %v8114 = vmul.f32 %v8068, 0.5
        %v8115 = vmul.f32 %v8073, 0.5
        %v8116 = vmul.f32 %v8076, 0.5
        %v8117 = vmul.f32 %v8081, 0.5
        %v8118 = vmul.f32 %v8084, 0.5
        %v8119 = vmul.f32 %v7961, 0.044715
        %v8120 = vmul.f32 %v7964, 0.044715
        %v8121 = vmul.f32 %v7969, 0.044715
        %v8122 = vmul.f32 %v7972, 0.044715
        %v8123 = vmul.f32 %v7977, 0.044715
        %v8124 = vmul.f32 %v7980, 0.044715
        %v8125 = vmul.f32 %v7985, 0.044715
        %v8126 = vmul.f32 %v7988, 0.044715
        %v8127 = vmul.f32 %v7993, 0.044715
        %v8128 = vmul.f32 %v7996, 0.044715
        %v8129 = vmul.f32 %v8001, 0.044715
        %v8130 = vmul.f32 %v8004, 0.044715
        %v8131 = vmul.f32 %v8009, 0.044715
        %v8132 = vmul.f32 %v8012, 0.044715
        %v8133 = vmul.f32 %v8017, 0.044715
        %v8134 = vmul.f32 %v8020, 0.044715
        %v8135 = vmul.f32 %v8025, 0.044715
        %v8136 = vmul.f32 %v8028, 0.044715
        %v8137 = vmul.f32 %v8033, 0.044715
        %v8138 = vmul.f32 %v8036, 0.044715
        %v8139 = vmul.f32 %v8041, 0.044715
        %v8140 = vmul.f32 %v8044, 0.044715
        %v8141 = vmul.f32 %v8049, 0.044715
        %v8142 = vmul.f32 %v8052, 0.044715
        %v8143 = vmul.f32 %v8057, 0.044715
        %v8144 = vmul.f32 %v8060, 0.044715
        %v8145 = vmul.f32 %v8065, 0.044715
        %v8146 = vmul.f32 %v8068, 0.044715
        %v8147 = vmul.f32 %v8073, 0.044715
        %v8148 = vmul.f32 %v8076, 0.044715
        %v8149 = vmul.f32 %v8081, 0.044715
        %v8150 = vmul.f32 %v8084, 0.044715
        %v8151 = vmul.f32 %v8119, %v7961
        %v8152 = vmul.f32 %v8120, %v7964
        %v8153 = vmul.f32 %v8121, %v7969
        %v8154 = vmul.f32 %v8122, %v7972
        %v8155 = vmul.f32 %v8123, %v7977
        %v8156 = vmul.f32 %v8124, %v7980
        %v8157 = vmul.f32 %v8125, %v7985
        %v8158 = vmul.f32 %v8126, %v7988
        %v8159 = vmul.f32 %v8127, %v7993
        %v8160 = vmul.f32 %v8128, %v7996
        %v8161 = vmul.f32 %v8129, %v8001
        %v8162 = vmul.f32 %v8130, %v8004
        %v8163 = vmul.f32 %v8131, %v8009
        %v8164 = vmul.f32 %v8132, %v8012
        %v8165 = vmul.f32 %v8133, %v8017
        %v8166 = vmul.f32 %v8134, %v8020
        %v8167 = vmul.f32 %v8135, %v8025
        %v8168 = vmul.f32 %v8136, %v8028
        %v8169 = vmul.f32 %v8137, %v8033
        %v8170 = vmul.f32 %v8138, %v8036
        %v8171 = vmul.f32 %v8139, %v8041
        %v8172 = vmul.f32 %v8140, %v8044
        %v8173 = vmul.f32 %v8141, %v8049
        %v8174 = vmul.f32 %v8142, %v8052
        %v8175 = vmul.f32 %v8143, %v8057
        %v8176 = vmul.f32 %v8144, %v8060
        %v8177 = vmul.f32 %v8145, %v8065
        %v8178 = vmul.f32 %v8146, %v8068
        %v8179 = vmul.f32 %v8147, %v8073
        %v8180 = vmul.f32 %v8148, %v8076
        %v8181 = vmul.f32 %v8149, %v8081
        %v8182 = vmul.f32 %v8150, %v8084
        %v8183 = vmul.f32 %v8151, %v7961
        %v8184 = vmul.f32 %v8152, %v7964
        %v8185 = vmul.f32 %v8153, %v7969
        %v8186 = vmul.f32 %v8154, %v7972
        %v8187 = vmul.f32 %v8155, %v7977
        %v8188 = vmul.f32 %v8156, %v7980
        %v8189 = vmul.f32 %v8157, %v7985
        %v8190 = vmul.f32 %v8158, %v7988
        %v8191 = vmul.f32 %v8159, %v7993
        %v8192 = vmul.f32 %v8160, %v7996
        %v8193 = vmul.f32 %v8161, %v8001
        %v8194 = vmul.f32 %v8162, %v8004
        %v8195 = vmul.f32 %v8163, %v8009
        %v8196 = vmul.f32 %v8164, %v8012
        %v8197 = vmul.f32 %v8165, %v8017
        %v8198 = vmul.f32 %v8166, %v8020
        %v8199 = vmul.f32 %v8167, %v8025
        %v8200 = vmul.f32 %v8168, %v8028
        %v8201 = vmul.f32 %v8169, %v8033
        %v8202 = vmul.f32 %v8170, %v8036
        %v8203 = vmul.f32 %v8171, %v8041
        %v8204 = vmul.f32 %v8172, %v8044
        %v8205 = vmul.f32 %v8173, %v8049
        %v8206 = vmul.f32 %v8174, %v8052
        %v8207 = vmul.f32 %v8175, %v8057
        %v8208 = vmul.f32 %v8176, %v8060
        %v8209 = vmul.f32 %v8177, %v8065
        %v8210 = vmul.f32 %v8178, %v8068
        %v8211 = vmul.f32 %v8179, %v8073
        %v8212 = vmul.f32 %v8180, %v8076
        %v8213 = vmul.f32 %v8181, %v8081
        %v8214 = vmul.f32 %v8182, %v8084
        %v8215 = vadd.f32 %v7961, %v8183
        %v8216 = vadd.f32 %v7964, %v8184
        %v8217 = vadd.f32 %v7969, %v8185
        %v8218 = vadd.f32 %v7972, %v8186
        %v8219 = vadd.f32 %v7977, %v8187
        %v8220 = vadd.f32 %v7980, %v8188
        %v8221 = vadd.f32 %v7985, %v8189
        %v8222 = vadd.f32 %v7988, %v8190
        %v8223 = vadd.f32 %v7993, %v8191
        %v8224 = vadd.f32 %v7996, %v8192
        %v8225 = vadd.f32 %v8001, %v8193
        %v8226 = vadd.f32 %v8004, %v8194
        %v8227 = vadd.f32 %v8009, %v8195
        %v8228 = vadd.f32 %v8012, %v8196
        %v8229 = vadd.f32 %v8017, %v8197
        %v8230 = vadd.f32 %v8020, %v8198
        %v8231 = vadd.f32 %v8025, %v8199
        %v8232 = vadd.f32 %v8028, %v8200
        %v8233 = vadd.f32 %v8033, %v8201
        %v8234 = vadd.f32 %v8036, %v8202
        %v8235 = vadd.f32 %v8041, %v8203
        %v8236 = vadd.f32 %v8044, %v8204
        %v8237 = vadd.f32 %v8049, %v8205
        %v8238 = vadd.f32 %v8052, %v8206
        %v8239 = vadd.f32 %v8057, %v8207
        %v8240 = vadd.f32 %v8060, %v8208
        %v8241 = vadd.f32 %v8065, %v8209
        %v8242 = vadd.f32 %v8068, %v8210
        %v8243 = vadd.f32 %v8073, %v8211
        %v8244 = vadd.f32 %v8076, %v8212
        %v8245 = vadd.f32 %v8081, %v8213
        %v8246 = vadd.f32 %v8084, %v8214
        %v8247 = vmul.f32 %v8215, 0.7978846
        %v8248 = vmul.f32 %v8216, 0.7978846
        %v8249 = vmul.f32 %v8217, 0.7978846
        %v8250 = vmul.f32 %v8218, 0.7978846
        %v8251 = vmul.f32 %v8219, 0.7978846
        %v8252 = vmul.f32 %v8220, 0.7978846
        %v8253 = vmul.f32 %v8221, 0.7978846
        %v8254 = vmul.f32 %v8222, 0.7978846
        %v8255 = vmul.f32 %v8223, 0.7978846
        %v8256 = vmul.f32 %v8224, 0.7978846
        %v8257 = vmul.f32 %v8225, 0.7978846
        %v8258 = vmul.f32 %v8226, 0.7978846
        %v8259 = vmul.f32 %v8227, 0.7978846
        %v8260 = vmul.f32 %v8228, 0.7978846
        %v8261 = vmul.f32 %v8229, 0.7978846
        %v8262 = vmul.f32 %v8230, 0.7978846
        %v8263 = vmul.f32 %v8231, 0.7978846
        %v8264 = vmul.f32 %v8232, 0.7978846
        %v8265 = vmul.f32 %v8233, 0.7978846
        %v8266 = vmul.f32 %v8234, 0.7978846
        %v8267 = vmul.f32 %v8235, 0.7978846
        %v8268 = vmul.f32 %v8236, 0.7978846
        %v8269 = vmul.f32 %v8237, 0.7978846
        %v8270 = vmul.f32 %v8238, 0.7978846
        %v8271 = vmul.f32 %v8239, 0.7978846
        %v8272 = vmul.f32 %v8240, 0.7978846
        %v8273 = vmul.f32 %v8241, 0.7978846
        %v8274 = vmul.f32 %v8242, 0.7978846
        %v8275 = vmul.f32 %v8243, 0.7978846
        %v8276 = vmul.f32 %v8244, 0.7978846
        %v8277 = vmul.f32 %v8245, 0.7978846
        %v8278 = vmul.f32 %v8246, 0.7978846
        %v8279 = vtanh.pop %v8247
        %v8280 = vtanh.pop %v8248
        %v8281 = vtanh.pop %v8249
        %v8282 = vtanh.pop %v8250
        %v8283 = vtanh.pop %v8251
        %v8284 = vtanh.pop %v8252
        %v8285 = vtanh.pop %v8253
        %v8286 = vtanh.pop %v8254
        %v8287 = vtanh.pop %v8255
        %v8288 = vtanh.pop %v8256
        %v8289 = vtanh.pop %v8257
        %v8290 = vtanh.pop %v8258
        %v8291 = vtanh.pop %v8259
        %v8292 = vtanh.pop %v8260
        %v8293 = vtanh.pop %v8261
        %v8294 = vtanh.pop %v8262
        %v8295 = vtanh.pop %v8263
        %v8296 = vtanh.pop %v8264
        %v8297 = vtanh.pop %v8265
        %v8298 = vtanh.pop %v8266
        %v8299 = vtanh.pop %v8267
        %v8300 = vtanh.pop %v8268
        %v8301 = vtanh.pop %v8269
        %v8302 = vtanh.pop %v8270
        %v8303 = vtanh.pop %v8271
        %v8304 = vtanh.pop %v8272
        %v8305 = vtanh.pop %v8273
        %v8306 = vtanh.pop %v8274
        %v8307 = vtanh.pop %v8275
        %v8308 = vtanh.pop %v8276
        %v8309 = vtanh.pop %v8277
        %v8310 = vtanh.pop %v8278
        %v8311 = vadd.f32 %v8279, 1.0
        %v8312 = vadd.f32 %v8280, 1.0
        %v8313 = vadd.f32 %v8281, 1.0
        %v8314 = vadd.f32 %v8282, 1.0
        %v8315 = vadd.f32 %v8283, 1.0
        %v8316 = vadd.f32 %v8284, 1.0
        %v8317 = vadd.f32 %v8285, 1.0
        %v8318 = vadd.f32 %v8286, 1.0
        %v8319 = vadd.f32 %v8287, 1.0
        %v8320 = vadd.f32 %v8288, 1.0
        %v8321 = vadd.f32 %v8289, 1.0
        %v8322 = vadd.f32 %v8290, 1.0
        %v8323 = vadd.f32 %v8291, 1.0
        %v8324 = vadd.f32 %v8292, 1.0
        %v8325 = vadd.f32 %v8293, 1.0
        %v8326 = vadd.f32 %v8294, 1.0
        %v8327 = vadd.f32 %v8295, 1.0
        %v8328 = vadd.f32 %v8296, 1.0
        %v8329 = vadd.f32 %v8297, 1.0
        %v8330 = vadd.f32 %v8298, 1.0
        %v8331 = vadd.f32 %v8299, 1.0
        %v8332 = vadd.f32 %v8300, 1.0
        %v8333 = vadd.f32 %v8301, 1.0
        %v8334 = vadd.f32 %v8302, 1.0
        %v8335 = vadd.f32 %v8303, 1.0
        %v8336 = vadd.f32 %v8304, 1.0
        %v8337 = vadd.f32 %v8305, 1.0
        %v8338 = vadd.f32 %v8306, 1.0
        %v8339 = vadd.f32 %v8307, 1.0
        %v8340 = vadd.f32 %v8308, 1.0
        %v8341 = vadd.f32 %v8309, 1.0
        %v8342 = vadd.f32 %v8310, 1.0
        %v8343 = vmul.f32 %v8087, %v8311
        %v8344 = vmul.f32 %v8088, %v8312
        %v8345 = vmul.f32 %v8089, %v8313
        %v8346 = vmul.f32 %v8090, %v8314
        %v8347 = vmul.f32 %v8091, %v8315
        %v8348 = vmul.f32 %v8092, %v8316
        %v8349 = vmul.f32 %v8093, %v8317
        %v8350 = vmul.f32 %v8094, %v8318
        %v8351 = vmul.f32 %v8095, %v8319
        %v8352 = vmul.f32 %v8096, %v8320
        %v8353 = vmul.f32 %v8097, %v8321
        %v8354 = vmul.f32 %v8098, %v8322
        %v8355 = vmul.f32 %v8099, %v8323
        %v8356 = vmul.f32 %v8100, %v8324
        %v8357 = vmul.f32 %v8101, %v8325
        %v8358 = vmul.f32 %v8102, %v8326
        %v8359 = vmul.f32 %v8103, %v8327
        %v8360 = vmul.f32 %v8104, %v8328
        %v8361 = vmul.f32 %v8105, %v8329
        %v8362 = vmul.f32 %v8106, %v8330
        %v8363 = vmul.f32 %v8107, %v8331
        %v8364 = vmul.f32 %v8108, %v8332
        %v8365 = vmul.f32 %v8109, %v8333
        %v8366 = vmul.f32 %v8110, %v8334
        %v8367 = vmul.f32 %v8111, %v8335
        %v8368 = vmul.f32 %v8112, %v8336
        %v8369 = vmul.f32 %v8113, %v8337
        %v8370 = vmul.f32 %v8114, %v8338
        %v8371 = vmul.f32 %v8115, %v8339
        %v8372 = vmul.f32 %v8116, %v8340
        %v8373 = vmul.f32 %v8117, %v8341
        %v8374 = vmul.f32 %v8118, %v8342
        %v8375 = vpack.c.bf16 %v8344, %v8343
        %v8376 = vpack.c.bf16 %v8346, %v8345
        %v8377 = vpack.c.bf16 %v8348, %v8347
        %v8378 = vpack.c.bf16 %v8350, %v8349
        %v8379 = vpack.c.bf16 %v8352, %v8351
        %v8380 = vpack.c.bf16 %v8354, %v8353
        %v8381 = vpack.c.bf16 %v8356, %v8355
        %v8382 = vpack.c.bf16 %v8358, %v8357
        %v8383 = vpack.c.bf16 %v8360, %v8359
        %v8384 = vpack.c.bf16 %v8362, %v8361
        %v8385 = vpack.c.bf16 %v8364, %v8363
        %v8386 = vpack.c.bf16 %v8366, %v8365
        %v8387 = vpack.c.bf16 %v8368, %v8367
        %v8388 = vpack.c.bf16 %v8370, %v8369
        %v8389 = vpack.c.bf16 %v8372, %v8371
        %v8390 = vpack.c.bf16 %v8374, %v8373
        %v8391 = vld [vmem:[%s11 + $0x80] sm:$0xf]
        %v8392 = vld [vmem:[%s11 + $0x84] sm:$0xf]
        %v8393 = vld [vmem:[%s11 + $0x88] sm:$0xf]
        %v8394 = vld [vmem:[%s11 + $0x8c] sm:$0xf]
        %v8395 = vld [vmem:[%s11 + $0x90] sm:$0xf]
        %v8396 = vld [vmem:[%s11 + $0x94] sm:$0xf]
        %v8397 = vld [vmem:[%s11 + $0x98] sm:$0xf]
        %v8398 = vld [vmem:[%s11 + $0x9c] sm:$0xf]
        %v8399 = vld [vmem:[%s11 + $0xa0] sm:$0xf]
        %v8400 = vld [vmem:[%s11 + $0xa4] sm:$0xf]
        %v8401 = vld [vmem:[%s11 + $0xa8] sm:$0xf]
        %v8402 = vld [vmem:[%s11 + $0xac] sm:$0xf]
        %v8403 = vld [vmem:[%s11 + $0xb0] sm:$0xf]
        %v8404 = vld [vmem:[%s11 + $0xb4] sm:$0xf]
        %v8405 = vld [vmem:[%s11 + $0xb8] sm:$0xf]
        %v8406 = vld [vmem:[%s11 + $0xbc] sm:$0xf]
        %v8423 = vunpack.c.l.b16 %v8391
        %v8424 = vunpack.c.l.b16 %v8392
        %v8425 = vunpack.c.l.b16 %v8393
        %v8426 = vunpack.c.l.b16 %v8394
        %v8427 = vunpack.c.l.b16 %v8395
        %v8428 = vunpack.c.l.b16 %v8396
        %v8429 = vunpack.c.l.b16 %v8397
        %v8430 = vunpack.c.l.b16 %v8398
        %v8431 = vunpack.c.l.b16 %v8399
        %v8432 = vunpack.c.l.b16 %v8400
        %v8433 = vunpack.c.l.b16 %v8401
        %v8434 = vunpack.c.l.b16 %v8402
        %v8435 = vunpack.c.l.b16 %v8403
        %v8436 = vunpack.c.l.b16 %v8404
        %v8437 = vunpack.c.l.b16 %v8405
        %v8438 = vunpack.c.l.b16 %v8406
        %v8439 = vpack.c.b16 %v8424, %v8423
        %v8440 = vpack.c.b16 %v8426, %v8425
        %v8441 = vpack.c.b16 %v8428, %v8427
        %v8442 = vpack.c.b16 %v8430, %v8429
        %v8443 = vpack.c.b16 %v8432, %v8431
        %v8444 = vpack.c.b16 %v8434, %v8433
        %v8445 = vpack.c.b16 %v8436, %v8435
        %v8446 = vpack.c.b16 %v8438, %v8437
        %8455 = vmatprep.subr.bf16.mxu0 0
        %8456 = vmatpush1.bf16.msra.mxu0 %v8439
        %8457 = vmatprep.subr.bf16.mxu0 0
        %8458 = vmatpush1.bf16.msra.mxu0 %v8440
        %8459 = vmatprep.subr.bf16.mxu0 0
        %8460 = vmatpush1.bf16.msra.mxu0 %v8441
        %8461 = vmatprep.subr.bf16.mxu0 0
        %8462 = vmatpush1.bf16.msra.mxu0 %v8442
        %8463 = vmatprep.subr.bf16.mxu0 0
        %8464 = vmatpush1.bf16.msra.mxu0 %v8443
        %8465 = vmatprep.subr.bf16.mxu0 0
        %8466 = vmatpush1.bf16.msra.mxu0 %v8444
        %8467 = vmatprep.subr.bf16.mxu0 0
        %8468 = vmatpush1.bf16.msra.mxu0 %v8445
        %8469 = vmatprep.subr.bf16.mxu0 0
        %8470 = vmatpush1.bf16.msra.mxu0 %v8446
        %8471 = vmatprep.subr.bf16.mxu0 0
        %8472 = vmatpush1.bf16.msra.mxu0 0
        %8473 = vmatprep.subr.bf16.mxu0 0
        %8474 = vmatpush1.bf16.msra.mxu0 0
        %8475 = vmatprep.subr.bf16.mxu0 0
        %8476 = vmatpush1.bf16.msra.mxu0 0
        %8477 = vmatprep.subr.bf16.mxu0 0
        %8478 = vmatpush1.bf16.msra.mxu0 0
        %8479 = vmatprep.subr.bf16.mxu0 0
        %8480 = vmatpush1.bf16.msra.mxu0 0
        %8481 = vmatprep.subr.bf16.mxu0 0
        %8482 = vmatpush1.bf16.msra.mxu0 0
        %8483 = vmatprep.subr.bf16.mxu0 0
        %8484 = vmatpush1.bf16.msra.mxu0 0
        %8485 = vmatprep.subr.bf16.mxu0 0
        %8486 = vmatpush1.bf16.msra.mxu0 0
        %8487 = vmatprep.mubr.bf16.mxu0 0
        %8488 = vmatmul.mubr.bf16.gmra.mrb[0].mxu0 %v8375
        %v8489 = vpop.f32.mrb[0].mxu0
        %v8490 = vadd.f32 0.0, %v8489
        %v8491 = vpop.f32.mrb[0].mxu0
        %v8492 = vpop.f32.mrb[0].mxu0
        %v8493 = vadd.f32 0.0, %v8492
        %v8494 = vpop.f32.mrb[0].mxu0
        %8495 = vmatprep.mubr.bf16.mxu0 0
        %8496 = vmatmul.mubr.bf16.gmra.mrb[0].mxu0 %v8376
        %v8497 = vpop.f32.mrb[0].mxu0
        %v8498 = vadd.f32 0.0, %v8497
        %v8499 = vpop.f32.mrb[0].mxu0
        %v8500 = vpop.f32.mrb[0].mxu0
        %v8501 = vadd.f32 0.0, %v8500
        %v8502 = vpop.f32.mrb[0].mxu0
        %8503 = vmatprep.mubr.bf16.mxu0 0
        %8504 = vmatmul.mubr.bf16.gmra.mrb[0].mxu0 %v8377
        %v8505 = vpop.f32.mrb[0].mxu0
        %v8506 = vadd.f32 0.0, %v8505
        %v8507 = vpop.f32.mrb[0].mxu0
        %v8508 = vpop.f32.mrb[0].mxu0
        %v8509 = vadd.f32 0.0, %v8508
        %v8510 = vpop.f32.mrb[0].mxu0
        %8511 = vmatprep.mubr.bf16.mxu0 0
        %8512 = vmatmul.mubr.bf16.gmra.mrb[0].mxu0 %v8378
        %v8513 = vpop.f32.mrb[0].mxu0
        %v8514 = vadd.f32 0.0, %v8513
        %v8515 = vpop.f32.mrb[0].mxu0
        %v8516 = vpop.f32.mrb[0].mxu0
        %v8517 = vadd.f32 0.0, %v8516
        %v8518 = vpop.f32.mrb[0].mxu0
        %8519 = vmatprep.mubr.bf16.mxu0 0
        %8520 = vmatmul.mubr.bf16.gmra.mrb[0].mxu0 %v8379
        %v8521 = vpop.f32.mrb[0].mxu0
        %v8522 = vadd.f32 0.0, %v8521
        %v8523 = vpop.f32.mrb[0].mxu0
        %v8524 = vpop.f32.mrb[0].mxu0
        %v8525 = vadd.f32 0.0, %v8524
        %v8526 = vpop.f32.mrb[0].mxu0
        %8527 = vmatprep.mubr.bf16.mxu0 0
        %8528 = vmatmul.mubr.bf16.gmra.mrb[0].mxu0 %v8380
        %v8529 = vpop.f32.mrb[0].mxu0
        %v8530 = vadd.f32 0.0, %v8529
        %v8531 = vpop.f32.mrb[0].mxu0
        %v8532 = vpop.f32.mrb[0].mxu0
        %v8533 = vadd.f32 0.0, %v8532
        %v8534 = vpop.f32.mrb[0].mxu0
        %8535 = vmatprep.mubr.bf16.mxu0 0
        %8536 = vmatmul.mubr.bf16.gmra.mrb[0].mxu0 %v8381
        %v8537 = vpop.f32.mrb[0].mxu0
        %v8538 = vadd.f32 0.0, %v8537
        %v8539 = vpop.f32.mrb[0].mxu0
        %v8540 = vpop.f32.mrb[0].mxu0
        %v8541 = vadd.f32 0.0, %v8540
        %v8542 = vpop.f32.mrb[0].mxu0
        %8543 = vmatprep.mubr.bf16.mxu0 0
        %8544 = vmatmul.mubr.bf16.gmra.mrb[0].mxu0 %v8382
        %v8545 = vpop.f32.mrb[0].mxu0
        %v8546 = vadd.f32 0.0, %v8545
        %v8547 = vpop.f32.mrb[0].mxu0
        %v8548 = vpop.f32.mrb[0].mxu0
        %v8549 = vadd.f32 0.0, %v8548
        %v8550 = vpop.f32.mrb[0].mxu0
        %8551 = vmatprep.mubr.bf16.mxu0 0
        %8552 = vmatmul.mubr.bf16.gmra.mrb[0].mxu0 %v8383
        %v8553 = vpop.f32.mrb[0].mxu0
        %v8554 = vadd.f32 0.0, %v8553
        %v8555 = vpop.f32.mrb[0].mxu0
        %v8556 = vpop.f32.mrb[0].mxu0
        %v8557 = vadd.f32 0.0, %v8556
        %v8558 = vpop.f32.mrb[0].mxu0
        %8559 = vmatprep.mubr.bf16.mxu0 0
        %8560 = vmatmul.mubr.bf16.gmra.mrb[0].mxu0 %v8384
        %v8561 = vpop.f32.mrb[0].mxu0
        %v8562 = vadd.f32 0.0, %v8561
        %v8563 = vpop.f32.mrb[0].mxu0
        %v8564 = vpop.f32.mrb[0].mxu0
        %v8565 = vadd.f32 0.0, %v8564
        %v8566 = vpop.f32.mrb[0].mxu0
        %8567 = vmatprep.mubr.bf16.mxu0 0
        %8568 = vmatmul.mubr.bf16.gmra.mrb[0].mxu0 %v8385
        %v8569 = vpop.f32.mrb[0].mxu0
        %v8570 = vadd.f32 0.0, %v8569
        %v8571 = vpop.f32.mrb[0].mxu0
        %v8572 = vpop.f32.mrb[0].mxu0
        %v8573 = vadd.f32 0.0, %v8572
        %v8574 = vpop.f32.mrb[0].mxu0
        %8575 = vmatprep.mubr.bf16.mxu0 0
        %8576 = vmatmul.mubr.bf16.gmra.mrb[0].mxu0 %v8386
        %v8577 = vpop.f32.mrb[0].mxu0
        %v8578 = vadd.f32 0.0, %v8577
        %v8579 = vpop.f32.mrb[0].mxu0
        %v8580 = vpop.f32.mrb[0].mxu0
        %v8581 = vadd.f32 0.0, %v8580
        %v8582 = vpop.f32.mrb[0].mxu0
        %8583 = vmatprep.mubr.bf16.mxu0 0
        %8584 = vmatmul.mubr.bf16.gmra.mrb[0].mxu0 %v8387
        %v8585 = vpop.f32.mrb[0].mxu0
        %v8586 = vadd.f32 0.0, %v8585
        %v8587 = vpop.f32.mrb[0].mxu0
        %v8588 = vpop.f32.mrb[0].mxu0
        %v8589 = vadd.f32 0.0, %v8588
        %v8590 = vpop.f32.mrb[0].mxu0
        %8591 = vmatprep.mubr.bf16.mxu0 0
        %8592 = vmatmul.mubr.bf16.gmra.mrb[0].mxu0 %v8388
        %v8593 = vpop.f32.mrb[0].mxu0
        %v8594 = vadd.f32 0.0, %v8593
        %v8595 = vpop.f32.mrb[0].mxu0
        %v8596 = vpop.f32.mrb[0].mxu0
        %v8597 = vadd.f32 0.0, %v8596
        %v8598 = vpop.f32.mrb[0].mxu0
        %8599 = vmatprep.mubr.bf16.mxu0 0
        %8600 = vmatmul.mubr.bf16.gmra.mrb[0].mxu0 %v8389
        %v8601 = vpop.f32.mrb[0].mxu0
        %v8602 = vadd.f32 0.0, %v8601
        %v8603 = vpop.f32.mrb[0].mxu0
        %v8604 = vpop.f32.mrb[0].mxu0
        %v8605 = vadd.f32 0.0, %v8604
        %v8606 = vpop.f32.mrb[0].mxu0
        %8607 = vmatprep.mubr.bf16.mxu0 0
        %8608 = vmatmul.mubr.bf16.gmra.mrb[0].mxu0 %v8390
        %v8609 = vpop.f32.mrb[0].mxu0
        %v8610 = vadd.f32 0.0, %v8609
        %v8611 = vpop.f32.mrb[0].mxu0
        %v8612 = vpop.f32.mrb[0].mxu0
        %v8613 = vadd.f32 0.0, %v8612
        %v8614 = vpop.f32.mrb[0].mxu0
        %8615 = vdwg.mxu0
        %v8616 = vadd.f32 %v7729, %v8490
        %v8617 = vadd.f32 %v7732, %v8493
        %v8618 = vadd.f32 %v7737, %v8498
        %v8619 = vadd.f32 %v7740, %v8501
        %v8620 = vadd.f32 %v7745, %v8506
        %v8621 = vadd.f32 %v7748, %v8509
        %v8622 = vadd.f32 %v7753, %v8514
        %v8623 = vadd.f32 %v7756, %v8517
        %v8624 = vadd.f32 %v7761, %v8522
        %v8625 = vadd.f32 %v7764, %v8525
        %v8626 = vadd.f32 %v7769, %v8530
        %v8627 = vadd.f32 %v7772, %v8533
        %v8628 = vadd.f32 %v7777, %v8538
        %v8629 = vadd.f32 %v7780, %v8541
        %v8630 = vadd.f32 %v7785, %v8546
        %v8631 = vadd.f32 %v7788, %v8549
        %v8632 = vadd.f32 %v7793, %v8554
        %v8633 = vadd.f32 %v7796, %v8557
        %v8634 = vadd.f32 %v7801, %v8562
        %v8635 = vadd.f32 %v7804, %v8565
        %v8636 = vadd.f32 %v7809, %v8570
        %v8637 = vadd.f32 %v7812, %v8573
        %v8638 = vadd.f32 %v7817, %v8578
        %v8639 = vadd.f32 %v7820, %v8581
        %v8640 = vadd.f32 %v7825, %v8586
        %v8641 = vadd.f32 %v7828, %v8589
        %v8642 = vadd.f32 %v7833, %v8594
        %v8643 = vadd.f32 %v7836, %v8597
        %v8644 = vadd.f32 %v7841, %v8602
        %v8645 = vadd.f32 %v7844, %v8605
        %v8646 = vadd.f32 %v7849, %v8610
        %v8647 = vadd.f32 %v7852, %v8613
        %v8648 = vld [vmem:[%s9 + $0xc] sm:$0xf]
        %v8649 = vld [vmem:[%s9 + $0x1c] sm:$0xf]
        %v8650 = vld [vmem:[%s9 + $0x2c] sm:$0xf]
        %v8651 = vld [vmem:[%s9 + $0x3c] sm:$0xf]
        %v8652 = vld [vmem:[%s9 + $0x4c] sm:$0xf]
        %v8653 = vld [vmem:[%s9 + $0x5c] sm:$0xf]
        %v8654 = vld [vmem:[%s9 + $0x6c] sm:$0xf]
        %v8655 = vld [vmem:[%s9 + $0x7c] sm:$0xf]
        %v8656 = vld [vmem:[%s9 + $0x8c] sm:$0xf]
        %v8657 = vld [vmem:[%s9 + $0x9c] sm:$0xf]
        %v8658 = vld [vmem:[%s9 + $0xac] sm:$0xf]
        %v8659 = vld [vmem:[%s9 + $0xbc] sm:$0xf]
        %v8660 = vld [vmem:[%s9 + $0xcc] sm:$0xf]
        %v8661 = vld [vmem:[%s9 + $0xdc] sm:$0xf]
        %v8662 = vld [vmem:[%s9 + $0xec] sm:$0xf]
        %v8663 = vld [vmem:[%s9 + $0xfc] sm:$0xf]
        %v8664 = vld [vmem:[%s10 + $0x3] sm:$0x1]
        %v8666 = vlaneseq
        %v8667 = vshrl.u32 %v8666, 7
        %v8668 = vsub.s32 0, %v8667
        %v8669 = vrot.slane %v8664, %v8668
        %v8687 = vunpack.c.l.b16 %v8648
        %v8688 = vunpack.c.l.b16 %v8649
        %v8689 = vunpack.c.l.b16 %v8650
        %v8690 = vunpack.c.l.b16 %v8651
        %v8691 = vunpack.c.l.b16 %v8652
        %v8692 = vunpack.c.l.b16 %v8653
        %v8693 = vunpack.c.l.b16 %v8654
        %v8694 = vunpack.c.l.b16 %v8655
        %v8695 = vunpack.c.l.b16 %v8656
        %v8696 = vunpack.c.l.b16 %v8657
        %v8697 = vunpack.c.l.b16 %v8658
        %v8698 = vunpack.c.l.b16 %v8659
        %v8699 = vunpack.c.l.b16 %v8660
        %v8700 = vunpack.c.l.b16 %v8661
        %v8701 = vunpack.c.l.b16 %v8662
        %v8702 = vunpack.c.l.b16 %v8663
        %v8703 = vpack.c.b16 %v8688, %v8687
        %v8704 = vpack.c.b16 %v8690, %v8689
        %v8705 = vpack.c.b16 %v8692, %v8691
        %v8706 = vpack.c.b16 %v8694, %v8693
        %v8707 = vpack.c.b16 %v8696, %v8695
        %v8708 = vpack.c.b16 %v8698, %v8697
        %v8709 = vpack.c.b16 %v8700, %v8699
        %v8710 = vpack.c.b16 %v8702, %v8701
        %8719 = vmatprep.subr.bf16.mxu0 0
        %8720 = vmatpush1.bf16.msra.mxu0 %v8703
        %8721 = vmatprep.subr.bf16.mxu0 0
        %8722 = vmatpush1.bf16.msra.mxu0 %v8704
        %8723 = vmatprep.subr.bf16.mxu0 0
        %8724 = vmatpush1.bf16.msra.mxu0 %v8705
        %8725 = vmatprep.subr.bf16.mxu0 0
        %8726 = vmatpush1.bf16.msra.mxu0 %v8706
        %8727 = vmatprep.subr.bf16.mxu0 0
        %8728 = vmatpush1.bf16.msra.mxu0 %v8707
        %8729 = vmatprep.subr.bf16.mxu0 0
        %8730 = vmatpush1.bf16.msra.mxu0 %v8708
        %8731 = vmatprep.subr.bf16.mxu0 0
        %8732 = vmatpush1.bf16.msra.mxu0 %v8709
        %8733 = vmatprep.subr.bf16.mxu0 0
        %8734 = vmatpush1.bf16.msra.mxu0 %v8710
        %8735 = vmatprep.subr.bf16.mxu0 0
        %8736 = vmatpush1.bf16.msra.mxu0 0
        %8737 = vmatprep.subr.bf16.mxu0 0
        %8738 = vmatpush1.bf16.msra.mxu0 0
        %8739 = vmatprep.subr.bf16.mxu0 0
        %8740 = vmatpush1.bf16.msra.mxu0 0
        %8741 = vmatprep.subr.bf16.mxu0 0
        %8742 = vmatpush1.bf16.msra.mxu0 0
        %8743 = vmatprep.subr.bf16.mxu0 0
        %8744 = vmatpush1.bf16.msra.mxu0 0
        %8745 = vmatprep.subr.bf16.mxu0 0
        %8746 = vmatpush1.bf16.msra.mxu0 0
        %8747 = vmatprep.subr.bf16.mxu0 0
        %8748 = vmatpush1.bf16.msra.mxu0 0
        %8749 = vmatprep.subr.bf16.mxu0 0
        %8750 = vmatpush1.bf16.msra.mxu0 0
        %8751 = vmatprep.mubr.bf16.mxu0 0
        %8752 = vmatmul.mubr.bf16.gmra.mrb[0].mxu0 %v6317
        %v8753 = vpop.f32.mrb[0].mxu0
        %v8754 = vadd.f32 %v8669, %v8753
        %v8755 = vpop.f32.mrb[0].mxu0
        %v8756 = vpop.f32.mrb[0].mxu0
        %v8757 = vadd.f32 %v8669, %v8756
        %v8758 = vpop.f32.mrb[0].mxu0
        %8759 = vmatprep.mubr.bf16.mxu0 0
        %8760 = vmatmul.mubr.bf16.gmra.mrb[0].mxu0 %v6318
        %v8761 = vpop.f32.mrb[0].mxu0
        %v8762 = vadd.f32 %v8669, %v8761
        %v8763 = vpop.f32.mrb[0].mxu0
        %v8764 = vpop.f32.mrb[0].mxu0
        %v8765 = vadd.f32 %v8669, %v8764
        %v8766 = vpop.f32.mrb[0].mxu0
        %8767 = vmatprep.mubr.bf16.mxu0 0
        %8768 = vmatmul.mubr.bf16.gmra.mrb[0].mxu0 %v6319
        %v8769 = vpop.f32.mrb[0].mxu0
        %v8770 = vadd.f32 %v8669, %v8769
        %v8771 = vpop.f32.mrb[0].mxu0
        %v8772 = vpop.f32.mrb[0].mxu0
        %v8773 = vadd.f32 %v8669, %v8772
        %v8774 = vpop.f32.mrb[0].mxu0
        %8775 = vmatprep.mubr.bf16.mxu0 0
        %8776 = vmatmul.mubr.bf16.gmra.mrb[0].mxu0 %v6320
        %v8777 = vpop.f32.mrb[0].mxu0
        %v8778 = vadd.f32 %v8669, %v8777
        %v8779 = vpop.f32.mrb[0].mxu0
        %v8780 = vpop.f32.mrb[0].mxu0
        %v8781 = vadd.f32 %v8669, %v8780
        %v8782 = vpop.f32.mrb[0].mxu0
        %8783 = vmatprep.mubr.bf16.mxu0 0
        %8784 = vmatmul.mubr.bf16.gmra.mrb[0].mxu0 %v6321
        %v8785 = vpop.f32.mrb[0].mxu0
        %v8786 = vadd.f32 %v8669, %v8785
        %v8787 = vpop.f32.mrb[0].mxu0
        %v8788 = vpop.f32.mrb[0].mxu0
        %v8789 = vadd.f32 %v8669, %v8788
        %v8790 = vpop.f32.mrb[0].mxu0
        %8791 = vmatprep.mubr.bf16.mxu0 0
        %8792 = vmatmul.mubr.bf16.gmra.mrb[0].mxu0 %v6322
        %v8793 = vpop.f32.mrb[0].mxu0
        %v8794 = vadd.f32 %v8669, %v8793
        %v8795 = vpop.f32.mrb[0].mxu0
        %v8796 = vpop.f32.mrb[0].mxu0
        %v8797 = vadd.f32 %v8669, %v8796
        %v8798 = vpop.f32.mrb[0].mxu0
        %8799 = vmatprep.mubr.bf16.mxu0 0
        %8800 = vmatmul.mubr.bf16.gmra.mrb[0].mxu0 %v6323
        %v8801 = vpop.f32.mrb[0].mxu0
        %v8802 = vadd.f32 %v8669, %v8801
        %v8803 = vpop.f32.mrb[0].mxu0
        %v8804 = vpop.f32.mrb[0].mxu0
        %v8805 = vadd.f32 %v8669, %v8804
        %v8806 = vpop.f32.mrb[0].mxu0
        %8807 = vmatprep.mubr.bf16.mxu0 0
        %8808 = vmatmul.mubr.bf16.gmra.mrb[0].mxu0 %v6324
        %v8809 = vpop.f32.mrb[0].mxu0
        %v8810 = vadd.f32 %v8669, %v8809
        %v8811 = vpop.f32.mrb[0].mxu0
        %v8812 = vpop.f32.mrb[0].mxu0
        %v8813 = vadd.f32 %v8669, %v8812
        %v8814 = vpop.f32.mrb[0].mxu0
        %8815 = vmatprep.mubr.bf16.mxu0 0
        %8816 = vmatmul.mubr.bf16.gmra.mrb[0].mxu0 %v6325
        %v8817 = vpop.f32.mrb[0].mxu0
        %v8818 = vadd.f32 %v8669, %v8817
        %v8819 = vpop.f32.mrb[0].mxu0
        %v8820 = vpop.f32.mrb[0].mxu0
        %v8821 = vadd.f32 %v8669, %v8820
        %v8822 = vpop.f32.mrb[0].mxu0
        %8823 = vmatprep.mubr.bf16.mxu0 0
        %8824 = vmatmul.mubr.bf16.gmra.mrb[0].mxu0 %v6326
        %v8825 = vpop.f32.mrb[0].mxu0
        %v8826 = vadd.f32 %v8669, %v8825
        %v8827 = vpop.f32.mrb[0].mxu0
        %v8828 = vpop.f32.mrb[0].mxu0
        %v8829 = vadd.f32 %v8669, %v8828
        %v8830 = vpop.f32.mrb[0].mxu0
        %8831 = vmatprep.mubr.bf16.mxu0 0
        %8832 = vmatmul.mubr.bf16.gmra.mrb[0].mxu0 %v6327
        %v8833 = vpop.f32.mrb[0].mxu0
        %v8834 = vadd.f32 %v8669, %v8833
        %v8835 = vpop.f32.mrb[0].mxu0
        %v8836 = vpop.f32.mrb[0].mxu0
        %v8837 = vadd.f32 %v8669, %v8836
        %v8838 = vpop.f32.mrb[0].mxu0
        %8839 = vmatprep.mubr.bf16.mxu0 0
        %8840 = vmatmul.mubr.bf16.gmra.mrb[0].mxu0 %v6328
        %v8841 = vpop.f32.mrb[0].mxu0
        %v8842 = vadd.f32 %v8669, %v8841
        %v8843 = vpop.f32.mrb[0].mxu0
        %v8844 = vpop.f32.mrb[0].mxu0
        %v8845 = vadd.f32 %v8669, %v8844
        %v8846 = vpop.f32.mrb[0].mxu0
        %8847 = vmatprep.mubr.bf16.mxu0 0
        %8848 = vmatmul.mubr.bf16.gmra.mrb[0].mxu0 %v6329
        %v8849 = vpop.f32.mrb[0].mxu0
        %v8850 = vadd.f32 %v8669, %v8849
        %v8851 = vpop.f32.mrb[0].mxu0
        %v8852 = vpop.f32.mrb[0].mxu0
        %v8853 = vadd.f32 %v8669, %v8852
        %v8854 = vpop.f32.mrb[0].mxu0
        %8855 = vmatprep.mubr.bf16.mxu0 0
        %8856 = vmatmul.mubr.bf16.gmra.mrb[0].mxu0 %v6330
        %v8857 = vpop.f32.mrb[0].mxu0
        %v8858 = vadd.f32 %v8669, %v8857
        %v8859 = vpop.f32.mrb[0].mxu0
        %v8860 = vpop.f32.mrb[0].mxu0
        %v8861 = vadd.f32 %v8669, %v8860
        %v8862 = vpop.f32.mrb[0].mxu0
        %8863 = vmatprep.mubr.bf16.mxu0 0
        %8864 = vmatmul.mubr.bf16.gmra.mrb[0].mxu0 %v6331
        %v8865 = vpop.f32.mrb[0].mxu0
        %v8866 = vadd.f32 %v8669, %v8865
        %v8867 = vpop.f32.mrb[0].mxu0
        %v8868 = vpop.f32.mrb[0].mxu0
        %v8869 = vadd.f32 %v8669, %v8868
        %v8870 = vpop.f32.mrb[0].mxu0
        %8871 = vmatprep.mubr.bf16.mxu0 0
        %8872 = vmatmul.mubr.bf16.gmra.mrb[0].mxu0 %v6332
        %v8873 = vpop.f32.mrb[0].mxu0
        %v8874 = vadd.f32 %v8669, %v8873
        %v8875 = vpop.f32.mrb[0].mxu0
        %v8876 = vpop.f32.mrb[0].mxu0
        %v8877 = vadd.f32 %v8669, %v8876
        %v8878 = vpop.f32.mrb[0].mxu0
        %8879 = vdwg.mxu0
        %v8880 = vmul.f32 %v8754, 0.5
        %v8881 = vmul.f32 %v8757, 0.5
        %v8882 = vmul.f32 %v8762, 0.5
        %v8883 = vmul.f32 %v8765, 0.5
        %v8884 = vmul.f32 %v8770, 0.5
        %v8885 = vmul.f32 %v8773, 0.5
        %v8886 = vmul.f32 %v8778, 0.5
        %v8887 = vmul.f32 %v8781, 0.5
        %v8888 = vmul.f32 %v8786, 0.5
        %v8889 = vmul.f32 %v8789, 0.5
        %v8890 = vmul.f32 %v8794, 0.5
        %v8891 = vmul.f32 %v8797, 0.5
        %v8892 = vmul.f32 %v8802, 0.5
        %v8893 = vmul.f32 %v8805, 0.5
        %v8894 = vmul.f32 %v8810, 0.5
        %v8895 = vmul.f32 %v8813, 0.5
        %v8896 = vmul.f32 %v8818, 0.5
        %v8897 = vmul.f32 %v8821, 0.5
        %v8898 = vmul.f32 %v8826, 0.5
        %v8899 = vmul.f32 %v8829, 0.5
        %v8900 = vmul.f32 %v8834, 0.5
        %v8901 = vmul.f32 %v8837, 0.5
        %v8902 = vmul.f32 %v8842, 0.5
        %v8903 = vmul.f32 %v8845, 0.5
        %v8904 = vmul.f32 %v8850, 0.5
        %v8905 = vmul.f32 %v8853, 0.5
        %v8906 = vmul.f32 %v8858, 0.5
        %v8907 = vmul.f32 %v8861, 0.5
        %v8908 = vmul.f32 %v8866, 0.5
        %v8909 = vmul.f32 %v8869, 0.5
        %v8910 = vmul.f32 %v8874, 0.5
        %v8911 = vmul.f32 %v8877, 0.5
        %v8912 = vmul.f32 %v8754, 0.044715
        %v8913 = vmul.f32 %v8757, 0.044715
        %v8914 = vmul.f32 %v8762, 0.044715
        %v8915 = vmul.f32 %v8765, 0.044715
        %v8916 = vmul.f32 %v8770, 0.044715
        %v8917 = vmul.f32 %v8773, 0.044715
        %v8918 = vmul.f32 %v8778, 0.044715
        %v8919 = vmul.f32 %v8781, 0.044715
        %v8920 = vmul.f32 %v8786, 0.044715
        %v8921 = vmul.f32 %v8789, 0.044715
        %v8922 = vmul.f32 %v8794, 0.044715
        %v8923 = vmul.f32 %v8797, 0.044715
        %v8924 = vmul.f32 %v8802, 0.044715
        %v8925 = vmul.f32 %v8805, 0.044715
        %v8926 = vmul.f32 %v8810, 0.044715
        %v8927 = vmul.f32 %v8813, 0.044715
        %v8928 = vmul.f32 %v8818, 0.044715
        %v8929 = vmul.f32 %v8821, 0.044715
        %v8930 = vmul.f32 %v8826, 0.044715
        %v8931 = vmul.f32 %v8829, 0.044715
        %v8932 = vmul.f32 %v8834, 0.044715
        %v8933 = vmul.f32 %v8837, 0.044715
        %v8934 = vmul.f32 %v8842, 0.044715
        %v8935 = vmul.f32 %v8845, 0.044715
        %v8936 = vmul.f32 %v8850, 0.044715
        %v8937 = vmul.f32 %v8853, 0.044715
        %v8938 = vmul.f32 %v8858, 0.044715
        %v8939 = vmul.f32 %v8861, 0.044715
        %v8940 = vmul.f32 %v8866, 0.044715
        %v8941 = vmul.f32 %v8869, 0.044715
        %v8942 = vmul.f32 %v8874, 0.044715
        %v8943 = vmul.f32 %v8877, 0.044715
        %v8944 = vmul.f32 %v8912, %v8754
        %v8945 = vmul.f32 %v8913, %v8757
        %v8946 = vmul.f32 %v8914, %v8762
        %v8947 = vmul.f32 %v8915, %v8765
        %v8948 = vmul.f32 %v8916, %v8770
        %v8949 = vmul.f32 %v8917, %v8773
        %v8950 = vmul.f32 %v8918, %v8778
        %v8951 = vmul.f32 %v8919, %v8781
        %v8952 = vmul.f32 %v8920, %v8786
        %v8953 = vmul.f32 %v8921, %v8789
        %v8954 = vmul.f32 %v8922, %v8794
        %v8955 = vmul.f32 %v8923, %v8797
        %v8956 = vmul.f32 %v8924, %v8802
        %v8957 = vmul.f32 %v8925, %v8805
        %v8958 = vmul.f32 %v8926, %v8810
        %v8959 = vmul.f32 %v8927, %v8813
        %v8960 = vmul.f32 %v8928, %v8818
        %v8961 = vmul.f32 %v8929, %v8821
        %v8962 = vmul.f32 %v8930, %v8826
        %v8963 = vmul.f32 %v8931, %v8829
        %v8964 = vmul.f32 %v8932, %v8834
        %v8965 = vmul.f32 %v8933, %v8837
        %v8966 = vmul.f32 %v8934, %v8842
        %v8967 = vmul.f32 %v8935, %v8845
        %v8968 = vmul.f32 %v8936, %v8850
        %v8969 = vmul.f32 %v8937, %v8853
        %v8970 = vmul.f32 %v8938, %v8858
        %v8971 = vmul.f32 %v8939, %v8861
        %v8972 = vmul.f32 %v8940, %v8866
        %v8973 = vmul.f32 %v8941, %v8869
        %v8974 = vmul.f32 %v8942, %v8874
        %v8975 = vmul.f32 %v8943, %v8877
        %v8976 = vmul.f32 %v8944, %v8754
        %v8977 = vmul.f32 %v8945, %v8757
        %v8978 = vmul.f32 %v8946, %v8762
        %v8979 = vmul.f32 %v8947, %v8765
        %v8980 = vmul.f32 %v8948, %v8770
        %v8981 = vmul.f32 %v8949, %v8773
        %v8982 = vmul.f32 %v8950, %v8778
        %v8983 = vmul.f32 %v8951, %v8781
        %v8984 = vmul.f32 %v8952, %v8786
        %v8985 = vmul.f32 %v8953, %v8789
        %v8986 = vmul.f32 %v8954, %v8794
        %v8987 = vmul.f32 %v8955, %v8797
        %v8988 = vmul.f32 %v8956, %v8802
        %v8989 = vmul.f32 %v8957, %v8805
        %v8990 = vmul.f32 %v8958, %v8810
        %v8991 = vmul.f32 %v8959, %v8813
        %v8992 = vmul.f32 %v8960, %v8818
        %v8993 = vmul.f32 %v8961, %v8821
        %v8994 = vmul.f32 %v8962, %v8826
        %v8995 = vmul.f32 %v8963, %v8829
        %v8996 = vmul.f32 %v8964, %v8834
        %v8997 = vmul.f32 %v8965, %v8837
        %v8998 = vmul.f32 %v8966, %v8842
        %v8999 = vmul.f32 %v8967, %v8845
        %v9000 = vmul.f32 %v8968, %v8850
        %v9001 = vmul.f32 %v8969, %v8853
        %v9002 = vmul.f32 %v8970, %v8858
        %v9003 = vmul.f32 %v8971, %v8861
        %v9004 = vmul.f32 %v8972, %v8866
        %v9005 = vmul.f32 %v8973, %v8869
        %v9006 = vmul.f32 %v8974, %v8874
        %v9007 = vmul.f32 %v8975, %v8877
        %v9008 = vadd.f32 %v8754, %v8976
        %v9009 = vadd.f32 %v8757, %v8977
        %v9010 = vadd.f32 %v8762, %v8978
        %v9011 = vadd.f32 %v8765, %v8979
        %v9012 = vadd.f32 %v8770, %v8980
        %v9013 = vadd.f32 %v8773, %v8981
        %v9014 = vadd.f32 %v8778, %v8982
        %v9015 = vadd.f32 %v8781, %v8983
        %v9016 = vadd.f32 %v8786, %v8984
        %v9017 = vadd.f32 %v8789, %v8985
        %v9018 = vadd.f32 %v8794, %v8986
        %v9019 = vadd.f32 %v8797, %v8987
        %v9020 = vadd.f32 %v8802, %v8988
        %v9021 = vadd.f32 %v8805, %v8989
        %v9022 = vadd.f32 %v8810, %v8990
        %v9023 = vadd.f32 %v8813, %v8991
        %v9024 = vadd.f32 %v8818, %v8992
        %v9025 = vadd.f32 %v8821, %v8993
        %v9026 = vadd.f32 %v8826, %v8994
        %v9027 = vadd.f32 %v8829, %v8995
        %v9028 = vadd.f32 %v8834, %v8996
        %v9029 = vadd.f32 %v8837, %v8997
        %v9030 = vadd.f32 %v8842, %v8998
        %v9031 = vadd.f32 %v8845, %v8999
        %v9032 = vadd.f32 %v8850, %v9000
        %v9033 = vadd.f32 %v8853, %v9001
        %v9034 = vadd.f32 %v8858, %v9002
        %v9035 = vadd.f32 %v8861, %v9003
        %v9036 = vadd.f32 %v8866, %v9004
        %v9037 = vadd.f32 %v8869, %v9005
        %v9038 = vadd.f32 %v8874, %v9006
        %v9039 = vadd.f32 %v8877, %v9007
        %v9040 = vmul.f32 %v9008, 0.7978846
        %v9041 = vmul.f32 %v9009, 0.7978846
        %v9042 = vmul.f32 %v9010, 0.7978846
        %v9043 = vmul.f32 %v9011, 0.7978846
        %v9044 = vmul.f32 %v9012, 0.7978846
        %v9045 = vmul.f32 %v9013, 0.7978846
        %v9046 = vmul.f32 %v9014, 0.7978846
        %v9047 = vmul.f32 %v9015, 0.7978846
        %v9048 = vmul.f32 %v9016, 0.7978846
        %v9049 = vmul.f32 %v9017, 0.7978846
        %v9050 = vmul.f32 %v9018, 0.7978846
        %v9051 = vmul.f32 %v9019, 0.7978846
        %v9052 = vmul.f32 %v9020, 0.7978846
        %v9053 = vmul.f32 %v9021, 0.7978846
        %v9054 = vmul.f32 %v9022, 0.7978846
        %v9055 = vmul.f32 %v9023, 0.7978846
        %v9056 = vmul.f32 %v9024, 0.7978846
        %v9057 = vmul.f32 %v9025, 0.7978846
        %v9058 = vmul.f32 %v9026, 0.7978846
        %v9059 = vmul.f32 %v9027, 0.7978846
        %v9060 = vmul.f32 %v9028, 0.7978846
        %v9061 = vmul.f32 %v9029, 0.7978846
        %v9062 = vmul.f32 %v9030, 0.7978846
        %v9063 = vmul.f32 %v9031, 0.7978846
        %v9064 = vmul.f32 %v9032, 0.7978846
        %v9065 = vmul.f32 %v9033, 0.7978846
        %v9066 = vmul.f32 %v9034, 0.7978846
        %v9067 = vmul.f32 %v9035, 0.7978846
        %v9068 = vmul.f32 %v9036, 0.7978846
        %v9069 = vmul.f32 %v9037, 0.7978846
        %v9070 = vmul.f32 %v9038, 0.7978846
        %v9071 = vmul.f32 %v9039, 0.7978846
        %v9072 = vtanh.pop %v9040
        %v9073 = vtanh.pop %v9041
        %v9074 = vtanh.pop %v9042
        %v9075 = vtanh.pop %v9043
        %v9076 = vtanh.pop %v9044
        %v9077 = vtanh.pop %v9045
        %v9078 = vtanh.pop %v9046
        %v9079 = vtanh.pop %v9047
        %v9080 = vtanh.pop %v9048
        %v9081 = vtanh.pop %v9049
        %v9082 = vtanh.pop %v9050
        %v9083 = vtanh.pop %v9051
        %v9084 = vtanh.pop %v9052
        %v9085 = vtanh.pop %v9053
        %v9086 = vtanh.pop %v9054
        %v9087 = vtanh.pop %v9055
        %v9088 = vtanh.pop %v9056
        %v9089 = vtanh.pop %v9057
        %v9090 = vtanh.pop %v9058
        %v9091 = vtanh.pop %v9059
        %v9092 = vtanh.pop %v9060
        %v9093 = vtanh.pop %v9061
        %v9094 = vtanh.pop %v9062
        %v9095 = vtanh.pop %v9063
        %v9096 = vtanh.pop %v9064
        %v9097 = vtanh.pop %v9065
        %v9098 = vtanh.pop %v9066
        %v9099 = vtanh.pop %v9067
        %v9100 = vtanh.pop %v9068
        %v9101 = vtanh.pop %v9069
        %v9102 = vtanh.pop %v9070
        %v9103 = vtanh.pop %v9071
        %v9104 = vadd.f32 %v9072, 1.0
        %v9105 = vadd.f32 %v9073, 1.0
        %v9106 = vadd.f32 %v9074, 1.0
        %v9107 = vadd.f32 %v9075, 1.0
        %v9108 = vadd.f32 %v9076, 1.0
        %v9109 = vadd.f32 %v9077, 1.0
        %v9110 = vadd.f32 %v9078, 1.0
        %v9111 = vadd.f32 %v9079, 1.0
        %v9112 = vadd.f32 %v9080, 1.0
        %v9113 = vadd.f32 %v9081, 1.0
        %v9114 = vadd.f32 %v9082, 1.0
        %v9115 = vadd.f32 %v9083, 1.0
        %v9116 = vadd.f32 %v9084, 1.0
        %v9117 = vadd.f32 %v9085, 1.0
        %v9118 = vadd.f32 %v9086, 1.0
        %v9119 = vadd.f32 %v9087, 1.0
        %v9120 = vadd.f32 %v9088, 1.0
        %v9121 = vadd.f32 %v9089, 1.0
        %v9122 = vadd.f32 %v9090, 1.0
        %v9123 = vadd.f32 %v9091, 1.0
        %v9124 = vadd.f32 %v9092, 1.0
        %v9125 = vadd.f32 %v9093, 1.0
        %v9126 = vadd.f32 %v9094, 1.0
        %v9127 = vadd.f32 %v9095, 1.0
        %v9128 = vadd.f32 %v9096, 1.0
        %v9129 = vadd.f32 %v9097, 1.0
        %v9130 = vadd.f32 %v9098, 1.0
        %v9131 = vadd.f32 %v9099, 1.0
        %v9132 = vadd.f32 %v9100, 1.0
        %v9133 = vadd.f32 %v9101, 1.0
        %v9134 = vadd.f32 %v9102, 1.0
        %v9135 = vadd.f32 %v9103, 1.0
        %v9136 = vmul.f32 %v8880, %v9104
        %v9137 = vmul.f32 %v8881, %v9105
        %v9138 = vmul.f32 %v8882, %v9106
        %v9139 = vmul.f32 %v8883, %v9107
        %v9140 = vmul.f32 %v8884, %v9108
        %v9141 = vmul.f32 %v8885, %v9109
        %v9142 = vmul.f32 %v8886, %v9110
        %v9143 = vmul.f32 %v8887, %v9111
        %v9144 = vmul.f32 %v8888, %v9112
        %v9145 = vmul.f32 %v8889, %v9113
        %v9146 = vmul.f32 %v8890, %v9114
        %v9147 = vmul.f32 %v8891, %v9115
        %v9148 = vmul.f32 %v8892, %v9116
        %v9149 = vmul.f32 %v8893, %v9117
        %v9150 = vmul.f32 %v8894, %v9118
        %v9151 = vmul.f32 %v8895, %v9119
        %v9152 = vmul.f32 %v8896, %v9120
        %v9153 = vmul.f32 %v8897, %v9121
        %v9154 = vmul.f32 %v8898, %v9122
        %v9155 = vmul.f32 %v8899, %v9123
        %v9156 = vmul.f32 %v8900, %v9124
        %v9157 = vmul.f32 %v8901, %v9125
        %v9158 = vmul.f32 %v8902, %v9126
        %v9159 = vmul.f32 %v8903, %v9127
        %v9160 = vmul.f32 %v8904, %v9128
        %v9161 = vmul.f32 %v8905, %v9129
        %v9162 = vmul.f32 %v8906, %v9130
        %v9163 = vmul.f32 %v8907, %v9131
        %v9164 = vmul.f32 %v8908, %v9132
        %v9165 = vmul.f32 %v8909, %v9133
        %v9166 = vmul.f32 %v8910, %v9134
        %v9167 = vmul.f32 %v8911, %v9135
        %v9168 = vpack.c.bf16 %v9137, %v9136
        %v9169 = vpack.c.bf16 %v9139, %v9138
        %v9170 = vpack.c.bf16 %v9141, %v9140
        %v9171 = vpack.c.bf16 %v9143, %v9142
        %v9172 = vpack.c.bf16 %v9145, %v9144
        %v9173 = vpack.c.bf16 %v9147, %v9146
        %v9174 = vpack.c.bf16 %v9149, %v9148
        %v9175 = vpack.c.bf16 %v9151, %v9150
        %v9176 = vpack.c.bf16 %v9153, %v9152
        %v9177 = vpack.c.bf16 %v9155, %v9154
        %v9178 = vpack.c.bf16 %v9157, %v9156
        %v9179 = vpack.c.bf16 %v9159, %v9158
        %v9180 = vpack.c.bf16 %v9161, %v9160
        %v9181 = vpack.c.bf16 %v9163, %v9162
        %v9182 = vpack.c.bf16 %v9165, %v9164
        %v9183 = vpack.c.bf16 %v9167, %v9166
        %v9184 = vld [vmem:[%s11 + $0xc0] sm:$0xf]
        %v9185 = vld [vmem:[%s11 + $0xc4] sm:$0xf]
        %v9186 = vld [vmem:[%s11 + $0xc8] sm:$0xf]
        %v9187 = vld [vmem:[%s11 + $0xcc] sm:$0xf]
        %v9188 = vld [vmem:[%s11 + $0xd0] sm:$0xf]
        %v9189 = vld [vmem:[%s11 + $0xd4] sm:$0xf]
        %v9190 = vld [vmem:[%s11 + $0xd8] sm:$0xf]
        %v9191 = vld [vmem:[%s11 + $0xdc] sm:$0xf]
        %v9192 = vld [vmem:[%s11 + $0xe0] sm:$0xf]
        %v9193 = vld [vmem:[%s11 + $0xe4] sm:$0xf]
        %v9194 = vld [vmem:[%s11 + $0xe8] sm:$0xf]
        %v9195 = vld [vmem:[%s11 + $0xec] sm:$0xf]
        %v9196 = vld [vmem:[%s11 + $0xf0] sm:$0xf]
        %v9197 = vld [vmem:[%s11 + $0xf4] sm:$0xf]
        %v9198 = vld [vmem:[%s11 + $0xf8] sm:$0xf]
        %v9199 = vld [vmem:[%s11 + $0xfc] sm:$0xf]
        %v9216 = vunpack.c.l.b16 %v9184
        %v9217 = vunpack.c.l.b16 %v9185
        %v9218 = vunpack.c.l.b16 %v9186
        %v9219 = vunpack.c.l.b16 %v9187
        %v9220 = vunpack.c.l.b16 %v9188
        %v9221 = vunpack.c.l.b16 %v9189
        %v9222 = vunpack.c.l.b16 %v9190
        %v9223 = vunpack.c.l.b16 %v9191
        %v9224 = vunpack.c.l.b16 %v9192
        %v9225 = vunpack.c.l.b16 %v9193
        %v9226 = vunpack.c.l.b16 %v9194
        %v9227 = vunpack.c.l.b16 %v9195
        %v9228 = vunpack.c.l.b16 %v9196
        %v9229 = vunpack.c.l.b16 %v9197
        %v9230 = vunpack.c.l.b16 %v9198
        %v9231 = vunpack.c.l.b16 %v9199
        %v9232 = vpack.c.b16 %v9217, %v9216
        %v9233 = vpack.c.b16 %v9219, %v9218
        %v9234 = vpack.c.b16 %v9221, %v9220
        %v9235 = vpack.c.b16 %v9223, %v9222
        %v9236 = vpack.c.b16 %v9225, %v9224
        %v9237 = vpack.c.b16 %v9227, %v9226
        %v9238 = vpack.c.b16 %v9229, %v9228
        %v9239 = vpack.c.b16 %v9231, %v9230
        %9248 = vmatprep.subr.bf16.mxu0 0
        %9249 = vmatpush1.bf16.msra.mxu0 %v9232
        %9250 = vmatprep.subr.bf16.mxu0 0
        %9251 = vmatpush1.bf16.msra.mxu0 %v9233
        %9252 = vmatprep.subr.bf16.mxu0 0
        %9253 = vmatpush1.bf16.msra.mxu0 %v9234
        %9254 = vmatprep.subr.bf16.mxu0 0
        %9255 = vmatpush1.bf16.msra.mxu0 %v9235
        %9256 = vmatprep.subr.bf16.mxu0 0
        %9257 = vmatpush1.bf16.msra.mxu0 %v9236
        %9258 = vmatprep.subr.bf16.mxu0 0
        %9259 = vmatpush1.bf16.msra.mxu0 %v9237
        %9260 = vmatprep.subr.bf16.mxu0 0
        %9261 = vmatpush1.bf16.msra.mxu0 %v9238
        %9262 = vmatprep.subr.bf16.mxu0 0
        %9263 = vmatpush1.bf16.msra.mxu0 %v9239
        %9264 = vmatprep.subr.bf16.mxu0 0
        %9265 = vmatpush1.bf16.msra.mxu0 0
        %9266 = vmatprep.subr.bf16.mxu0 0
        %9267 = vmatpush1.bf16.msra.mxu0 0
        %9268 = vmatprep.subr.bf16.mxu0 0
        %9269 = vmatpush1.bf16.msra.mxu0 0
        %9270 = vmatprep.subr.bf16.mxu0 0
        %9271 = vmatpush1.bf16.msra.mxu0 0
        %9272 = vmatprep.subr.bf16.mxu0 0
        %9273 = vmatpush1.bf16.msra.mxu0 0
        %9274 = vmatprep.subr.bf16.mxu0 0
        %9275 = vmatpush1.bf16.msra.mxu0 0
        %9276 = vmatprep.subr.bf16.mxu0 0
        %9277 = vmatpush1.bf16.msra.mxu0 0
        %9278 = vmatprep.subr.bf16.mxu0 0
        %9279 = vmatpush1.bf16.msra.mxu0 0
        %9280 = vmatprep.mubr.bf16.mxu0 0
        %9281 = vmatmul.mubr.bf16.gmra.mrb[0].mxu0 %v9168
        %v9282 = vpop.f32.mrb[0].mxu0
        %v9283 = vadd.f32 0.0, %v9282
        %v9284 = vpop.f32.mrb[0].mxu0
        %v9285 = vpop.f32.mrb[0].mxu0
        %v9286 = vadd.f32 0.0, %v9285
        %v9287 = vpop.f32.mrb[0].mxu0
        %9288 = vmatprep.mubr.bf16.mxu0 0
        %9289 = vmatmul.mubr.bf16.gmra.mrb[0].mxu0 %v9169
        %v9290 = vpop.f32.mrb[0].mxu0
        %v9291 = vadd.f32 0.0, %v9290
        %v9292 = vpop.f32.mrb[0].mxu0
        %v9293 = vpop.f32.mrb[0].mxu0
        %v9294 = vadd.f32 0.0, %v9293
        %v9295 = vpop.f32.mrb[0].mxu0
        %9296 = vmatprep.mubr.bf16.mxu0 0
        %9297 = vmatmul.mubr.bf16.gmra.mrb[0].mxu0 %v9170
        %v9298 = vpop.f32.mrb[0].mxu0
        %v9299 = vadd.f32 0.0, %v9298
        %v9300 = vpop.f32.mrb[0].mxu0
        %v9301 = vpop.f32.mrb[0].mxu0
        %v9302 = vadd.f32 0.0, %v9301
        %v9303 = vpop.f32.mrb[0].mxu0
        %9304 = vmatprep.mubr.bf16.mxu0 0
        %9305 = vmatmul.mubr.bf16.gmra.mrb[0].mxu0 %v9171
        %v9306 = vpop.f32.mrb[0].mxu0
        %v9307 = vadd.f32 0.0, %v9306
        %v9308 = vpop.f32.mrb[0].mxu0
        %v9309 = vpop.f32.mrb[0].mxu0
        %v9310 = vadd.f32 0.0, %v9309
        %v9311 = vpop.f32.mrb[0].mxu0
        %9312 = vmatprep.mubr.bf16.mxu0 0
        %9313 = vmatmul.mubr.bf16.gmra.mrb[0].mxu0 %v9172
        %v9314 = vpop.f32.mrb[0].mxu0
        %v9315 = vadd.f32 0.0, %v9314
        %v9316 = vpop.f32.mrb[0].mxu0
        %v9317 = vpop.f32.mrb[0].mxu0
        %v9318 = vadd.f32 0.0, %v9317
        %v9319 = vpop.f32.mrb[0].mxu0
        %9320 = vmatprep.mubr.bf16.mxu0 0
        %9321 = vmatmul.mubr.bf16.gmra.mrb[0].mxu0 %v9173
        %v9322 = vpop.f32.mrb[0].mxu0
        %v9323 = vadd.f32 0.0, %v9322
        %v9324 = vpop.f32.mrb[0].mxu0
        %v9325 = vpop.f32.mrb[0].mxu0
        %v9326 = vadd.f32 0.0, %v9325
        %v9327 = vpop.f32.mrb[0].mxu0
        %9328 = vmatprep.mubr.bf16.mxu0 0
        %9329 = vmatmul.mubr.bf16.gmra.mrb[0].mxu0 %v9174
        %v9330 = vpop.f32.mrb[0].mxu0
        %v9331 = vadd.f32 0.0, %v9330
        %v9332 = vpop.f32.mrb[0].mxu0
        %v9333 = vpop.f32.mrb[0].mxu0
        %v9334 = vadd.f32 0.0, %v9333
        %v9335 = vpop.f32.mrb[0].mxu0
        %9336 = vmatprep.mubr.bf16.mxu0 0
        %9337 = vmatmul.mubr.bf16.gmra.mrb[0].mxu0 %v9175
        %v9338 = vpop.f32.mrb[0].mxu0
        %v9339 = vadd.f32 0.0, %v9338
        %v9340 = vpop.f32.mrb[0].mxu0
        %v9341 = vpop.f32.mrb[0].mxu0
        %v9342 = vadd.f32 0.0, %v9341
        %v9343 = vpop.f32.mrb[0].mxu0
        %9344 = vmatprep.mubr.bf16.mxu0 0
        %9345 = vmatmul.mubr.bf16.gmra.mrb[0].mxu0 %v9176
        %v9346 = vpop.f32.mrb[0].mxu0
        %v9347 = vadd.f32 0.0, %v9346
        %v9348 = vpop.f32.mrb[0].mxu0
        %v9349 = vpop.f32.mrb[0].mxu0
        %v9350 = vadd.f32 0.0, %v9349
        %v9351 = vpop.f32.mrb[0].mxu0
        %9352 = vmatprep.mubr.bf16.mxu0 0
        %9353 = vmatmul.mubr.bf16.gmra.mrb[0].mxu0 %v9177
        %v9354 = vpop.f32.mrb[0].mxu0
        %v9355 = vadd.f32 0.0, %v9354
        %v9356 = vpop.f32.mrb[0].mxu0
        %v9357 = vpop.f32.mrb[0].mxu0
        %v9358 = vadd.f32 0.0, %v9357
        %v9359 = vpop.f32.mrb[0].mxu0
        %9360 = vmatprep.mubr.bf16.mxu0 0
        %9361 = vmatmul.mubr.bf16.gmra.mrb[0].mxu0 %v9178
        %v9362 = vpop.f32.mrb[0].mxu0
        %v9363 = vadd.f32 0.0, %v9362
        %v9364 = vpop.f32.mrb[0].mxu0
        %v9365 = vpop.f32.mrb[0].mxu0
        %v9366 = vadd.f32 0.0, %v9365
        %v9367 = vpop.f32.mrb[0].mxu0
        %9368 = vmatprep.mubr.bf16.mxu0 0
        %9369 = vmatmul.mubr.bf16.gmra.mrb[0].mxu0 %v9179
        %v9370 = vpop.f32.mrb[0].mxu0
        %v9371 = vadd.f32 0.0, %v9370
        %v9372 = vpop.f32.mrb[0].mxu0
        %v9373 = vpop.f32.mrb[0].mxu0
        %v9374 = vadd.f32 0.0, %v9373
        %v9375 = vpop.f32.mrb[0].mxu0
        %9376 = vmatprep.mubr.bf16.mxu0 0
        %9377 = vmatmul.mubr.bf16.gmra.mrb[0].mxu0 %v9180
        %v9378 = vpop.f32.mrb[0].mxu0
        %v9379 = vadd.f32 0.0, %v9378
        %v9380 = vpop.f32.mrb[0].mxu0
        %v9381 = vpop.f32.mrb[0].mxu0
        %v9382 = vadd.f32 0.0, %v9381
        %v9383 = vpop.f32.mrb[0].mxu0
        %9384 = vmatprep.mubr.bf16.mxu0 0
        %9385 = vmatmul.mubr.bf16.gmra.mrb[0].mxu0 %v9181
        %v9386 = vpop.f32.mrb[0].mxu0
        %v9387 = vadd.f32 0.0, %v9386
        %v9388 = vpop.f32.mrb[0].mxu0
        %v9389 = vpop.f32.mrb[0].mxu0
        %v9390 = vadd.f32 0.0, %v9389
        %v9391 = vpop.f32.mrb[0].mxu0
        %9392 = vmatprep.mubr.bf16.mxu0 0
        %9393 = vmatmul.mubr.bf16.gmra.mrb[0].mxu0 %v9182
        %v9394 = vpop.f32.mrb[0].mxu0
        %v9395 = vadd.f32 0.0, %v9394
        %v9396 = vpop.f32.mrb[0].mxu0
        %v9397 = vpop.f32.mrb[0].mxu0
        %v9398 = vadd.f32 0.0, %v9397
        %v9399 = vpop.f32.mrb[0].mxu0
        %9400 = vmatprep.mubr.bf16.mxu0 0
        %9401 = vmatmul.mubr.bf16.gmra.mrb[0].mxu0 %v9183
        %v9402 = vpop.f32.mrb[0].mxu0
        %v9403 = vadd.f32 0.0, %v9402
        %v9404 = vpop.f32.mrb[0].mxu0
        %v9405 = vpop.f32.mrb[0].mxu0
        %v9406 = vadd.f32 0.0, %v9405
        %v9407 = vpop.f32.mrb[0].mxu0
        %9408 = vdwg.mxu0
        %v9409 = vadd.f32 %v8616, %v9283
        %v9410 = vadd.f32 %v8617, %v9286
        %v9411 = vadd.f32 %v8618, %v9291
        %v9412 = vadd.f32 %v8619, %v9294
        %v9413 = vadd.f32 %v8620, %v9299
        %v9414 = vadd.f32 %v8621, %v9302
        %v9415 = vadd.f32 %v8622, %v9307
        %v9416 = vadd.f32 %v8623, %v9310
        %v9417 = vadd.f32 %v8624, %v9315
        %v9418 = vadd.f32 %v8625, %v9318
        %v9419 = vadd.f32 %v8626, %v9323
        %v9420 = vadd.f32 %v8627, %v9326
        %v9421 = vadd.f32 %v8628, %v9331
        %v9422 = vadd.f32 %v8629, %v9334
        %v9423 = vadd.f32 %v8630, %v9339
        %v9424 = vadd.f32 %v8631, %v9342
        %v9425 = vadd.f32 %v8632, %v9347
        %v9426 = vadd.f32 %v8633, %v9350
        %v9427 = vadd.f32 %v8634, %v9355
        %v9428 = vadd.f32 %v8635, %v9358
        %v9429 = vadd.f32 %v8636, %v9363
        %v9430 = vadd.f32 %v8637, %v9366
        %v9431 = vadd.f32 %v8638, %v9371
        %v9432 = vadd.f32 %v8639, %v9374
        %v9433 = vadd.f32 %v8640, %v9379
        %v9434 = vadd.f32 %v8641, %v9382
        %v9435 = vadd.f32 %v8642, %v9387
        %v9436 = vadd.f32 %v8643, %v9390
        %v9437 = vadd.f32 %v8644, %v9395
        %v9438 = vadd.f32 %v8645, %v9398
        %v9439 = vadd.f32 %v8646, %v9403
        %v9440 = vadd.f32 %v8647, %v9406
        %v9441 = vadd.f32 %v5855, %v9409
        %v9442 = vadd.f32 %v5856, %v9410
        %v9443 = vadd.f32 %v5857, %v9411
        %v9444 = vadd.f32 %v5858, %v9412
        %v9445 = vadd.f32 %v5859, %v9413
        %v9446 = vadd.f32 %v5860, %v9414
        %v9447 = vadd.f32 %v5861, %v9415
        %v9448 = vadd.f32 %v5862, %v9416
        %v9449 = vadd.f32 %v5863, %v9417
        %v9450 = vadd.f32 %v5864, %v9418
        %v9451 = vadd.f32 %v5865, %v9419
        %v9452 = vadd.f32 %v5866, %v9420
        %v9453 = vadd.f32 %v5867, %v9421
        %v9454 = vadd.f32 %v5868, %v9422
        %v9455 = vadd.f32 %v5869, %v9423
        %v9456 = vadd.f32 %v5870, %v9424
        %v9457 = vadd.f32 %v5871, %v9425
        %v9458 = vadd.f32 %v5872, %v9426
        %v9459 = vadd.f32 %v5873, %v9427
        %v9460 = vadd.f32 %v5874, %v9428
        %v9461 = vadd.f32 %v5875, %v9429
        %v9462 = vadd.f32 %v5876, %v9430
        %v9463 = vadd.f32 %v5877, %v9431
        %v9464 = vadd.f32 %v5878, %v9432
        %v9465 = vadd.f32 %v5879, %v9433
        %v9466 = vadd.f32 %v5880, %v9434
        %v9467 = vadd.f32 %v5881, %v9435
        %v9468 = vadd.f32 %v5882, %v9436
        %v9469 = vadd.f32 %v5883, %v9437
        %v9470 = vadd.f32 %v5884, %v9438
        %v9471 = vadd.f32 %v5885, %v9439
        %v9472 = vadd.f32 %v5886, %v9440
        %v9473 = vld [vmem:[%s12] sm:$0x1]
        %v9475 = vlaneseq
        %v9476 = vshrl.u32 %v9475, 7
        %v9477 = vsub.s32 0, %v9476
        %v9478 = vrot.slane %v9473, %v9477
        %v9480 = vadd.f32 %v9441, %v9478
        %v9481 = vadd.f32 %v9442, %v9478
        %v9482 = vadd.f32 %v9443, %v9478
        %v9483 = vadd.f32 %v9444, %v9478
        %v9484 = vadd.f32 %v9445, %v9478
        %v9485 = vadd.f32 %v9446, %v9478
        %v9486 = vadd.f32 %v9447, %v9478
        %v9487 = vadd.f32 %v9448, %v9478
        %v9488 = vadd.f32 %v9449, %v9478
        %v9489 = vadd.f32 %v9450, %v9478
        %v9490 = vadd.f32 %v9451, %v9478
        %v9491 = vadd.f32 %v9452, %v9478
        %v9492 = vadd.f32 %v9453, %v9478
        %v9493 = vadd.f32 %v9454, %v9478
        %v9494 = vadd.f32 %v9455, %v9478
        %v9495 = vadd.f32 %v9456, %v9478
        %v9496 = vadd.f32 %v9457, %v9478
        %v9497 = vadd.f32 %v9458, %v9478
        %v9498 = vadd.f32 %v9459, %v9478
        %v9499 = vadd.f32 %v9460, %v9478
        %v9500 = vadd.f32 %v9461, %v9478
        %v9501 = vadd.f32 %v9462, %v9478
        %v9502 = vadd.f32 %v9463, %v9478
        %v9503 = vadd.f32 %v9464, %v9478
        %v9504 = vadd.f32 %v9465, %v9478
        %v9505 = vadd.f32 %v9466, %v9478
        %v9506 = vadd.f32 %v9467, %v9478
        %v9507 = vadd.f32 %v9468, %v9478
        %v9508 = vadd.f32 %v9469, %v9478
        %v9509 = vadd.f32 %v9470, %v9478
        %v9510 = vadd.f32 %v9471, %v9478
        %v9511 = vadd.f32 %v9472, %v9478
        %9512 = vst [vmem:[%s459] sm:$0xff] %v9480
        %9513 = vst [vmem:[%s459 + $0x8] sm:$0xff] %v9481
        %9514 = vst [vmem:[%s459 + $0x10] sm:$0xff] %v9482
        %9515 = vst [vmem:[%s459 + $0x18] sm:$0xff] %v9483
        %9516 = vst [vmem:[%s459 + $0x20] sm:$0xff] %v9484
        %9517 = vst [vmem:[%s459 + $0x28] sm:$0xff] %v9485
        %9518 = vst [vmem:[%s459 + $0x30] sm:$0xff] %v9486
        %9519 = vst [vmem:[%s459 + $0x38] sm:$0xff] %v9487
        %9520 = vst [vmem:[%s459 + $0x40] sm:$0xff] %v9488
        %9521 = vst [vmem:[%s459 + $0x48] sm:$0xff] %v9489
        %9522 = vst [vmem:[%s459 + $0x50] sm:$0xff] %v9490
        %9523 = vst [vmem:[%s459 + $0x58] sm:$0xff] %v9491
        %9524 = vst [vmem:[%s459 + $0x60] sm:$0xff] %v9492
        %9525 = vst [vmem:[%s459 + $0x68] sm:$0xff] %v9493
        %9526 = vst [vmem:[%s459 + $0x70] sm:$0xff] %v9494
        %9527 = vst [vmem:[%s459 + $0x78] sm:$0xff] %v9495
        %9528 = vst [vmem:[%s459 + $0x80] sm:$0xff] %v9496
        %9529 = vst [vmem:[%s459 + $0x88] sm:$0xff] %v9497
        %9530 = vst [vmem:[%s459 + $0x90] sm:$0xff] %v9498
        %9531 = vst [vmem:[%s459 + $0x98] sm:$0xff] %v9499
        %9532 = vst [vmem:[%s459 + $0xa0] sm:$0xff] %v9500
        %9533 = vst [vmem:[%s459 + $0xa8] sm:$0xff] %v9501
        %9534 = vst [vmem:[%s459 + $0xb0] sm:$0xff] %v9502
        %9535 = vst [vmem:[%s459 + $0xb8] sm:$0xff] %v9503
        %9536 = vst [vmem:[%s459 + $0xc0] sm:$0xff] %v9504
        %9537 = vst [vmem:[%s459 + $0xc8] sm:$0xff] %v9505
        %9538 = vst [vmem:[%s459 + $0xd0] sm:$0xff] %v9506
        %9539 = vst [vmem:[%s459 + $0xd8] sm:$0xff] %v9507
        %9540 = vst [vmem:[%s459 + $0xe0] sm:$0xff] %v9508
        %9541 = vst [vmem:[%s459 + $0xe8] sm:$0xff] %v9509
        %9542 = vst [vmem:[%s459 + $0xf0] sm:$0xff] %v9510
        %9543 = vst [vmem:[%s459 + $0xf8] sm:$0xff] %v9511
        %s9544 = sand.u32 %s316, 1
        %s9545 = scalar_lea.sflag [#allocation4], %s9544
        %s9546 = sand.u32 %s316, 1
        %s9547 = smul.addr %s9546, 256
        %s9548 = scalar_lea.vmem [#allocation5], %s9547
        // Predicated region
        $region77: #{gpt2_block.1} parent=71 // pred_check
          %p9549 = pneg %p326
        $region78: #{gpt2_block.1} parent=71 // pred_check_branch
          %9551 = sbr.rel (%p9549) target = $region80
        $region79: #{gpt2_block.1} parent=71 // pred_region
          %s9552 = smul.u32 2, %s30
          %s9554 = ssub.s32 4096, 4096
          %9555 = vsyncadd %s9545, %s9554
          %s9556 = smul.addr %s9552, 16
          %s9557 = smul.addr %s9556, 128
          %s9558 = scalar_lea.hbm %s13, %s9557
          %s9559 = sshll.u32 %s9548, 4
          %s9560 = int_to_ptr.vmem [resolvable:$true] %s9559
          %9565 = dma.vmem_to_hbm [thread:$0]  %s9560, 4096, %s9558, %s9545, 128, 128, 8
        $region80: #{gpt2_block.1} parent=71 // pred_fallthru
          _
      $region72: #{gpt2_block.1} parent=5 // pred_fallthru
        _
      %p9566 = scmp.le.s32.totalorder 2, %s25
      // Predicated region
      $region81: #{gpt2_block.1} parent=5 // pred_check
        %p9567 = pneg %p9566
      $region82: #{gpt2_block.1} parent=5 // pred_check_branch
        %9569 = sbr.rel (%p9567) target = $region84
      $region83: #{gpt2_block.1} parent=5 // pred_region
        %s9570 = ssub.s32 %s25, 2
        // Predicated region
        $region85: #{gpt2_block.1} parent=83 // pred_check
          %p9571 = pneg %p332
        $region86: #{gpt2_block.1} parent=83 // pred_check_branch
          %9573 = sbr.rel (%p9571) target = $region88
        $region87: #{gpt2_block.1} parent=83 // pred_region
          %s9574 = sand.u32 %s317, 1
          %s9575 = scalar_lea.sflag [#allocation4], %s9574
          %s9576 = sand.u32 %s317, 1
          %s9577 = smul.addr %s9576, 256
          %s9578 = scalar_lea.vmem [#allocation5], %s9577
          %9579 = dma.done %s9575, 4096
        $region88: #{gpt2_block.1} parent=83 // pred_fallthru
          _
      $region84: #{gpt2_block.1} parent=5 // pred_fallthru
        _
    $region6: #{gpt2_block.1} parent=1 // loop_footer
      %s29 = sadd.s32 1, %s25
    $region7: #{gpt2_block.1} parent=1 // loop_footer_branch
      %24 = sbr.rel target = $region3
    $region8: #{gpt2_block.1} parent=1 // loop_exit
      _
    %9580 = vsyncpa [#allocation3], 1
    %s9581 = scalar_lea.sflag [#allocation3], 1
    %9582 = vsyncpa %s9581, 1
    %9583 = vsyncpa [#allocation4], 1
    %s9584 = scalar_lea.sflag [#allocation4], 1
    %9585 = vsyncpa %s9584, 1

</llo_original>
